<compile_context>
chip_gen: v6e
topology: v6e:2x2x1
jax: 0.10.0
libtpu: 0.0.40
codegen_flags: <defaults>
</compile_context>

<pallas_src>
import jax
import jax.numpy as jnp
from jax import lax
from jax.experimental import pallas as pl
from jax.experimental.pallas import tpu as pltpu


def _round_up(a, b):
    return ((a + b - 1) // b) * b


_VMEM_LIMIT = None


def _vmem_limit_bytes():
    """VMEM limit with headroom (v7x only has 64 MiB per TensorCore)."""
    global _VMEM_LIMIT
    if _VMEM_LIMIT is None:
        try:
            cap = int(pltpu.get_tpu_info().vmem_capacity_bytes)
        except Exception:
            cap = 64 * 1024 * 1024
        _VMEM_LIMIT = int(min(max(cap - 16 * 1024 * 1024, 32 * 1024 * 1024),
                              96 * 1024 * 1024))
    return _VMEM_LIMIT


# ----------------------------------------------------------------------------
# Kernel 1: fused (BN-affine + ReLU prologue, f32) -> bf16 MXU matmul ->
#           (bias + ReLU epilogue).  Used for the dense-layer 1x1 bottleneck.
# ----------------------------------------------------------------------------
def _make_matmul_kernel(prologue, has_out_bias, out_relu):
    def kernel(*refs):
        i = 0
        x_ref = refs[i]; i += 1
        if prologue:
            s_ref, b_ref = refs[i], refs[i + 1]; i += 2
        w_ref = refs[i]; i += 1
        if has_out_bias:
            ob_ref = refs[i]; i += 1
        o_ref = refs[i]

        x = x_ref[...]
        if prologue:
            x = jnp.maximum(x.astype(jnp.float32) * s_ref[...] + b_ref[...], 0.0)
        acc = jnp.dot(x.astype(jnp.bfloat16), w_ref[...],
                      preferred_element_type=jnp.float32)
        if has_out_bias:
            acc = acc + ob_ref[...]
        if out_relu:
            acc = jnp.maximum(acc, 0.0)
        o_ref[...] = acc.astype(o_ref.dtype)

    return kernel


def _pick_tm(m, k, n, x_bytes, out_bytes, budget=8 * 1024 * 1024):
    per_row = (2 * x_bytes + 4) * k + (2 * out_bytes + 4) * n + 16
    cap = int(budget // max(per_row, 1))
    cap = max(8, min(1024, cap - cap % 8))
    if m > 8:
        # keep >=2 grid steps so "parallel" can shard across v7x's two cores
        cap = min(cap, max(8, _round_up((m + 1) // 2, 8)))
    if m <= cap:
        return m
    for tm in range(cap, 7, -8):
        if m % tm == 0:
            return tm
    return cap  # masked partial last block


def fused_matmul(x, w, *, in_scale=None, in_bias=None, out_bias=None,
                 out_relu=False, out_dtype=jnp.bfloat16, k_block=None):
    """y = epilogue( prologue(x[:, :K]) @ w ).  x: (M, >=K), w: (K, N)."""
    m, k_total = x.shape
    k = int(k_block) if k_block is not None else k_total
    n = w.shape[1]
    assert w.shape[0] == k
    assert k == k_total or k % 128 == 0   # lane-aligned channel-prefix read
    prologue = in_scale is not None
    has_ob = out_bias is not None

    tm = _pick_tm(m, k, n, x.dtype.itemsize, jnp.dtype(out_dtype).itemsize)
    grid = (pl.cdiv(m, tm),)

    in_specs = [pl.BlockSpec((tm, k), lambda i: (i, 0))]
    args = [x]
    if prologue:
        in_specs += [pl.BlockSpec((1, k), lambda i: (0, 0)),
                     pl.BlockSpec((1, k), lambda i: (0, 0))]
        args += [in_scale.reshape(1, k).astype(jnp.float32),
                 in_bias.reshape(1, k).astype(jnp.float32)]
    in_specs.append(pl.BlockSpec((k, n), lambda i: (0, 0)))   # resident weight
    args.append(w.astype(jnp.bfloat16))
    if has_ob:
        in_specs.append(pl.BlockSpec((1, n), lambda i: (0, 0)))
        args.append(out_bias.reshape(1, n).astype(jnp.float32))

    return pl.pallas_call(
        _make_matmul_kernel(prologue, has_ob, out_relu),
        out_shape=jax.ShapeDtypeStruct((m, n), out_dtype),
        grid=grid,
        in_specs=in_specs,
        out_specs=pl.BlockSpec((tm, n), lambda i: (i, 0)),
        compiler_params=pltpu.CompilerParams(
            dimension_semantics=("parallel",),
            vmem_limit_bytes=_vmem_limit_bytes()),
    )(*args)


# ----------------------------------------------------------------------------
# Kernel 2: generalized tap-wise stride-1 conv (kh x kw), no im2col, no HBM
# padding.  Column taps packed into the matmul N dimension; H halos from
# clamped one-row BlockSpecs; W borders from zero pad columns of a VMEM
# scratch combined with pltpu.roll wrap-around.
# ----------------------------------------------------------------------------
def _choose_tb(h, per_row_bytes, budget=6 * 1024 * 1024, cap=256):
    tb_max = int(max(1, min(cap, budget // max(per_row_bytes, 1), h)))
    best = 1
    for cand in range(1, tb_max + 1):
        if h % cand == 0:
            best = cand
    if best * 2 < tb_max:
        return tb_max          # big masked tile beats a tiny exact divisor
    return best


def _make_conv_kernel(*, kh, kw, g, pad_top, pad_bot, pad_left, tb, w, wq, h,
                      has_bias, relu):
    partial_rows = (h % tb) != 0

    def kernel(*refs):
        idx = 0
        top_refs = refs[idx:idx + pad_top]; idx += pad_top
        xm_ref = refs[idx]; idx += 1
        bot_refs = refs[idx:idx + pad_bot]; idx += pad_bot
        w_ref = refs[idx]; idx += 1
        if has_bias:
            b_ref = refs[idx]; idx += 1
        o_ref = refs[idx]; idx += 1
        xpad = refs[idx]                         # VMEM (tb+kh-1, wq, cin) bf16

        j = pl.program_id(1)
        cin = xm_ref.shape[-1]

        # Zero the W pad columns every step (scratch is per-core / may be stale).
        xpad[:, w:, :] = jnp.zeros((tb + kh - 1, wq - w, cin), dtype=xpad.dtype)

        # Tile rows (mask garbage rows of a partial last tile).
        xm = xm_ref[0]
        if partial_rows:
            rows_left = h - j * tb
            rmask = lax.broadcasted_iota(jnp.int32, (tb, 1, 1), 0) < rows_left
            xm = jnp.where(rmask, xm, jnp.zeros_like(xm))
        xpad[pad_top:pad_top + tb, :w, :] = xm

        # Halo rows (zeroed outside the image).
        for t in range(pad_top):
            off = t - pad_top
            row = top_refs[t][0, 0]
            valid = (j * tb + off) >= 0
            xpad[pad_top + off, :w, :] = jnp.where(valid, row, jnp.zeros_like(row))
        for t in range(pad_bot):
            off = tb + t
            row = bot_refs[t][0, 0]
            valid = (j * tb + off) < h
            xpad[pad_top + off, :w, :] = jnp.where(valid, row, jnp.zeros_like(row))

        # One MXU dot per kernel row; kw column taps packed along N.
        acc = None
        for di in range(kh):
            lhs = xpad[di:di + tb].reshape(tb * wq, cin)   # wq%8==0 -> no relayout
            contrib = jnp.dot(lhs, w_ref[di], preferred_element_type=jnp.float32)
            acc = contrib if acc is None else acc + contrib

        # Combine column taps.  Zero pad columns make the roll wrap exact at
        # the left/right image borders.
        m_rows = tb * wq
        comb = acc[:, pad_left * g:(pad_left + 1) * g]
        for dj in range(kw):
            ct = dj - pad_left
            if ct == 0:
                continue
            ytap = acc[:, dj * g:(dj + 1) * g]
            comb = comb + pltpu.roll(ytap, shift=(-ct) % m_rows, axis=0)

        if has_bias:
            comb = comb + b_ref[...]
        if relu:
            comb = jnp.maximum(comb, 0.0)
        out = comb.reshape(tb, wq, g)[:, :w, :]
        # TODO(synk): g < 128 lanes still forces masked stores here; packing
        # several layers' growth channels into one 128-lane slab would fix it.
        o_ref[0] = out.astype(o_ref.dtype)

    return kernel


def conv_taps(x, w_packed, *, kw, pad_top, pad_left, bias=None, relu=False,
              out_dtype=jnp.bfloat16):
    """Stride-1 small conv.  x: (N,H,W,Cin) bf16, w_packed: (kh, Cin, kw*G)."""
    n, h, wdt, cin = x.shape
    kh = w_packed.shape[0]
    kwg = w_packed.shape[2]
    g = kwg // kw
    pad_bot = kh - 1 - pad_top
    right_reach = kw - 1 - pad_left
    wq = _round_up(wdt + max(pad_left, right_reach, 1), 8)

    out_isz = jnp.dtype(out_dtype).itemsize
    per_row = (3 * wq * cin * 2 + 4 * wdt * cin + 2 * out_isz * wdt * g
               + 4 * wq * kw * g + 4 * wq * g)
    tb = _choose_tb(h, per_row)
    grid = (n, pl.cdiv(h, tb))

    in_specs, args = [], []
    for off in range(-pad_top, 0):
        in_specs.append(pl.BlockSpec(
            (1, 1, wdt, cin),
            lambda b, j, off=off: (b, jnp.maximum(j * tb + off, 0), 0, 0)))
        args.append(x)
    in_specs.append(pl.BlockSpec((1, tb, wdt, cin), lambda b, j: (b, j, 0, 0)))
    args.append(x)
    for off in range(tb, tb + pad_bot):
        in_specs.append(pl.BlockSpec(
            (1, 1, wdt, cin),
            lambda b, j, off=off: (b, jnp.minimum(j * tb + off, h - 1), 0, 0)))
        args.append(x)
    in_specs.append(pl.BlockSpec((kh, cin, kwg), lambda b, j: (0, 0, 0)))
    args.append(w_packed.astype(jnp.bfloat16))
    has_bias = bias is not None
    if has_bias:
        in_specs.append(pl.BlockSpec((1, g), lambda b, j: (0, 0)))
        args.append(bias.reshape(1, g).astype(jnp.float32))

    kernel = _make_conv_kernel(kh=kh, kw=kw, g=g, pad_top=pad_top,
                               pad_bot=pad_bot, pad_left=pad_left, tb=tb,
                               w=wdt, wq=wq, h=h, has_bias=has_bias, relu=relu)
    return pl.pallas_call(
        kernel,
        out_shape=jax.ShapeDtypeStruct((n, h, wdt, g), out_dtype),
        grid=grid,
        in_specs=in_specs,
        out_specs=pl.BlockSpec((1, tb, wdt, g), lambda b, j: (b, j, 0, 0)),
        scratch_shapes=[pltpu.VMEM((tb + kh - 1, wq, cin), jnp.bfloat16)],
        compiler_params=pltpu.CompilerParams(
            dimension_semantics=("parallel", "parallel"),
            vmem_limit_bytes=_vmem_limit_bytes()),
    )(*args)


# ----------------------------------------------------------------------------
# Kernel 3: fused transition: BN affine + ReLU -> 2x2 avg pool -> 1x1 matmul.
# (pooling and a 1x1 conv commute, so pooling happens before the matmul).
# ----------------------------------------------------------------------------
def _transition_kernel(x_ref, s_ref, b_ref, w_ref, o_ref, v_ref):
    x = x_ref[0].astype(jnp.float32)                       # (2*tr, w, cin)
    x = jnp.maximum(x * s_ref[...] + b_ref[...], 0.0)
    tr2, w, cin = x.shape
    tr, wo = tr2 // 2, w // 2
    xv = x.reshape(tr, 2, w, cin)                          # major-dim split
    v_ref[...] = xv[:, 0] + xv[:, 1]                       # vertical pair sum
    pooled = 0.25 * (v_ref[:, pl.ds(0, wo, 2), :] +        # strided column read
                     v_ref[:, pl.ds(1, wo, 2), :])
    pooled = pooled.reshape(tr * wo, cin).astype(jnp.bfloat16)
    y = jnp.dot(pooled, w_ref[...], preferred_element_type=jnp.float32)
    o_ref[0] = y.reshape(tr, wo, -1).astype(o_ref.dtype)


def transition_fused(x, w, s, b):
    n, h, wd, cin = x.shape
    cout = w.shape[1]
    if (h % 2) or (wd % 2):
        # Rare fallback for odd spatial dims (AvgPool2d floor mode).
        y = fused_matmul(x.reshape(n * h * wd, cin), w, in_scale=s, in_bias=b,
                         out_dtype=jnp.bfloat16)
        return avg_pool_2x2(y.reshape(n, h, wd, cout)).astype(jnp.bfloat16)
    hr, wo = h // 2, wd // 2
    per_row = 16 * wd * cin + 4 * wo * cout + 4 * wd * cin
    tr = _choose_tb(hr, per_row, cap=128)
    grid = (n, pl.cdiv(hr, tr))
    return pl.pallas_call(
        _transition_kernel,
        out_shape=jax.ShapeDtypeStruct((n, hr, wo, cout), jnp.bfloat16),
        grid=grid,
        in_specs=[pl.BlockSpec((1, 2 * tr, wd, cin), lambda bb, i: (bb, i, 0, 0)),
                  pl.BlockSpec((1, cin), lambda bb, i: (0, 0)),
                  pl.BlockSpec((1, cin), lambda bb, i: (0, 0)),
                  pl.BlockSpec((cin, cout), lambda bb, i: (0, 0))],
        out_specs=pl.BlockSpec((1, tr, wo, cout), lambda bb, i: (bb, i, 0, 0)),
        scratch_shapes=[pltpu.VMEM((tr, wd, cin), jnp.float32)],
        compiler_params=pltpu.CompilerParams(
            dimension_semantics=("parallel", "parallel"),
            vmem_limit_bytes=_vmem_limit_bytes()),
    )(x, s.reshape(1, cin).astype(jnp.float32),
      b.reshape(1, cin).astype(jnp.float32), w.astype(jnp.bfloat16))


# ----------------------------------------------------------------------------
# Plain-JAX glue
# ----------------------------------------------------------------------------
def max_pool_3x3_s2_p1(x):  # NHWC glue
    init = jnp.asarray(-jnp.inf, x.dtype)
    return lax.reduce_window(x, init, lax.max,
                             window_dimensions=(1, 3, 3, 1),
                             window_strides=(1, 2, 2, 1),
                             padding=[(0, 0), (1, 1), (1, 1), (0, 0)])


def avg_pool_2x2(x):  # NHWC glue (reference / odd-shape fallback only)
    n, h, w, c = x.shape
    h2, w2 = h // 2, w // 2
    x = x[:, :h2 * 2, :w2 * 2, :].astype(jnp.float32)
    return x.reshape(n, h2, 2, w2, 2, c).mean(axis=(2, 4))


def bn_fold(p, eps=1e-5):
    scale = p["gamma"] / jnp.sqrt(p["var"] + eps)
    bias = p["beta"] - p["mean"] * scale
    return scale, bias


def conv_w_to_mat(w):
    o, i, kh, kw = w.shape
    return jnp.transpose(w, (2, 3, 1, 0)).reshape(kh * kw * i, o)


def pack_conv0_weight(w, scale):
    """(C0,3,7,7) conv0 weight (norm0 scale folded) -> space-to-depth packed
    (4, 12, 4*C0) weight for the 4x4 stride-1 tap-wise kernel."""
    c0 = w.shape[0]
    w = w * scale[:, None, None, None]
    wp = jnp.zeros((4, 2, 2, 3, 4, c0), jnp.float32)       # [di,py,px,c,dj,o]
    for di in range(4):
        for py in range(2):
            ki = 2 * (di - 2) + py + 3
            if not 0 <= ki <= 6:
                continue
            for dj in range(4):
                for px in range(2):
                    kj = 2 * (dj - 2) + px + 3
                    if not 0 <= kj <= 6:
                        continue
                    wp = wp.at[di, py, px, :, dj, :].set(
                        jnp.transpose(w[:, :, ki, kj]))
    return wp.reshape(4, 12, 4 * c0)


def prepare_params(raw, eps=1e-5):
    f32, bf16 = jnp.float32, jnp.bfloat16
    prep = {}
    s0, b0 = bn_fold(raw["norm0"], eps)
    prep["conv0_w"] = pack_conv0_weight(raw["conv0"], s0).astype(bf16)
    prep["conv0_b"] = b0.astype(f32)

    bi = 1
    while f"denseblock{bi}" in raw:
        layers = raw[f"denseblock{bi}"]
        growth = layers[0]["conv2"].shape[0]
        ctot = layers[-1]["conv1"].shape[1] + growth
        plist = []
        for lp in layers:
            cin = lp["conv1"].shape[1]
            cb = lp["conv1"].shape[0]
            g = lp["conv2"].shape[0]
            kblk = min(_round_up(cin, 128), ctot)          # lane-aligned prefix
            s1, b1 = bn_fold(lp["norm1"], eps)
            s2, b2 = bn_fold(lp["norm2"], eps)
            w1 = conv_w_to_mat(lp["conv1"]) * s2[None, :]   # fold norm2 scale
            w1 = jnp.pad(w1, ((0, kblk - cin), (0, 0)))     # zero rows -> exact
            w2p = jnp.transpose(lp["conv2"], (2, 1, 3, 0)).reshape(3, cb, 3 * g)
            plist.append(dict(
                w1=w1.astype(bf16),
                s1=jnp.pad(s1, (0, kblk - cin)).astype(f32),
                b1=jnp.pad(b1, (0, kblk - cin)).astype(f32),
                b2=b2.astype(f32),
                w2=w2p.astype(bf16)))
        prep[f"denseblock{bi}"] = plist
        if f"transition{bi}" in raw:
            st, bt = bn_fold(raw[f"transition{bi}"]["norm"], eps)
            prep[f"transition{bi}"] = dict(
                w=conv_w_to_mat(raw[f"transition{bi}"]["conv"]).astype(bf16),
                s=st.astype(f32), b=bt.astype(f32))
        bi += 1
    return prep


# ----------------------------------------------------------------------------
# DenseNet building blocks
# ----------------------------------------------------------------------------
def dense_layer(lp, buf, ctot):
    n, h, w, _ = buf.shape
    kblk = lp["w1"].shape[0]
    cb = lp["w1"].shape[1]
    bott = fused_matmul(buf.reshape(n * h * w, ctot), lp["w1"],
                        in_scale=lp["s1"], in_bias=lp["b1"],
                        out_bias=lp["b2"], out_relu=True,
                        out_dtype=jnp.bfloat16, k_block=kblk)
    bott = bott.reshape(n, h, w, cb)
    return conv_taps(bott, lp["w2"], kw=3, pad_top=1, pad_left=1,
                     out_dtype=jnp.bfloat16)


def dense_block(layers, x):
    n, h, w, c0 = x.shape
    gsum = sum(lp["w2"].shape[2] // 3 for lp in layers)
    ctot = c0 + gsum
    buf = jnp.concatenate(
        [x.astype(jnp.bfloat16), jnp.zeros((n, h, w, gsum), jnp.bfloat16)],
        axis=-1)
    coff = c0
    for lp in layers:
        new = dense_layer(lp, buf, ctot)
        # TODO(synk): relies on XLA doing this update in place; a K-segmented
        # matmul grid would avoid rebuilding the buffer entirely.
        buf = lax.dynamic_update_slice(buf, new, (0, 0, 0, coff))
        coff += new.shape[-1]
    return buf


def conv0_forward(prep, x):
    n, hh, ww, _ = x.shape
    ph, pw = hh % 2, ww % 2
    if ph or pw:                    # make space-to-depth exact for odd sizes
        x = jnp.pad(x, ((0, 0), (0, ph), (0, pw), (0, 0)))
        hh += ph; ww += pw
    h2, w2 = hh // 2, ww // 2
    xs = x.reshape(n, h2, 2, w2, 2, 3).transpose(0, 1, 3, 2, 4, 5)
    xs = xs.reshape(n, h2, w2, 12).astype(jnp.bfloat16)
    return conv_taps(xs, prep["conv0_w"], kw=4, pad_top=2, pad_left=2,
                     bias=prep["conv0_b"], relu=True, out_dtype=jnp.bfloat16)


def densenet_forward(prep, x_nchw):
    x = jnp.transpose(x_nchw, (0, 2, 3, 1)).astype(jnp.float32)   # NHWC
    s1 = conv0_forward(prep, x)                 # conv0 + norm0 + relu0, bf16
    feat = max_pool_3x3_s2_p1(s1)
    skips = [s1]
    num_blocks = sum(1 for k in prep if k.startswith("denseblock"))
    for bi in range(1, num_blocks + 1):
        feat = dense_block(prep[f"denseblock{bi}"], feat)
        skips.append(feat)
        if f"transition{bi}" in prep:
            tp = prep[f"transition{bi}"]
            feat = transition_fused(feat, tp["w"], tp["s"], tp["b"])
    return tuple(jnp.transpose(s.astype(jnp.float32), (0, 3, 1, 2))
                 for s in skips)                 # NCHW skips (s1 .. s5)


# ----------------------------------------------------------------------------
# Independent pure-JAX reference (same bf16 rounding points, f32 math).
# ----------------------------------------------------------------------------
_HIGH = lax.Precision.HIGHEST
_DN = ("NHWC", "HWIO", "NHWC")


def _bf16_round(x):
    return x.astype(jnp.bfloat16).astype(jnp.float32)


def reference_forward(raw, x_nchw, eps=1e-5):
    x = jnp.transpose(x_nchw, (0, 2, 3, 1)).astype(jnp.float32)
    s0, b0 = bn_fold(raw["norm0"], eps)
    w0 = _bf16_round(raw["conv0"] * s0[:, None, None, None])
    w0 = jnp.transpose(w0, (2, 3, 1, 0))
    s1 = lax.conv_general_dilated(_bf16_round(x), w0, (2, 2),
                                  [(3, 3), (3, 3)], dimension_numbers=_DN,
                                  precision=_HIGH)
    s1 = _bf16_round(jnp.maximum(s1 + b0, 0.0))
    feat = max_pool_3x3_s2_p1(s1)
    skips = [s1]
    num_blocks = sum(1 for k in raw if k.startswith("denseblock"))
    for bi in range(1, num_blocks + 1):
        feats = [feat]
        for lp in raw[f"denseblock{bi}"]:
            xcat = jnp.concatenate(feats, axis=-1)
            n, h, w, c = xcat.shape
            sA, bA = bn_fold(lp["norm1"], eps)
            sB, bB = bn_fold(lp["norm2"], eps)
            a = _bf16_round(jnp.maximum(xcat * sA + bA, 0.0)).reshape(-1, c)
            w1 = _bf16_round(conv_w_to_mat(lp["conv1"]) * sB[None, :])
            bott = jnp.dot(a, w1, precision=_HIGH) + bB
            bott = _bf16_round(jnp.maximum(bott, 0.0)).reshape(n, h, w, -1)
            w2 = _bf16_round(jnp.transpose(lp["conv2"], (2, 3, 1, 0)))
            new = lax.conv_general_dilated(bott, w2, (1, 1), [(1, 1), (1, 1)],
                                           dimension_numbers=_DN,
                                           precision=_HIGH)
            feats.append(_bf16_round(new))
        feat = jnp.concatenate(feats, axis=-1)
        skips.append(feat)
        if f"transition{bi}" in raw:
            tp = raw[f"transition{bi}"]
            st, bt = bn_fold(tp["norm"], eps)
            t = jnp.maximum(feat * st + bt, 0.0)
            t = _bf16_round(avg_pool_2x2(t))
            wt = _bf16_round(conv_w_to_mat(tp["conv"]))
            nb, hh, ww, cc = feat.shape
            t = jnp.dot(t.reshape(-1, cc), wt, precision=_HIGH)
            feat = _bf16_round(t).reshape(nb, hh // 2, ww // 2, -1)
    return tuple(jnp.transpose(s, (0, 3, 1, 2)) for s in skips)


# ----------------------------------------------------------------------------
# Deterministic synthetic parameters matching the module constructor shapes.
# ----------------------------------------------------------------------------
def init_model_params(key, growth_rate, block_config, num_init_features, bn_size):
    keys = iter(jax.random.split(key, 512))

    def nk():
        return next(keys)

    def conv_w(out_c, in_c, kh, kw):
        fan_in = in_c * kh * kw
        return jax.random.normal(nk(), (out_c, in_c, kh, kw), jnp.float32) / jnp.sqrt(
            jnp.float32(fan_in))

    def bn(c):
        return dict(
            gamma=1.0 + 0.1 * jax.random.normal(nk(), (c,), jnp.float32),
            beta=0.1 * jax.random.normal(nk(), (c,), jnp.float32),
            mean=0.1 * jax.random.normal(nk(), (c,), jnp.float32),
            var=jax.random.uniform(nk(), (c,), jnp.float32, 0.5, 1.5),
        )

    params = {"conv0": conv_w(num_init_features, 3, 7, 7),
              "norm0": bn(num_init_features)}
    num_features = num_init_features
    for i, num_layers in enumerate(block_config):
        layers = []
        for li in range(num_layers):
            cin = num_features + li * growth_rate
            layers.append(dict(
                norm1=bn(cin),
                conv1=conv_w(bn_size * growth_rate, cin, 1, 1),
                norm2=bn(bn_size * growth_rate),
                conv2=conv_w(growth_rate, bn_size * growth_rate, 3, 3)))
        params[f"denseblock{i + 1}"] = layers
        num_features += num_layers * growth_rate
        if i != len(block_config) - 1:
            params[f"transition{i + 1}"] = dict(
                norm=bn(num_features),
                conv=conv_w(num_features // 2, num_features, 1, 1))
            num_features //= 2
    return params


# ----------------------------------------------------------------------------
if __name__ == "__main__":
    key = jax.random.PRNGKey(0)
    pkey, xkey = jax.random.split(key)

    growth_rate = 8
    block_config = (2, 2, 2, 2)
    num_init_features = 16
    bn_size = 2

    raw_params = init_model_params(pkey, growth_rate, block_config,
                                   num_init_features, bn_size)
    prep = prepare_params(raw_params)

    x = jax.random.normal(xkey, (2, 3, 32, 32), jnp.float32)

    fwd = jax.jit(densenet_forward)
    outs = jax.block_until_ready(fwd(prep, x))

    expected = [(2, 16, 16, 16), (2, 32, 8, 8), (2, 32, 4, 4),
                (2, 32, 2, 2), (2, 32, 1, 1)]
    for o, e in zip(outs, expected):
        assert o.shape == e, (o.shape, e)
        assert bool(jnp.all(jnp.isfinite(o)))

    refs = jax.jit(reference_forward)(raw_params, x)
    for o, r in zip(outs, refs):
        err = float(jnp.max(jnp.abs(o - r)))
        assert bool(jnp.allclose(o, r, rtol=5e-2, atol=5e-2)), err

    print("KERNEL_OK")
</pallas_src>

<mosaic_0001>
module attributes {stable_mosaic.version = 11 : i64} {
  func.func @kernel(%arg0: i32, %arg1: i32, %arg2: memref<1x1x16x12xbf16, #tpu.memory_space<vmem>>, %arg3: memref<1x1x16x12xbf16, #tpu.memory_space<vmem>>, %arg4: memref<1x16x16x12xbf16, #tpu.memory_space<vmem>>, %arg5: memref<1x1x16x12xbf16, #tpu.memory_space<vmem>>, %arg6: memref<4x12x64xbf16, #tpu.memory_space<vmem>>, %arg7: memref<1x16xf32, #tpu.memory_space<vmem>>, %arg8: memref<1x16x16x16xbf16, #tpu.memory_space<vmem>>, %arg9: memref<19x24x12xbf16, #tpu.memory_space<vmem>>) attributes {dimension_semantics = [#tpu.dimension_semantics<parallel>, #tpu.dimension_semantics<parallel>], iteration_bounds = array<i64: 2, 1>, scalar_prefetch = 0 : i64, scratch_operands = 1 : i64, tpu.core_type = #tpu.core_type<tc>, window_params = [{transform_indices = @transform_0, window_bounds = array<i64: 1, 1, 16, 12>}, {transform_indices = @transform_1, window_bounds = array<i64: 1, 1, 16, 12>}, {transform_indices = @transform_2, window_bounds = array<i64: 1, 16, 16, 12>}, {transform_indices = @transform_3, window_bounds = array<i64: 1, 1, 16, 12>}, {pipeline_mode = #tpu.pipeline_mode<synchronous>, transform_indices = @transform_4, window_bounds = array<i64: 4, 12, 64>}, {pipeline_mode = #tpu.pipeline_mode<synchronous>, transform_indices = @transform_5, window_bounds = array<i64: 1, 16>}, {transform_indices = @transform_6, window_bounds = array<i64: 1, 16, 16, 16>}]} {
    %cst = arith.constant 0.000000e+00 : bf16
    %0 = vector.broadcast %cst : bf16 to vector<19x8x12xbf16>
    %c0 = arith.constant 0 : index
    %c16 = arith.constant 16 : index
    %c0_0 = arith.constant 0 : index
    %1 = vector.load %arg9[%c0, %c16, %c0_0] : memref<19x24x12xbf16, #tpu.memory_space<vmem>>, vector<19x8x12xbf16>
    tpu.vector_store %arg9[%c0, %c16, %c0_0], %0 {strides = array<i32>} : memref<19x24x12xbf16, #tpu.memory_space<vmem>>, vector<19x8x12xbf16>,
    %c0_1 = arith.constant 0 : index
    %c0_2 = arith.constant 0 : index
    %c0_3 = arith.constant 0 : index
    %c0_4 = arith.constant 0 : index
    %2 = vector.load %arg4[%c0_1, %c0_2, %c0_3, %c0_4] : memref<1x16x16x12xbf16, #tpu.memory_space<vmem>>, vector<1x16x16x12xbf16>
    %3 = vector.shape_cast %2 : vector<1x16x16x12xbf16> to vector<16x16x12xbf16>
    %c2 = arith.constant 2 : index
    %c0_5 = arith.constant 0 : index
    %c0_6 = arith.constant 0 : index
    %4 = vector.load %arg9[%c2, %c0_5, %c0_6] : memref<19x24x12xbf16, #tpu.memory_space<vmem>>, vector<16x16x12xbf16>
    tpu.vector_store %arg9[%c2, %c0_5, %c0_6], %3 {strides = array<i32>} : memref<19x24x12xbf16, #tpu.memory_space<vmem>>, vector<16x16x12xbf16>,
    %c0_7 = arith.constant 0 : index
    %c0_8 = arith.constant 0 : index
    %c0_9 = arith.constant 0 : index
    %c0_10 = arith.constant 0 : index
    %5 = vector.load %arg2[%c0_7, %c0_8, %c0_9, %c0_10] : memref<1x1x16x12xbf16, #tpu.memory_space<vmem>>, vector<1x1x16x12xbf16>
    %6 = vector.shape_cast %5 : vector<1x1x16x12xbf16> to vector<16x12xbf16>
    %c16_i32 = arith.constant 16 : i32
    %7 = arith.muli %arg1, %c16_i32 : i32
    %c-2_i32 = arith.constant -2 : i32
    %8 = arith.addi %7, %c-2_i32 : i32
    %c0_i32 = arith.constant 0 : i32
    %9 = arith.cmpi sge, %8, %c0_i32 : i32
    %cst_11 = arith.constant 0.000000e+00 : bf16
    %10 = vector.broadcast %cst_11 : bf16 to vector<16x12xbf16>
    %11 = arith.select %9, %6, %10 : vector<16x12xbf16>
    %c0_12 = arith.constant 0 : index
    %c0_13 = arith.constant 0 : index
    %c0_14 = arith.constant 0 : index
    %12 = vector.load %arg9[%c0_12, %c0_13, %c0_14] : memref<19x24x12xbf16, #tpu.memory_space<vmem>>, vector<1x16x12xbf16>
    %13 = vector.shape_cast %12 : vector<1x16x12xbf16> to vector<16x12xbf16>
    %14 = vector.shape_cast %11 : vector<16x12xbf16> to vector<1x16x12xbf16>
    tpu.vector_store %arg9[%c0_12, %c0_13, %c0_14], %14 {strides = array<i32>} : memref<19x24x12xbf16, #tpu.memory_space<vmem>>, vector<1x16x12xbf16>,
    %c0_15 = arith.constant 0 : index
    %c0_16 = arith.constant 0 : index
    %c0_17 = arith.constant 0 : index
    %c0_18 = arith.constant 0 : index
    %15 = vector.load %arg3[%c0_15, %c0_16, %c0_17, %c0_18] : memref<1x1x16x12xbf16, #tpu.memory_space<vmem>>, vector<1x1x16x12xbf16>
    %16 = vector.shape_cast %15 : vector<1x1x16x12xbf16> to vector<16x12xbf16>
    %c16_i32_19 = arith.constant 16 : i32
    %17 = arith.muli %arg1, %c16_i32_19 : i32
    %c-1_i32 = arith.constant -1 : i32
    %18 = arith.addi %17, %c-1_i32 : i32
    %c0_i32_20 = arith.constant 0 : i32
    %19 = arith.cmpi sge, %18, %c0_i32_20 : i32
    %cst_21 = arith.constant 0.000000e+00 : bf16
    %20 = vector.broadcast %cst_21 : bf16 to vector<16x12xbf16>
    %21 = arith.select %19, %16, %20 : vector<16x12xbf16>
    %c1 = arith.constant 1 : index
    %c0_22 = arith.constant 0 : index
    %c0_23 = arith.constant 0 : index
    %22 = vector.load %arg9[%c1, %c0_22, %c0_23] : memref<19x24x12xbf16, #tpu.memory_space<vmem>>, vector<1x16x12xbf16>
    %23 = vector.shape_cast %22 : vector<1x16x12xbf16> to vector<16x12xbf16>
    %24 = vector.shape_cast %21 : vector<16x12xbf16> to vector<1x16x12xbf16>
    tpu.vector_store %arg9[%c1, %c0_22, %c0_23], %24 {strides = array<i32>} : memref<19x24x12xbf16, #tpu.memory_space<vmem>>, vector<1x16x12xbf16>,
    %c0_24 = arith.constant 0 : index
    %c0_25 = arith.constant 0 : index
    %c0_26 = arith.constant 0 : index
    %c0_27 = arith.constant 0 : index
    %25 = vector.load %arg5[%c0_24, %c0_25, %c0_26, %c0_27] : memref<1x1x16x12xbf16, #tpu.memory_space<vmem>>, vector<1x1x16x12xbf16>
    %26 = vector.shape_cast %25 : vector<1x1x16x12xbf16> to vector<16x12xbf16>
    %c16_i32_28 = arith.constant 16 : i32
    %27 = arith.muli %arg1, %c16_i32_28 : i32
    %c16_i32_29 = arith.constant 16 : i32
    %28 = arith.addi %27, %c16_i32_29 : i32
    %c16_i32_30 = arith.constant 16 : i32
    %29 = arith.cmpi slt, %28, %c16_i32_30 : i32
    %cst_31 = arith.constant 0.000000e+00 : bf16
    %30 = vector.broadcast %cst_31 : bf16 to vector<16x12xbf16>
    %31 = arith.select %29, %26, %30 : vector<16x12xbf16>
    %c18 = arith.constant 18 : index
    %c0_32 = arith.constant 0 : index
    %c0_33 = arith.constant 0 : index
    %32 = vector.load %arg9[%c18, %c0_32, %c0_33] : memref<19x24x12xbf16, #tpu.memory_space<vmem>>, vector<1x16x12xbf16>
    %33 = vector.shape_cast %32 : vector<1x16x12xbf16> to vector<16x12xbf16>
    %34 = vector.shape_cast %31 : vector<16x12xbf16> to vector<1x16x12xbf16>
    tpu.vector_store %arg9[%c18, %c0_32, %c0_33], %34 {strides = array<i32>} : memref<19x24x12xbf16, #tpu.memory_space<vmem>>, vector<1x16x12xbf16>,
    %c0_34 = arith.constant 0 : index
    %c0_35 = arith.constant 0 : index
    %c0_36 = arith.constant 0 : index
    %35 = vector.load %arg9[%c0_34, %c0_35, %c0_36] : memref<19x24x12xbf16, #tpu.memory_space<vmem>>, vector<16x24x12xbf16>
    %36 = vector.shape_cast %35 : vector<16x24x12xbf16> to vector<384x12xbf16>
    %c0_37 = arith.constant 0 : index
    %c0_38 = arith.constant 0 : index
    %c0_39 = arith.constant 0 : index
    %37 = vector.load %arg6[%c0_37, %c0_38, %c0_39] : memref<4x12x64xbf16, #tpu.memory_space<vmem>>, vector<1x12x64xbf16>
    %38 = vector.shape_cast %37 : vector<1x12x64xbf16> to vector<12x64xbf16>
    %cst_40 = arith.constant dense<0.000000e+00> : vector<384x64xf32>
    %39 = tpu.matmul %36, %38, %cst_40 {dimension_numbers = #tpu.dot_dimension_numbers<[1], [0], [0], [1], [0, 0, 1, 1], [], []>} : vector<384x12xbf16>, vector<12x64xbf16>, vector<384x64xf32> -> vector<384x64xf32>
    %c1_41 = arith.constant 1 : index
    %c0_42 = arith.constant 0 : index
    %c0_43 = arith.constant 0 : index
    %40 = vector.load %arg9[%c1_41, %c0_42, %c0_43] : memref<19x24x12xbf16, #tpu.memory_space<vmem>>, vector<16x24x12xbf16>
    %41 = vector.shape_cast %40 : vector<16x24x12xbf16> to vector<384x12xbf16>
    %c1_44 = arith.constant 1 : index
    %c0_45 = arith.constant 0 : index
    %c0_46 = arith.constant 0 : index
    %42 = vector.load %arg6[%c1_44, %c0_45, %c0_46] : memref<4x12x64xbf16, #tpu.memory_space<vmem>>, vector<1x12x64xbf16>
    %43 = vector.shape_cast %42 : vector<1x12x64xbf16> to vector<12x64xbf16>
    %cst_47 = arith.constant dense<0.000000e+00> : vector<384x64xf32>
    %44 = tpu.matmul %41, %43, %cst_47 {dimension_numbers = #tpu.dot_dimension_numbers<[1], [0], [0], [1], [0, 0, 1, 1], [], []>} : vector<384x12xbf16>, vector<12x64xbf16>, vector<384x64xf32> -> vector<384x64xf32>
    %45 = arith.addf %39, %44 : vector<384x64xf32>
    %c2_48 = arith.constant 2 : index
    %c0_49 = arith.constant 0 : index
    %c0_50 = arith.constant 0 : index
    %46 = vector.load %arg9[%c2_48, %c0_49, %c0_50] : memref<19x24x12xbf16, #tpu.memory_space<vmem>>, vector<16x24x12xbf16>
    %47 = vector.shape_cast %46 : vector<16x24x12xbf16> to vector<384x12xbf16>
    %c2_51 = arith.constant 2 : index
    %c0_52 = arith.constant 0 : index
    %c0_53 = arith.constant 0 : index
    %48 = vector.load %arg6[%c2_51, %c0_52, %c0_53] : memref<4x12x64xbf16, #tpu.memory_space<vmem>>, vector<1x12x64xbf16>
    %49 = vector.shape_cast %48 : vector<1x12x64xbf16> to vector<12x64xbf16>
    %cst_54 = arith.constant dense<0.000000e+00> : vector<384x64xf32>
    %50 = tpu.matmul %47, %49, %cst_54 {dimension_numbers = #tpu.dot_dimension_numbers<[1], [0], [0], [1], [0, 0, 1, 1], [], []>} : vector<384x12xbf16>, vector<12x64xbf16>, vector<384x64xf32> -> vector<384x64xf32>
    %51 = arith.addf %45, %50 : vector<384x64xf32>
    %c3 = arith.constant 3 : index
    %c0_55 = arith.constant 0 : index
    %c0_56 = arith.constant 0 : index
    %52 = vector.load %arg9[%c3, %c0_55, %c0_56] : memref<19x24x12xbf16, #tpu.memory_space<vmem>>, vector<16x24x12xbf16>
    %53 = vector.shape_cast %52 : vector<16x24x12xbf16> to vector<384x12xbf16>
    %c3_57 = arith.constant 3 : index
    %c0_58 = arith.constant 0 : index
    %c0_59 = arith.constant 0 : index
    %54 = vector.load %arg6[%c3_57, %c0_58, %c0_59] : memref<4x12x64xbf16, #tpu.memory_space<vmem>>, vector<1x12x64xbf16>
    %55 = vector.shape_cast %54 : vector<1x12x64xbf16> to vector<12x64xbf16>
    %cst_60 = arith.constant dense<0.000000e+00> : vector<384x64xf32>
    %56 = tpu.matmul %53, %55, %cst_60 {dimension_numbers = #tpu.dot_dimension_numbers<[1], [0], [0], [1], [0, 0, 1, 1], [], []>} : vector<384x12xbf16>, vector<12x64xbf16>, vector<384x64xf32> -> vector<384x64xf32>
    %57 = arith.addf %51, %56 : vector<384x64xf32>
    %58 = vector.extract_strided_slice %57 {offsets = [0, 32], sizes = [384, 16], strides = [1, 1]} : vector<384x64xf32> to vector<384x16xf32>
    %59 = vector.extract_strided_slice %57 {offsets = [0, 0], sizes = [384, 16], strides = [1, 1]} : vector<384x64xf32> to vector<384x16xf32>
    %c2_i32 = arith.constant 2 : i32
    %60 = tpu.dynamic_rotate %59 by %c2_i32 dim 0 : vector<384x16xf32>, i32 -> vector<384x16xf32>
    %61 = arith.addf %58, %60 : vector<384x16xf32>
    %62 = vector.extract_strided_slice %57 {offsets = [0, 16], sizes = [384, 16], strides = [1, 1]} : vector<384x64xf32> to vector<384x16xf32>
    %c1_i32 = arith.constant 1 : i32
    %63 = tpu.dynamic_rotate %62 by %c1_i32 dim 0 : vector<384x16xf32>, i32 -> vector<384x16xf32>
    %64 = arith.addf %61, %63 : vector<384x16xf32>
    %65 = vector.extract_strided_slice %57 {offsets = [0, 48], sizes = [384, 16], strides = [1, 1]} : vector<384x64xf32> to vector<384x16xf32>
    %c383_i32 = arith.constant 383 : i32
    %66 = tpu.dynamic_rotate %65 by %c383_i32 dim 0 : vector<384x16xf32>, i32 -> vector<384x16xf32>
    %67 = arith.addf %64, %66 : vector<384x16xf32>
    %c0_61 = arith.constant 0 : index
    %c0_62 = arith.constant 0 : index
    %68 = vector.load %arg7[%c0_61, %c0_62] : memref<1x16xf32, #tpu.memory_space<vmem>>, vector<1x16xf32>
    %69 = vector.broadcast %68 : vector<1x16xf32> to vector<384x16xf32>
    %70 = arith.addf %67, %69 : vector<384x16xf32>
    %cst_63 = arith.constant 0.000000e+00 : f32
    %71 = vector.broadcast %cst_63 : f32 to vector<384x16xf32>
    %72 = arith.maximumf %70, %71 : vector<384x16xf32>
    %73 = vector.shape_cast %72 : vector<384x16xf32> to vector<16x24x16xf32>
    %74 = vector.extract_strided_slice %73 {offsets = [0, 0, 0], sizes = [16, 16, 16], strides = [1, 1, 1]} : vector<16x24x16xf32> to vector<16x16x16xf32>
    %75 = arith.truncf %74 : vector<16x16x16xf32> to vector<16x16x16xbf16>
    %c0_64 = arith.constant 0 : index
    %c0_65 = arith.constant 0 : index
    %c0_66 = arith.constant 0 : index
    %c0_67 = arith.constant 0 : index
    %76 = vector.load %arg8[%c0_64, %c0_65, %c0_66, %c0_67] : memref<1x16x16x16xbf16, #tpu.memory_space<vmem>>, vector<1x16x16x16xbf16>
    %77 = vector.shape_cast %76 : vector<1x16x16x16xbf16> to vector<16x16x16xbf16>
    %78 = vector.shape_cast %75 : vector<16x16x16xbf16> to vector<1x16x16x16xbf16>
    tpu.vector_store %arg8[%c0_64, %c0_65, %c0_66, %c0_67], %78 {strides = array<i32>} : memref<1x16x16x16xbf16, #tpu.memory_space<vmem>>, vector<1x16x16x16xbf16>,
    return
  }
  func.func @transform_0(%arg0: i32, %arg1: i32) -> (i32, i32, i32, i32) {
    %c16_i32 = arith.constant 16 : i32
    %0 = arith.muli %arg1, %c16_i32 : i32
    %c-2_i32 = arith.constant -2 : i32
    %1 = arith.addi %0, %c-2_i32 : i32
    %c0_i32 = arith.constant 0 : i32
    %2 = arith.maxsi %1, %c0_i32 : i32
    %c0_i32_0 = arith.constant 0 : i32
    %c0_i32_1 = arith.constant 0 : i32
    %c0_i32_2 = arith.constant 0 : i32
    return %arg0, %2, %c0_i32_0, %c0_i32_1 : i32, i32, i32, i32
  }
  func.func @transform_1(%arg0: i32, %arg1: i32) -> (i32, i32, i32, i32) {
    %c16_i32 = arith.constant 16 : i32
    %0 = arith.muli %arg1, %c16_i32 : i32
    %c-1_i32 = arith.constant -1 : i32
    %1 = arith.addi %0, %c-1_i32 : i32
    %c0_i32 = arith.constant 0 : i32
    %2 = arith.maxsi %1, %c0_i32 : i32
    %c0_i32_0 = arith.constant 0 : i32
    %c0_i32_1 = arith.constant 0 : i32
    %c0_i32_2 = arith.constant 0 : i32
    return %arg0, %2, %c0_i32_0, %c0_i32_1 : i32, i32, i32, i32
  }
  func.func @transform_2(%arg0: i32, %arg1: i32) -> (i32, i32, i32, i32) {
    %c0_i32 = arith.constant 0 : i32
    %c0_i32_0 = arith.constant 0 : i32
    %c0_i32_1 = arith.constant 0 : i32
    return %arg0, %arg1, %c0_i32, %c0_i32_0 : i32, i32, i32, i32
  }
  func.func @transform_3(%arg0: i32, %arg1: i32) -> (i32, i32, i32, i32) {
    %c16_i32 = arith.constant 16 : i32
    %0 = arith.muli %arg1, %c16_i32 : i32
    %c16_i32_0 = arith.constant 16 : i32
    %1 = arith.addi %0, %c16_i32_0 : i32
    %c15_i32 = arith.constant 15 : i32
    %2 = arith.minsi %1, %c15_i32 : i32
    %c0_i32 = arith.constant 0 : i32
    %c0_i32_1 = arith.constant 0 : i32
    %c0_i32_2 = arith.constant 0 : i32
    return %arg0, %2, %c0_i32, %c0_i32_1 : i32, i32, i32, i32
  }
  func.func @transform_4(%arg0: i32, %arg1: i32) -> (i32, i32, i32) {
    %c0_i32 = arith.constant 0 : i32
    %c0_i32_0 = arith.constant 0 : i32
    %c0_i32_1 = arith.constant 0 : i32
    %c0_i32_2 = arith.constant 0 : i32
    return %c0_i32, %c0_i32_0, %c0_i32_1 : i32, i32, i32
  }
  func.func @transform_5(%arg0: i32, %arg1: i32) -> (i32, i32) {
    %c0_i32 = arith.constant 0 : i32
    %c0_i32_0 = arith.constant 0 : i32
    %c0_i32_1 = arith.constant 0 : i32
    return %c0_i32, %c0_i32_0 : i32, i32
  }
  func.func @transform_6(%arg0: i32, %arg1: i32) -> (i32, i32, i32, i32) {
    %c0_i32 = arith.constant 0 : i32
    %c0_i32_0 = arith.constant 0 : i32
    %c0_i32_1 = arith.constant 0 : i32
    return %arg0, %arg1, %c0_i32, %c0_i32_0 : i32, i32, i32, i32
  }
}

module attributes {stable_mosaic.version = 11 : i64} {
  func.func @kernel(%arg0: i32, %arg1: memref<64x32xbf16, #tpu.memory_space<vmem>>, %arg2: memref<1x32xf32, #tpu.memory_space<vmem>>, %arg3: memref<1x32xf32, #tpu.memory_space<vmem>>, %arg4: memref<32x16xbf16, #tpu.memory_space<vmem>>, %arg5: memref<1x16xf32, #tpu.memory_space<vmem>>, %arg6: memref<64x16xbf16, #tpu.memory_space<vmem>>) attributes {dimension_semantics = [#tpu.dimension_semantics<parallel>], iteration_bounds = array<i64: 2>, scalar_prefetch = 0 : i64, scratch_operands = 0 : i64, tpu.core_type = #tpu.core_type<tc>, window_params = [{transform_indices = @transform_0, window_bounds = array<i64: 64, 32>}, {pipeline_mode = #tpu.pipeline_mode<synchronous>, transform_indices = @transform_1, window_bounds = array<i64: 1, 32>}, {pipeline_mode = #tpu.pipeline_mode<synchronous>, transform_indices = @transform_2, window_bounds = array<i64: 1, 32>}, {pipeline_mode = #tpu.pipeline_mode<synchronous>, transform_indices = @transform_3, window_bounds = array<i64: 32, 16>}, {pipeline_mode = #tpu.pipeline_mode<synchronous>, transform_indices = @transform_4, window_bounds = array<i64: 1, 16>}, {transform_indices = @transform_5, window_bounds = array<i64: 64, 16>}]} {
    %c0 = arith.constant 0 : index
    %c0_0 = arith.constant 0 : index
    %0 = vector.load %arg1[%c0, %c0_0] : memref<64x32xbf16, #tpu.memory_space<vmem>>, vector<64x32xbf16>
    %1 = arith.extf %0 : vector<64x32xbf16> to vector<64x32xf32>
    %c0_1 = arith.constant 0 : index
    %c0_2 = arith.constant 0 : index
    %2 = vector.load %arg2[%c0_1, %c0_2] : memref<1x32xf32, #tpu.memory_space<vmem>>, vector<1x32xf32>
    %3 = vector.broadcast %2 : vector<1x32xf32> to vector<64x32xf32>
    %4 = arith.mulf %1, %3 : vector<64x32xf32>
    %c0_3 = arith.constant 0 : index
    %c0_4 = arith.constant 0 : index
    %5 = vector.load %arg3[%c0_3, %c0_4] : memref<1x32xf32, #tpu.memory_space<vmem>>, vector<1x32xf32>
    %6 = vector.broadcast %5 : vector<1x32xf32> to vector<64x32xf32>
    %7 = arith.addf %4, %6 : vector<64x32xf32>
    %cst = arith.constant 0.000000e+00 : f32
    %8 = vector.broadcast %cst : f32 to vector<64x32xf32>
    %9 = arith.maximumf %7, %8 : vector<64x32xf32>
    %10 = arith.truncf %9 : vector<64x32xf32> to vector<64x32xbf16>
    %c0_5 = arith.constant 0 : index
    %c0_6 = arith.constant 0 : index
    %11 = vector.load %arg4[%c0_5, %c0_6] : memref<32x16xbf16, #tpu.memory_space<vmem>>, vector<32x16xbf16>
    %cst_7 = arith.constant dense<0.000000e+00> : vector<64x16xf32>
    %12 = tpu.matmul %10, %11, %cst_7 {dimension_numbers = #tpu.dot_dimension_numbers<[1], [0], [0], [1], [0, 0, 1, 1], [], []>} : vector<64x32xbf16>, vector<32x16xbf16>, vector<64x16xf32> -> vector<64x16xf32>
    %c0_8 = arith.constant 0 : index
    %c0_9 = arith.constant 0 : index
    %13 = vector.load %arg5[%c0_8, %c0_9] : memref<1x16xf32, #tpu.memory_space<vmem>>, vector<1x16xf32>
    %14 = vector.broadcast %13 : vector<1x16xf32> to vector<64x16xf32>
    %15 = arith.addf %12, %14 : vector<64x16xf32>
    %cst_10 = arith.constant 0.000000e+00 : f32
    %16 = vector.broadcast %cst_10 : f32 to vector<64x16xf32>
    %17 = arith.maximumf %15, %16 : vector<64x16xf32>
    %18 = arith.truncf %17 : vector<64x16xf32> to vector<64x16xbf16>
    %c0_11 = arith.constant 0 : index
    %c0_12 = arith.constant 0 : index
    %19 = vector.load %arg6[%c0_11, %c0_12] : memref<64x16xbf16, #tpu.memory_space<vmem>>, vector<64x16xbf16>
    tpu.vector_store %arg6[%c0_11, %c0_12], %18 {strides = array<i32>} : memref<64x16xbf16, #tpu.memory_space<vmem>>, vector<64x16xbf16>,
    return
  }
  func.func @transform_0(%arg0: i32) -> (i32, i32) {
    %c0_i32 = arith.constant 0 : i32
    %c0_i32_0 = arith.constant 0 : i32
    return %arg0, %c0_i32 : i32, i32
  }
  func.func @transform_1(%arg0: i32) -> (i32, i32) {
    %c0_i32 = arith.constant 0 : i32
    %c0_i32_0 = arith.constant 0 : i32
    %c0_i32_1 = arith.constant 0 : i32
    return %c0_i32, %c0_i32_0 : i32, i32
  }
  func.func @transform_2(%arg0: i32) -> (i32, i32) {
    %c0_i32 = arith.constant 0 : i32
    %c0_i32_0 = arith.constant 0 : i32
    %c0_i32_1 = arith.constant 0 : i32
    return %c0_i32, %c0_i32_0 : i32, i32
  }
  func.func @transform_3(%arg0: i32) -> (i32, i32) {
    %c0_i32 = arith.constant 0 : i32
    %c0_i32_0 = arith.constant 0 : i32
    %c0_i32_1 = arith.constant 0 : i32
    return %c0_i32, %c0_i32_0 : i32, i32
  }
  func.func @transform_4(%arg0: i32) -> (i32, i32) {
    %c0_i32 = arith.constant 0 : i32
    %c0_i32_0 = arith.constant 0 : i32
    %c0_i32_1 = arith.constant 0 : i32
    return %c0_i32, %c0_i32_0 : i32, i32
  }
  func.func @transform_5(%arg0: i32) -> (i32, i32) {
    %c0_i32 = arith.constant 0 : i32
    %c0_i32_0 = arith.constant 0 : i32
    return %arg0, %c0_i32 : i32, i32
  }
}

module attributes {stable_mosaic.version = 11 : i64} {
  func.func @kernel(%arg0: i32, %arg1: i32, %arg2: memref<1x1x8x16xbf16, #tpu.memory_space<vmem>>, %arg3: memref<1x8x8x16xbf16, #tpu.memory_space<vmem>>, %arg4: memref<1x1x8x16xbf16, #tpu.memory_space<vmem>>, %arg5: memref<3x16x24xbf16, #tpu.memory_space<vmem>>, %arg6: memref<1x8x8x8xbf16, #tpu.memory_space<vmem>>, %arg7: memref<10x16x16xbf16, #tpu.memory_space<vmem>>) attributes {dimension_semantics = [#tpu.dimension_semantics<parallel>, #tpu.dimension_semantics<parallel>], iteration_bounds = array<i64: 2, 1>, scalar_prefetch = 0 : i64, scratch_operands = 1 : i64, tpu.core_type = #tpu.core_type<tc>, window_params = [{transform_indices = @transform_0, window_bounds = array<i64: 1, 1, 8, 16>}, {transform_indices = @transform_1, window_bounds = array<i64: 1, 8, 8, 16>}, {transform_indices = @transform_2, window_bounds = array<i64: 1, 1, 8, 16>}, {pipeline_mode = #tpu.pipeline_mode<synchronous>, transform_indices = @transform_3, window_bounds = array<i64: 3, 16, 24>}, {transform_indices = @transform_4, window_bounds = array<i64: 1, 8, 8, 8>}]} {
    %cst = arith.constant 0.000000e+00 : bf16
    %0 = vector.broadcast %cst : bf16 to vector<10x8x16xbf16>
    %c0 = arith.constant 0 : index
    %c8 = arith.constant 8 : index
    %c0_0 = arith.constant 0 : index
    %1 = vector.load %arg7[%c0, %c8, %c0_0] : memref<10x16x16xbf16, #tpu.memory_space<vmem>>, vector<10x8x16xbf16>
    tpu.vector_store %arg7[%c0, %c8, %c0_0], %0 {strides = array<i32>} : memref<10x16x16xbf16, #tpu.memory_space<vmem>>, vector<10x8x16xbf16>,
    %c0_1 = arith.constant 0 : index
    %c0_2 = arith.constant 0 : index
    %c0_3 = arith.constant 0 : index
    %c0_4 = arith.constant 0 : index
    %2 = vector.load %arg3[%c0_1, %c0_2, %c0_3, %c0_4] : memref<1x8x8x16xbf16, #tpu.memory_space<vmem>>, vector<1x8x8x16xbf16>
    %3 = vector.shape_cast %2 : vector<1x8x8x16xbf16> to vector<8x8x16xbf16>
    %c1 = arith.constant 1 : index
    %c0_5 = arith.constant 0 : index
    %c0_6 = arith.constant 0 : index
    %4 = vector.load %arg7[%c1, %c0_5, %c0_6] : memref<10x16x16xbf16, #tpu.memory_space<vmem>>, vector<8x8x16xbf16>
    tpu.vector_store %arg7[%c1, %c0_5, %c0_6], %3 {strides = array<i32>} : memref<10x16x16xbf16, #tpu.memory_space<vmem>>, vector<8x8x16xbf16>,
    %c0_7 = arith.constant 0 : index
    %c0_8 = arith.constant 0 : index
    %c0_9 = arith.constant 0 : index
    %c0_10 = arith.constant 0 : index
    %5 = vector.load %arg2[%c0_7, %c0_8, %c0_9, %c0_10] : memref<1x1x8x16xbf16, #tpu.memory_space<vmem>>, vector<1x1x8x16xbf16>
    %6 = vector.shape_cast %5 : vector<1x1x8x16xbf16> to vector<8x16xbf16>
    %c8_i32 = arith.constant 8 : i32
    %7 = arith.muli %arg1, %c8_i32 : i32
    %c-1_i32 = arith.constant -1 : i32
    %8 = arith.addi %7, %c-1_i32 : i32
    %c0_i32 = arith.constant 0 : i32
    %9 = arith.cmpi sge, %8, %c0_i32 : i32
    %cst_11 = arith.constant 0.000000e+00 : bf16
    %10 = vector.broadcast %cst_11 : bf16 to vector<8x16xbf16>
    %11 = arith.select %9, %6, %10 : vector<8x16xbf16>
    %c0_12 = arith.constant 0 : index
    %c0_13 = arith.constant 0 : index
    %c0_14 = arith.constant 0 : index
    %12 = vector.load %arg7[%c0_12, %c0_13, %c0_14] : memref<10x16x16xbf16, #tpu.memory_space<vmem>>, vector<1x8x16xbf16>
    %13 = vector.shape_cast %12 : vector<1x8x16xbf16> to vector<8x16xbf16>
    %14 = vector.shape_cast %11 : vector<8x16xbf16> to vector<1x8x16xbf16>
    tpu.vector_store %arg7[%c0_12, %c0_13, %c0_14], %14 {strides = array<i32>} : memref<10x16x16xbf16, #tpu.memory_space<vmem>>, vector<1x8x16xbf16>,
    %c0_15 = arith.constant 0 : index
    %c0_16 = arith.constant 0 : index
    %c0_17 = arith.constant 0 : index
    %c0_18 = arith.constant 0 : index
    %15 = vector.load %arg4[%c0_15, %c0_16, %c0_17, %c0_18] : memref<1x1x8x16xbf16, #tpu.memory_space<vmem>>, vector<1x1x8x16xbf16>
    %16 = vector.shape_cast %15 : vector<1x1x8x16xbf16> to vector<8x16xbf16>
    %c8_i32_19 = arith.constant 8 : i32
    %17 = arith.muli %arg1, %c8_i32_19 : i32
    %c8_i32_20 = arith.constant 8 : i32
    %18 = arith.addi %17, %c8_i32_20 : i32
    %c8_i32_21 = arith.constant 8 : i32
    %19 = arith.cmpi slt, %18, %c8_i32_21 : i32
    %cst_22 = arith.constant 0.000000e+00 : bf16
    %20 = vector.broadcast %cst_22 : bf16 to vector<8x16xbf16>
    %21 = arith.select %19, %16, %20 : vector<8x16xbf16>
    %c9 = arith.constant 9 : index
    %c0_23 = arith.constant 0 : index
    %c0_24 = arith.constant 0 : index
    %22 = vector.load %arg7[%c9, %c0_23, %c0_24] : memref<10x16x16xbf16, #tpu.memory_space<vmem>>, vector<1x8x16xbf16>
    %23 = vector.shape_cast %22 : vector<1x8x16xbf16> to vector<8x16xbf16>
    %24 = vector.shape_cast %21 : vector<8x16xbf16> to vector<1x8x16xbf16>
    tpu.vector_store %arg7[%c9, %c0_23, %c0_24], %24 {strides = array<i32>} : memref<10x16x16xbf16, #tpu.memory_space<vmem>>, vector<1x8x16xbf16>,
    %c0_25 = arith.constant 0 : index
    %c0_26 = arith.constant 0 : index
    %c0_27 = arith.constant 0 : index
    %25 = vector.load %arg7[%c0_25, %c0_26, %c0_27] : memref<10x16x16xbf16, #tpu.memory_space<vmem>>, vector<8x16x16xbf16>
    %26 = vector.shape_cast %25 : vector<8x16x16xbf16> to vector<128x16xbf16>
    %c0_28 = arith.constant 0 : index
    %c0_29 = arith.constant 0 : index
    %c0_30 = arith.constant 0 : index
    %27 = vector.load %arg5[%c0_28, %c0_29, %c0_30] : memref<3x16x24xbf16, #tpu.memory_space<vmem>>, vector<1x16x24xbf16>
    %28 = vector.shape_cast %27 : vector<1x16x24xbf16> to vector<16x24xbf16>
    %cst_31 = arith.constant dense<0.000000e+00> : vector<128x24xf32>
    %29 = tpu.matmul %26, %28, %cst_31 {dimension_numbers = #tpu.dot_dimension_numbers<[1], [0], [0], [1], [0, 0, 1, 1], [], []>} : vector<128x16xbf16>, vector<16x24xbf16>, vector<128x24xf32> -> vector<128x24xf32>
    %c1_32 = arith.constant 1 : index
    %c0_33 = arith.constant 0 : index
    %c0_34 = arith.constant 0 : index
    %30 = vector.load %arg7[%c1_32, %c0_33, %c0_34] : memref<10x16x16xbf16, #tpu.memory_space<vmem>>, vector<8x16x16xbf16>
    %31 = vector.shape_cast %30 : vector<8x16x16xbf16> to vector<128x16xbf16>
    %c1_35 = arith.constant 1 : index
    %c0_36 = arith.constant 0 : index
    %c0_37 = arith.constant 0 : index
    %32 = vector.load %arg5[%c1_35, %c0_36, %c0_37] : memref<3x16x24xbf16, #tpu.memory_space<vmem>>, vector<1x16x24xbf16>
    %33 = vector.shape_cast %32 : vector<1x16x24xbf16> to vector<16x24xbf16>
    %cst_38 = arith.constant dense<0.000000e+00> : vector<128x24xf32>
    %34 = tpu.matmul %31, %33, %cst_38 {dimension_numbers = #tpu.dot_dimension_numbers<[1], [0], [0], [1], [0, 0, 1, 1], [], []>} : vector<128x16xbf16>, vector<16x24xbf16>, vector<128x24xf32> -> vector<128x24xf32>
    %35 = arith.addf %29, %34 : vector<128x24xf32>
    %c2 = arith.constant 2 : index
    %c0_39 = arith.constant 0 : index
    %c0_40 = arith.constant 0 : index
    %36 = vector.load %arg7[%c2, %c0_39, %c0_40] : memref<10x16x16xbf16, #tpu.memory_space<vmem>>, vector<8x16x16xbf16>
    %37 = vector.shape_cast %36 : vector<8x16x16xbf16> to vector<128x16xbf16>
    %c2_41 = arith.constant 2 : index
    %c0_42 = arith.constant 0 : index
    %c0_43 = arith.constant 0 : index
    %38 = vector.load %arg5[%c2_41, %c0_42, %c0_43] : memref<3x16x24xbf16, #tpu.memory_space<vmem>>, vector<1x16x24xbf16>
    %39 = vector.shape_cast %38 : vector<1x16x24xbf16> to vector<16x24xbf16>
    %cst_44 = arith.constant dense<0.000000e+00> : vector<128x24xf32>
    %40 = tpu.matmul %37, %39, %cst_44 {dimension_numbers = #tpu.dot_dimension_numbers<[1], [0], [0], [1], [0, 0, 1, 1], [], []>} : vector<128x16xbf16>, vector<16x24xbf16>, vector<128x24xf32> -> vector<128x24xf32>
    %41 = arith.addf %35, %40 : vector<128x24xf32>
    %42 = vector.extract_strided_slice %41 {offsets = [0, 8], sizes = [128, 8], strides = [1, 1]} : vector<128x24xf32> to vector<128x8xf32>
    %43 = vector.extract_strided_slice %41 {offsets = [0, 0], sizes = [128, 8], strides = [1, 1]} : vector<128x24xf32> to vector<128x8xf32>
    %c1_i32 = arith.constant 1 : i32
    %44 = tpu.dynamic_rotate %43 by %c1_i32 dim 0 : vector<128x8xf32>, i32 -> vector<128x8xf32>
    %45 = arith.addf %42, %44 : vector<128x8xf32>
    %46 = vector.extract_strided_slice %41 {offsets = [0, 16], sizes = [128, 8], strides = [1, 1]} : vector<128x24xf32> to vector<128x8xf32>
    %c127_i32 = arith.constant 127 : i32
    %47 = tpu.dynamic_rotate %46 by %c127_i32 dim 0 : vector<128x8xf32>, i32 -> vector<128x8xf32>
    %48 = arith.addf %45, %47 : vector<128x8xf32>
    %49 = vector.shape_cast %48 : vector<128x8xf32> to vector<8x16x8xf32>
    %50 = vector.extract_strided_slice %49 {offsets = [0, 0, 0], sizes = [8, 8, 8], strides = [1, 1, 1]} : vector<8x16x8xf32> to vector<8x8x8xf32>
    %51 = arith.truncf %50 : vector<8x8x8xf32> to vector<8x8x8xbf16>
    %c0_45 = arith.constant 0 : index
    %c0_46 = arith.constant 0 : index
    %c0_47 = arith.constant 0 : index
    %c0_48 = arith.constant 0 : index
    %52 = vector.load %arg6[%c0_45, %c0_46, %c0_47, %c0_48] : memref<1x8x8x8xbf16, #tpu.memory_space<vmem>>, vector<1x8x8x8xbf16>
    %53 = vector.shape_cast %52 : vector<1x8x8x8xbf16> to vector<8x8x8xbf16>
    %54 = vector.shape_cast %51 : vector<8x8x8xbf16> to vector<1x8x8x8xbf16>
    tpu.vector_store %arg6[%c0_45, %c0_46, %c0_47, %c0_48], %54 {strides = array<i32>} : memref<1x8x8x8xbf16, #tpu.memory_space<vmem>>, vector<1x8x8x8xbf16>,
    return
  }
  func.func @transform_0(%arg0: i32, %arg1: i32) -> (i32, i32, i32, i32) {
    %c8_i32 = arith.constant 8 : i32
    %0 = arith.muli %arg1, %c8_i32 : i32
    %c-1_i32 = arith.constant -1 : i32
    %1 = arith.addi %0, %c-1_i32 : i32
    %c0_i32 = arith.constant 0 : i32
    %2 = arith.maxsi %1, %c0_i32 : i32
    %c0_i32_0 = arith.constant 0 : i32
    %c0_i32_1 = arith.constant 0 : i32
    %c0_i32_2 = arith.constant 0 : i32
    return %arg0, %2, %c0_i32_0, %c0_i32_1 : i32, i32, i32, i32
  }
  func.func @transform_1(%arg0: i32, %arg1: i32) -> (i32, i32, i32, i32) {
    %c0_i32 = arith.constant 0 : i32
    %c0_i32_0 = arith.constant 0 : i32
    %c0_i32_1 = arith.constant 0 : i32
    return %arg0, %arg1, %c0_i32, %c0_i32_0 : i32, i32, i32, i32
  }
  func.func @transform_2(%arg0: i32, %arg1: i32) -> (i32, i32, i32, i32) {
    %c8_i32 = arith.constant 8 : i32
    %0 = arith.muli %arg1, %c8_i32 : i32
    %c8_i32_0 = arith.constant 8 : i32
    %1 = arith.addi %0, %c8_i32_0 : i32
    %c7_i32 = arith.constant 7 : i32
    %2 = arith.minsi %1, %c7_i32 : i32
    %c0_i32 = arith.constant 0 : i32
    %c0_i32_1 = arith.constant 0 : i32
    %c0_i32_2 = arith.constant 0 : i32
    return %arg0, %2, %c0_i32, %c0_i32_1 : i32, i32, i32, i32
  }
  func.func @transform_3(%arg0: i32, %arg1: i32) -> (i32, i32, i32) {
    %c0_i32 = arith.constant 0 : i32
    %c0_i32_0 = arith.constant 0 : i32
    %c0_i32_1 = arith.constant 0 : i32
    %c0_i32_2 = arith.constant 0 : i32
    return %c0_i32, %c0_i32_0, %c0_i32_1 : i32, i32, i32
  }
  func.func @transform_4(%arg0: i32, %arg1: i32) -> (i32, i32, i32, i32) {
    %c0_i32 = arith.constant 0 : i32
    %c0_i32_0 = arith.constant 0 : i32
    %c0_i32_1 = arith.constant 0 : i32
    return %arg0, %arg1, %c0_i32, %c0_i32_0 : i32, i32, i32, i32
  }
}

module attributes {stable_mosaic.version = 11 : i64} {
  func.func @_transition_kernel(%arg0: i32, %arg1: i32, %arg2: memref<1x8x8x32xbf16, #tpu.memory_space<vmem>>, %arg3: memref<1x32xf32, #tpu.memory_space<vmem>>, %arg4: memref<1x32xf32, #tpu.memory_space<vmem>>, %arg5: memref<32x16xbf16, #tpu.memory_space<vmem>>, %arg6: memref<1x4x4x16xbf16, #tpu.memory_space<vmem>>, %arg7: memref<4x8x32xf32, #tpu.memory_space<vmem>>) attributes {dimension_semantics = [#tpu.dimension_semantics<parallel>, #tpu.dimension_semantics<parallel>], iteration_bounds = array<i64: 2, 1>, scalar_prefetch = 0 : i64, scratch_operands = 1 : i64, tpu.core_type = #tpu.core_type<tc>, window_params = [{transform_indices = @transform_0, window_bounds = array<i64: 1, 8, 8, 32>}, {pipeline_mode = #tpu.pipeline_mode<synchronous>, transform_indices = @transform_1, window_bounds = array<i64: 1, 32>}, {pipeline_mode = #tpu.pipeline_mode<synchronous>, transform_indices = @transform_2, window_bounds = array<i64: 1, 32>}, {pipeline_mode = #tpu.pipeline_mode<synchronous>, transform_indices = @transform_3, window_bounds = array<i64: 32, 16>}, {transform_indices = @transform_4, window_bounds = array<i64: 1, 4, 4, 16>}]} {
    %c0 = arith.constant 0 : index
    %c0_0 = arith.constant 0 : index
    %c0_1 = arith.constant 0 : index
    %c0_2 = arith.constant 0 : index
    %0 = vector.load %arg2[%c0, %c0_0, %c0_1, %c0_2] : memref<1x8x8x32xbf16, #tpu.memory_space<vmem>>, vector<1x8x8x32xbf16>
    %1 = vector.shape_cast %0 : vector<1x8x8x32xbf16> to vector<8x8x32xbf16>
    %2 = arith.extf %1 : vector<8x8x32xbf16> to vector<8x8x32xf32>
    %c0_3 = arith.constant 0 : index
    %c0_4 = arith.constant 0 : index
    %3 = vector.load %arg3[%c0_3, %c0_4] : memref<1x32xf32, #tpu.memory_space<vmem>>, vector<1x32xf32>
    %4 = vector.shape_cast %3 : vector<1x32xf32> to vector<1x1x32xf32>
    %5 = vector.broadcast %4 : vector<1x1x32xf32> to vector<8x8x32xf32>
    %6 = arith.mulf %2, %5 : vector<8x8x32xf32>
    %c0_5 = arith.constant 0 : index
    %c0_6 = arith.constant 0 : index
    %7 = vector.load %arg4[%c0_5, %c0_6] : memref<1x32xf32, #tpu.memory_space<vmem>>, vector<1x32xf32>
    %8 = vector.shape_cast %7 : vector<1x32xf32> to vector<1x1x32xf32>
    %9 = vector.broadcast %8 : vector<1x1x32xf32> to vector<8x8x32xf32>
    %10 = arith.addf %6, %9 : vector<8x8x32xf32>
    %cst = arith.constant 0.000000e+00 : f32
    %11 = vector.broadcast %cst : f32 to vector<8x8x32xf32>
    %12 = arith.maximumf %10, %11 : vector<8x8x32xf32>
    %13 = vector.shape_cast %12 : vector<8x8x32xf32> to vector<4x2x8x32xf32>
    %14 = vector.extract_strided_slice %13 {offsets = [0, 0, 0, 0], sizes = [4, 1, 8, 32], strides = [1, 1, 1, 1]} : vector<4x2x8x32xf32> to vector<4x1x8x32xf32>
    %15 = vector.shape_cast %14 : vector<4x1x8x32xf32> to vector<4x8x32xf32>
    %16 = vector.extract_strided_slice %13 {offsets = [0, 1, 0, 0], sizes = [4, 1, 8, 32], strides = [1, 1, 1, 1]} : vector<4x2x8x32xf32> to vector<4x1x8x32xf32>
    %17 = vector.shape_cast %16 : vector<4x1x8x32xf32> to vector<4x8x32xf32>
    %18 = arith.addf %15, %17 : vector<4x8x32xf32>
    %c0_7 = arith.constant 0 : index
    %c0_8 = arith.constant 0 : index
    %c0_9 = arith.constant 0 : index
    %19 = vector.load %arg7[%c0_7, %c0_8, %c0_9] : memref<4x8x32xf32, #tpu.memory_space<vmem>>, vector<4x8x32xf32>
    tpu.vector_store %arg7[%c0_7, %c0_8, %c0_9], %18 {strides = array<i32>} : memref<4x8x32xf32, #tpu.memory_space<vmem>>, vector<4x8x32xf32>,
    %c0_10 = arith.constant 0 : index
    %c0_11 = arith.constant 0 : index
    %c0_12 = arith.constant 0 : index
    %20 = tpu.strided_load %arg7[%c0_10, %c0_11, %c0_12] {strides = array<i32: 1, 2, 1>} : memref<4x8x32xf32, #tpu.memory_space<vmem>>, vector<4x4x32xf32>
    %c0_13 = arith.constant 0 : index
    %c1 = arith.constant 1 : index
    %c0_14 = arith.constant 0 : index
    %21 = tpu.strided_load %arg7[%c0_13, %c1, %c0_14] {strides = array<i32: 1, 2, 1>} : memref<4x8x32xf32, #tpu.memory_space<vmem>>, vector<4x4x32xf32>
    %22 = arith.addf %20, %21 : vector<4x4x32xf32>
    %cst_15 = arith.constant 2.500000e-01 : f32
    %23 = vector.broadcast %cst_15 : f32 to vector<4x4x32xf32>
    %24 = arith.mulf %23, %22 : vector<4x4x32xf32>
    %25 = vector.shape_cast %24 : vector<4x4x32xf32> to vector<16x32xf32>
    %26 = arith.truncf %25 : vector<16x32xf32> to vector<16x32xbf16>
    %c0_16 = arith.constant 0 : index
    %c0_17 = arith.constant 0 : index
    %27 = vector.load %arg5[%c0_16, %c0_17] : memref<32x16xbf16, #tpu.memory_space<vmem>>, vector<32x16xbf16>
    %cst_18 = arith.constant dense<0.000000e+00> : vector<16x16xf32>
    %28 = tpu.matmul %26, %27, %cst_18 {dimension_numbers = #tpu.dot_dimension_numbers<[1], [0], [0], [1], [0, 0, 1, 1], [], []>} : vector<16x32xbf16>, vector<32x16xbf16>, vector<16x16xf32> -> vector<16x16xf32>
    %29 = vector.shape_cast %28 : vector<16x16xf32> to vector<4x4x16xf32>
    %30 = arith.truncf %29 : vector<4x4x16xf32> to vector<4x4x16xbf16>
    %c0_19 = arith.constant 0 : index
    %c0_20 = arith.constant 0 : index
    %c0_21 = arith.constant 0 : index
    %c0_22 = arith.constant 0 : index
    %31 = vector.load %arg6[%c0_19, %c0_20, %c0_21, %c0_22] : memref<1x4x4x16xbf16, #tpu.memory_space<vmem>>, vector<1x4x4x16xbf16>
    %32 = vector.shape_cast %31 : vector<1x4x4x16xbf16> to vector<4x4x16xbf16>
    %33 = vector.shape_cast %30 : vector<4x4x16xbf16> to vector<1x4x4x16xbf16>
    tpu.vector_store %arg6[%c0_19, %c0_20, %c0_21, %c0_22], %33 {strides = array<i32>} : memref<1x4x4x16xbf16, #tpu.memory_space<vmem>>, vector<1x4x4x16xbf16>,
    return
  }
  func.func @transform_0(%arg0: i32, %arg1: i32) -> (i32, i32, i32, i32) {
    %c0_i32 = arith.constant 0 : i32
    %c0_i32_0 = arith.constant 0 : i32
    %c0_i32_1 = arith.constant 0 : i32
    return %arg0, %arg1, %c0_i32, %c0_i32_0 : i32, i32, i32, i32
  }
  func.func @transform_1(%arg0: i32, %arg1: i32) -> (i32, i32) {
    %c0_i32 = arith.constant 0 : i32
    %c0_i32_0 = arith.constant 0 : i32
    %c0_i32_1 = arith.constant 0 : i32
    return %c0_i32, %c0_i32_0 : i32, i32
  }
  func.func @transform_2(%arg0: i32, %arg1: i32) -> (i32, i32) {
    %c0_i32 = arith.constant 0 : i32
    %c0_i32_0 = arith.constant 0 : i32
    %c0_i32_1 = arith.constant 0 : i32
    return %c0_i32, %c0_i32_0 : i32, i32
  }
  func.func @transform_3(%arg0: i32, %arg1: i32) -> (i32, i32) {
    %c0_i32 = arith.constant 0 : i32
    %c0_i32_0 = arith.constant 0 : i32
    %c0_i32_1 = arith.constant 0 : i32
    return %c0_i32, %c0_i32_0 : i32, i32
  }
  func.func @transform_4(%arg0: i32, %arg1: i32) -> (i32, i32, i32, i32) {
    %c0_i32 = arith.constant 0 : i32
    %c0_i32_0 = arith.constant 0 : i32
    %c0_i32_1 = arith.constant 0 : i32
    return %arg0, %arg1, %c0_i32, %c0_i32_0 : i32, i32, i32, i32
  }
}

module attributes {stable_mosaic.version = 11 : i64} {
  func.func @kernel(%arg0: i32, %arg1: memref<16x32xbf16, #tpu.memory_space<vmem>>, %arg2: memref<1x32xf32, #tpu.memory_space<vmem>>, %arg3: memref<1x32xf32, #tpu.memory_space<vmem>>, %arg4: memref<32x16xbf16, #tpu.memory_space<vmem>>, %arg5: memref<1x16xf32, #tpu.memory_space<vmem>>, %arg6: memref<16x16xbf16, #tpu.memory_space<vmem>>) attributes {dimension_semantics = [#tpu.dimension_semantics<parallel>], iteration_bounds = array<i64: 2>, scalar_prefetch = 0 : i64, scratch_operands = 0 : i64, tpu.core_type = #tpu.core_type<tc>, window_params = [{transform_indices = @transform_0, window_bounds = array<i64: 16, 32>}, {pipeline_mode = #tpu.pipeline_mode<synchronous>, transform_indices = @transform_1, window_bounds = array<i64: 1, 32>}, {pipeline_mode = #tpu.pipeline_mode<synchronous>, transform_indices = @transform_2, window_bounds = array<i64: 1, 32>}, {pipeline_mode = #tpu.pipeline_mode<synchronous>, transform_indices = @transform_3, window_bounds = array<i64: 32, 16>}, {pipeline_mode = #tpu.pipeline_mode<synchronous>, transform_indices = @transform_4, window_bounds = array<i64: 1, 16>}, {transform_indices = @transform_5, window_bounds = array<i64: 16, 16>}]} {
    %c0 = arith.constant 0 : index
    %c0_0 = arith.constant 0 : index
    %0 = vector.load %arg1[%c0, %c0_0] : memref<16x32xbf16, #tpu.memory_space<vmem>>, vector<16x32xbf16>
    %1 = arith.extf %0 : vector<16x32xbf16> to vector<16x32xf32>
    %c0_1 = arith.constant 0 : index
    %c0_2 = arith.constant 0 : index
    %2 = vector.load %arg2[%c0_1, %c0_2] : memref<1x32xf32, #tpu.memory_space<vmem>>, vector<1x32xf32>
    %3 = vector.broadcast %2 : vector<1x32xf32> to vector<16x32xf32>
    %4 = arith.mulf %1, %3 : vector<16x32xf32>
    %c0_3 = arith.constant 0 : index
    %c0_4 = arith.constant 0 : index
    %5 = vector.load %arg3[%c0_3, %c0_4] : memref<1x32xf32, #tpu.memory_space<vmem>>, vector<1x32xf32>
    %6 = vector.broadcast %5 : vector<1x32xf32> to vector<16x32xf32>
    %7 = arith.addf %4, %6 : vector<16x32xf32>
    %cst = arith.constant 0.000000e+00 : f32
    %8 = vector.broadcast %cst : f32 to vector<16x32xf32>
    %9 = arith.maximumf %7, %8 : vector<16x32xf32>
    %10 = arith.truncf %9 : vector<16x32xf32> to vector<16x32xbf16>
    %c0_5 = arith.constant 0 : index
    %c0_6 = arith.constant 0 : index
    %11 = vector.load %arg4[%c0_5, %c0_6] : memref<32x16xbf16, #tpu.memory_space<vmem>>, vector<32x16xbf16>
    %cst_7 = arith.constant dense<0.000000e+00> : vector<16x16xf32>
    %12 = tpu.matmul %10, %11, %cst_7 {dimension_numbers = #tpu.dot_dimension_numbers<[1], [0], [0], [1], [0, 0, 1, 1], [], []>} : vector<16x32xbf16>, vector<32x16xbf16>, vector<16x16xf32> -> vector<16x16xf32>
    %c0_8 = arith.constant 0 : index
    %c0_9 = arith.constant 0 : index
    %13 = vector.load %arg5[%c0_8, %c0_9] : memref<1x16xf32, #tpu.memory_space<vmem>>, vector<1x16xf32>
    %14 = vector.broadcast %13 : vector<1x16xf32> to vector<16x16xf32>
    %15 = arith.addf %12, %14 : vector<16x16xf32>
    %cst_10 = arith.constant 0.000000e+00 : f32
    %16 = vector.broadcast %cst_10 : f32 to vector<16x16xf32>
    %17 = arith.maximumf %15, %16 : vector<16x16xf32>
    %18 = arith.truncf %17 : vector<16x16xf32> to vector<16x16xbf16>
    %c0_11 = arith.constant 0 : index
    %c0_12 = arith.constant 0 : index
    %19 = vector.load %arg6[%c0_11, %c0_12] : memref<16x16xbf16, #tpu.memory_space<vmem>>, vector<16x16xbf16>
    tpu.vector_store %arg6[%c0_11, %c0_12], %18 {strides = array<i32>} : memref<16x16xbf16, #tpu.memory_space<vmem>>, vector<16x16xbf16>,
    return
  }
  func.func @transform_0(%arg0: i32) -> (i32, i32) {
    %c0_i32 = arith.constant 0 : i32
    %c0_i32_0 = arith.constant 0 : i32
    return %arg0, %c0_i32 : i32, i32
  }
  func.func @transform_1(%arg0: i32) -> (i32, i32) {
    %c0_i32 = arith.constant 0 : i32
    %c0_i32_0 = arith.constant 0 : i32
    %c0_i32_1 = arith.constant 0 : i32
    return %c0_i32, %c0_i32_0 : i32, i32
  }
  func.func @transform_2(%arg0: i32) -> (i32, i32) {
    %c0_i32 = arith.constant 0 : i32
    %c0_i32_0 = arith.constant 0 : i32
    %c0_i32_1 = arith.constant 0 : i32
    return %c0_i32, %c0_i32_0 : i32, i32
  }
  func.func @transform_3(%arg0: i32) -> (i32, i32) {
    %c0_i32 = arith.constant 0 : i32
    %c0_i32_0 = arith.constant 0 : i32
    %c0_i32_1 = arith.constant 0 : i32
    return %c0_i32, %c0_i32_0 : i32, i32
  }
  func.func @transform_4(%arg0: i32) -> (i32, i32) {
    %c0_i32 = arith.constant 0 : i32
    %c0_i32_0 = arith.constant 0 : i32
    %c0_i32_1 = arith.constant 0 : i32
    return %c0_i32, %c0_i32_0 : i32, i32
  }
  func.func @transform_5(%arg0: i32) -> (i32, i32) {
    %c0_i32 = arith.constant 0 : i32
    %c0_i32_0 = arith.constant 0 : i32
    return %arg0, %c0_i32 : i32, i32
  }
}

module attributes {stable_mosaic.version = 11 : i64} {
  func.func @kernel(%arg0: i32, %arg1: i32, %arg2: memref<1x1x4x16xbf16, #tpu.memory_space<vmem>>, %arg3: memref<1x4x4x16xbf16, #tpu.memory_space<vmem>>, %arg4: memref<1x1x4x16xbf16, #tpu.memory_space<vmem>>, %arg5: memref<3x16x24xbf16, #tpu.memory_space<vmem>>, %arg6: memref<1x4x4x8xbf16, #tpu.memory_space<vmem>>, %arg7: memref<6x8x16xbf16, #tpu.memory_space<vmem>>) attributes {dimension_semantics = [#tpu.dimension_semantics<parallel>, #tpu.dimension_semantics<parallel>], iteration_bounds = array<i64: 2, 1>, scalar_prefetch = 0 : i64, scratch_operands = 1 : i64, tpu.core_type = #tpu.core_type<tc>, window_params = [{transform_indices = @transform_0, window_bounds = array<i64: 1, 1, 4, 16>}, {transform_indices = @transform_1, window_bounds = array<i64: 1, 4, 4, 16>}, {transform_indices = @transform_2, window_bounds = array<i64: 1, 1, 4, 16>}, {pipeline_mode = #tpu.pipeline_mode<synchronous>, transform_indices = @transform_3, window_bounds = array<i64: 3, 16, 24>}, {transform_indices = @transform_4, window_bounds = array<i64: 1, 4, 4, 8>}]} {
    %cst = arith.constant 0.000000e+00 : bf16
    %0 = vector.broadcast %cst : bf16 to vector<6x4x16xbf16>
    %c0 = arith.constant 0 : index
    %c4 = arith.constant 4 : index
    %c0_0 = arith.constant 0 : index
    %1 = vector.load %arg7[%c0, %c4, %c0_0] : memref<6x8x16xbf16, #tpu.memory_space<vmem>>, vector<6x4x16xbf16>
    tpu.vector_store %arg7[%c0, %c4, %c0_0], %0 {strides = array<i32>} : memref<6x8x16xbf16, #tpu.memory_space<vmem>>, vector<6x4x16xbf16>,
    %c0_1 = arith.constant 0 : index
    %c0_2 = arith.constant 0 : index
    %c0_3 = arith.constant 0 : index
    %c0_4 = arith.constant 0 : index
    %2 = vector.load %arg3[%c0_1, %c0_2, %c0_3, %c0_4] : memref<1x4x4x16xbf16, #tpu.memory_space<vmem>>, vector<1x4x4x16xbf16>
    %3 = vector.shape_cast %2 : vector<1x4x4x16xbf16> to vector<4x4x16xbf16>
    %c1 = arith.constant 1 : index
    %c0_5 = arith.constant 0 : index
    %c0_6 = arith.constant 0 : index
    %4 = vector.load %arg7[%c1, %c0_5, %c0_6] : memref<6x8x16xbf16, #tpu.memory_space<vmem>>, vector<4x4x16xbf16>
    tpu.vector_store %arg7[%c1, %c0_5, %c0_6], %3 {strides = array<i32>} : memref<6x8x16xbf16, #tpu.memory_space<vmem>>, vector<4x4x16xbf16>,
    %c0_7 = arith.constant 0 : index
    %c0_8 = arith.constant 0 : index
    %c0_9 = arith.constant 0 : index
    %c0_10 = arith.constant 0 : index
    %5 = vector.load %arg2[%c0_7, %c0_8, %c0_9, %c0_10] : memref<1x1x4x16xbf16, #tpu.memory_space<vmem>>, vector<1x1x4x16xbf16>
    %6 = vector.shape_cast %5 : vector<1x1x4x16xbf16> to vector<4x16xbf16>
    %c4_i32 = arith.constant 4 : i32
    %7 = arith.muli %arg1, %c4_i32 : i32
    %c-1_i32 = arith.constant -1 : i32
    %8 = arith.addi %7, %c-1_i32 : i32
    %c0_i32 = arith.constant 0 : i32
    %9 = arith.cmpi sge, %8, %c0_i32 : i32
    %cst_11 = arith.constant 0.000000e+00 : bf16
    %10 = vector.broadcast %cst_11 : bf16 to vector<4x16xbf16>
    %11 = arith.select %9, %6, %10 : vector<4x16xbf16>
    %c0_12 = arith.constant 0 : index
    %c0_13 = arith.constant 0 : index
    %c0_14 = arith.constant 0 : index
    %12 = vector.load %arg7[%c0_12, %c0_13, %c0_14] : memref<6x8x16xbf16, #tpu.memory_space<vmem>>, vector<1x4x16xbf16>
    %13 = vector.shape_cast %12 : vector<1x4x16xbf16> to vector<4x16xbf16>
    %14 = vector.shape_cast %11 : vector<4x16xbf16> to vector<1x4x16xbf16>
    tpu.vector_store %arg7[%c0_12, %c0_13, %c0_14], %14 {strides = array<i32>} : memref<6x8x16xbf16, #tpu.memory_space<vmem>>, vector<1x4x16xbf16>,
    %c0_15 = arith.constant 0 : index
    %c0_16 = arith.constant 0 : index
    %c0_17 = arith.constant 0 : index
    %c0_18 = arith.constant 0 : index
    %15 = vector.load %arg4[%c0_15, %c0_16, %c0_17, %c0_18] : memref<1x1x4x16xbf16, #tpu.memory_space<vmem>>, vector<1x1x4x16xbf16>
    %16 = vector.shape_cast %15 : vector<1x1x4x16xbf16> to vector<4x16xbf16>
    %c4_i32_19 = arith.constant 4 : i32
    %17 = arith.muli %arg1, %c4_i32_19 : i32
    %c4_i32_20 = arith.constant 4 : i32
    %18 = arith.addi %17, %c4_i32_20 : i32
    %c4_i32_21 = arith.constant 4 : i32
    %19 = arith.cmpi slt, %18, %c4_i32_21 : i32
    %cst_22 = arith.constant 0.000000e+00 : bf16
    %20 = vector.broadcast %cst_22 : bf16 to vector<4x16xbf16>
    %21 = arith.select %19, %16, %20 : vector<4x16xbf16>
    %c5 = arith.constant 5 : index
    %c0_23 = arith.constant 0 : index
    %c0_24 = arith.constant 0 : index
    %22 = vector.load %arg7[%c5, %c0_23, %c0_24] : memref<6x8x16xbf16, #tpu.memory_space<vmem>>, vector<1x4x16xbf16>
    %23 = vector.shape_cast %22 : vector<1x4x16xbf16> to vector<4x16xbf16>
    %24 = vector.shape_cast %21 : vector<4x16xbf16> to vector<1x4x16xbf16>
    tpu.vector_store %arg7[%c5, %c0_23, %c0_24], %24 {strides = array<i32>} : memref<6x8x16xbf16, #tpu.memory_space<vmem>>, vector<1x4x16xbf16>,
    %c0_25 = arith.constant 0 : index
    %c0_26 = arith.constant 0 : index
    %c0_27 = arith.constant 0 : index
    %25 = vector.load %arg7[%c0_25, %c0_26, %c0_27] : memref<6x8x16xbf16, #tpu.memory_space<vmem>>, vector<4x8x16xbf16>
    %26 = vector.shape_cast %25 : vector<4x8x16xbf16> to vector<32x16xbf16>
    %c0_28 = arith.constant 0 : index
    %c0_29 = arith.constant 0 : index
    %c0_30 = arith.constant 0 : index
    %27 = vector.load %arg5[%c0_28, %c0_29, %c0_30] : memref<3x16x24xbf16, #tpu.memory_space<vmem>>, vector<1x16x24xbf16>
    %28 = vector.shape_cast %27 : vector<1x16x24xbf16> to vector<16x24xbf16>
    %cst_31 = arith.constant dense<0.000000e+00> : vector<32x24xf32>
    %29 = tpu.matmul %26, %28, %cst_31 {dimension_numbers = #tpu.dot_dimension_numbers<[1], [0], [0], [1], [0, 0, 1, 1], [], []>} : vector<32x16xbf16>, vector<16x24xbf16>, vector<32x24xf32> -> vector<32x24xf32>
    %c1_32 = arith.constant 1 : index
    %c0_33 = arith.constant 0 : index
    %c0_34 = arith.constant 0 : index
    %30 = vector.load %arg7[%c1_32, %c0_33, %c0_34] : memref<6x8x16xbf16, #tpu.memory_space<vmem>>, vector<4x8x16xbf16>
    %31 = vector.shape_cast %30 : vector<4x8x16xbf16> to vector<32x16xbf16>
    %c1_35 = arith.constant 1 : index
    %c0_36 = arith.constant 0 : index
    %c0_37 = arith.constant 0 : index
    %32 = vector.load %arg5[%c1_35, %c0_36, %c0_37] : memref<3x16x24xbf16, #tpu.memory_space<vmem>>, vector<1x16x24xbf16>
    %33 = vector.shape_cast %32 : vector<1x16x24xbf16> to vector<16x24xbf16>
    %cst_38 = arith.constant dense<0.000000e+00> : vector<32x24xf32>
    %34 = tpu.matmul %31, %33, %cst_38 {dimension_numbers = #tpu.dot_dimension_numbers<[1], [0], [0], [1], [0, 0, 1, 1], [], []>} : vector<32x16xbf16>, vector<16x24xbf16>, vector<32x24xf32> -> vector<32x24xf32>
    %35 = arith.addf %29, %34 : vector<32x24xf32>
    %c2 = arith.constant 2 : index
    %c0_39 = arith.constant 0 : index
    %c0_40 = arith.constant 0 : index
    %36 = vector.load %arg7[%c2, %c0_39, %c0_40] : memref<6x8x16xbf16, #tpu.memory_space<vmem>>, vector<4x8x16xbf16>
    %37 = vector.shape_cast %36 : vector<4x8x16xbf16> to vector<32x16xbf16>
    %c2_41 = arith.constant 2 : index
    %c0_42 = arith.constant 0 : index
    %c0_43 = arith.constant 0 : index
    %38 = vector.load %arg5[%c2_41, %c0_42, %c0_43] : memref<3x16x24xbf16, #tpu.memory_space<vmem>>, vector<1x16x24xbf16>
    %39 = vector.shape_cast %38 : vector<1x16x24xbf16> to vector<16x24xbf16>
    %cst_44 = arith.constant dense<0.000000e+00> : vector<32x24xf32>
    %40 = tpu.matmul %37, %39, %cst_44 {dimension_numbers = #tpu.dot_dimension_numbers<[1], [0], [0], [1], [0, 0, 1, 1], [], []>} : vector<32x16xbf16>, vector<16x24xbf16>, vector<32x24xf32> -> vector<32x24xf32>
    %41 = arith.addf %35, %40 : vector<32x24xf32>
    %42 = vector.extract_strided_slice %41 {offsets = [0, 8], sizes = [32, 8], strides = [1, 1]} : vector<32x24xf32> to vector<32x8xf32>
    %43 = vector.extract_strided_slice %41 {offsets = [0, 0], sizes = [32, 8], strides = [1, 1]} : vector<32x24xf32> to vector<32x8xf32>
    %c1_i32 = arith.constant 1 : i32
    %44 = tpu.dynamic_rotate %43 by %c1_i32 dim 0 : vector<32x8xf32>, i32 -> vector<32x8xf32>
    %45 = arith.addf %42, %44 : vector<32x8xf32>
    %46 = vector.extract_strided_slice %41 {offsets = [0, 16], sizes = [32, 8], strides = [1, 1]} : vector<32x24xf32> to vector<32x8xf32>
    %c31_i32 = arith.constant 31 : i32
    %47 = tpu.dynamic_rotate %46 by %c31_i32 dim 0 : vector<32x8xf32>, i32 -> vector<32x8xf32>
    %48 = arith.addf %45, %47 : vector<32x8xf32>
    %49 = vector.shape_cast %48 : vector<32x8xf32> to vector<4x8x8xf32>
    %50 = vector.extract_strided_slice %49 {offsets = [0, 0, 0], sizes = [4, 4, 8], strides = [1, 1, 1]} : vector<4x8x8xf32> to vector<4x4x8xf32>
    %51 = arith.truncf %50 : vector<4x4x8xf32> to vector<4x4x8xbf16>
    %c0_45 = arith.constant 0 : index
    %c0_46 = arith.constant 0 : index
    %c0_47 = arith.constant 0 : index
    %c0_48 = arith.constant 0 : index
    %52 = vector.load %arg6[%c0_45, %c0_46, %c0_47, %c0_48] : memref<1x4x4x8xbf16, #tpu.memory_space<vmem>>, vector<1x4x4x8xbf16>
    %53 = vector.shape_cast %52 : vector<1x4x4x8xbf16> to vector<4x4x8xbf16>
    %54 = vector.shape_cast %51 : vector<4x4x8xbf16> to vector<1x4x4x8xbf16>
    tpu.vector_store %arg6[%c0_45, %c0_46, %c0_47, %c0_48], %54 {strides = array<i32>} : memref<1x4x4x8xbf16, #tpu.memory_space<vmem>>, vector<1x4x4x8xbf16>,
    return
  }
  func.func @transform_0(%arg0: i32, %arg1: i32) -> (i32, i32, i32, i32) {
    %c4_i32 = arith.constant 4 : i32
    %0 = arith.muli %arg1, %c4_i32 : i32
    %c-1_i32 = arith.constant -1 : i32
    %1 = arith.addi %0, %c-1_i32 : i32
    %c0_i32 = arith.constant 0 : i32
    %2 = arith.maxsi %1, %c0_i32 : i32
    %c0_i32_0 = arith.constant 0 : i32
    %c0_i32_1 = arith.constant 0 : i32
    %c0_i32_2 = arith.constant 0 : i32
    return %arg0, %2, %c0_i32_0, %c0_i32_1 : i32, i32, i32, i32
  }
  func.func @transform_1(%arg0: i32, %arg1: i32) -> (i32, i32, i32, i32) {
    %c0_i32 = arith.constant 0 : i32
    %c0_i32_0 = arith.constant 0 : i32
    %c0_i32_1 = arith.constant 0 : i32
    return %arg0, %arg1, %c0_i32, %c0_i32_0 : i32, i32, i32, i32
  }
  func.func @transform_2(%arg0: i32, %arg1: i32) -> (i32, i32, i32, i32) {
    %c4_i32 = arith.constant 4 : i32
    %0 = arith.muli %arg1, %c4_i32 : i32
    %c4_i32_0 = arith.constant 4 : i32
    %1 = arith.addi %0, %c4_i32_0 : i32
    %c3_i32 = arith.constant 3 : i32
    %2 = arith.minsi %1, %c3_i32 : i32
    %c0_i32 = arith.constant 0 : i32
    %c0_i32_1 = arith.constant 0 : i32
    %c0_i32_2 = arith.constant 0 : i32
    return %arg0, %2, %c0_i32, %c0_i32_1 : i32, i32, i32, i32
  }
  func.func @transform_3(%arg0: i32, %arg1: i32) -> (i32, i32, i32) {
    %c0_i32 = arith.constant 0 : i32
    %c0_i32_0 = arith.constant 0 : i32
    %c0_i32_1 = arith.constant 0 : i32
    %c0_i32_2 = arith.constant 0 : i32
    return %c0_i32, %c0_i32_0, %c0_i32_1 : i32, i32, i32
  }
  func.func @transform_4(%arg0: i32, %arg1: i32) -> (i32, i32, i32, i32) {
    %c0_i32 = arith.constant 0 : i32
    %c0_i32_0 = arith.constant 0 : i32
    %c0_i32_1 = arith.constant 0 : i32
    return %arg0, %arg1, %c0_i32, %c0_i32_0 : i32, i32, i32, i32
  }
}

module attributes {stable_mosaic.version = 11 : i64} {
  func.func @_transition_kernel(%arg0: i32, %arg1: i32, %arg2: memref<1x4x4x32xbf16, #tpu.memory_space<vmem>>, %arg3: memref<1x32xf32, #tpu.memory_space<vmem>>, %arg4: memref<1x32xf32, #tpu.memory_space<vmem>>, %arg5: memref<32x16xbf16, #tpu.memory_space<vmem>>, %arg6: memref<1x2x2x16xbf16, #tpu.memory_space<vmem>>, %arg7: memref<2x4x32xf32, #tpu.memory_space<vmem>>) attributes {dimension_semantics = [#tpu.dimension_semantics<parallel>, #tpu.dimension_semantics<parallel>], iteration_bounds = array<i64: 2, 1>, scalar_prefetch = 0 : i64, scratch_operands = 1 : i64, tpu.core_type = #tpu.core_type<tc>, window_params = [{transform_indices = @transform_0, window_bounds = array<i64: 1, 4, 4, 32>}, {pipeline_mode = #tpu.pipeline_mode<synchronous>, transform_indices = @transform_1, window_bounds = array<i64: 1, 32>}, {pipeline_mode = #tpu.pipeline_mode<synchronous>, transform_indices = @transform_2, window_bounds = array<i64: 1, 32>}, {pipeline_mode = #tpu.pipeline_mode<synchronous>, transform_indices = @transform_3, window_bounds = array<i64: 32, 16>}, {transform_indices = @transform_4, window_bounds = array<i64: 1, 2, 2, 16>}]} {
    %c0 = arith.constant 0 : index
    %c0_0 = arith.constant 0 : index
    %c0_1 = arith.constant 0 : index
    %c0_2 = arith.constant 0 : index
    %0 = vector.load %arg2[%c0, %c0_0, %c0_1, %c0_2] : memref<1x4x4x32xbf16, #tpu.memory_space<vmem>>, vector<1x4x4x32xbf16>
    %1 = vector.shape_cast %0 : vector<1x4x4x32xbf16> to vector<4x4x32xbf16>
    %2 = arith.extf %1 : vector<4x4x32xbf16> to vector<4x4x32xf32>
    %c0_3 = arith.constant 0 : index
    %c0_4 = arith.constant 0 : index
    %3 = vector.load %arg3[%c0_3, %c0_4] : memref<1x32xf32, #tpu.memory_space<vmem>>, vector<1x32xf32>
    %4 = vector.shape_cast %3 : vector<1x32xf32> to vector<1x1x32xf32>
    %5 = vector.broadcast %4 : vector<1x1x32xf32> to vector<4x4x32xf32>
    %6 = arith.mulf %2, %5 : vector<4x4x32xf32>
    %c0_5 = arith.constant 0 : index
    %c0_6 = arith.constant 0 : index
    %7 = vector.load %arg4[%c0_5, %c0_6] : memref<1x32xf32, #tpu.memory_space<vmem>>, vector<1x32xf32>
    %8 = vector.shape_cast %7 : vector<1x32xf32> to vector<1x1x32xf32>
    %9 = vector.broadcast %8 : vector<1x1x32xf32> to vector<4x4x32xf32>
    %10 = arith.addf %6, %9 : vector<4x4x32xf32>
    %cst = arith.constant 0.000000e+00 : f32
    %11 = vector.broadcast %cst : f32 to vector<4x4x32xf32>
    %12 = arith.maximumf %10, %11 : vector<4x4x32xf32>
    %13 = vector.shape_cast %12 : vector<4x4x32xf32> to vector<2x2x4x32xf32>
    %14 = vector.extract_strided_slice %13 {offsets = [0, 0, 0, 0], sizes = [2, 1, 4, 32], strides = [1, 1, 1, 1]} : vector<2x2x4x32xf32> to vector<2x1x4x32xf32>
    %15 = vector.shape_cast %14 : vector<2x1x4x32xf32> to vector<2x4x32xf32>
    %16 = vector.extract_strided_slice %13 {offsets = [0, 1, 0, 0], sizes = [2, 1, 4, 32], strides = [1, 1, 1, 1]} : vector<2x2x4x32xf32> to vector<2x1x4x32xf32>
    %17 = vector.shape_cast %16 : vector<2x1x4x32xf32> to vector<2x4x32xf32>
    %18 = arith.addf %15, %17 : vector<2x4x32xf32>
    %c0_7 = arith.constant 0 : index
    %c0_8 = arith.constant 0 : index
    %c0_9 = arith.constant 0 : index
    %19 = vector.load %arg7[%c0_7, %c0_8, %c0_9] : memref<2x4x32xf32, #tpu.memory_space<vmem>>, vector<2x4x32xf32>
    tpu.vector_store %arg7[%c0_7, %c0_8, %c0_9], %18 {strides = array<i32>} : memref<2x4x32xf32, #tpu.memory_space<vmem>>, vector<2x4x32xf32>,
    %c0_10 = arith.constant 0 : index
    %c0_11 = arith.constant 0 : index
    %c0_12 = arith.constant 0 : index
    %20 = tpu.strided_load %arg7[%c0_10, %c0_11, %c0_12] {strides = array<i32: 1, 2, 1>} : memref<2x4x32xf32, #tpu.memory_space<vmem>>, vector<2x2x32xf32>
    %c0_13 = arith.constant 0 : index
    %c1 = arith.constant 1 : index
    %c0_14 = arith.constant 0 : index
    %21 = tpu.strided_load %arg7[%c0_13, %c1, %c0_14] {strides = array<i32: 1, 2, 1>} : memref<2x4x32xf32, #tpu.memory_space<vmem>>, vector<2x2x32xf32>
    %22 = arith.addf %20, %21 : vector<2x2x32xf32>
    %cst_15 = arith.constant 2.500000e-01 : f32
    %23 = vector.broadcast %cst_15 : f32 to vector<2x2x32xf32>
    %24 = arith.mulf %23, %22 : vector<2x2x32xf32>
    %25 = vector.shape_cast %24 : vector<2x2x32xf32> to vector<4x32xf32>
    %26 = arith.truncf %25 : vector<4x32xf32> to vector<4x32xbf16>
    %c0_16 = arith.constant 0 : index
    %c0_17 = arith.constant 0 : index
    %27 = vector.load %arg5[%c0_16, %c0_17] : memref<32x16xbf16, #tpu.memory_space<vmem>>, vector<32x16xbf16>
    %cst_18 = arith.constant dense<0.000000e+00> : vector<4x16xf32>
    %28 = tpu.matmul %26, %27, %cst_18 {dimension_numbers = #tpu.dot_dimension_numbers<[1], [0], [0], [1], [0, 0, 1, 1], [], []>} : vector<4x32xbf16>, vector<32x16xbf16>, vector<4x16xf32> -> vector<4x16xf32>
    %29 = vector.shape_cast %28 : vector<4x16xf32> to vector<2x2x16xf32>
    %30 = arith.truncf %29 : vector<2x2x16xf32> to vector<2x2x16xbf16>
    %c0_19 = arith.constant 0 : index
    %c0_20 = arith.constant 0 : index
    %c0_21 = arith.constant 0 : index
    %c0_22 = arith.constant 0 : index
    %31 = vector.load %arg6[%c0_19, %c0_20, %c0_21, %c0_22] : memref<1x2x2x16xbf16, #tpu.memory_space<vmem>>, vector<1x2x2x16xbf16>
    %32 = vector.shape_cast %31 : vector<1x2x2x16xbf16> to vector<2x2x16xbf16>
    %33 = vector.shape_cast %30 : vector<2x2x16xbf16> to vector<1x2x2x16xbf16>
    tpu.vector_store %arg6[%c0_19, %c0_20, %c0_21, %c0_22], %33 {strides = array<i32>} : memref<1x2x2x16xbf16, #tpu.memory_space<vmem>>, vector<1x2x2x16xbf16>,
    return
  }
  func.func @transform_0(%arg0: i32, %arg1: i32) -> (i32, i32, i32, i32) {
    %c0_i32 = arith.constant 0 : i32
    %c0_i32_0 = arith.constant 0 : i32
    %c0_i32_1 = arith.constant 0 : i32
    return %arg0, %arg1, %c0_i32, %c0_i32_0 : i32, i32, i32, i32
  }
  func.func @transform_1(%arg0: i32, %arg1: i32) -> (i32, i32) {
    %c0_i32 = arith.constant 0 : i32
    %c0_i32_0 = arith.constant 0 : i32
    %c0_i32_1 = arith.constant 0 : i32
    return %c0_i32, %c0_i32_0 : i32, i32
  }
  func.func @transform_2(%arg0: i32, %arg1: i32) -> (i32, i32) {
    %c0_i32 = arith.constant 0 : i32
    %c0_i32_0 = arith.constant 0 : i32
    %c0_i32_1 = arith.constant 0 : i32
    return %c0_i32, %c0_i32_0 : i32, i32
  }
  func.func @transform_3(%arg0: i32, %arg1: i32) -> (i32, i32) {
    %c0_i32 = arith.constant 0 : i32
    %c0_i32_0 = arith.constant 0 : i32
    %c0_i32_1 = arith.constant 0 : i32
    return %c0_i32, %c0_i32_0 : i32, i32
  }
  func.func @transform_4(%arg0: i32, %arg1: i32) -> (i32, i32, i32, i32) {
    %c0_i32 = arith.constant 0 : i32
    %c0_i32_0 = arith.constant 0 : i32
    %c0_i32_1 = arith.constant 0 : i32
    return %arg0, %arg1, %c0_i32, %c0_i32_0 : i32, i32, i32, i32
  }
}

module attributes {stable_mosaic.version = 11 : i64} {
  func.func @kernel(%arg0: i32, %arg1: memref<8x32xbf16, #tpu.memory_space<vmem>>, %arg2: memref<1x32xf32, #tpu.memory_space<vmem>>, %arg3: memref<1x32xf32, #tpu.memory_space<vmem>>, %arg4: memref<32x16xbf16, #tpu.memory_space<vmem>>, %arg5: memref<1x16xf32, #tpu.memory_space<vmem>>, %arg6: memref<8x16xbf16, #tpu.memory_space<vmem>>) attributes {dimension_semantics = [#tpu.dimension_semantics<parallel>], iteration_bounds = array<i64: 1>, scalar_prefetch = 0 : i64, scratch_operands = 0 : i64, tpu.core_type = #tpu.core_type<tc>, window_params = [{transform_indices = @transform_0, window_bounds = array<i64: 8, 32>}, {pipeline_mode = #tpu.pipeline_mode<synchronous>, transform_indices = @transform_1, window_bounds = array<i64: 1, 32>}, {pipeline_mode = #tpu.pipeline_mode<synchronous>, transform_indices = @transform_2, window_bounds = array<i64: 1, 32>}, {pipeline_mode = #tpu.pipeline_mode<synchronous>, transform_indices = @transform_3, window_bounds = array<i64: 32, 16>}, {pipeline_mode = #tpu.pipeline_mode<synchronous>, transform_indices = @transform_4, window_bounds = array<i64: 1, 16>}, {transform_indices = @transform_5, window_bounds = array<i64: 8, 16>}]} {
    %c0 = arith.constant 0 : index
    %c0_0 = arith.constant 0 : index
    %0 = vector.load %arg1[%c0, %c0_0] : memref<8x32xbf16, #tpu.memory_space<vmem>>, vector<8x32xbf16>
    %1 = arith.extf %0 : vector<8x32xbf16> to vector<8x32xf32>
    %c0_1 = arith.constant 0 : index
    %c0_2 = arith.constant 0 : index
    %2 = vector.load %arg2[%c0_1, %c0_2] : memref<1x32xf32, #tpu.memory_space<vmem>>, vector<1x32xf32>
    %3 = vector.broadcast %2 : vector<1x32xf32> to vector<8x32xf32>
    %4 = arith.mulf %1, %3 : vector<8x32xf32>
    %c0_3 = arith.constant 0 : index
    %c0_4 = arith.constant 0 : index
    %5 = vector.load %arg3[%c0_3, %c0_4] : memref<1x32xf32, #tpu.memory_space<vmem>>, vector<1x32xf32>
    %6 = vector.broadcast %5 : vector<1x32xf32> to vector<8x32xf32>
    %7 = arith.addf %4, %6 : vector<8x32xf32>
    %cst = arith.constant 0.000000e+00 : f32
    %8 = vector.broadcast %cst : f32 to vector<8x32xf32>
    %9 = arith.maximumf %7, %8 : vector<8x32xf32>
    %10 = arith.truncf %9 : vector<8x32xf32> to vector<8x32xbf16>
    %c0_5 = arith.constant 0 : index
    %c0_6 = arith.constant 0 : index
    %11 = vector.load %arg4[%c0_5, %c0_6] : memref<32x16xbf16, #tpu.memory_space<vmem>>, vector<32x16xbf16>
    %cst_7 = arith.constant dense<0.000000e+00> : vector<8x16xf32>
    %12 = tpu.matmul %10, %11, %cst_7 {dimension_numbers = #tpu.dot_dimension_numbers<[1], [0], [0], [1], [0, 0, 1, 1], [], []>} : vector<8x32xbf16>, vector<32x16xbf16>, vector<8x16xf32> -> vector<8x16xf32>
    %c0_8 = arith.constant 0 : index
    %c0_9 = arith.constant 0 : index
    %13 = vector.load %arg5[%c0_8, %c0_9] : memref<1x16xf32, #tpu.memory_space<vmem>>, vector<1x16xf32>
    %14 = vector.broadcast %13 : vector<1x16xf32> to vector<8x16xf32>
    %15 = arith.addf %12, %14 : vector<8x16xf32>
    %cst_10 = arith.constant 0.000000e+00 : f32
    %16 = vector.broadcast %cst_10 : f32 to vector<8x16xf32>
    %17 = arith.maximumf %15, %16 : vector<8x16xf32>
    %18 = arith.truncf %17 : vector<8x16xf32> to vector<8x16xbf16>
    %c0_11 = arith.constant 0 : index
    %c0_12 = arith.constant 0 : index
    %19 = vector.load %arg6[%c0_11, %c0_12] : memref<8x16xbf16, #tpu.memory_space<vmem>>, vector<8x16xbf16>
    tpu.vector_store %arg6[%c0_11, %c0_12], %18 {strides = array<i32>} : memref<8x16xbf16, #tpu.memory_space<vmem>>, vector<8x16xbf16>,
    return
  }
  func.func @transform_0(%arg0: i32) -> (i32, i32) {
    %c0_i32 = arith.constant 0 : i32
    %c0_i32_0 = arith.constant 0 : i32
    return %arg0, %c0_i32 : i32, i32
  }
  func.func @transform_1(%arg0: i32) -> (i32, i32) {
    %c0_i32 = arith.constant 0 : i32
    %c0_i32_0 = arith.constant 0 : i32
    %c0_i32_1 = arith.constant 0 : i32
    return %c0_i32, %c0_i32_0 : i32, i32
  }
  func.func @transform_2(%arg0: i32) -> (i32, i32) {
    %c0_i32 = arith.constant 0 : i32
    %c0_i32_0 = arith.constant 0 : i32
    %c0_i32_1 = arith.constant 0 : i32
    return %c0_i32, %c0_i32_0 : i32, i32
  }
  func.func @transform_3(%arg0: i32) -> (i32, i32) {
    %c0_i32 = arith.constant 0 : i32
    %c0_i32_0 = arith.constant 0 : i32
    %c0_i32_1 = arith.constant 0 : i32
    return %c0_i32, %c0_i32_0 : i32, i32
  }
  func.func @transform_4(%arg0: i32) -> (i32, i32) {
    %c0_i32 = arith.constant 0 : i32
    %c0_i32_0 = arith.constant 0 : i32
    %c0_i32_1 = arith.constant 0 : i32
    return %c0_i32, %c0_i32_0 : i32, i32
  }
  func.func @transform_5(%arg0: i32) -> (i32, i32) {
    %c0_i32 = arith.constant 0 : i32
    %c0_i32_0 = arith.constant 0 : i32
    return %arg0, %c0_i32 : i32, i32
  }
}

module attributes {stable_mosaic.version = 11 : i64} {
  func.func @kernel(%arg0: i32, %arg1: i32, %arg2: memref<1x1x2x16xbf16, #tpu.memory_space<vmem>>, %arg3: memref<1x2x2x16xbf16, #tpu.memory_space<vmem>>, %arg4: memref<1x1x2x16xbf16, #tpu.memory_space<vmem>>, %arg5: memref<3x16x24xbf16, #tpu.memory_space<vmem>>, %arg6: memref<1x2x2x8xbf16, #tpu.memory_space<vmem>>, %arg7: memref<4x8x16xbf16, #tpu.memory_space<vmem>>) attributes {dimension_semantics = [#tpu.dimension_semantics<parallel>, #tpu.dimension_semantics<parallel>], iteration_bounds = array<i64: 2, 1>, scalar_prefetch = 0 : i64, scratch_operands = 1 : i64, tpu.core_type = #tpu.core_type<tc>, window_params = [{transform_indices = @transform_0, window_bounds = array<i64: 1, 1, 2, 16>}, {transform_indices = @transform_1, window_bounds = array<i64: 1, 2, 2, 16>}, {transform_indices = @transform_2, window_bounds = array<i64: 1, 1, 2, 16>}, {pipeline_mode = #tpu.pipeline_mode<synchronous>, transform_indices = @transform_3, window_bounds = array<i64: 3, 16, 24>}, {transform_indices = @transform_4, window_bounds = array<i64: 1, 2, 2, 8>}]} {
    %cst = arith.constant 0.000000e+00 : bf16
    %0 = vector.broadcast %cst : bf16 to vector<4x6x16xbf16>
    %c0 = arith.constant 0 : index
    %c2 = arith.constant 2 : index
    %c0_0 = arith.constant 0 : index
    %1 = vector.load %arg7[%c0, %c2, %c0_0] : memref<4x8x16xbf16, #tpu.memory_space<vmem>>, vector<4x6x16xbf16>
    tpu.vector_store %arg7[%c0, %c2, %c0_0], %0 {strides = array<i32>} : memref<4x8x16xbf16, #tpu.memory_space<vmem>>, vector<4x6x16xbf16>,
    %c0_1 = arith.constant 0 : index
    %c0_2 = arith.constant 0 : index
    %c0_3 = arith.constant 0 : index
    %c0_4 = arith.constant 0 : index
    %2 = vector.load %arg3[%c0_1, %c0_2, %c0_3, %c0_4] : memref<1x2x2x16xbf16, #tpu.memory_space<vmem>>, vector<1x2x2x16xbf16>
    %3 = vector.shape_cast %2 : vector<1x2x2x16xbf16> to vector<2x2x16xbf16>
    %c1 = arith.constant 1 : index
    %c0_5 = arith.constant 0 : index
    %c0_6 = arith.constant 0 : index
    %4 = vector.load %arg7[%c1, %c0_5, %c0_6] : memref<4x8x16xbf16, #tpu.memory_space<vmem>>, vector<2x2x16xbf16>
    tpu.vector_store %arg7[%c1, %c0_5, %c0_6], %3 {strides = array<i32>} : memref<4x8x16xbf16, #tpu.memory_space<vmem>>, vector<2x2x16xbf16>,
    %c0_7 = arith.constant 0 : index
    %c0_8 = arith.constant 0 : index
    %c0_9 = arith.constant 0 : index
    %c0_10 = arith.constant 0 : index
    %5 = vector.load %arg2[%c0_7, %c0_8, %c0_9, %c0_10] : memref<1x1x2x16xbf16, #tpu.memory_space<vmem>>, vector<1x1x2x16xbf16>
    %6 = vector.shape_cast %5 : vector<1x1x2x16xbf16> to vector<2x16xbf16>
    %c2_i32 = arith.constant 2 : i32
    %7 = arith.muli %arg1, %c2_i32 : i32
    %c-1_i32 = arith.constant -1 : i32
    %8 = arith.addi %7, %c-1_i32 : i32
    %c0_i32 = arith.constant 0 : i32
    %9 = arith.cmpi sge, %8, %c0_i32 : i32
    %cst_11 = arith.constant 0.000000e+00 : bf16
    %10 = vector.broadcast %cst_11 : bf16 to vector<2x16xbf16>
    %11 = arith.select %9, %6, %10 : vector<2x16xbf16>
    %c0_12 = arith.constant 0 : index
    %c0_13 = arith.constant 0 : index
    %c0_14 = arith.constant 0 : index
    %12 = vector.load %arg7[%c0_12, %c0_13, %c0_14] : memref<4x8x16xbf16, #tpu.memory_space<vmem>>, vector<1x2x16xbf16>
    %13 = vector.shape_cast %12 : vector<1x2x16xbf16> to vector<2x16xbf16>
    %14 = vector.shape_cast %11 : vector<2x16xbf16> to vector<1x2x16xbf16>
    tpu.vector_store %arg7[%c0_12, %c0_13, %c0_14], %14 {strides = array<i32>} : memref<4x8x16xbf16, #tpu.memory_space<vmem>>, vector<1x2x16xbf16>,
    %c0_15 = arith.constant 0 : index
    %c0_16 = arith.constant 0 : index
    %c0_17 = arith.constant 0 : index
    %c0_18 = arith.constant 0 : index
    %15 = vector.load %arg4[%c0_15, %c0_16, %c0_17, %c0_18] : memref<1x1x2x16xbf16, #tpu.memory_space<vmem>>, vector<1x1x2x16xbf16>
    %16 = vector.shape_cast %15 : vector<1x1x2x16xbf16> to vector<2x16xbf16>
    %c2_i32_19 = arith.constant 2 : i32
    %17 = arith.muli %arg1, %c2_i32_19 : i32
    %c2_i32_20 = arith.constant 2 : i32
    %18 = arith.addi %17, %c2_i32_20 : i32
    %c2_i32_21 = arith.constant 2 : i32
    %19 = arith.cmpi slt, %18, %c2_i32_21 : i32
    %cst_22 = arith.constant 0.000000e+00 : bf16
    %20 = vector.broadcast %cst_22 : bf16 to vector<2x16xbf16>
    %21 = arith.select %19, %16, %20 : vector<2x16xbf16>
    %c3 = arith.constant 3 : index
    %c0_23 = arith.constant 0 : index
    %c0_24 = arith.constant 0 : index
    %22 = vector.load %arg7[%c3, %c0_23, %c0_24] : memref<4x8x16xbf16, #tpu.memory_space<vmem>>, vector<1x2x16xbf16>
    %23 = vector.shape_cast %22 : vector<1x2x16xbf16> to vector<2x16xbf16>
    %24 = vector.shape_cast %21 : vector<2x16xbf16> to vector<1x2x16xbf16>
    tpu.vector_store %arg7[%c3, %c0_23, %c0_24], %24 {strides = array<i32>} : memref<4x8x16xbf16, #tpu.memory_space<vmem>>, vector<1x2x16xbf16>,
    %c0_25 = arith.constant 0 : index
    %c0_26 = arith.constant 0 : index
    %c0_27 = arith.constant 0 : index
    %25 = vector.load %arg7[%c0_25, %c0_26, %c0_27] : memref<4x8x16xbf16, #tpu.memory_space<vmem>>, vector<2x8x16xbf16>
    %26 = vector.shape_cast %25 : vector<2x8x16xbf16> to vector<16x16xbf16>
    %c0_28 = arith.constant 0 : index
    %c0_29 = arith.constant 0 : index
    %c0_30 = arith.constant 0 : index
    %27 = vector.load %arg5[%c0_28, %c0_29, %c0_30] : memref<3x16x24xbf16, #tpu.memory_space<vmem>>, vector<1x16x24xbf16>
    %28 = vector.shape_cast %27 : vector<1x16x24xbf16> to vector<16x24xbf16>
    %cst_31 = arith.constant dense<0.000000e+00> : vector<16x24xf32>
    %29 = tpu.matmul %26, %28, %cst_31 {dimension_numbers = #tpu.dot_dimension_numbers<[1], [0], [0], [1], [0, 0, 1, 1], [], []>} : vector<16x16xbf16>, vector<16x24xbf16>, vector<16x24xf32> -> vector<16x24xf32>
    %c1_32 = arith.constant 1 : index
    %c0_33 = arith.constant 0 : index
    %c0_34 = arith.constant 0 : index
    %30 = vector.load %arg7[%c1_32, %c0_33, %c0_34] : memref<4x8x16xbf16, #tpu.memory_space<vmem>>, vector<2x8x16xbf16>
    %31 = vector.shape_cast %30 : vector<2x8x16xbf16> to vector<16x16xbf16>
    %c1_35 = arith.constant 1 : index
    %c0_36 = arith.constant 0 : index
    %c0_37 = arith.constant 0 : index
    %32 = vector.load %arg5[%c1_35, %c0_36, %c0_37] : memref<3x16x24xbf16, #tpu.memory_space<vmem>>, vector<1x16x24xbf16>
    %33 = vector.shape_cast %32 : vector<1x16x24xbf16> to vector<16x24xbf16>
    %cst_38 = arith.constant dense<0.000000e+00> : vector<16x24xf32>
    %34 = tpu.matmul %31, %33, %cst_38 {dimension_numbers = #tpu.dot_dimension_numbers<[1], [0], [0], [1], [0, 0, 1, 1], [], []>} : vector<16x16xbf16>, vector<16x24xbf16>, vector<16x24xf32> -> vector<16x24xf32>
    %35 = arith.addf %29, %34 : vector<16x24xf32>
    %c2_39 = arith.constant 2 : index
    %c0_40 = arith.constant 0 : index
    %c0_41 = arith.constant 0 : index
    %36 = vector.load %arg7[%c2_39, %c0_40, %c0_41] : memref<4x8x16xbf16, #tpu.memory_space<vmem>>, vector<2x8x16xbf16>
    %37 = vector.shape_cast %36 : vector<2x8x16xbf16> to vector<16x16xbf16>
    %c2_42 = arith.constant 2 : index
    %c0_43 = arith.constant 0 : index
    %c0_44 = arith.constant 0 : index
    %38 = vector.load %arg5[%c2_42, %c0_43, %c0_44] : memref<3x16x24xbf16, #tpu.memory_space<vmem>>, vector<1x16x24xbf16>
    %39 = vector.shape_cast %38 : vector<1x16x24xbf16> to vector<16x24xbf16>
    %cst_45 = arith.constant dense<0.000000e+00> : vector<16x24xf32>
    %40 = tpu.matmul %37, %39, %cst_45 {dimension_numbers = #tpu.dot_dimension_numbers<[1], [0], [0], [1], [0, 0, 1, 1], [], []>} : vector<16x16xbf16>, vector<16x24xbf16>, vector<16x24xf32> -> vector<16x24xf32>
    %41 = arith.addf %35, %40 : vector<16x24xf32>
    %42 = vector.extract_strided_slice %41 {offsets = [0, 8], sizes = [16, 8], strides = [1, 1]} : vector<16x24xf32> to vector<16x8xf32>
    %43 = vector.extract_strided_slice %41 {offsets = [0, 0], sizes = [16, 8], strides = [1, 1]} : vector<16x24xf32> to vector<16x8xf32>
    %c1_i32 = arith.constant 1 : i32
    %44 = tpu.dynamic_rotate %43 by %c1_i32 dim 0 : vector<16x8xf32>, i32 -> vector<16x8xf32>
    %45 = arith.addf %42, %44 : vector<16x8xf32>
    %46 = vector.extract_strided_slice %41 {offsets = [0, 16], sizes = [16, 8], strides = [1, 1]} : vector<16x24xf32> to vector<16x8xf32>
    %c15_i32 = arith.constant 15 : i32
    %47 = tpu.dynamic_rotate %46 by %c15_i32 dim 0 : vector<16x8xf32>, i32 -> vector<16x8xf32>
    %48 = arith.addf %45, %47 : vector<16x8xf32>
    %49 = vector.shape_cast %48 : vector<16x8xf32> to vector<2x8x8xf32>
    %50 = vector.extract_strided_slice %49 {offsets = [0, 0, 0], sizes = [2, 2, 8], strides = [1, 1, 1]} : vector<2x8x8xf32> to vector<2x2x8xf32>
    %51 = arith.truncf %50 : vector<2x2x8xf32> to vector<2x2x8xbf16>
    %c0_46 = arith.constant 0 : index
    %c0_47 = arith.constant 0 : index
    %c0_48 = arith.constant 0 : index
    %c0_49 = arith.constant 0 : index
    %52 = vector.load %arg6[%c0_46, %c0_47, %c0_48, %c0_49] : memref<1x2x2x8xbf16, #tpu.memory_space<vmem>>, vector<1x2x2x8xbf16>
    %53 = vector.shape_cast %52 : vector<1x2x2x8xbf16> to vector<2x2x8xbf16>
    %54 = vector.shape_cast %51 : vector<2x2x8xbf16> to vector<1x2x2x8xbf16>
    tpu.vector_store %arg6[%c0_46, %c0_47, %c0_48, %c0_49], %54 {strides = array<i32>} : memref<1x2x2x8xbf16, #tpu.memory_space<vmem>>, vector<1x2x2x8xbf16>,
    return
  }
  func.func @transform_0(%arg0: i32, %arg1: i32) -> (i32, i32, i32, i32) {
    %c2_i32 = arith.constant 2 : i32
    %0 = arith.muli %arg1, %c2_i32 : i32
    %c-1_i32 = arith.constant -1 : i32
    %1 = arith.addi %0, %c-1_i32 : i32
    %c0_i32 = arith.constant 0 : i32
    %2 = arith.maxsi %1, %c0_i32 : i32
    %c0_i32_0 = arith.constant 0 : i32
    %c0_i32_1 = arith.constant 0 : i32
    %c0_i32_2 = arith.constant 0 : i32
    return %arg0, %2, %c0_i32_0, %c0_i32_1 : i32, i32, i32, i32
  }
  func.func @transform_1(%arg0: i32, %arg1: i32) -> (i32, i32, i32, i32) {
    %c0_i32 = arith.constant 0 : i32
    %c0_i32_0 = arith.constant 0 : i32
    %c0_i32_1 = arith.constant 0 : i32
    return %arg0, %arg1, %c0_i32, %c0_i32_0 : i32, i32, i32, i32
  }
  func.func @transform_2(%arg0: i32, %arg1: i32) -> (i32, i32, i32, i32) {
    %c2_i32 = arith.constant 2 : i32
    %0 = arith.muli %arg1, %c2_i32 : i32
    %c2_i32_0 = arith.constant 2 : i32
    %1 = arith.addi %0, %c2_i32_0 : i32
    %c1_i32 = arith.constant 1 : i32
    %2 = arith.minsi %1, %c1_i32 : i32
    %c0_i32 = arith.constant 0 : i32
    %c0_i32_1 = arith.constant 0 : i32
    %c0_i32_2 = arith.constant 0 : i32
    return %arg0, %2, %c0_i32, %c0_i32_1 : i32, i32, i32, i32
  }
  func.func @transform_3(%arg0: i32, %arg1: i32) -> (i32, i32, i32) {
    %c0_i32 = arith.constant 0 : i32
    %c0_i32_0 = arith.constant 0 : i32
    %c0_i32_1 = arith.constant 0 : i32
    %c0_i32_2 = arith.constant 0 : i32
    return %c0_i32, %c0_i32_0, %c0_i32_1 : i32, i32, i32
  }
  func.func @transform_4(%arg0: i32, %arg1: i32) -> (i32, i32, i32, i32) {
    %c0_i32 = arith.constant 0 : i32
    %c0_i32_0 = arith.constant 0 : i32
    %c0_i32_1 = arith.constant 0 : i32
    return %arg0, %arg1, %c0_i32, %c0_i32_0 : i32, i32, i32, i32
  }
}

module attributes {stable_mosaic.version = 11 : i64} {
  func.func @_transition_kernel(%arg0: i32, %arg1: i32, %arg2: memref<1x2x2x32xbf16, #tpu.memory_space<vmem>>, %arg3: memref<1x32xf32, #tpu.memory_space<vmem>>, %arg4: memref<1x32xf32, #tpu.memory_space<vmem>>, %arg5: memref<32x16xbf16, #tpu.memory_space<vmem>>, %arg6: memref<1x1x1x16xbf16, #tpu.memory_space<vmem>>, %arg7: memref<1x2x32xf32, #tpu.memory_space<vmem>>) attributes {dimension_semantics = [#tpu.dimension_semantics<parallel>, #tpu.dimension_semantics<parallel>], iteration_bounds = array<i64: 2, 1>, scalar_prefetch = 0 : i64, scratch_operands = 1 : i64, tpu.core_type = #tpu.core_type<tc>, window_params = [{transform_indices = @transform_0, window_bounds = array<i64: 1, 2, 2, 32>}, {pipeline_mode = #tpu.pipeline_mode<synchronous>, transform_indices = @transform_1, window_bounds = array<i64: 1, 32>}, {pipeline_mode = #tpu.pipeline_mode<synchronous>, transform_indices = @transform_2, window_bounds = array<i64: 1, 32>}, {pipeline_mode = #tpu.pipeline_mode<synchronous>, transform_indices = @transform_3, window_bounds = array<i64: 32, 16>}, {transform_indices = @transform_4, window_bounds = array<i64: 1, 1, 1, 16>}]} {
    %c0 = arith.constant 0 : index
    %c0_0 = arith.constant 0 : index
    %c0_1 = arith.constant 0 : index
    %c0_2 = arith.constant 0 : index
    %0 = vector.load %arg2[%c0, %c0_0, %c0_1, %c0_2] : memref<1x2x2x32xbf16, #tpu.memory_space<vmem>>, vector<1x2x2x32xbf16>
    %1 = vector.shape_cast %0 : vector<1x2x2x32xbf16> to vector<2x2x32xbf16>
    %2 = arith.extf %1 : vector<2x2x32xbf16> to vector<2x2x32xf32>
    %c0_3 = arith.constant 0 : index
    %c0_4 = arith.constant 0 : index
    %3 = vector.load %arg3[%c0_3, %c0_4] : memref<1x32xf32, #tpu.memory_space<vmem>>, vector<1x32xf32>
    %4 = vector.shape_cast %3 : vector<1x32xf32> to vector<1x1x32xf32>
    %5 = vector.broadcast %4 : vector<1x1x32xf32> to vector<2x2x32xf32>
    %6 = arith.mulf %2, %5 : vector<2x2x32xf32>
    %c0_5 = arith.constant 0 : index
    %c0_6 = arith.constant 0 : index
    %7 = vector.load %arg4[%c0_5, %c0_6] : memref<1x32xf32, #tpu.memory_space<vmem>>, vector<1x32xf32>
    %8 = vector.shape_cast %7 : vector<1x32xf32> to vector<1x1x32xf32>
    %9 = vector.broadcast %8 : vector<1x1x32xf32> to vector<2x2x32xf32>
    %10 = arith.addf %6, %9 : vector<2x2x32xf32>
    %cst = arith.constant 0.000000e+00 : f32
    %11 = vector.broadcast %cst : f32 to vector<2x2x32xf32>
    %12 = arith.maximumf %10, %11 : vector<2x2x32xf32>
    %13 = vector.shape_cast %12 : vector<2x2x32xf32> to vector<1x2x2x32xf32>
    %14 = vector.extract_strided_slice %13 {offsets = [0, 0, 0, 0], sizes = [1, 1, 2, 32], strides = [1, 1, 1, 1]} : vector<1x2x2x32xf32> to vector<1x1x2x32xf32>
    %15 = vector.shape_cast %14 : vector<1x1x2x32xf32> to vector<1x2x32xf32>
    %16 = vector.extract_strided_slice %13 {offsets = [0, 1, 0, 0], sizes = [1, 1, 2, 32], strides = [1, 1, 1, 1]} : vector<1x2x2x32xf32> to vector<1x1x2x32xf32>
    %17 = vector.shape_cast %16 : vector<1x1x2x32xf32> to vector<1x2x32xf32>
    %18 = arith.addf %15, %17 : vector<1x2x32xf32>
    %c0_7 = arith.constant 0 : index
    %c0_8 = arith.constant 0 : index
    %c0_9 = arith.constant 0 : index
    %19 = vector.load %arg7[%c0_7, %c0_8, %c0_9] : memref<1x2x32xf32, #tpu.memory_space<vmem>>, vector<1x2x32xf32>
    tpu.vector_store %arg7[%c0_7, %c0_8, %c0_9], %18 {strides = array<i32>} : memref<1x2x32xf32, #tpu.memory_space<vmem>>, vector<1x2x32xf32>,
    %c0_10 = arith.constant 0 : index
    %c0_11 = arith.constant 0 : index
    %c0_12 = arith.constant 0 : index
    %20 = tpu.strided_load %arg7[%c0_10, %c0_11, %c0_12] {strides = array<i32: 1, 2, 1>} : memref<1x2x32xf32, #tpu.memory_space<vmem>>, vector<1x1x32xf32>
    %c0_13 = arith.constant 0 : index
    %c1 = arith.constant 1 : index
    %c0_14 = arith.constant 0 : index
    %21 = tpu.strided_load %arg7[%c0_13, %c1, %c0_14] {strides = array<i32: 1, 2, 1>} : memref<1x2x32xf32, #tpu.memory_space<vmem>>, vector<1x1x32xf32>
    %22 = arith.addf %20, %21 : vector<1x1x32xf32>
    %cst_15 = arith.constant 2.500000e-01 : f32
    %23 = vector.broadcast %cst_15 : f32 to vector<1x1x32xf32>
    %24 = arith.mulf %23, %22 : vector<1x1x32xf32>
    %25 = vector.shape_cast %24 : vector<1x1x32xf32> to vector<1x32xf32>
    %26 = arith.truncf %25 : vector<1x32xf32> to vector<1x32xbf16>
    %c0_16 = arith.constant 0 : index
    %c0_17 = arith.constant 0 : index
    %27 = vector.load %arg5[%c0_16, %c0_17] : memref<32x16xbf16, #tpu.memory_space<vmem>>, vector<32x16xbf16>
    %cst_18 = arith.constant dense<0.000000e+00> : vector<1x16xf32>
    %28 = tpu.matmul %26, %27, %cst_18 {dimension_numbers = #tpu.dot_dimension_numbers<[1], [0], [0], [1], [0, 0, 1, 1], [], []>} : vector<1x32xbf16>, vector<32x16xbf16>, vector<1x16xf32> -> vector<1x16xf32>
    %29 = vector.shape_cast %28 : vector<1x16xf32> to vector<1x1x16xf32>
    %30 = arith.truncf %29 : vector<1x1x16xf32> to vector<1x1x16xbf16>
    %c0_19 = arith.constant 0 : index
    %c0_20 = arith.constant 0 : index
    %c0_21 = arith.constant 0 : index
    %c0_22 = arith.constant 0 : index
    %31 = vector.load %arg6[%c0_19, %c0_20, %c0_21, %c0_22] : memref<1x1x1x16xbf16, #tpu.memory_space<vmem>>, vector<1x1x1x16xbf16>
    %32 = vector.shape_cast %31 : vector<1x1x1x16xbf16> to vector<1x1x16xbf16>
    %33 = vector.shape_cast %30 : vector<1x1x16xbf16> to vector<1x1x1x16xbf16>
    tpu.vector_store %arg6[%c0_19, %c0_20, %c0_21, %c0_22], %33 {strides = array<i32>} : memref<1x1x1x16xbf16, #tpu.memory_space<vmem>>, vector<1x1x1x16xbf16>,
    return
  }
  func.func @transform_0(%arg0: i32, %arg1: i32) -> (i32, i32, i32, i32) {
    %c0_i32 = arith.constant 0 : i32
    %c0_i32_0 = arith.constant 0 : i32
    %c0_i32_1 = arith.constant 0 : i32
    return %arg0, %arg1, %c0_i32, %c0_i32_0 : i32, i32, i32, i32
  }
  func.func @transform_1(%arg0: i32, %arg1: i32) -> (i32, i32) {
    %c0_i32 = arith.constant 0 : i32
    %c0_i32_0 = arith.constant 0 : i32
    %c0_i32_1 = arith.constant 0 : i32
    return %c0_i32, %c0_i32_0 : i32, i32
  }
  func.func @transform_2(%arg0: i32, %arg1: i32) -> (i32, i32) {
    %c0_i32 = arith.constant 0 : i32
    %c0_i32_0 = arith.constant 0 : i32
    %c0_i32_1 = arith.constant 0 : i32
    return %c0_i32, %c0_i32_0 : i32, i32
  }
  func.func @transform_3(%arg0: i32, %arg1: i32) -> (i32, i32) {
    %c0_i32 = arith.constant 0 : i32
    %c0_i32_0 = arith.constant 0 : i32
    %c0_i32_1 = arith.constant 0 : i32
    return %c0_i32, %c0_i32_0 : i32, i32
  }
  func.func @transform_4(%arg0: i32, %arg1: i32) -> (i32, i32, i32, i32) {
    %c0_i32 = arith.constant 0 : i32
    %c0_i32_0 = arith.constant 0 : i32
    %c0_i32_1 = arith.constant 0 : i32
    return %arg0, %arg1, %c0_i32, %c0_i32_0 : i32, i32, i32, i32
  }
}

module attributes {stable_mosaic.version = 11 : i64} {
  func.func @kernel(%arg0: i32, %arg1: i32, %arg2: memref<1x1x1x16xbf16, #tpu.memory_space<vmem>>, %arg3: memref<1x1x1x16xbf16, #tpu.memory_space<vmem>>, %arg4: memref<1x1x1x16xbf16, #tpu.memory_space<vmem>>, %arg5: memref<3x16x24xbf16, #tpu.memory_space<vmem>>, %arg6: memref<1x1x1x8xbf16, #tpu.memory_space<vmem>>, %arg7: memref<3x8x16xbf16, #tpu.memory_space<vmem>>) attributes {dimension_semantics = [#tpu.dimension_semantics<parallel>, #tpu.dimension_semantics<parallel>], iteration_bounds = array<i64: 2, 1>, scalar_prefetch = 0 : i64, scratch_operands = 1 : i64, tpu.core_type = #tpu.core_type<tc>, window_params = [{transform_indices = @transform_0, window_bounds = array<i64: 1, 1, 1, 16>}, {transform_indices = @transform_1, window_bounds = array<i64: 1, 1, 1, 16>}, {transform_indices = @transform_2, window_bounds = array<i64: 1, 1, 1, 16>}, {pipeline_mode = #tpu.pipeline_mode<synchronous>, transform_indices = @transform_3, window_bounds = array<i64: 3, 16, 24>}, {transform_indices = @transform_4, window_bounds = array<i64: 1, 1, 1, 8>}]} {
    %cst = arith.constant 0.000000e+00 : bf16
    %0 = vector.broadcast %cst : bf16 to vector<3x7x16xbf16>
    %c0 = arith.constant 0 : index
    %c1 = arith.constant 1 : index
    %c0_0 = arith.constant 0 : index
    %1 = vector.load %arg7[%c0, %c1, %c0_0] : memref<3x8x16xbf16, #tpu.memory_space<vmem>>, vector<3x7x16xbf16>
    tpu.vector_store %arg7[%c0, %c1, %c0_0], %0 {strides = array<i32>} : memref<3x8x16xbf16, #tpu.memory_space<vmem>>, vector<3x7x16xbf16>,
    %c0_1 = arith.constant 0 : index
    %c0_2 = arith.constant 0 : index
    %c0_3 = arith.constant 0 : index
    %c0_4 = arith.constant 0 : index
    %2 = vector.load %arg3[%c0_1, %c0_2, %c0_3, %c0_4] : memref<1x1x1x16xbf16, #tpu.memory_space<vmem>>, vector<1x1x1x16xbf16>
    %3 = vector.shape_cast %2 : vector<1x1x1x16xbf16> to vector<1x1x16xbf16>
    %c1_5 = arith.constant 1 : index
    %c0_6 = arith.constant 0 : index
    %c0_7 = arith.constant 0 : index
    %4 = vector.load %arg7[%c1_5, %c0_6, %c0_7] : memref<3x8x16xbf16, #tpu.memory_space<vmem>>, vector<1x1x16xbf16>
    tpu.vector_store %arg7[%c1_5, %c0_6, %c0_7], %3 {strides = array<i32>} : memref<3x8x16xbf16, #tpu.memory_space<vmem>>, vector<1x1x16xbf16>,
    %c0_8 = arith.constant 0 : index
    %c0_9 = arith.constant 0 : index
    %c0_10 = arith.constant 0 : index
    %c0_11 = arith.constant 0 : index
    %5 = vector.load %arg2[%c0_8, %c0_9, %c0_10, %c0_11] : memref<1x1x1x16xbf16, #tpu.memory_space<vmem>>, vector<1x1x1x16xbf16>
    %6 = vector.shape_cast %5 : vector<1x1x1x16xbf16> to vector<1x16xbf16>
    %c1_i32 = arith.constant 1 : i32
    %7 = arith.muli %arg1, %c1_i32 : i32
    %c-1_i32 = arith.constant -1 : i32
    %8 = arith.addi %7, %c-1_i32 : i32
    %c0_i32 = arith.constant 0 : i32
    %9 = arith.cmpi sge, %8, %c0_i32 : i32
    %cst_12 = arith.constant 0.000000e+00 : bf16
    %10 = vector.broadcast %cst_12 : bf16 to vector<1x16xbf16>
    %11 = arith.select %9, %6, %10 : vector<1x16xbf16>
    %c0_13 = arith.constant 0 : index
    %c0_14 = arith.constant 0 : index
    %c0_15 = arith.constant 0 : index
    %12 = vector.load %arg7[%c0_13, %c0_14, %c0_15] : memref<3x8x16xbf16, #tpu.memory_space<vmem>>, vector<1x1x16xbf16>
    %13 = vector.shape_cast %12 : vector<1x1x16xbf16> to vector<1x16xbf16>
    %14 = vector.shape_cast %11 : vector<1x16xbf16> to vector<1x1x16xbf16>
    tpu.vector_store %arg7[%c0_13, %c0_14, %c0_15], %14 {strides = array<i32>} : memref<3x8x16xbf16, #tpu.memory_space<vmem>>, vector<1x1x16xbf16>,
    %c0_16 = arith.constant 0 : index
    %c0_17 = arith.constant 0 : index
    %c0_18 = arith.constant 0 : index
    %c0_19 = arith.constant 0 : index
    %15 = vector.load %arg4[%c0_16, %c0_17, %c0_18, %c0_19] : memref<1x1x1x16xbf16, #tpu.memory_space<vmem>>, vector<1x1x1x16xbf16>
    %16 = vector.shape_cast %15 : vector<1x1x1x16xbf16> to vector<1x16xbf16>
    %c1_i32_20 = arith.constant 1 : i32
    %17 = arith.muli %arg1, %c1_i32_20 : i32
    %c1_i32_21 = arith.constant 1 : i32
    %18 = arith.addi %17, %c1_i32_21 : i32
    %c1_i32_22 = arith.constant 1 : i32
    %19 = arith.cmpi slt, %18, %c1_i32_22 : i32
    %cst_23 = arith.constant 0.000000e+00 : bf16
    %20 = vector.broadcast %cst_23 : bf16 to vector<1x16xbf16>
    %21 = arith.select %19, %16, %20 : vector<1x16xbf16>
    %c2 = arith.constant 2 : index
    %c0_24 = arith.constant 0 : index
    %c0_25 = arith.constant 0 : index
    %22 = vector.load %arg7[%c2, %c0_24, %c0_25] : memref<3x8x16xbf16, #tpu.memory_space<vmem>>, vector<1x1x16xbf16>
    %23 = vector.shape_cast %22 : vector<1x1x16xbf16> to vector<1x16xbf16>
    %24 = vector.shape_cast %21 : vector<1x16xbf16> to vector<1x1x16xbf16>
    tpu.vector_store %arg7[%c2, %c0_24, %c0_25], %24 {strides = array<i32>} : memref<3x8x16xbf16, #tpu.memory_space<vmem>>, vector<1x1x16xbf16>,
    %c0_26 = arith.constant 0 : index
    %c0_27 = arith.constant 0 : index
    %c0_28 = arith.constant 0 : index
    %25 = vector.load %arg7[%c0_26, %c0_27, %c0_28] : memref<3x8x16xbf16, #tpu.memory_space<vmem>>, vector<1x8x16xbf16>
    %26 = vector.shape_cast %25 : vector<1x8x16xbf16> to vector<8x16xbf16>
    %c0_29 = arith.constant 0 : index
    %c0_30 = arith.constant 0 : index
    %c0_31 = arith.constant 0 : index
    %27 = vector.load %arg5[%c0_29, %c0_30, %c0_31] : memref<3x16x24xbf16, #tpu.memory_space<vmem>>, vector<1x16x24xbf16>
    %28 = vector.shape_cast %27 : vector<1x16x24xbf16> to vector<16x24xbf16>
    %cst_32 = arith.constant dense<0.000000e+00> : vector<8x24xf32>
    %29 = tpu.matmul %26, %28, %cst_32 {dimension_numbers = #tpu.dot_dimension_numbers<[1], [0], [0], [1], [0, 0, 1, 1], [], []>} : vector<8x16xbf16>, vector<16x24xbf16>, vector<8x24xf32> -> vector<8x24xf32>
    %c1_33 = arith.constant 1 : index
    %c0_34 = arith.constant 0 : index
    %c0_35 = arith.constant 0 : index
    %30 = vector.load %arg7[%c1_33, %c0_34, %c0_35] : memref<3x8x16xbf16, #tpu.memory_space<vmem>>, vector<1x8x16xbf16>
    %31 = vector.shape_cast %30 : vector<1x8x16xbf16> to vector<8x16xbf16>
    %c1_36 = arith.constant 1 : index
    %c0_37 = arith.constant 0 : index
    %c0_38 = arith.constant 0 : index
    %32 = vector.load %arg5[%c1_36, %c0_37, %c0_38] : memref<3x16x24xbf16, #tpu.memory_space<vmem>>, vector<1x16x24xbf16>
    %33 = vector.shape_cast %32 : vector<1x16x24xbf16> to vector<16x24xbf16>
    %cst_39 = arith.constant dense<0.000000e+00> : vector<8x24xf32>
    %34 = tpu.matmul %31, %33, %cst_39 {dimension_numbers = #tpu.dot_dimension_numbers<[1], [0], [0], [1], [0, 0, 1, 1], [], []>} : vector<8x16xbf16>, vector<16x24xbf16>, vector<8x24xf32> -> vector<8x24xf32>
    %35 = arith.addf %29, %34 : vector<8x24xf32>
    %c2_40 = arith.constant 2 : index
    %c0_41 = arith.constant 0 : index
    %c0_42 = arith.constant 0 : index
    %36 = vector.load %arg7[%c2_40, %c0_41, %c0_42] : memref<3x8x16xbf16, #tpu.memory_space<vmem>>, vector<1x8x16xbf16>
    %37 = vector.shape_cast %36 : vector<1x8x16xbf16> to vector<8x16xbf16>
    %c2_43 = arith.constant 2 : index
    %c0_44 = arith.constant 0 : index
    %c0_45 = arith.constant 0 : index
    %38 = vector.load %arg5[%c2_43, %c0_44, %c0_45] : memref<3x16x24xbf16, #tpu.memory_space<vmem>>, vector<1x16x24xbf16>
    %39 = vector.shape_cast %38 : vector<1x16x24xbf16> to vector<16x24xbf16>
    %cst_46 = arith.constant dense<0.000000e+00> : vector<8x24xf32>
    %40 = tpu.matmul %37, %39, %cst_46 {dimension_numbers = #tpu.dot_dimension_numbers<[1], [0], [0], [1], [0, 0, 1, 1], [], []>} : vector<8x16xbf16>, vector<16x24xbf16>, vector<8x24xf32> -> vector<8x24xf32>
    %41 = arith.addf %35, %40 : vector<8x24xf32>
    %42 = vector.extract_strided_slice %41 {offsets = [0, 8], sizes = [8, 8], strides = [1, 1]} : vector<8x24xf32> to vector<8x8xf32>
    %43 = vector.extract_strided_slice %41 {offsets = [0, 0], sizes = [8, 8], strides = [1, 1]} : vector<8x24xf32> to vector<8x8xf32>
    %c1_i32_47 = arith.constant 1 : i32
    %44 = tpu.dynamic_rotate %43 by %c1_i32_47 dim 0 : vector<8x8xf32>, i32 -> vector<8x8xf32>
    %45 = arith.addf %42, %44 : vector<8x8xf32>
    %46 = vector.extract_strided_slice %41 {offsets = [0, 16], sizes = [8, 8], strides = [1, 1]} : vector<8x24xf32> to vector<8x8xf32>
    %c7_i32 = arith.constant 7 : i32
    %47 = tpu.dynamic_rotate %46 by %c7_i32 dim 0 : vector<8x8xf32>, i32 -> vector<8x8xf32>
    %48 = arith.addf %45, %47 : vector<8x8xf32>
    %49 = vector.shape_cast %48 : vector<8x8xf32> to vector<1x8x8xf32>
    %50 = vector.extract_strided_slice %49 {offsets = [0, 0, 0], sizes = [1, 1, 8], strides = [1, 1, 1]} : vector<1x8x8xf32> to vector<1x1x8xf32>
    %51 = arith.truncf %50 : vector<1x1x8xf32> to vector<1x1x8xbf16>
    %c0_48 = arith.constant 0 : index
    %c0_49 = arith.constant 0 : index
    %c0_50 = arith.constant 0 : index
    %c0_51 = arith.constant 0 : index
    %52 = vector.load %arg6[%c0_48, %c0_49, %c0_50, %c0_51] : memref<1x1x1x8xbf16, #tpu.memory_space<vmem>>, vector<1x1x1x8xbf16>
    %53 = vector.shape_cast %52 : vector<1x1x1x8xbf16> to vector<1x1x8xbf16>
    %54 = vector.shape_cast %51 : vector<1x1x8xbf16> to vector<1x1x1x8xbf16>
    tpu.vector_store %arg6[%c0_48, %c0_49, %c0_50, %c0_51], %54 {strides = array<i32>} : memref<1x1x1x8xbf16, #tpu.memory_space<vmem>>, vector<1x1x1x8xbf16>,
    return
  }
  func.func @transform_0(%arg0: i32, %arg1: i32) -> (i32, i32, i32, i32) {
    %c1_i32 = arith.constant 1 : i32
    %0 = arith.muli %arg1, %c1_i32 : i32
    %c-1_i32 = arith.constant -1 : i32
    %1 = arith.addi %0, %c-1_i32 : i32
    %c0_i32 = arith.constant 0 : i32
    %2 = arith.maxsi %1, %c0_i32 : i32
    %c0_i32_0 = arith.constant 0 : i32
    %c0_i32_1 = arith.constant 0 : i32
    %c0_i32_2 = arith.constant 0 : i32
    return %arg0, %2, %c0_i32_0, %c0_i32_1 : i32, i32, i32, i32
  }
  func.func @transform_1(%arg0: i32, %arg1: i32) -> (i32, i32, i32, i32) {
    %c0_i32 = arith.constant 0 : i32
    %c0_i32_0 = arith.constant 0 : i32
    %c0_i32_1 = arith.constant 0 : i32
    return %arg0, %arg1, %c0_i32, %c0_i32_0 : i32, i32, i32, i32
  }
  func.func @transform_2(%arg0: i32, %arg1: i32) -> (i32, i32, i32, i32) {
    %c1_i32 = arith.constant 1 : i32
    %0 = arith.muli %arg1, %c1_i32 : i32
    %c1_i32_0 = arith.constant 1 : i32
    %1 = arith.addi %0, %c1_i32_0 : i32
    %c0_i32 = arith.constant 0 : i32
    %2 = arith.minsi %1, %c0_i32 : i32
    %c0_i32_1 = arith.constant 0 : i32
    %c0_i32_2 = arith.constant 0 : i32
    %c0_i32_3 = arith.constant 0 : i32
    return %arg0, %2, %c0_i32_1, %c0_i32_2 : i32, i32, i32, i32
  }
  func.func @transform_3(%arg0: i32, %arg1: i32) -> (i32, i32, i32) {
    %c0_i32 = arith.constant 0 : i32
    %c0_i32_0 = arith.constant 0 : i32
    %c0_i32_1 = arith.constant 0 : i32
    %c0_i32_2 = arith.constant 0 : i32
    return %c0_i32, %c0_i32_0, %c0_i32_1 : i32, i32, i32
  }
  func.func @transform_4(%arg0: i32, %arg1: i32) -> (i32, i32, i32, i32) {
    %c0_i32 = arith.constant 0 : i32
    %c0_i32_0 = arith.constant 0 : i32
    %c0_i32_1 = arith.constant 0 : i32
    return %arg0, %arg1, %c0_i32, %c0_i32_0 : i32, i32, i32, i32
  }
}

module attributes {stable_mosaic.version = 11 : i64} {
  func.func @kernel(%arg0: i32, %arg1: memref<2x32xbf16, #tpu.memory_space<vmem>>, %arg2: memref<1x32xf32, #tpu.memory_space<vmem>>, %arg3: memref<1x32xf32, #tpu.memory_space<vmem>>, %arg4: memref<32x16xbf16, #tpu.memory_space<vmem>>, %arg5: memref<1x16xf32, #tpu.memory_space<vmem>>, %arg6: memref<2x16xbf16, #tpu.memory_space<vmem>>) attributes {dimension_semantics = [#tpu.dimension_semantics<parallel>], iteration_bounds = array<i64: 1>, scalar_prefetch = 0 : i64, scratch_operands = 0 : i64, tpu.core_type = #tpu.core_type<tc>, window_params = [{transform_indices = @transform_0, window_bounds = array<i64: 2, 32>}, {pipeline_mode = #tpu.pipeline_mode<synchronous>, transform_indices = @transform_1, window_bounds = array<i64: 1, 32>}, {pipeline_mode = #tpu.pipeline_mode<synchronous>, transform_indices = @transform_2, window_bounds = array<i64: 1, 32>}, {pipeline_mode = #tpu.pipeline_mode<synchronous>, transform_indices = @transform_3, window_bounds = array<i64: 32, 16>}, {pipeline_mode = #tpu.pipeline_mode<synchronous>, transform_indices = @transform_4, window_bounds = array<i64: 1, 16>}, {transform_indices = @transform_5, window_bounds = array<i64: 2, 16>}]} {
    %c0 = arith.constant 0 : index
    %c0_0 = arith.constant 0 : index
    %0 = vector.load %arg1[%c0, %c0_0] : memref<2x32xbf16, #tpu.memory_space<vmem>>, vector<2x32xbf16>
    %1 = arith.extf %0 : vector<2x32xbf16> to vector<2x32xf32>
    %c0_1 = arith.constant 0 : index
    %c0_2 = arith.constant 0 : index
    %2 = vector.load %arg2[%c0_1, %c0_2] : memref<1x32xf32, #tpu.memory_space<vmem>>, vector<1x32xf32>
    %3 = vector.broadcast %2 : vector<1x32xf32> to vector<2x32xf32>
    %4 = arith.mulf %1, %3 : vector<2x32xf32>
    %c0_3 = arith.constant 0 : index
    %c0_4 = arith.constant 0 : index
    %5 = vector.load %arg3[%c0_3, %c0_4] : memref<1x32xf32, #tpu.memory_space<vmem>>, vector<1x32xf32>
    %6 = vector.broadcast %5 : vector<1x32xf32> to vector<2x32xf32>
    %7 = arith.addf %4, %6 : vector<2x32xf32>
    %cst = arith.constant 0.000000e+00 : f32
    %8 = vector.broadcast %cst : f32 to vector<2x32xf32>
    %9 = arith.maximumf %7, %8 : vector<2x32xf32>
    %10 = arith.truncf %9 : vector<2x32xf32> to vector<2x32xbf16>
    %c0_5 = arith.constant 0 : index
    %c0_6 = arith.constant 0 : index
    %11 = vector.load %arg4[%c0_5, %c0_6] : memref<32x16xbf16, #tpu.memory_space<vmem>>, vector<32x16xbf16>
    %cst_7 = arith.constant dense<0.000000e+00> : vector<2x16xf32>
    %12 = tpu.matmul %10, %11, %cst_7 {dimension_numbers = #tpu.dot_dimension_numbers<[1], [0], [0], [1], [0, 0, 1, 1], [], []>} : vector<2x32xbf16>, vector<32x16xbf16>, vector<2x16xf32> -> vector<2x16xf32>
    %c0_8 = arith.constant 0 : index
    %c0_9 = arith.constant 0 : index
    %13 = vector.load %arg5[%c0_8, %c0_9] : memref<1x16xf32, #tpu.memory_space<vmem>>, vector<1x16xf32>
    %14 = vector.broadcast %13 : vector<1x16xf32> to vector<2x16xf32>
    %15 = arith.addf %12, %14 : vector<2x16xf32>
    %cst_10 = arith.constant 0.000000e+00 : f32
    %16 = vector.broadcast %cst_10 : f32 to vector<2x16xf32>
    %17 = arith.maximumf %15, %16 : vector<2x16xf32>
    %18 = arith.truncf %17 : vector<2x16xf32> to vector<2x16xbf16>
    %c0_11 = arith.constant 0 : index
    %c0_12 = arith.constant 0 : index
    %19 = vector.load %arg6[%c0_11, %c0_12] : memref<2x16xbf16, #tpu.memory_space<vmem>>, vector<2x16xbf16>
    tpu.vector_store %arg6[%c0_11, %c0_12], %18 {strides = array<i32>} : memref<2x16xbf16, #tpu.memory_space<vmem>>, vector<2x16xbf16>,
    return
  }
  func.func @transform_0(%arg0: i32) -> (i32, i32) {
    %c0_i32 = arith.constant 0 : i32
    %c0_i32_0 = arith.constant 0 : i32
    return %arg0, %c0_i32 : i32, i32
  }
  func.func @transform_1(%arg0: i32) -> (i32, i32) {
    %c0_i32 = arith.constant 0 : i32
    %c0_i32_0 = arith.constant 0 : i32
    %c0_i32_1 = arith.constant 0 : i32
    return %c0_i32, %c0_i32_0 : i32, i32
  }
  func.func @transform_2(%arg0: i32) -> (i32, i32) {
    %c0_i32 = arith.constant 0 : i32
    %c0_i32_0 = arith.constant 0 : i32
    %c0_i32_1 = arith.constant 0 : i32
    return %c0_i32, %c0_i32_0 : i32, i32
  }
  func.func @transform_3(%arg0: i32) -> (i32, i32) {
    %c0_i32 = arith.constant 0 : i32
    %c0_i32_0 = arith.constant 0 : i32
    %c0_i32_1 = arith.constant 0 : i32
    return %c0_i32, %c0_i32_0 : i32, i32
  }
  func.func @transform_4(%arg0: i32) -> (i32, i32) {
    %c0_i32 = arith.constant 0 : i32
    %c0_i32_0 = arith.constant 0 : i32
    %c0_i32_1 = arith.constant 0 : i32
    return %c0_i32, %c0_i32_0 : i32, i32
  }
  func.func @transform_5(%arg0: i32) -> (i32, i32) {
    %c0_i32 = arith.constant 0 : i32
    %c0_i32_0 = arith.constant 0 : i32
    return %arg0, %c0_i32 : i32, i32
  }
}

</mosaic_0001>

<llo_original>
// kernel: densenet_forward.21
$region0: #{densenet_forward.21}
  #allocation0 [shape = 'u32[]', space=smem, size = 0x4, offset = 0x4, fixed_abs, tag = 'smem constant byte address 0x4 - core index']
  #allocation1 [shape = 'u32[144,128]{1,0:T(1,128)}', space=vmem, size = 0x12000, scoped, tag = 'internal scratch']
  %s0 = inlined_call_operand.vmem [shape: bf16[128,32], index: 0, kind: input, shape index: {}]
  %s1 = inlined_call_operand.vmem [shape: f32[1,32], index: 1, kind: input, shape index: {}]
  %s2 = inlined_call_operand.vmem [shape: f32[1,32], index: 2, kind: input, shape index: {}]
  %s3 = inlined_call_operand.vmem [shape: bf16[32,16], index: 3, kind: input, shape index: {}]
  %s4 = inlined_call_operand.vmem [shape: f32[1,16], index: 4, kind: input, shape index: {}]
  %s5 = inlined_call_operand.vmem [shape: bf16[128,16], index: 5, kind: output, shape index: {}]
  %s6 = sld [smem:[#allocation0]]
  $region53: #{densenet_forward.21} parent=0
    _
  %s8 = ssub.s32 1, %s6
  %s9 = scalar_select 0, %s8, %s6
  loop: start=0, step=1, limit=4
  $region2: #{densenet_forward.21} parent=0 // loop_pre_header
    _
  $region3: #{densenet_forward.21} parent=0 // loop_header
    %s11 = sphi 0, %s15
    %p12 = scmp.ge.s32.totalorder %s11, 4
    %s21 = sphi 0, %s23
    %s24 = sphi 0, %s21
    %s25 = sphi 0, %s24
    %s41 = sphi 0, %s25
    %s45 = sphi 0, %s45
    %s47 = sphi 0, %s45
    %s48 = sphi 0, %s47
    %s62 = sphi 0, %s48
    %s66 = sphi 0, %s66
    %s68 = sphi 0, %s66
    %s69 = sphi 0, %s68
    %s83 = sphi 0, %s69
    %s87 = sphi 0, %s87
    %s89 = sphi 0, %s87
    %s90 = sphi 0, %s89
    %s104 = sphi 0, %s90
    %s108 = sphi 0, %s108
    %s110 = sphi 0, %s108
    %s111 = sphi 0, %s110
    %s125 = sphi 0, %s111
    %s131 = sphi 0, %s133
    %s134 = sphi 0, %s131
    %s135 = sphi 0, %s134
    %s151 = sphi 0, %s135
  $region4: #{densenet_forward.21} parent=0 // loop_header_branch
    %14 = sbr.rel (%p12) target = $region8
  $region5: #{densenet_forward.21} parent=0 // loop_body
    %s16 = ssub.s32 %s11, 1
    %s17 = ssub.s32 %s11, 2
    %s18 = sadd.s32 %s11, 1
    %s19 = ssub.s32 %s11, %s18
    %p20 = scmp.eq.s32.totalorder %s19, 0
    %s22 = sadd.s32 %s21, 1
    %s23 = scalar_select %p20, %s21, %s22
    %p26 = pneg %p20
    %p27 = scmp.eq.s32.totalorder %s11, 1
    %p28 = por %p26, %p27
    %p29 = scmp.ne.s32.totalorder %s21, %s24
    %p30 = scmp.eq.s32.totalorder %s11, 0
    %p31 = por %p29, %p30
    %p32 = scmp.ne.s32.totalorder %s21, %s24
    %p33 = scmp.eq.s32.totalorder %s16, 1
    %p34 = por %p32, %p33
    %p35 = scmp.ne.s32.totalorder %s24, %s25
    %p36 = scmp.eq.s32.totalorder %s16, 0
    %p37 = por %p35, %p36
    %p38 = scmp.ne.s32.totalorder %s24, %s25
    %p39 = scmp.eq.s32.totalorder %s17, 1
    %p40 = por %p38, %p39
    %p42 = scmp.ne.s32.totalorder %s25, %s41
    %p43 = scmp.eq.s32.totalorder %s17, 0
    %p44 = por %p42, %p43
    %s46 = sadd.s32 %s45, 1
    %p49 = scmp.eq.s32.totalorder %s11, 1
    %p50 = scmp.ne.s32.totalorder %s45, %s47
    %p51 = scmp.eq.s32.totalorder %s11, 0
    %p52 = por %p50, %p51
    %p53 = scmp.ne.s32.totalorder %s45, %s47
    %p54 = scmp.eq.s32.totalorder %s16, 1
    %p55 = por %p53, %p54
    %p56 = scmp.ne.s32.totalorder %s47, %s48
    %p57 = scmp.eq.s32.totalorder %s16, 0
    %p58 = por %p56, %p57
    %p59 = scmp.ne.s32.totalorder %s47, %s48
    %p60 = scmp.eq.s32.totalorder %s17, 1
    %p61 = por %p59, %p60
    %p63 = scmp.ne.s32.totalorder %s48, %s62
    %p64 = scmp.eq.s32.totalorder %s17, 0
    %p65 = por %p63, %p64
    %s67 = sadd.s32 %s66, 1
    %p70 = scmp.eq.s32.totalorder %s11, 1
    %p71 = scmp.ne.s32.totalorder %s66, %s68
    %p72 = scmp.eq.s32.totalorder %s11, 0
    %p73 = por %p71, %p72
    %p74 = scmp.ne.s32.totalorder %s66, %s68
    %p75 = scmp.eq.s32.totalorder %s16, 1
    %p76 = por %p74, %p75
    %p77 = scmp.ne.s32.totalorder %s68, %s69
    %p78 = scmp.eq.s32.totalorder %s16, 0
    %p79 = por %p77, %p78
    %p80 = scmp.ne.s32.totalorder %s68, %s69
    %p81 = scmp.eq.s32.totalorder %s17, 1
    %p82 = por %p80, %p81
    %p84 = scmp.ne.s32.totalorder %s69, %s83
    %p85 = scmp.eq.s32.totalorder %s17, 0
    %p86 = por %p84, %p85
    %s88 = sadd.s32 %s87, 1
    %p91 = scmp.eq.s32.totalorder %s11, 1
    %p92 = scmp.ne.s32.totalorder %s87, %s89
    %p93 = scmp.eq.s32.totalorder %s11, 0
    %p94 = por %p92, %p93
    %p95 = scmp.ne.s32.totalorder %s87, %s89
    %p96 = scmp.eq.s32.totalorder %s16, 1
    %p97 = por %p95, %p96
    %p98 = scmp.ne.s32.totalorder %s89, %s90
    %p99 = scmp.eq.s32.totalorder %s16, 0
    %p100 = por %p98, %p99
    %p101 = scmp.ne.s32.totalorder %s89, %s90
    %p102 = scmp.eq.s32.totalorder %s17, 1
    %p103 = por %p101, %p102
    %p105 = scmp.ne.s32.totalorder %s90, %s104
    %p106 = scmp.eq.s32.totalorder %s17, 0
    %p107 = por %p105, %p106
    %s109 = sadd.s32 %s108, 1
    %p112 = scmp.eq.s32.totalorder %s11, 1
    %p113 = scmp.ne.s32.totalorder %s108, %s110
    %p114 = scmp.eq.s32.totalorder %s11, 0
    %p115 = por %p113, %p114
    %p116 = scmp.ne.s32.totalorder %s108, %s110
    %p117 = scmp.eq.s32.totalorder %s16, 1
    %p118 = por %p116, %p117
    %p119 = scmp.ne.s32.totalorder %s110, %s111
    %p120 = scmp.eq.s32.totalorder %s16, 0
    %p121 = por %p119, %p120
    %p122 = scmp.ne.s32.totalorder %s110, %s111
    %p123 = scmp.eq.s32.totalorder %s17, 1
    %p124 = por %p122, %p123
    %p126 = scmp.ne.s32.totalorder %s111, %s125
    %p127 = scmp.eq.s32.totalorder %s17, 0
    %p128 = por %p126, %p127
    %s129 = ssub.s32 %s11, %s18
    %p130 = scmp.eq.s32.totalorder %s129, 0
    %s132 = sadd.s32 %s131, 1
    %s133 = scalar_select %p130, %s131, %s132
    %p136 = pneg %p130
    %p137 = scmp.eq.s32.totalorder %s11, 1
    %p138 = por %p136, %p137
    %p139 = scmp.ne.s32.totalorder %s131, %s134
    %p140 = scmp.eq.s32.totalorder %s11, 0
    %p141 = por %p139, %p140
    %p142 = scmp.ne.s32.totalorder %s131, %s134
    %p143 = scmp.eq.s32.totalorder %s16, 1
    %p144 = por %p142, %p143
    %p145 = scmp.ne.s32.totalorder %s134, %s135
    %p146 = scmp.eq.s32.totalorder %s16, 0
    %p147 = por %p145, %p146
    %p148 = scmp.ne.s32.totalorder %s134, %s135
    %p149 = scmp.eq.s32.totalorder %s17, 1
    %p150 = por %p148, %p149
    %p152 = scmp.ne.s32.totalorder %s135, %s151
    %p153 = scmp.eq.s32.totalorder %s17, 0
    %p154 = por %p152, %p153
    %p155 = scmp.le.s32.totalorder 1, %s11
    %p156 = scmp.lt.s32.totalorder %s11, 3
    %p157 = pnand %p155, %p156
    %p158 = pneg %p157
    // Predicated region
    $region9: #{densenet_forward.21} parent=5 // pred_check
      _
    $region10: #{densenet_forward.21} parent=5 // pred_check_branch
      %160 = sbr.rel (%p157) target = $region12
    $region11: #{densenet_forward.21} parent=5 // pred_region
      %s161 = ssub.s32 %s11, 1
      // Predicated region
      $region13: #{densenet_forward.21} parent=11 // pred_check
        %p162 = pneg %p58
      $region14: #{densenet_forward.21} parent=11 // pred_check_branch
        %164 = sbr.rel (%p162) target = $region16
      $region15: #{densenet_forward.21} parent=11 // pred_region
        _
      $region16: #{densenet_forward.21} parent=11 // pred_fallthru
        _
      // Predicated region
      $region17: #{densenet_forward.21} parent=11 // pred_check
        %p165 = pneg %p79
      $region18: #{densenet_forward.21} parent=11 // pred_check_branch
        %167 = sbr.rel (%p165) target = $region20
      $region19: #{densenet_forward.21} parent=11 // pred_region
        _
      $region20: #{densenet_forward.21} parent=11 // pred_fallthru
        _
      // Predicated region
      $region21: #{densenet_forward.21} parent=11 // pred_check
        %p168 = pneg %p100
      $region22: #{densenet_forward.21} parent=11 // pred_check_branch
        %170 = sbr.rel (%p168) target = $region24
      $region23: #{densenet_forward.21} parent=11 // pred_region
        _
      $region24: #{densenet_forward.21} parent=11 // pred_fallthru
        _
      // Predicated region
      $region25: #{densenet_forward.21} parent=11 // pred_check
        %p171 = pneg %p121
      $region26: #{densenet_forward.21} parent=11 // pred_check_branch
        %173 = sbr.rel (%p171) target = $region28
      $region27: #{densenet_forward.21} parent=11 // pred_region
        _
      $region28: #{densenet_forward.21} parent=11 // pred_fallthru
        _
    $region12: #{densenet_forward.21} parent=5 // pred_fallthru
      _
    %p174 = scmp.lt.s32.totalorder %s11, 2
    // Predicated region
    $region29: #{densenet_forward.21} parent=5 // pred_check
      %p175 = pneg %p174
    $region30: #{densenet_forward.21} parent=5 // pred_check_branch
      %177 = sbr.rel (%p175) target = $region32
    $region31: #{densenet_forward.21} parent=5 // pred_region
      // Predicated region
      $region33: #{densenet_forward.21} parent=31 // pred_check
        %p178 = pneg %p31
      $region34: #{densenet_forward.21} parent=31 // pred_check_branch
        %180 = sbr.rel (%p178) target = $region36
      $region35: #{densenet_forward.21} parent=31 // pred_region
        %s181 = smul.u32 8, %s11
        %p182 = scmp.lt.s32.totalorder %s181, 15
        %s183 = scalar_select %p182, %s181, 15
        %s184 = smul.addr %s183, 4
        %s185 = scalar_lea.vmem %s0, %s184
        %s186 = smul.u32 8, %s11
      $region36: #{densenet_forward.21} parent=31 // pred_fallthru
        _
    $region32: #{densenet_forward.21} parent=5 // pred_fallthru
      _
    %p187 = scmp.le.s32.totalorder 1, %s11
    %p188 = scmp.lt.s32.totalorder %s11, 3
    %p189 = pnand %p187, %p188
    %p190 = pneg %p189
    // Predicated region
    $region37: #{densenet_forward.21} parent=5 // pred_check
      _
    $region38: #{densenet_forward.21} parent=5 // pred_check_branch
      %192 = sbr.rel (%p189) target = $region40
    $region39: #{densenet_forward.21} parent=5 // pred_region
      %s193 = ssub.s32 %s11, 1
      %s194 = smul.u32 8, %s16
      %p195 = scmp.lt.s32.totalorder %s194, 15
      %s196 = scalar_select %p195, %s194, 15
      %s197 = smul.addr %s196, 4
      %s198 = scalar_lea.vmem %s0, %s197
      %p199 = pneg %p37
      %p200 = pneg %p34
      %p201 = pneg %p58
      %p202 = pneg %p55
      %p203 = pneg %p79
      %p204 = pneg %p76
      %p205 = pneg %p100
      %p206 = pneg %p97
      %p207 = pneg %p121
      %p208 = pneg %p118
      %p209 = pneg %p147
      %p210 = pneg %p144
      %s211 = smul.u32 8, %s16
      %p212 = scmp.lt.s32.totalorder %s211, 15
      %s213 = scalar_select %p212, %s211, 15
      %s214 = smul.addr %s213, 4
      %s215 = scalar_lea.vmem %s5, %s214
      %s216 = smul.u32 8, %s16
      %p217 = scmp.lt.s32.totalorder %s216, 15
      %s218 = scalar_select %p217, %s216, 15
      %s219 = smul.addr %s218, 4
      %s220 = scalar_lea.vmem %s0, %s219
      %s221 = smul.u32 8, %s16
      %s222 = smul.u32 8, %s16
      %p223 = scmp.lt.s32.totalorder %s222, 15
      %s224 = scalar_select %p223, %s222, 15
      %s225 = smul.addr %s224, 4
      %s226 = scalar_lea.vmem %s5, %s225
      %s227 = smul.u32 8, %s16
      %v229 = vld [vmem:[%s220] sm:$0xf]
      %v230 = vld [vmem:[%s220 + $0x4] sm:$0xf]
      %v231 = vld [vmem:[%s220 + $0x8] sm:$0xf]
      %v232 = vld [vmem:[%s220 + $0xc] sm:$0xf]
      %v233 = vld [vmem:[%s220 + $0x10] sm:$0xf]
      %v234 = vld [vmem:[%s220 + $0x14] sm:$0xf]
      %v235 = vld [vmem:[%s220 + $0x18] sm:$0xf]
      %v236 = vld [vmem:[%s220 + $0x1c] sm:$0xf]
      %v237 = vunpack.c.l.bf16 %v229
      %v238 = vunpack.c.l.bf16 %v230
      %v239 = vunpack.c.l.bf16 %v231
      %v240 = vunpack.c.l.bf16 %v232
      %v241 = vunpack.c.l.bf16 %v233
      %v242 = vunpack.c.l.bf16 %v234
      %v243 = vunpack.c.l.bf16 %v235
      %v244 = vunpack.c.l.bf16 %v236
      %v245 = vld [vmem:[%s1] sm:$0x1]
      %v247 = vlaneseq
      %v248 = vshrl.u32 %v247, 7
      %v249 = vsub.s32 0, %v248
      %v250 = vrot.slane %v245, %v249
      %v252 = vmul.f32 %v237, %v250
      %v253 = vmul.f32 %v238, %v250
      %v254 = vmul.f32 %v239, %v250
      %v255 = vmul.f32 %v240, %v250
      %v256 = vmul.f32 %v241, %v250
      %v257 = vmul.f32 %v242, %v250
      %v258 = vmul.f32 %v243, %v250
      %v259 = vmul.f32 %v244, %v250
      %v260 = vld [vmem:[%s2] sm:$0x1]
      %v262 = vlaneseq
      %v263 = vshrl.u32 %v262, 7
      %v264 = vsub.s32 0, %v263
      %v265 = vrot.slane %v260, %v264
      %v267 = vadd.f32 %v252, %v265
      %v268 = vadd.f32 %v253, %v265
      %v269 = vadd.f32 %v254, %v265
      %v270 = vadd.f32 %v255, %v265
      %v271 = vadd.f32 %v256, %v265
      %v272 = vadd.f32 %v257, %v265
      %v273 = vadd.f32 %v258, %v265
      %v274 = vadd.f32 %v259, %v265
      %v275 = vmax.f32 %v267, 0.0
      %v276 = vmax.f32 %v268, 0.0
      %v277 = vmax.f32 %v269, 0.0
      %v278 = vmax.f32 %v270, 0.0
      %v279 = vmax.f32 %v271, 0.0
      %v280 = vmax.f32 %v272, 0.0
      %v281 = vmax.f32 %v273, 0.0
      %v282 = vmax.f32 %v274, 0.0
      %v283 = vpack.c.bf16 %v276, %v275
      %v284 = vpack.c.bf16 %v278, %v277
      %v285 = vpack.c.bf16 %v280, %v279
      %v286 = vpack.c.bf16 %v282, %v281
      %v287 = vld [vmem:[%s3] sm:$0xf]
      %v288 = vld [vmem:[%s3 + $0x4] sm:$0xf]
      %v289 = vld [vmem:[%s3 + $0x8] sm:$0xf]
      %v290 = vld [vmem:[%s3 + $0xc] sm:$0xf]
      %v291 = vld [vmem:[%s4] sm:$0x1]
      %v293 = vlaneseq
      %v294 = vshrl.u32 %v293, 7
      %v295 = vsub.s32 0, %v294
      %v296 = vrot.slane %v291, %v295
      %v302 = vunpack.c.l.b16 %v287
      %v303 = vunpack.c.l.b16 %v288
      %v304 = vunpack.c.l.b16 %v289
      %v305 = vunpack.c.l.b16 %v290
      %v306 = vpack.c.b16 %v303, %v302
      %v307 = vpack.c.b16 %v305, %v304
      %vm310 = vcmask 261120
      %v312 = vsel %vm310, %v283, 0
      %v315 = vsel %vm310, %v284, 0
      %v318 = vsel %vm310, %v285, 0
      %v321 = vsel %vm310, %v286, 0
      %323 = vmatprep.subr.bf16.mxu0 0
      %324 = vmatpush1.bf16.msra.mxu0 0
      %325 = vmatprep.subr.bf16.mxu0 0
      %326 = vmatpush1.bf16.msra.mxu0 0
      %327 = vmatprep.subr.bf16.mxu0 0
      %328 = vmatpush1.bf16.msra.mxu0 0
      %329 = vmatprep.subr.bf16.mxu0 0
      %330 = vmatpush1.bf16.msra.mxu0 0
      %331 = vmatprep.subr.bf16.mxu0 0
      %332 = vmatpush1.bf16.msra.mxu0 0
      %333 = vmatprep.subr.bf16.mxu0 0
      %334 = vmatpush1.bf16.msra.mxu0 0
      %335 = vmatprep.subr.bf16.mxu0 0
      %336 = vmatpush1.bf16.msra.mxu0 %v307
      %337 = vmatprep.subr.bf16.mxu0 0
      %338 = vmatpush1.bf16.msra.mxu0 %v306
      %339 = vmatprep.subr.bf16.mxu0 0
      %340 = vmatpush2.bf16.msra.mxu0 0
      %341 = vmatprep.subr.bf16.mxu0 0
      %342 = vmatpush2.bf16.msra.mxu0 0
      %343 = vmatprep.subr.bf16.mxu0 0
      %344 = vmatpush2.bf16.msra.mxu0 0
      %345 = vmatprep.subr.bf16.mxu0 0
      %346 = vmatpush2.bf16.msra.mxu0 0
      %347 = vmatprep.subr.bf16.mxu0 0
      %348 = vmatpush2.bf16.msra.mxu0 0
      %349 = vmatprep.subr.bf16.mxu0 0
      %350 = vmatpush2.bf16.msra.mxu0 0
      %351 = vmatprep.subr.bf16.mxu0 0
      %352 = vmatpush2.bf16.msra.mxu0 0
      %353 = vmatprep.subr.bf16.mxu0 0
      %354 = vmatpush2.bf16.msra.mxu0 0
      %355 = vmatprep.mubr.bf16.mxu0 0
      %356 = vmatmul.mubr.bf16.gmra.mxu0 %v312
      %v357 = vpop.f32.mrf.mxu0
      %v358 = vadd.f32 %v296, %v357
      %v359 = vpop.f32.mrf.mxu0
      %v360 = vpop.f32.mrf.mxu0
      %v361 = vadd.f32 %v296, %v360
      %v362 = vpop.f32.mrf.mxu0
      %363 = vmatprep.mubr.bf16.mxu0 0
      %364 = vmatmul.mubr.bf16.gmra.mxu0 %v315
      %v365 = vpop.f32.mrf.mxu0
      %v366 = vadd.f32 %v296, %v365
      %v367 = vpop.f32.mrf.mxu0
      %v368 = vpop.f32.mrf.mxu0
      %v369 = vadd.f32 %v296, %v368
      %v370 = vpop.f32.mrf.mxu0
      %371 = vmatprep.mubr.bf16.mxu0 0
      %372 = vmatmul.mubr.bf16.gmra.mxu0 %v318
      %v373 = vpop.f32.mrf.mxu0
      %v374 = vadd.f32 %v296, %v373
      %v375 = vpop.f32.mrf.mxu0
      %v376 = vpop.f32.mrf.mxu0
      %v377 = vadd.f32 %v296, %v376
      %v378 = vpop.f32.mrf.mxu0
      %379 = vmatprep.mubr.bf16.mxu0 0
      %380 = vmatmul.mubr.bf16.gmra.mxu0 %v321
      %v381 = vpop.f32.mrf.mxu0
      %v382 = vadd.f32 %v296, %v381
      %v383 = vpop.f32.mrf.mxu0
      %v384 = vpop.f32.mrf.mxu0
      %v385 = vadd.f32 %v296, %v384
      %v386 = vpop.f32.mrf.mxu0
      %387 = vdwg.mxu0
      %v388 = vmax.f32 %v358, 0.0
      %v389 = vmax.f32 %v361, 0.0
      %v390 = vmax.f32 %v366, 0.0
      %v391 = vmax.f32 %v369, 0.0
      %v392 = vmax.f32 %v374, 0.0
      %v393 = vmax.f32 %v377, 0.0
      %v394 = vmax.f32 %v382, 0.0
      %v395 = vmax.f32 %v385, 0.0
      %v396 = vpack.c.bf16 %v389, %v388
      %v397 = vpack.c.bf16 %v391, %v390
      %v398 = vpack.c.bf16 %v393, %v392
      %v399 = vpack.c.bf16 %v395, %v394
      %v404 = vunpack.c.l.b16 %v396
      %v405 = vunpack.c.h.b16 %v396
      %v406 = vunpack.c.l.b16 %v397
      %v407 = vunpack.c.h.b16 %v397
      %v408 = vunpack.c.l.b16 %v398
      %v409 = vunpack.c.h.b16 %v398
      %v410 = vunpack.c.l.b16 %v399
      %v411 = vunpack.c.h.b16 %v399
      %v412 = vpack.c.b16 %v404, %v404
      %v413 = vpack.c.b16 %v405, %v405
      %v414 = vpack.c.b16 %v406, %v406
      %v415 = vpack.c.b16 %v407, %v407
      %v416 = vpack.c.b16 %v408, %v408
      %v417 = vpack.c.b16 %v409, %v409
      %v418 = vpack.c.b16 %v410, %v410
      %v419 = vpack.c.b16 %v411, %v411
      %vm428 = vcmask 125952
      %429 = vst.msk [vmem:[%s226] sm:$0xf] %vm428, %v412
      %430 = vst.msk [vmem:[%s226 + $0x4] sm:$0xf] %vm428, %v413
      %431 = vst.msk [vmem:[%s226 + $0x8] sm:$0xf] %vm428, %v414
      %432 = vst.msk [vmem:[%s226 + $0xc] sm:$0xf] %vm428, %v415
      %433 = vst.msk [vmem:[%s226 + $0x10] sm:$0xf] %vm428, %v416
      %434 = vst.msk [vmem:[%s226 + $0x14] sm:$0xf] %vm428, %v417
      %435 = vst.msk [vmem:[%s226 + $0x18] sm:$0xf] %vm428, %v418
      %436 = vst.msk [vmem:[%s226 + $0x1c] sm:$0xf] %vm428, %v419
      %s437 = smul.u32 8, %s16
      %p438 = scmp.lt.s32.totalorder %s437, 15
      %s439 = scalar_select %p438, %s437, 15
      %s440 = smul.addr %s439, 4
      %s441 = scalar_lea.vmem %s5, %s440
      // Predicated region
      $region41: #{densenet_forward.21} parent=39 // pred_check
        %p442 = pneg %p144
      $region42: #{densenet_forward.21} parent=39 // pred_check_branch
        %444 = sbr.rel (%p442) target = $region44
      $region43: #{densenet_forward.21} parent=39 // pred_region
        %s445 = smul.u32 8, %s16
      $region44: #{densenet_forward.21} parent=39 // pred_fallthru
        _
    $region40: #{densenet_forward.21} parent=5 // pred_fallthru
      _
    %p446 = scmp.le.s32.totalorder 2, %s11
    // Predicated region
    $region45: #{densenet_forward.21} parent=5 // pred_check
      %p447 = pneg %p446
    $region46: #{densenet_forward.21} parent=5 // pred_check_branch
      %449 = sbr.rel (%p447) target = $region48
    $region47: #{densenet_forward.21} parent=5 // pred_region
      %s450 = ssub.s32 %s11, 2
      // Predicated region
      $region49: #{densenet_forward.21} parent=47 // pred_check
        %p451 = pneg %p150
      $region50: #{densenet_forward.21} parent=47 // pred_check_branch
        %453 = sbr.rel (%p451) target = $region52
      $region51: #{densenet_forward.21} parent=47 // pred_region
        %s454 = smul.u32 8, %s17
        %p455 = scmp.lt.s32.totalorder %s454, 15
        %s456 = scalar_select %p455, %s454, 15
        %s457 = smul.addr %s456, 4
        %s458 = scalar_lea.vmem %s5, %s457
      $region52: #{densenet_forward.21} parent=47 // pred_fallthru
        _
    $region48: #{densenet_forward.21} parent=5 // pred_fallthru
      _
  $region6: #{densenet_forward.21} parent=0 // loop_footer
    %s15 = sadd.s32 1, %s11
  $region7: #{densenet_forward.21} parent=0 // loop_footer_branch
    %10 = sbr.rel target = $region3
  $region8: #{densenet_forward.21} parent=0 // loop_exit
    _

// kernel: densenet_forward.20
$region0: #{densenet_forward.20}
  #allocation0 [shape = 'u32[]', space=smem, size = 0x4, offset = 0x4, fixed_abs, tag = 'smem constant byte address 0x4 - core index']
  #allocation1 [shape = 'u32[144,128]{1,0:T(1,128)}', space=vmem, size = 0x12000, scoped, tag = 'internal scratch']
  #allocation2 [shape = 'bf16[19,24,12]{2,1,0:T(8,128)(2,1)}', space=vmem, size = 0x1c800, scoped, tag = 'scratch operand']
  %s0 = inlined_call_operand.vmem [shape: bf16[2,16,16,12], index: 0, kind: input, shape index: {}, may-alias: {0,1,2,3}]
  %s1 = inlined_call_operand.vmem [shape: bf16[2,16,16,12], index: 1, kind: input, shape index: {}, may-alias: {0,1,2,3}]
  %s2 = inlined_call_operand.vmem [shape: bf16[2,16,16,12], index: 2, kind: input, shape index: {}, may-alias: {0,1,2,3}]
  %s3 = inlined_call_operand.vmem [shape: bf16[2,16,16,12], index: 3, kind: input, shape index: {}, may-alias: {0,1,2,3}]
  %s4 = inlined_call_operand.vmem [shape: bf16[4,12,64], index: 4, kind: input, shape index: {}]
  %s5 = inlined_call_operand.vmem [shape: f32[1,16], index: 5, kind: input, shape index: {}]
  %s6 = inlined_call_operand.vmem [shape: bf16[2,16,16,16], index: 6, kind: output, shape index: {}]
  %s7 = sld [smem:[#allocation0]]
  $region57: #{densenet_forward.20} parent=0
    _
  %s9 = ssub.s32 1, %s7
  %s10 = scalar_select 0, %s9, %s7
  loop: start=0, step=1, limit=4
  $region2: #{densenet_forward.20} parent=0 // loop_pre_header
    _
  $region3: #{densenet_forward.20} parent=0 // loop_header
    %s12 = sphi 0, %s16
    %p13 = scmp.ge.s32.totalorder %s12, 4
    %s19 = sphi 0, %s31
    %s20 = sphi 0, %s27
    %s21 = sphi 0, %s19
    %s22 = sphi 0, %s20
    %s23 = sphi 0, %s21
    %s24 = sphi 0, %s22
    %s44 = sphi 0, %s46
    %s47 = sphi 0, %s44
    %s48 = sphi 0, %s47
    %s64 = sphi 0, %s48
    %s80 = sphi 0, %s82
    %s83 = sphi 0, %s80
    %s84 = sphi 0, %s83
    %s100 = sphi 0, %s84
    %s108 = sphi 0, %s110
    %s111 = sphi 0, %s108
    %s112 = sphi 0, %s111
    %s128 = sphi 0, %s112
    %s144 = sphi 0, %s146
    %s147 = sphi 0, %s144
    %s148 = sphi 0, %s147
    %s164 = sphi 0, %s148
    %s168 = sphi 0, %s168
    %s170 = sphi 0, %s168
    %s171 = sphi 0, %s170
    %s185 = sphi 0, %s171
    %s189 = sphi 0, %s189
    %s191 = sphi 0, %s189
    %s192 = sphi 0, %s191
    %s206 = sphi 0, %s192
    %s214 = sphi 0, %s216
    %s217 = sphi 0, %s214
    %s218 = sphi 0, %s217
    %s234 = sphi 0, %s218
  $region4: #{densenet_forward.20} parent=0 // loop_header_branch
    %15 = sbr.rel (%p13) target = $region8
  $region5: #{densenet_forward.20} parent=0 // loop_body
    %s17 = ssub.s32 %s12, 1
    %s18 = ssub.s32 %s12, 2
    %s25 = sadd.s32 1, %s20
    %p26 = scmp.ge.s32.totalorder %s25, 1
    %s27 = scalar_select %p26, 0, %s25
    %s28 = sadd.s32 1, %s19
    %s29 = scalar_select %p26, %s28, %s19
    %p30 = scmp.ge.s32.totalorder %s29, 2
    %s31 = scalar_select %p30, 0, %s29
    %s32 = smul.u32 %s20, 16
    %s33 = sadd.s32 %s32, 4294967294
    %p34 = scmp.gt.s32.totalorder %s33, 0
    %s35 = scalar_select %p34, %s33, 0
    %s36 = smul.u32 %s27, 16
    %s37 = sadd.s32 %s36, 4294967294
    %p38 = scmp.gt.s32.totalorder %s37, 0
    %s39 = scalar_select %p38, %s37, 0
    %s40 = ssub.s32 %s19, %s31
    %s41 = ssub.s32 %s35, %s39
    %s42 = sor.u32 %s40, %s41
    %p43 = scmp.eq.s32.totalorder %s42, 0
    %s45 = sadd.s32 %s44, 1
    %s46 = scalar_select %p43, %s44, %s45
    %p49 = pneg %p43
    %p50 = scmp.eq.s32.totalorder %s12, 1
    %p51 = por %p49, %p50
    %p52 = scmp.ne.s32.totalorder %s44, %s47
    %p53 = scmp.eq.s32.totalorder %s12, 0
    %p54 = por %p52, %p53
    %p55 = scmp.ne.s32.totalorder %s44, %s47
    %p56 = scmp.eq.s32.totalorder %s17, 1
    %p57 = por %p55, %p56
    %p58 = scmp.ne.s32.totalorder %s47, %s48
    %p59 = scmp.eq.s32.totalorder %s17, 0
    %p60 = por %p58, %p59
    %p61 = scmp.ne.s32.totalorder %s47, %s48
    %p62 = scmp.eq.s32.totalorder %s18, 1
    %p63 = por %p61, %p62
    %p65 = scmp.ne.s32.totalorder %s48, %s64
    %p66 = scmp.eq.s32.totalorder %s18, 0
    %p67 = por %p65, %p66
    %s68 = smul.u32 %s20, 16
    %s69 = sadd.s32 %s68, 4294967295
    %p70 = scmp.gt.s32.totalorder %s69, 0
    %s71 = scalar_select %p70, %s69, 0
    %s72 = smul.u32 %s27, 16
    %s73 = sadd.s32 %s72, 4294967295
    %p74 = scmp.gt.s32.totalorder %s73, 0
    %s75 = scalar_select %p74, %s73, 0
    %s76 = ssub.s32 %s19, %s31
    %s77 = ssub.s32 %s71, %s75
    %s78 = sor.u32 %s76, %s77
    %p79 = scmp.eq.s32.totalorder %s78, 0
    %s81 = sadd.s32 %s80, 1
    %s82 = scalar_select %p79, %s80, %s81
    %p85 = pneg %p79
    %p86 = scmp.eq.s32.totalorder %s12, 1
    %p87 = por %p85, %p86
    %p88 = scmp.ne.s32.totalorder %s80, %s83
    %p89 = scmp.eq.s32.totalorder %s12, 0
    %p90 = por %p88, %p89
    %p91 = scmp.ne.s32.totalorder %s80, %s83
    %p92 = scmp.eq.s32.totalorder %s17, 1
    %p93 = por %p91, %p92
    %p94 = scmp.ne.s32.totalorder %s83, %s84
    %p95 = scmp.eq.s32.totalorder %s17, 0
    %p96 = por %p94, %p95
    %p97 = scmp.ne.s32.totalorder %s83, %s84
    %p98 = scmp.eq.s32.totalorder %s18, 1
    %p99 = por %p97, %p98
    %p101 = scmp.ne.s32.totalorder %s84, %s100
    %p102 = scmp.eq.s32.totalorder %s18, 0
    %p103 = por %p101, %p102
    %s104 = ssub.s32 %s19, %s31
    %s105 = ssub.s32 %s20, %s27
    %s106 = sor.u32 %s104, %s105
    %p107 = scmp.eq.s32.totalorder %s106, 0
    %s109 = sadd.s32 %s108, 1
    %s110 = scalar_select %p107, %s108, %s109
    %p113 = pneg %p107
    %p114 = scmp.eq.s32.totalorder %s12, 1
    %p115 = por %p113, %p114
    %p116 = scmp.ne.s32.totalorder %s108, %s111
    %p117 = scmp.eq.s32.totalorder %s12, 0
    %p118 = por %p116, %p117
    %p119 = scmp.ne.s32.totalorder %s108, %s111
    %p120 = scmp.eq.s32.totalorder %s17, 1
    %p121 = por %p119, %p120
    %p122 = scmp.ne.s32.totalorder %s111, %s112
    %p123 = scmp.eq.s32.totalorder %s17, 0
    %p124 = por %p122, %p123
    %p125 = scmp.ne.s32.totalorder %s111, %s112
    %p126 = scmp.eq.s32.totalorder %s18, 1
    %p127 = por %p125, %p126
    %p129 = scmp.ne.s32.totalorder %s112, %s128
    %p130 = scmp.eq.s32.totalorder %s18, 0
    %p131 = por %p129, %p130
    %s132 = smul.u32 %s20, 16
    %s133 = sadd.s32 %s132, 16
    %p134 = scmp.lt.s32.totalorder %s133, 15
    %s135 = scalar_select %p134, %s133, 15
    %s136 = smul.u32 %s27, 16
    %s137 = sadd.s32 %s136, 16
    %p138 = scmp.lt.s32.totalorder %s137, 15
    %s139 = scalar_select %p138, %s137, 15
    %s140 = ssub.s32 %s19, %s31
    %s141 = ssub.s32 %s135, %s139
    %s142 = sor.u32 %s140, %s141
    %p143 = scmp.eq.s32.totalorder %s142, 0
    %s145 = sadd.s32 %s144, 1
    %s146 = scalar_select %p143, %s144, %s145
    %p149 = pneg %p143
    %p150 = scmp.eq.s32.totalorder %s12, 1
    %p151 = por %p149, %p150
    %p152 = scmp.ne.s32.totalorder %s144, %s147
    %p153 = scmp.eq.s32.totalorder %s12, 0
    %p154 = por %p152, %p153
    %p155 = scmp.ne.s32.totalorder %s144, %s147
    %p156 = scmp.eq.s32.totalorder %s17, 1
    %p157 = por %p155, %p156
    %p158 = scmp.ne.s32.totalorder %s147, %s148
    %p159 = scmp.eq.s32.totalorder %s17, 0
    %p160 = por %p158, %p159
    %p161 = scmp.ne.s32.totalorder %s147, %s148
    %p162 = scmp.eq.s32.totalorder %s18, 1
    %p163 = por %p161, %p162
    %p165 = scmp.ne.s32.totalorder %s148, %s164
    %p166 = scmp.eq.s32.totalorder %s18, 0
    %p167 = por %p165, %p166
    %s169 = sadd.s32 %s168, 1
    %p172 = scmp.eq.s32.totalorder %s12, 1
    %p173 = scmp.ne.s32.totalorder %s168, %s170
    %p174 = scmp.eq.s32.totalorder %s12, 0
    %p175 = por %p173, %p174
    %p176 = scmp.ne.s32.totalorder %s168, %s170
    %p177 = scmp.eq.s32.totalorder %s17, 1
    %p178 = por %p176, %p177
    %p179 = scmp.ne.s32.totalorder %s170, %s171
    %p180 = scmp.eq.s32.totalorder %s17, 0
    %p181 = por %p179, %p180
    %p182 = scmp.ne.s32.totalorder %s170, %s171
    %p183 = scmp.eq.s32.totalorder %s18, 1
    %p184 = por %p182, %p183
    %p186 = scmp.ne.s32.totalorder %s171, %s185
    %p187 = scmp.eq.s32.totalorder %s18, 0
    %p188 = por %p186, %p187
    %s190 = sadd.s32 %s189, 1
    %p193 = scmp.eq.s32.totalorder %s12, 1
    %p194 = scmp.ne.s32.totalorder %s189, %s191
    %p195 = scmp.eq.s32.totalorder %s12, 0
    %p196 = por %p194, %p195
    %p197 = scmp.ne.s32.totalorder %s189, %s191
    %p198 = scmp.eq.s32.totalorder %s17, 1
    %p199 = por %p197, %p198
    %p200 = scmp.ne.s32.totalorder %s191, %s192
    %p201 = scmp.eq.s32.totalorder %s17, 0
    %p202 = por %p200, %p201
    %p203 = scmp.ne.s32.totalorder %s191, %s192
    %p204 = scmp.eq.s32.totalorder %s18, 1
    %p205 = por %p203, %p204
    %p207 = scmp.ne.s32.totalorder %s192, %s206
    %p208 = scmp.eq.s32.totalorder %s18, 0
    %p209 = por %p207, %p208
    %s210 = ssub.s32 %s19, %s31
    %s211 = ssub.s32 %s20, %s27
    %s212 = sor.u32 %s210, %s211
    %p213 = scmp.eq.s32.totalorder %s212, 0
    %s215 = sadd.s32 %s214, 1
    %s216 = scalar_select %p213, %s214, %s215
    %p219 = pneg %p213
    %p220 = scmp.eq.s32.totalorder %s12, 1
    %p221 = por %p219, %p220
    %p222 = scmp.ne.s32.totalorder %s214, %s217
    %p223 = scmp.eq.s32.totalorder %s12, 0
    %p224 = por %p222, %p223
    %p225 = scmp.ne.s32.totalorder %s214, %s217
    %p226 = scmp.eq.s32.totalorder %s17, 1
    %p227 = por %p225, %p226
    %p228 = scmp.ne.s32.totalorder %s217, %s218
    %p229 = scmp.eq.s32.totalorder %s17, 0
    %p230 = por %p228, %p229
    %p231 = scmp.ne.s32.totalorder %s217, %s218
    %p232 = scmp.eq.s32.totalorder %s18, 1
    %p233 = por %p231, %p232
    %p235 = scmp.ne.s32.totalorder %s218, %s234
    %p236 = scmp.eq.s32.totalorder %s18, 0
    %p237 = por %p235, %p236
    %p238 = scmp.le.s32.totalorder 1, %s12
    %p239 = scmp.lt.s32.totalorder %s12, 3
    %p240 = pnand %p238, %p239
    %p241 = pneg %p240
    // Predicated region
    $region9: #{densenet_forward.20} parent=5 // pred_check
      _
    $region10: #{densenet_forward.20} parent=5 // pred_check_branch
      %243 = sbr.rel (%p240) target = $region12
    $region11: #{densenet_forward.20} parent=5 // pred_region
      %s244 = ssub.s32 %s12, 1
      // Predicated region
      $region13: #{densenet_forward.20} parent=11 // pred_check
        %p245 = pneg %p181
      $region14: #{densenet_forward.20} parent=11 // pred_check_branch
        %247 = sbr.rel (%p245) target = $region16
      $region15: #{densenet_forward.20} parent=11 // pred_region
        _
      $region16: #{densenet_forward.20} parent=11 // pred_fallthru
        _
      // Predicated region
      $region17: #{densenet_forward.20} parent=11 // pred_check
        %p248 = pneg %p202
      $region18: #{densenet_forward.20} parent=11 // pred_check_branch
        %250 = sbr.rel (%p248) target = $region20
      $region19: #{densenet_forward.20} parent=11 // pred_region
        _
      $region20: #{densenet_forward.20} parent=11 // pred_fallthru
        _
    $region12: #{densenet_forward.20} parent=5 // pred_fallthru
      _
    %p251 = scmp.lt.s32.totalorder %s12, 2
    // Predicated region
    $region21: #{densenet_forward.20} parent=5 // pred_check
      %p252 = pneg %p251
    $region22: #{densenet_forward.20} parent=5 // pred_check_branch
      %254 = sbr.rel (%p252) target = $region24
    $region23: #{densenet_forward.20} parent=5 // pred_region
      // Predicated region
      $region25: #{densenet_forward.20} parent=23 // pred_check
        %p255 = pneg %p54
      $region26: #{densenet_forward.20} parent=23 // pred_check_branch
        %257 = sbr.rel (%p255) target = $region28
      $region27: #{densenet_forward.20} parent=23 // pred_region
        %s258 = smul.u32 %s20, 16
        %s259 = sadd.s32 %s258, 4294967294
        %p260 = scmp.gt.s32.totalorder %s259, 0
        %s261 = scalar_select %p260, %s259, 0
        %p262 = scmp.lt.s32.totalorder %s19, 1
        %s263 = scalar_select %p262, %s19, 1
        %p264 = scmp.lt.s32.totalorder %s261, 15
        %s265 = scalar_select %p264, %s261, 15
        %s266 = smul.addr %s265, 2
        %s267 = smul.addr %s263, 32
        %s268 = sadd.s32 %s266, %s267
        %s269 = smul.addr %s268, 4
        %s270 = scalar_lea.vmem %s0, %s269
        %s271 = smul.u32 %s20, 16
        %s272 = sadd.s32 %s271, 4294967294
        %p273 = scmp.gt.s32.totalorder %s272, 0
        %s274 = scalar_select %p273, %s272, 0
      $region28: #{densenet_forward.20} parent=23 // pred_fallthru
        _
      // Predicated region
      $region29: #{densenet_forward.20} parent=23 // pred_check
        %p275 = pneg %p90
      $region30: #{densenet_forward.20} parent=23 // pred_check_branch
        %277 = sbr.rel (%p275) target = $region32
      $region31: #{densenet_forward.20} parent=23 // pred_region
        %s278 = smul.u32 %s20, 16
        %s279 = sadd.s32 %s278, 4294967295
        %p280 = scmp.gt.s32.totalorder %s279, 0
        %s281 = scalar_select %p280, %s279, 0
        %p282 = scmp.lt.s32.totalorder %s19, 1
        %s283 = scalar_select %p282, %s19, 1
        %p284 = scmp.lt.s32.totalorder %s281, 15
        %s285 = scalar_select %p284, %s281, 15
        %s286 = smul.addr %s285, 2
        %s287 = smul.addr %s283, 32
        %s288 = sadd.s32 %s286, %s287
        %s289 = smul.addr %s288, 4
        %s290 = scalar_lea.vmem %s1, %s289
        %s291 = smul.u32 %s20, 16
        %s292 = sadd.s32 %s291, 4294967295
        %p293 = scmp.gt.s32.totalorder %s292, 0
        %s294 = scalar_select %p293, %s292, 0
      $region32: #{densenet_forward.20} parent=23 // pred_fallthru
        _
      // Predicated region
      $region33: #{densenet_forward.20} parent=23 // pred_check
        %p295 = pneg %p118
      $region34: #{densenet_forward.20} parent=23 // pred_check_branch
        %297 = sbr.rel (%p295) target = $region36
      $region35: #{densenet_forward.20} parent=23 // pred_region
        %s298 = smul.u32 16, %s20
        %p299 = scmp.lt.s32.totalorder %s19, 1
        %s300 = scalar_select %p299, %s19, 1
        %p301 = scmp.lt.s32.totalorder %s298, 15
        %s302 = scalar_select %p301, %s298, 15
        %s303 = smul.addr %s302, 2
        %s304 = smul.addr %s300, 32
        %s305 = sadd.s32 %s303, %s304
        %s306 = smul.addr %s305, 4
        %s307 = scalar_lea.vmem %s2, %s306
        %s308 = smul.u32 16, %s20
      $region36: #{densenet_forward.20} parent=23 // pred_fallthru
        _
      // Predicated region
      $region37: #{densenet_forward.20} parent=23 // pred_check
        %p309 = pneg %p154
      $region38: #{densenet_forward.20} parent=23 // pred_check_branch
        %311 = sbr.rel (%p309) target = $region40
      $region39: #{densenet_forward.20} parent=23 // pred_region
        %s312 = smul.u32 %s20, 16
        %s313 = sadd.s32 %s312, 16
        %p314 = scmp.lt.s32.totalorder %s313, 15
        %s315 = scalar_select %p314, %s313, 15
        %p316 = scmp.lt.s32.totalorder %s19, 1
        %s317 = scalar_select %p316, %s19, 1
        %p318 = scmp.lt.s32.totalorder %s315, 15
        %s319 = scalar_select %p318, %s315, 15
        %s320 = smul.addr %s319, 2
        %s321 = smul.addr %s317, 32
        %s322 = sadd.s32 %s320, %s321
        %s323 = smul.addr %s322, 4
        %s324 = scalar_lea.vmem %s3, %s323
        %s325 = smul.u32 %s20, 16
        %s326 = sadd.s32 %s325, 16
        %p327 = scmp.lt.s32.totalorder %s326, 15
        %s328 = scalar_select %p327, %s326, 15
      $region40: #{densenet_forward.20} parent=23 // pred_fallthru
        _
    $region24: #{densenet_forward.20} parent=5 // pred_fallthru
      _
    %p329 = scmp.le.s32.totalorder 1, %s12
    %p330 = scmp.lt.s32.totalorder %s12, 3
    %p331 = pnand %p329, %p330
    %p332 = pneg %p331
    // Predicated region
    $region41: #{densenet_forward.20} parent=5 // pred_check
      _
    $region42: #{densenet_forward.20} parent=5 // pred_check_branch
      %334 = sbr.rel (%p331) target = $region44
    $region43: #{densenet_forward.20} parent=5 // pred_region
      %s335 = ssub.s32 %s12, 1
      %s336 = smul.u32 %s22, 16
      %s337 = sadd.s32 %s336, 4294967294
      %p338 = scmp.gt.s32.totalorder %s337, 0
      %s339 = scalar_select %p338, %s337, 0
      %p340 = scmp.lt.s32.totalorder %s21, 1
      %s341 = scalar_select %p340, %s21, 1
      %p342 = scmp.lt.s32.totalorder %s339, 15
      %s343 = scalar_select %p342, %s339, 15
      %s344 = smul.addr %s343, 2
      %s345 = smul.addr %s341, 32
      %s346 = sadd.s32 %s344, %s345
      %s347 = smul.addr %s346, 4
      %s348 = scalar_lea.vmem %s0, %s347
      %p349 = pneg %p60
      %p350 = pneg %p57
      %s351 = smul.u32 %s22, 16
      %s352 = sadd.s32 %s351, 4294967295
      %p353 = scmp.gt.s32.totalorder %s352, 0
      %s354 = scalar_select %p353, %s352, 0
      %p355 = scmp.lt.s32.totalorder %s21, 1
      %s356 = scalar_select %p355, %s21, 1
      %p357 = scmp.lt.s32.totalorder %s354, 15
      %s358 = scalar_select %p357, %s354, 15
      %s359 = smul.addr %s358, 2
      %s360 = smul.addr %s356, 32
      %s361 = sadd.s32 %s359, %s360
      %s362 = smul.addr %s361, 4
      %s363 = scalar_lea.vmem %s1, %s362
      %p364 = pneg %p96
      %p365 = pneg %p93
      %s366 = smul.u32 16, %s22
      %p367 = scmp.lt.s32.totalorder %s21, 1
      %s368 = scalar_select %p367, %s21, 1
      %p369 = scmp.lt.s32.totalorder %s366, 15
      %s370 = scalar_select %p369, %s366, 15
      %s371 = smul.addr %s370, 2
      %s372 = smul.addr %s368, 32
      %s373 = sadd.s32 %s371, %s372
      %s374 = smul.addr %s373, 4
      %s375 = scalar_lea.vmem %s2, %s374
      %p376 = pneg %p124
      %p377 = pneg %p121
      %s378 = smul.u32 %s22, 16
      %s379 = sadd.s32 %s378, 16
      %p380 = scmp.lt.s32.totalorder %s379, 15
      %s381 = scalar_select %p380, %s379, 15
      %p382 = scmp.lt.s32.totalorder %s21, 1
      %s383 = scalar_select %p382, %s21, 1
      %p384 = scmp.lt.s32.totalorder %s381, 15
      %s385 = scalar_select %p384, %s381, 15
      %s386 = smul.addr %s385, 2
      %s387 = smul.addr %s383, 32
      %s388 = sadd.s32 %s386, %s387
      %s389 = smul.addr %s388, 4
      %s390 = scalar_lea.vmem %s3, %s389
      %p391 = pneg %p160
      %p392 = pneg %p157
      %p393 = pneg %p181
      %p394 = pneg %p178
      %p395 = pneg %p202
      %p396 = pneg %p199
      %p397 = pneg %p230
      %p398 = pneg %p227
      %s399 = smul.u32 16, %s22
      %p400 = scmp.lt.s32.totalorder %s21, 1
      %s401 = scalar_select %p400, %s21, 1
      %p402 = scmp.lt.s32.totalorder %s399, 15
      %s403 = scalar_select %p402, %s399, 15
      %s404 = smul.addr %s403, 2
      %s405 = smul.addr %s401, 32
      %s406 = sadd.s32 %s404, %s405
      %s407 = smul.addr %s406, 4
      %s408 = scalar_lea.vmem %s6, %s407
      %s409 = smul.u32 %s22, 16
      %s410 = sadd.s32 %s409, 4294967294
      %p411 = scmp.gt.s32.totalorder %s410, 0
      %s412 = scalar_select %p411, %s410, 0
      %p413 = scmp.lt.s32.totalorder %s21, 1
      %s414 = scalar_select %p413, %s21, 1
      %p415 = scmp.lt.s32.totalorder %s412, 15
      %s416 = scalar_select %p415, %s412, 15
      %s417 = smul.addr %s416, 2
      %s418 = smul.addr %s414, 32
      %s419 = sadd.s32 %s417, %s418
      %s420 = smul.addr %s419, 4
      %s421 = scalar_lea.vmem %s0, %s420
      %s422 = smul.u32 %s22, 16
      %s423 = sadd.s32 %s422, 4294967294
      %p424 = scmp.gt.s32.totalorder %s423, 0
      %s425 = scalar_select %p424, %s423, 0
      %s426 = smul.u32 %s22, 16
      %s427 = sadd.s32 %s426, 4294967295
      %p428 = scmp.gt.s32.totalorder %s427, 0
      %s429 = scalar_select %p428, %s427, 0
      %p430 = scmp.lt.s32.totalorder %s21, 1
      %s431 = scalar_select %p430, %s21, 1
      %p432 = scmp.lt.s32.totalorder %s429, 15
      %s433 = scalar_select %p432, %s429, 15
      %s434 = smul.addr %s433, 2
      %s435 = smul.addr %s431, 32
      %s436 = sadd.s32 %s434, %s435
      %s437 = smul.addr %s436, 4
      %s438 = scalar_lea.vmem %s1, %s437
      %s439 = smul.u32 %s22, 16
      %s440 = sadd.s32 %s439, 4294967295
      %p441 = scmp.gt.s32.totalorder %s440, 0
      %s442 = scalar_select %p441, %s440, 0
      %s443 = smul.u32 16, %s22
      %p444 = scmp.lt.s32.totalorder %s21, 1
      %s445 = scalar_select %p444, %s21, 1
      %p446 = scmp.lt.s32.totalorder %s443, 15
      %s447 = scalar_select %p446, %s443, 15
      %s448 = smul.addr %s447, 2
      %s449 = smul.addr %s445, 32
      %s450 = sadd.s32 %s448, %s449
      %s451 = smul.addr %s450, 4
      %s452 = scalar_lea.vmem %s2, %s451
      %s453 = smul.u32 16, %s22
      %s454 = smul.u32 %s22, 16
      %s455 = sadd.s32 %s454, 16
      %p456 = scmp.lt.s32.totalorder %s455, 15
      %s457 = scalar_select %p456, %s455, 15
      %p458 = scmp.lt.s32.totalorder %s21, 1
      %s459 = scalar_select %p458, %s21, 1
      %p460 = scmp.lt.s32.totalorder %s457, 15
      %s461 = scalar_select %p460, %s457, 15
      %s462 = smul.addr %s461, 2
      %s463 = smul.addr %s459, 32
      %s464 = sadd.s32 %s462, %s463
      %s465 = smul.addr %s464, 4
      %s466 = scalar_lea.vmem %s3, %s465
      %s467 = smul.u32 %s22, 16
      %s468 = sadd.s32 %s467, 16
      %p469 = scmp.lt.s32.totalorder %s468, 15
      %s470 = scalar_select %p469, %s468, 15
      %s471 = smul.u32 16, %s22
      %p472 = scmp.lt.s32.totalorder %s21, 1
      %s473 = scalar_select %p472, %s21, 1
      %p474 = scmp.lt.s32.totalorder %s471, 15
      %s475 = scalar_select %p474, %s471, 15
      %s476 = smul.addr %s475, 2
      %s477 = smul.addr %s473, 32
      %s478 = sadd.s32 %s476, %s477
      %s479 = smul.addr %s478, 4
      %s480 = scalar_lea.vmem %s6, %s479
      %s481 = smul.u32 16, %s22
      %vm483 = vcmask 93184
      %484 = vst.msk [vmem:[#allocation2 + $0x8] sm:$0xf] %vm483, 0
      %485 = vst.msk [vmem:[#allocation2 + $0x14] sm:$0xf] %vm483, 0
      %486 = vst.msk [vmem:[#allocation2 + $0x20] sm:$0xf] %vm483, 0
      %487 = vst.msk [vmem:[#allocation2 + $0x2c] sm:$0xf] %vm483, 0
      %488 = vst.msk [vmem:[#allocation2 + $0x38] sm:$0xf] %vm483, 0
      %489 = vst.msk [vmem:[#allocation2 + $0x44] sm:$0xf] %vm483, 0
      %490 = vst.msk [vmem:[#allocation2 + $0x50] sm:$0xf] %vm483, 0
      %491 = vst.msk [vmem:[#allocation2 + $0x5c] sm:$0xf] %vm483, 0
      %492 = vst.msk [vmem:[#allocation2 + $0x68] sm:$0xf] %vm483, 0
      %493 = vst.msk [vmem:[#allocation2 + $0x74] sm:$0xf] %vm483, 0
      %494 = vst.msk [vmem:[#allocation2 + $0x80] sm:$0xf] %vm483, 0
      %495 = vst.msk [vmem:[#allocation2 + $0x8c] sm:$0xf] %vm483, 0
      %496 = vst.msk [vmem:[#allocation2 + $0x98] sm:$0xf] %vm483, 0
      %497 = vst.msk [vmem:[#allocation2 + $0xa4] sm:$0xf] %vm483, 0
      %498 = vst.msk [vmem:[#allocation2 + $0xb0] sm:$0xf] %vm483, 0
      %499 = vst.msk [vmem:[#allocation2 + $0xbc] sm:$0xf] %vm483, 0
      %500 = vst.msk [vmem:[#allocation2 + $0xc8] sm:$0xf] %vm483, 0
      %501 = vst.msk [vmem:[#allocation2 + $0xd4] sm:$0xf] %vm483, 0
      %502 = vst.msk [vmem:[#allocation2 + $0xe0] sm:$0xf] %vm483, 0
      %v503 = vld [vmem:[%s452] sm:$0xf]
      %v504 = vld [vmem:[%s452 + $0x4] sm:$0xf]
      %v505 = vld [vmem:[%s452 + $0x8] sm:$0xf]
      %v506 = vld [vmem:[%s452 + $0xc] sm:$0xf]
      %v507 = vld [vmem:[%s452 + $0x10] sm:$0xf]
      %v508 = vld [vmem:[%s452 + $0x14] sm:$0xf]
      %v509 = vld [vmem:[%s452 + $0x18] sm:$0xf]
      %v510 = vld [vmem:[%s452 + $0x1c] sm:$0xf]
      %v511 = vld [vmem:[%s452 + $0x20] sm:$0xf]
      %v512 = vld [vmem:[%s452 + $0x24] sm:$0xf]
      %v513 = vld [vmem:[%s452 + $0x28] sm:$0xf]
      %v514 = vld [vmem:[%s452 + $0x2c] sm:$0xf]
      %v515 = vld [vmem:[%s452 + $0x30] sm:$0xf]
      %v516 = vld [vmem:[%s452 + $0x34] sm:$0xf]
      %v517 = vld [vmem:[%s452 + $0x38] sm:$0xf]
      %v518 = vld [vmem:[%s452 + $0x3c] sm:$0xf]
      %v519 = vld [vmem:[%s452 + $0x40] sm:$0xf]
      %v520 = vld [vmem:[%s452 + $0x44] sm:$0xf]
      %v521 = vld [vmem:[%s452 + $0x48] sm:$0xf]
      %v522 = vld [vmem:[%s452 + $0x4c] sm:$0xf]
      %v523 = vld [vmem:[%s452 + $0x50] sm:$0xf]
      %v524 = vld [vmem:[%s452 + $0x54] sm:$0xf]
      %v525 = vld [vmem:[%s452 + $0x58] sm:$0xf]
      %v526 = vld [vmem:[%s452 + $0x5c] sm:$0xf]
      %v527 = vld [vmem:[%s452 + $0x60] sm:$0xf]
      %v528 = vld [vmem:[%s452 + $0x64] sm:$0xf]
      %v529 = vld [vmem:[%s452 + $0x68] sm:$0xf]
      %v530 = vld [vmem:[%s452 + $0x6c] sm:$0xf]
      %v531 = vld [vmem:[%s452 + $0x70] sm:$0xf]
      %v532 = vld [vmem:[%s452 + $0x74] sm:$0xf]
      %v533 = vld [vmem:[%s452 + $0x78] sm:$0xf]
      %v534 = vld [vmem:[%s452 + $0x7c] sm:$0xf]
      %s535 = scalar_lea.vmem [#allocation2], 24
      %536 = vst.msk [vmem:[%s535] sm:$0xf] %vm483, %v503
      %537 = vst.msk [vmem:[%s535 + $0x4] sm:$0xf] %vm483, %v504
      %538 = vst.msk [vmem:[%s535 + $0xc] sm:$0xf] %vm483, %v505
      %539 = vst.msk [vmem:[%s535 + $0x10] sm:$0xf] %vm483, %v506
      %540 = vst.msk [vmem:[%s535 + $0x18] sm:$0xf] %vm483, %v507
      %541 = vst.msk [vmem:[%s535 + $0x1c] sm:$0xf] %vm483, %v508
      %542 = vst.msk [vmem:[%s535 + $0x24] sm:$0xf] %vm483, %v509
      %543 = vst.msk [vmem:[%s535 + $0x28] sm:$0xf] %vm483, %v510
      %544 = vst.msk [vmem:[%s535 + $0x30] sm:$0xf] %vm483, %v511
      %545 = vst.msk [vmem:[%s535 + $0x34] sm:$0xf] %vm483, %v512
      %546 = vst.msk [vmem:[%s535 + $0x3c] sm:$0xf] %vm483, %v513
      %547 = vst.msk [vmem:[%s535 + $0x40] sm:$0xf] %vm483, %v514
      %548 = vst.msk [vmem:[%s535 + $0x48] sm:$0xf] %vm483, %v515
      %549 = vst.msk [vmem:[%s535 + $0x4c] sm:$0xf] %vm483, %v516
      %550 = vst.msk [vmem:[%s535 + $0x54] sm:$0xf] %vm483, %v517
      %551 = vst.msk [vmem:[%s535 + $0x58] sm:$0xf] %vm483, %v518
      %552 = vst.msk [vmem:[%s535 + $0x60] sm:$0xf] %vm483, %v519
      %553 = vst.msk [vmem:[%s535 + $0x64] sm:$0xf] %vm483, %v520
      %554 = vst.msk [vmem:[%s535 + $0x6c] sm:$0xf] %vm483, %v521
      %555 = vst.msk [vmem:[%s535 + $0x70] sm:$0xf] %vm483, %v522
      %556 = vst.msk [vmem:[%s535 + $0x78] sm:$0xf] %vm483, %v523
      %557 = vst.msk [vmem:[%s535 + $0x7c] sm:$0xf] %vm483, %v524
      %558 = vst.msk [vmem:[%s535 + $0x84] sm:$0xf] %vm483, %v525
      %559 = vst.msk [vmem:[%s535 + $0x88] sm:$0xf] %vm483, %v526
      %560 = vst.msk [vmem:[%s535 + $0x90] sm:$0xf] %vm483, %v527
      %561 = vst.msk [vmem:[%s535 + $0x94] sm:$0xf] %vm483, %v528
      %562 = vst.msk [vmem:[%s535 + $0x9c] sm:$0xf] %vm483, %v529
      %563 = vst.msk [vmem:[%s535 + $0xa0] sm:$0xf] %vm483, %v530
      %564 = vst.msk [vmem:[%s535 + $0xa8] sm:$0xf] %vm483, %v531
      %565 = vst.msk [vmem:[%s535 + $0xac] sm:$0xf] %vm483, %v532
      %566 = vst.msk [vmem:[%s535 + $0xb4] sm:$0xf] %vm483, %v533
      %567 = vst.msk [vmem:[%s535 + $0xb8] sm:$0xf] %vm483, %v534
      %v568 = vld [vmem:[%s421] sm:$0xf]
      %v569 = vld [vmem:[%s421 + $0x4] sm:$0xf]
      %s570 = smul.u32 %s22, 16
      %s571 = sadd.s32 %s570, 4294967294
      %p572 = scmp.ge.s32.totalorder %s571, 0
      %s573 = scalar_select %p572, 1, 0
      %v574 = vstv %s573
      %vm575 = vcmp.eq.s32.totalorder %v574, 1
      %v576 = vsel %vm575, %v568, 0
      %v577 = vsel %vm575, %v569, 0
      %578 = vst.msk [vmem:[#allocation2] sm:$0xf] %vm483, %v576
      %579 = vst.msk [vmem:[#allocation2 + $0x4] sm:$0xf] %vm483, %v577
      %v580 = vld [vmem:[%s438] sm:$0xf]
      %v581 = vld [vmem:[%s438 + $0x4] sm:$0xf]
      %s582 = sadd.s32 %s570, 4294967295
      %p583 = scmp.ge.s32.totalorder %s582, 0
      %s584 = scalar_select %p583, 1, 0
      %v585 = vstv %s584
      %vm586 = vcmp.eq.s32.totalorder %v585, 1
      %v587 = vsel %vm586, %v580, 0
      %v588 = vsel %vm586, %v581, 0
      %s589 = scalar_lea.vmem [#allocation2], 12
      %590 = vst.msk [vmem:[%s589] sm:$0xf] %vm483, %v587
      %591 = vst.msk [vmem:[%s589 + $0x4] sm:$0xf] %vm483, %v588
      %v592 = vld [vmem:[%s466] sm:$0xf]
      %v593 = vld [vmem:[%s466 + $0x4] sm:$0xf]
      %s594 = sadd.s32 %s570, 16
      %p595 = scmp.lt.s32.totalorder %s594, 16
      %s596 = scalar_select %p595, 1, 0
      %v597 = vstv %s596
      %vm598 = vcmp.eq.s32.totalorder %v597, 1
      %v599 = vsel %vm598, %v592, 0
      %v600 = vsel %vm598, %v593, 0
      %s601 = scalar_lea.vmem [#allocation2], 216
      %602 = vst.msk [vmem:[%s601] sm:$0xf] %vm483, %v599
      %603 = vst.msk [vmem:[%s601 + $0x4] sm:$0xf] %vm483, %v600
      %v604 = vld [vmem:[#allocation2] sm:$0xf]
      %v605 = vld [vmem:[#allocation2 + $0x4] sm:$0xf]
      %v606 = vld [vmem:[#allocation2 + $0x8] sm:$0xf]
      %v607 = vld [vmem:[#allocation2 + $0xc] sm:$0xf]
      %v608 = vld [vmem:[#allocation2 + $0x10] sm:$0xf]
      %v609 = vld [vmem:[#allocation2 + $0x14] sm:$0xf]
      %v610 = vld [vmem:[#allocation2 + $0x18] sm:$0xf]
      %v611 = vld [vmem:[#allocation2 + $0x1c] sm:$0xf]
      %v612 = vld [vmem:[#allocation2 + $0x20] sm:$0xf]
      %v613 = vld [vmem:[#allocation2 + $0x24] sm:$0xf]
      %v614 = vld [vmem:[#allocation2 + $0x28] sm:$0xf]
      %v615 = vld [vmem:[#allocation2 + $0x2c] sm:$0xf]
      %v616 = vld [vmem:[#allocation2 + $0x30] sm:$0xf]
      %v617 = vld [vmem:[#allocation2 + $0x34] sm:$0xf]
      %v618 = vld [vmem:[#allocation2 + $0x38] sm:$0xf]
      %v619 = vld [vmem:[#allocation2 + $0x3c] sm:$0xf]
      %v620 = vld [vmem:[#allocation2 + $0x40] sm:$0xf]
      %v621 = vld [vmem:[#allocation2 + $0x44] sm:$0xf]
      %v622 = vld [vmem:[#allocation2 + $0x48] sm:$0xf]
      %v623 = vld [vmem:[#allocation2 + $0x4c] sm:$0xf]
      %v624 = vld [vmem:[#allocation2 + $0x50] sm:$0xf]
      %v625 = vld [vmem:[#allocation2 + $0x54] sm:$0xf]
      %v626 = vld [vmem:[#allocation2 + $0x58] sm:$0xf]
      %v627 = vld [vmem:[#allocation2 + $0x5c] sm:$0xf]
      %v628 = vld [vmem:[#allocation2 + $0x60] sm:$0xf]
      %v629 = vld [vmem:[#allocation2 + $0x64] sm:$0xf]
      %v630 = vld [vmem:[#allocation2 + $0x68] sm:$0xf]
      %v631 = vld [vmem:[#allocation2 + $0x6c] sm:$0xf]
      %v632 = vld [vmem:[#allocation2 + $0x70] sm:$0xf]
      %v633 = vld [vmem:[#allocation2 + $0x74] sm:$0xf]
      %v634 = vld [vmem:[#allocation2 + $0x78] sm:$0xf]
      %v635 = vld [vmem:[#allocation2 + $0x7c] sm:$0xf]
      %v636 = vld [vmem:[#allocation2 + $0x80] sm:$0xf]
      %v637 = vld [vmem:[#allocation2 + $0x84] sm:$0xf]
      %v638 = vld [vmem:[#allocation2 + $0x88] sm:$0xf]
      %v639 = vld [vmem:[#allocation2 + $0x8c] sm:$0xf]
      %v640 = vld [vmem:[#allocation2 + $0x90] sm:$0xf]
      %v641 = vld [vmem:[#allocation2 + $0x94] sm:$0xf]
      %v642 = vld [vmem:[#allocation2 + $0x98] sm:$0xf]
      %v643 = vld [vmem:[#allocation2 + $0x9c] sm:$0xf]
      %v644 = vld [vmem:[#allocation2 + $0xa0] sm:$0xf]
      %v645 = vld [vmem:[#allocation2 + $0xa4] sm:$0xf]
      %v646 = vld [vmem:[#allocation2 + $0xa8] sm:$0xf]
      %v647 = vld [vmem:[#allocation2 + $0xac] sm:$0xf]
      %v648 = vld [vmem:[#allocation2 + $0xb0] sm:$0xf]
      %v649 = vld [vmem:[#allocation2 + $0xb4] sm:$0xf]
      %v650 = vld [vmem:[#allocation2 + $0xb8] sm:$0xf]
      %v651 = vld [vmem:[#allocation2 + $0xbc] sm:$0xf]
      %v652 = vld [vmem:[%s4] sm:$0xf]
      %v653 = vld [vmem:[%s4 + $0x4] sm:$0x3]
      %v654 = vld [vmem:[%s589] sm:$0xf]
      %v655 = vld [vmem:[%s589 + $0x4] sm:$0xf]
      %v656 = vld [vmem:[%s589 + $0x8] sm:$0xf]
      %v657 = vld [vmem:[%s589 + $0xc] sm:$0xf]
      %v658 = vld [vmem:[%s589 + $0x10] sm:$0xf]
      %v659 = vld [vmem:[%s589 + $0x14] sm:$0xf]
      %v660 = vld [vmem:[%s589 + $0x18] sm:$0xf]
      %v661 = vld [vmem:[%s589 + $0x1c] sm:$0xf]
      %v662 = vld [vmem:[%s589 + $0x20] sm:$0xf]
      %v663 = vld [vmem:[%s589 + $0x24] sm:$0xf]
      %v664 = vld [vmem:[%s589 + $0x28] sm:$0xf]
      %v665 = vld [vmem:[%s589 + $0x2c] sm:$0xf]
      %v666 = vld [vmem:[%s589 + $0x30] sm:$0xf]
      %v667 = vld [vmem:[%s589 + $0x34] sm:$0xf]
      %v668 = vld [vmem:[%s589 + $0x38] sm:$0xf]
      %v669 = vld [vmem:[%s589 + $0x3c] sm:$0xf]
      %v670 = vld [vmem:[%s589 + $0x40] sm:$0xf]
      %v671 = vld [vmem:[%s589 + $0x44] sm:$0xf]
      %v672 = vld [vmem:[%s589 + $0x48] sm:$0xf]
      %v673 = vld [vmem:[%s589 + $0x4c] sm:$0xf]
      %v674 = vld [vmem:[%s589 + $0x50] sm:$0xf]
      %v675 = vld [vmem:[%s589 + $0x54] sm:$0xf]
      %v676 = vld [vmem:[%s589 + $0x58] sm:$0xf]
      %v677 = vld [vmem:[%s589 + $0x5c] sm:$0xf]
      %v678 = vld [vmem:[%s589 + $0x60] sm:$0xf]
      %v679 = vld [vmem:[%s589 + $0x64] sm:$0xf]
      %v680 = vld [vmem:[%s589 + $0x68] sm:$0xf]
      %v681 = vld [vmem:[%s589 + $0x6c] sm:$0xf]
      %v682 = vld [vmem:[%s589 + $0x70] sm:$0xf]
      %v683 = vld [vmem:[%s589 + $0x74] sm:$0xf]
      %v684 = vld [vmem:[%s589 + $0x78] sm:$0xf]
      %v685 = vld [vmem:[%s589 + $0x7c] sm:$0xf]
      %v686 = vld [vmem:[%s589 + $0x80] sm:$0xf]
      %v687 = vld [vmem:[%s589 + $0x84] sm:$0xf]
      %v688 = vld [vmem:[%s589 + $0x88] sm:$0xf]
      %v689 = vld [vmem:[%s589 + $0x8c] sm:$0xf]
      %v690 = vld [vmem:[%s589 + $0x90] sm:$0xf]
      %v691 = vld [vmem:[%s589 + $0x94] sm:$0xf]
      %v692 = vld [vmem:[%s589 + $0x98] sm:$0xf]
      %v693 = vld [vmem:[%s589 + $0x9c] sm:$0xf]
      %v694 = vld [vmem:[%s589 + $0xa0] sm:$0xf]
      %v695 = vld [vmem:[%s589 + $0xa4] sm:$0xf]
      %v696 = vld [vmem:[%s589 + $0xa8] sm:$0xf]
      %v697 = vld [vmem:[%s589 + $0xac] sm:$0xf]
      %v698 = vld [vmem:[%s589 + $0xb0] sm:$0xf]
      %v699 = vld [vmem:[%s589 + $0xb4] sm:$0xf]
      %v700 = vld [vmem:[%s589 + $0xb8] sm:$0xf]
      %v701 = vld [vmem:[%s589 + $0xbc] sm:$0xf]
      %s702 = scalar_lea.vmem %s4, 8
      %v703 = vld [vmem:[%s702] sm:$0xf]
      %v704 = vld [vmem:[%s702 + $0x4] sm:$0x3]
      %v753 = vunpack.c.l.b16 %v654
      %v754 = vunpack.c.l.b16 %v655
      %v755 = vunpack.c.l.b16 %v656
      %v756 = vunpack.c.l.b16 %v657
      %v757 = vunpack.c.l.b16 %v658
      %v758 = vunpack.c.l.b16 %v659
      %v759 = vunpack.c.l.b16 %v660
      %v760 = vunpack.c.l.b16 %v661
      %v761 = vunpack.c.l.b16 %v662
      %v762 = vunpack.c.l.b16 %v663
      %v763 = vunpack.c.l.b16 %v664
      %v764 = vunpack.c.l.b16 %v665
      %v765 = vunpack.c.l.b16 %v666
      %v766 = vunpack.c.l.b16 %v667
      %v767 = vunpack.c.l.b16 %v668
      %v768 = vunpack.c.l.b16 %v669
      %v769 = vunpack.c.l.b16 %v670
      %v770 = vunpack.c.l.b16 %v671
      %v771 = vunpack.c.l.b16 %v672
      %v772 = vunpack.c.l.b16 %v673
      %v773 = vunpack.c.l.b16 %v674
      %v774 = vunpack.c.l.b16 %v675
      %v775 = vunpack.c.l.b16 %v676
      %v776 = vunpack.c.l.b16 %v677
      %v777 = vunpack.c.l.b16 %v678
      %v778 = vunpack.c.l.b16 %v679
      %v779 = vunpack.c.l.b16 %v680
      %v780 = vunpack.c.l.b16 %v681
      %v781 = vunpack.c.l.b16 %v682
      %v782 = vunpack.c.l.b16 %v683
      %v783 = vunpack.c.l.b16 %v684
      %v784 = vunpack.c.l.b16 %v685
      %v785 = vunpack.c.l.b16 %v686
      %v786 = vunpack.c.l.b16 %v687
      %v787 = vunpack.c.l.b16 %v688
      %v788 = vunpack.c.l.b16 %v689
      %v789 = vunpack.c.l.b16 %v690
      %v790 = vunpack.c.l.b16 %v691
      %v791 = vunpack.c.l.b16 %v692
      %v792 = vunpack.c.l.b16 %v693
      %v793 = vunpack.c.l.b16 %v694
      %v794 = vunpack.c.l.b16 %v695
      %v795 = vunpack.c.l.b16 %v696
      %v796 = vunpack.c.l.b16 %v697
      %v797 = vunpack.c.l.b16 %v698
      %v798 = vunpack.c.l.b16 %v699
      %v799 = vunpack.c.l.b16 %v700
      %v800 = vunpack.c.l.b16 %v701
      %v801 = vpack.c.b16 %v754, %v753
      %v802 = vpack.c.b16 %v756, %v755
      %v803 = vpack.c.b16 %v758, %v757
      %v804 = vpack.c.b16 %v760, %v759
      %v805 = vpack.c.b16 %v762, %v761
      %v806 = vpack.c.b16 %v764, %v763
      %v807 = vpack.c.b16 %v766, %v765
      %v808 = vpack.c.b16 %v768, %v767
      %v809 = vpack.c.b16 %v770, %v769
      %v810 = vpack.c.b16 %v772, %v771
      %v811 = vpack.c.b16 %v774, %v773
      %v812 = vpack.c.b16 %v776, %v775
      %v813 = vpack.c.b16 %v778, %v777
      %v814 = vpack.c.b16 %v780, %v779
      %v815 = vpack.c.b16 %v782, %v781
      %v816 = vpack.c.b16 %v784, %v783
      %v817 = vpack.c.b16 %v786, %v785
      %v818 = vpack.c.b16 %v788, %v787
      %v819 = vpack.c.b16 %v790, %v789
      %v820 = vpack.c.b16 %v792, %v791
      %v821 = vpack.c.b16 %v794, %v793
      %v822 = vpack.c.b16 %v796, %v795
      %v823 = vpack.c.b16 %v798, %v797
      %v824 = vpack.c.b16 %v800, %v799
      %v827 = vunpack.c.l.b16 %v703
      %v828 = vunpack.c.l.b16 %v704
      %v829 = vpack.c.b16 %v828, %v827
      %vm830 = vcmask 97280
      %v832 = vsel %vm830, %v801, 0
      %v835 = vsel %vm830, %v802, 0
      %v838 = vsel %vm830, %v803, 0
      %v841 = vsel %vm830, %v804, 0
      %v844 = vsel %vm830, %v805, 0
      %v847 = vsel %vm830, %v806, 0
      %v850 = vsel %vm830, %v807, 0
      %v853 = vsel %vm830, %v808, 0
      %v856 = vsel %vm830, %v809, 0
      %v859 = vsel %vm830, %v810, 0
      %v862 = vsel %vm830, %v811, 0
      %v865 = vsel %vm830, %v812, 0
      %v868 = vsel %vm830, %v813, 0
      %v871 = vsel %vm830, %v814, 0
      %v874 = vsel %vm830, %v815, 0
      %v877 = vsel %vm830, %v816, 0
      %v880 = vsel %vm830, %v817, 0
      %v883 = vsel %vm830, %v818, 0
      %v886 = vsel %vm830, %v819, 0
      %v889 = vsel %vm830, %v820, 0
      %v892 = vsel %vm830, %v821, 0
      %v895 = vsel %vm830, %v822, 0
      %v898 = vsel %vm830, %v823, 0
      %v901 = vsel %vm830, %v824, 0
      %vm903 = vcmask 1045504
      %v905 = vsel %vm903, %v829, 0
      %907 = vmatprep.subr.bf16.mxu0 0
      %908 = vmatpush1.bf16.msra.mxu0 0
      %909 = vmatprep.subr.bf16.mxu0 0
      %910 = vmatpush1.bf16.msra.mxu0 0
      %911 = vmatprep.subr.bf16.mxu0 0
      %912 = vmatpush1.bf16.msra.mxu0 0
      %913 = vmatprep.subr.bf16.mxu0 0
      %914 = vmatpush1.bf16.msra.mxu0 0
      %915 = vmatprep.subr.bf16.mxu0 0
      %916 = vmatpush1.bf16.msra.mxu0 0
      %917 = vmatprep.subr.bf16.mxu0 0
      %918 = vmatpush1.bf16.msra.mxu0 0
      %919 = vmatprep.subr.bf16.mxu0 0
      %920 = vmatpush1.bf16.msra.mxu0 0
      %921 = vmatprep.subr.bf16.mxu0 0
      %922 = vmatpush1.bf16.msra.mxu0 %v905
      %923 = vmatprep.subr.bf16.mxu0 0
      %924 = vmatpush2.bf16.msra.mxu0 0
      %925 = vmatprep.subr.bf16.mxu0 0
      %926 = vmatpush2.bf16.msra.mxu0 0
      %927 = vmatprep.subr.bf16.mxu0 0
      %928 = vmatpush2.bf16.msra.mxu0 0
      %929 = vmatprep.subr.bf16.mxu0 0
      %930 = vmatpush2.bf16.msra.mxu0 0
      %931 = vmatprep.subr.bf16.mxu0 0
      %932 = vmatpush2.bf16.msra.mxu0 0
      %933 = vmatprep.subr.bf16.mxu0 0
      %934 = vmatpush2.bf16.msra.mxu0 0
      %935 = vmatprep.subr.bf16.mxu0 0
      %936 = vmatpush2.bf16.msra.mxu0 0
      %937 = vmatprep.subr.bf16.mxu0 0
      %938 = vmatpush2.bf16.msra.mxu0 0
      %939 = vmatprep.mubr.bf16.mxu0 0
      %940 = vmatmul.mubr.bf16.gmra.mxu0 %v832
      %v941 = vpop.f32.mrf.mxu0
      %v942 = vadd.f32 0.0, %v941
      %v943 = vpop.f32.mrf.mxu0
      %v944 = vpop.f32.mrf.mxu0
      %v945 = vadd.f32 0.0, %v944
      %v946 = vpop.f32.mrf.mxu0
      %947 = vmatprep.mubr.bf16.mxu0 0
      %948 = vmatmul.mubr.bf16.gmra.mxu0 %v835
      %v949 = vpop.f32.mrf.mxu0
      %v950 = vadd.f32 0.0, %v949
      %v951 = vpop.f32.mrf.mxu0
      %v952 = vpop.f32.mrf.mxu0
      %v953 = vadd.f32 0.0, %v952
      %v954 = vpop.f32.mrf.mxu0
      %955 = vmatprep.mubr.bf16.mxu0 0
      %956 = vmatmul.mubr.bf16.gmra.mxu0 %v838
      %v957 = vpop.f32.mrf.mxu0
      %v958 = vadd.f32 0.0, %v957
      %v959 = vpop.f32.mrf.mxu0
      %v960 = vpop.f32.mrf.mxu0
      %v961 = vadd.f32 0.0, %v960
      %v962 = vpop.f32.mrf.mxu0
      %963 = vmatprep.mubr.bf16.mxu0 0
      %964 = vmatmul.mubr.bf16.gmra.mxu0 %v841
      %v965 = vpop.f32.mrf.mxu0
      %v966 = vadd.f32 0.0, %v965
      %v967 = vpop.f32.mrf.mxu0
      %v968 = vpop.f32.mrf.mxu0
      %v969 = vadd.f32 0.0, %v968
      %v970 = vpop.f32.mrf.mxu0
      %971 = vmatprep.mubr.bf16.mxu0 0
      %972 = vmatmul.mubr.bf16.gmra.mxu0 %v844
      %v973 = vpop.f32.mrf.mxu0
      %v974 = vadd.f32 0.0, %v973
      %v975 = vpop.f32.mrf.mxu0
      %v976 = vpop.f32.mrf.mxu0
      %v977 = vadd.f32 0.0, %v976
      %v978 = vpop.f32.mrf.mxu0
      %979 = vmatprep.mubr.bf16.mxu0 0
      %980 = vmatmul.mubr.bf16.gmra.mxu0 %v847
      %v981 = vpop.f32.mrf.mxu0
      %v982 = vadd.f32 0.0, %v981
      %v983 = vpop.f32.mrf.mxu0
      %v984 = vpop.f32.mrf.mxu0
      %v985 = vadd.f32 0.0, %v984
      %v986 = vpop.f32.mrf.mxu0
      %987 = vmatprep.mubr.bf16.mxu0 0
      %988 = vmatmul.mubr.bf16.gmra.mxu0 %v850
      %v989 = vpop.f32.mrf.mxu0
      %v990 = vadd.f32 0.0, %v989
      %v991 = vpop.f32.mrf.mxu0
      %v992 = vpop.f32.mrf.mxu0
      %v993 = vadd.f32 0.0, %v992
      %v994 = vpop.f32.mrf.mxu0
      %995 = vmatprep.mubr.bf16.mxu0 0
      %996 = vmatmul.mubr.bf16.gmra.mxu0 %v853
      %v997 = vpop.f32.mrf.mxu0
      %v998 = vadd.f32 0.0, %v997
      %v999 = vpop.f32.mrf.mxu0
      %v1000 = vpop.f32.mrf.mxu0
      %v1001 = vadd.f32 0.0, %v1000
      %v1002 = vpop.f32.mrf.mxu0
      %1003 = vmatprep.mubr.bf16.mxu0 0
      %1004 = vmatmul.mubr.bf16.gmra.mxu0 %v856
      %v1005 = vpop.f32.mrf.mxu0
      %v1006 = vadd.f32 0.0, %v1005
      %v1007 = vpop.f32.mrf.mxu0
      %v1008 = vpop.f32.mrf.mxu0
      %v1009 = vadd.f32 0.0, %v1008
      %v1010 = vpop.f32.mrf.mxu0
      %1011 = vmatprep.mubr.bf16.mxu0 0
      %1012 = vmatmul.mubr.bf16.gmra.mxu0 %v859
      %v1013 = vpop.f32.mrf.mxu0
      %v1014 = vadd.f32 0.0, %v1013
      %v1015 = vpop.f32.mrf.mxu0
      %v1016 = vpop.f32.mrf.mxu0
      %v1017 = vadd.f32 0.0, %v1016
      %v1018 = vpop.f32.mrf.mxu0
      %1019 = vmatprep.mubr.bf16.mxu0 0
      %1020 = vmatmul.mubr.bf16.gmra.mxu0 %v862
      %v1021 = vpop.f32.mrf.mxu0
      %v1022 = vadd.f32 0.0, %v1021
      %v1023 = vpop.f32.mrf.mxu0
      %v1024 = vpop.f32.mrf.mxu0
      %v1025 = vadd.f32 0.0, %v1024
      %v1026 = vpop.f32.mrf.mxu0
      %1027 = vmatprep.mubr.bf16.mxu0 0
      %1028 = vmatmul.mubr.bf16.gmra.mxu0 %v865
      %v1029 = vpop.f32.mrf.mxu0
      %v1030 = vadd.f32 0.0, %v1029
      %v1031 = vpop.f32.mrf.mxu0
      %v1032 = vpop.f32.mrf.mxu0
      %v1033 = vadd.f32 0.0, %v1032
      %v1034 = vpop.f32.mrf.mxu0
      %1035 = vmatprep.mubr.bf16.mxu0 0
      %1036 = vmatmul.mubr.bf16.gmra.mxu0 %v868
      %v1037 = vpop.f32.mrf.mxu0
      %v1038 = vadd.f32 0.0, %v1037
      %v1039 = vpop.f32.mrf.mxu0
      %v1040 = vpop.f32.mrf.mxu0
      %v1041 = vadd.f32 0.0, %v1040
      %v1042 = vpop.f32.mrf.mxu0
      %1043 = vmatprep.mubr.bf16.mxu0 0
      %1044 = vmatmul.mubr.bf16.gmra.mxu0 %v871
      %v1045 = vpop.f32.mrf.mxu0
      %v1046 = vadd.f32 0.0, %v1045
      %v1047 = vpop.f32.mrf.mxu0
      %v1048 = vpop.f32.mrf.mxu0
      %v1049 = vadd.f32 0.0, %v1048
      %v1050 = vpop.f32.mrf.mxu0
      %1051 = vmatprep.mubr.bf16.mxu0 0
      %1052 = vmatmul.mubr.bf16.gmra.mxu0 %v874
      %v1053 = vpop.f32.mrf.mxu0
      %v1054 = vadd.f32 0.0, %v1053
      %v1055 = vpop.f32.mrf.mxu0
      %v1056 = vpop.f32.mrf.mxu0
      %v1057 = vadd.f32 0.0, %v1056
      %v1058 = vpop.f32.mrf.mxu0
      %1059 = vmatprep.mubr.bf16.mxu0 0
      %1060 = vmatmul.mubr.bf16.gmra.mxu0 %v877
      %v1061 = vpop.f32.mrf.mxu0
      %v1062 = vadd.f32 0.0, %v1061
      %v1063 = vpop.f32.mrf.mxu0
      %v1064 = vpop.f32.mrf.mxu0
      %v1065 = vadd.f32 0.0, %v1064
      %v1066 = vpop.f32.mrf.mxu0
      %1067 = vmatprep.mubr.bf16.mxu0 0
      %1068 = vmatmul.mubr.bf16.gmra.mxu0 %v880
      %v1069 = vpop.f32.mrf.mxu0
      %v1070 = vadd.f32 0.0, %v1069
      %v1071 = vpop.f32.mrf.mxu0
      %v1072 = vpop.f32.mrf.mxu0
      %v1073 = vadd.f32 0.0, %v1072
      %v1074 = vpop.f32.mrf.mxu0
      %1075 = vmatprep.mubr.bf16.mxu0 0
      %1076 = vmatmul.mubr.bf16.gmra.mxu0 %v883
      %v1077 = vpop.f32.mrf.mxu0
      %v1078 = vadd.f32 0.0, %v1077
      %v1079 = vpop.f32.mrf.mxu0
      %v1080 = vpop.f32.mrf.mxu0
      %v1081 = vadd.f32 0.0, %v1080
      %v1082 = vpop.f32.mrf.mxu0
      %1083 = vmatprep.mubr.bf16.mxu0 0
      %1084 = vmatmul.mubr.bf16.gmra.mxu0 %v886
      %v1085 = vpop.f32.mrf.mxu0
      %v1086 = vadd.f32 0.0, %v1085
      %v1087 = vpop.f32.mrf.mxu0
      %v1088 = vpop.f32.mrf.mxu0
      %v1089 = vadd.f32 0.0, %v1088
      %v1090 = vpop.f32.mrf.mxu0
      %1091 = vmatprep.mubr.bf16.mxu0 0
      %1092 = vmatmul.mubr.bf16.gmra.mxu0 %v889
      %v1093 = vpop.f32.mrf.mxu0
      %v1094 = vadd.f32 0.0, %v1093
      %v1095 = vpop.f32.mrf.mxu0
      %v1096 = vpop.f32.mrf.mxu0
      %v1097 = vadd.f32 0.0, %v1096
      %v1098 = vpop.f32.mrf.mxu0
      %1099 = vmatprep.mubr.bf16.mxu0 0
      %1100 = vmatmul.mubr.bf16.gmra.mxu0 %v892
      %v1101 = vpop.f32.mrf.mxu0
      %v1102 = vadd.f32 0.0, %v1101
      %v1103 = vpop.f32.mrf.mxu0
      %v1104 = vpop.f32.mrf.mxu0
      %v1105 = vadd.f32 0.0, %v1104
      %v1106 = vpop.f32.mrf.mxu0
      %1107 = vmatprep.mubr.bf16.mxu0 0
      %1108 = vmatmul.mubr.bf16.gmra.mxu0 %v895
      %v1109 = vpop.f32.mrf.mxu0
      %v1110 = vadd.f32 0.0, %v1109
      %v1111 = vpop.f32.mrf.mxu0
      %v1112 = vpop.f32.mrf.mxu0
      %v1113 = vadd.f32 0.0, %v1112
      %v1114 = vpop.f32.mrf.mxu0
      %1115 = vmatprep.mubr.bf16.mxu0 0
      %1116 = vmatmul.mubr.bf16.gmra.mxu0 %v898
      %v1117 = vpop.f32.mrf.mxu0
      %v1118 = vadd.f32 0.0, %v1117
      %v1119 = vpop.f32.mrf.mxu0
      %v1120 = vpop.f32.mrf.mxu0
      %v1121 = vadd.f32 0.0, %v1120
      %v1122 = vpop.f32.mrf.mxu0
      %1123 = vmatprep.mubr.bf16.mxu0 0
      %1124 = vmatmul.mubr.bf16.gmra.mxu0 %v901
      %v1125 = vpop.f32.mrf.mxu0
      %v1126 = vadd.f32 0.0, %v1125
      %v1127 = vpop.f32.mrf.mxu0
      %v1128 = vpop.f32.mrf.mxu0
      %v1129 = vadd.f32 0.0, %v1128
      %v1130 = vpop.f32.mrf.mxu0
      %1131 = vdwg.mxu0
      %v1180 = vunpack.c.l.b16 %v604
      %v1181 = vunpack.c.l.b16 %v605
      %v1182 = vunpack.c.l.b16 %v606
      %v1183 = vunpack.c.l.b16 %v607
      %v1184 = vunpack.c.l.b16 %v608
      %v1185 = vunpack.c.l.b16 %v609
      %v1186 = vunpack.c.l.b16 %v610
      %v1187 = vunpack.c.l.b16 %v611
      %v1188 = vunpack.c.l.b16 %v612
      %v1189 = vunpack.c.l.b16 %v613
      %v1190 = vunpack.c.l.b16 %v614
      %v1191 = vunpack.c.l.b16 %v615
      %v1192 = vunpack.c.l.b16 %v616
      %v1193 = vunpack.c.l.b16 %v617
      %v1194 = vunpack.c.l.b16 %v618
      %v1195 = vunpack.c.l.b16 %v619
      %v1196 = vunpack.c.l.b16 %v620
      %v1197 = vunpack.c.l.b16 %v621
      %v1198 = vunpack.c.l.b16 %v622
      %v1199 = vunpack.c.l.b16 %v623
      %v1200 = vunpack.c.l.b16 %v624
      %v1201 = vunpack.c.l.b16 %v625
      %v1202 = vunpack.c.l.b16 %v626
      %v1203 = vunpack.c.l.b16 %v627
      %v1204 = vunpack.c.l.b16 %v628
      %v1205 = vunpack.c.l.b16 %v629
      %v1206 = vunpack.c.l.b16 %v630
      %v1207 = vunpack.c.l.b16 %v631
      %v1208 = vunpack.c.l.b16 %v632
      %v1209 = vunpack.c.l.b16 %v633
      %v1210 = vunpack.c.l.b16 %v634
      %v1211 = vunpack.c.l.b16 %v635
      %v1212 = vunpack.c.l.b16 %v636
      %v1213 = vunpack.c.l.b16 %v637
      %v1214 = vunpack.c.l.b16 %v638
      %v1215 = vunpack.c.l.b16 %v639
      %v1216 = vunpack.c.l.b16 %v640
      %v1217 = vunpack.c.l.b16 %v641
      %v1218 = vunpack.c.l.b16 %v642
      %v1219 = vunpack.c.l.b16 %v643
      %v1220 = vunpack.c.l.b16 %v644
      %v1221 = vunpack.c.l.b16 %v645
      %v1222 = vunpack.c.l.b16 %v646
      %v1223 = vunpack.c.l.b16 %v647
      %v1224 = vunpack.c.l.b16 %v648
      %v1225 = vunpack.c.l.b16 %v649
      %v1226 = vunpack.c.l.b16 %v650
      %v1227 = vunpack.c.l.b16 %v651
      %v1228 = vpack.c.b16 %v1181, %v1180
      %v1229 = vpack.c.b16 %v1183, %v1182
      %v1230 = vpack.c.b16 %v1185, %v1184
      %v1231 = vpack.c.b16 %v1187, %v1186
      %v1232 = vpack.c.b16 %v1189, %v1188
      %v1233 = vpack.c.b16 %v1191, %v1190
      %v1234 = vpack.c.b16 %v1193, %v1192
      %v1235 = vpack.c.b16 %v1195, %v1194
      %v1236 = vpack.c.b16 %v1197, %v1196
      %v1237 = vpack.c.b16 %v1199, %v1198
      %v1238 = vpack.c.b16 %v1201, %v1200
      %v1239 = vpack.c.b16 %v1203, %v1202
      %v1240 = vpack.c.b16 %v1205, %v1204
      %v1241 = vpack.c.b16 %v1207, %v1206
      %v1242 = vpack.c.b16 %v1209, %v1208
      %v1243 = vpack.c.b16 %v1211, %v1210
      %v1244 = vpack.c.b16 %v1213, %v1212
      %v1245 = vpack.c.b16 %v1215, %v1214
      %v1246 = vpack.c.b16 %v1217, %v1216
      %v1247 = vpack.c.b16 %v1219, %v1218
      %v1248 = vpack.c.b16 %v1221, %v1220
      %v1249 = vpack.c.b16 %v1223, %v1222
      %v1250 = vpack.c.b16 %v1225, %v1224
      %v1251 = vpack.c.b16 %v1227, %v1226
      %v1254 = vunpack.c.l.b16 %v652
      %v1255 = vunpack.c.l.b16 %v653
      %v1256 = vpack.c.b16 %v1255, %v1254
      %v1258 = vsel %vm830, %v1228, 0
      %v1261 = vsel %vm830, %v1229, 0
      %v1264 = vsel %vm830, %v1230, 0
      %v1267 = vsel %vm830, %v1231, 0
      %v1270 = vsel %vm830, %v1232, 0
      %v1273 = vsel %vm830, %v1233, 0
      %v1276 = vsel %vm830, %v1234, 0
      %v1279 = vsel %vm830, %v1235, 0
      %v1282 = vsel %vm830, %v1236, 0
      %v1285 = vsel %vm830, %v1237, 0
      %v1288 = vsel %vm830, %v1238, 0
      %v1291 = vsel %vm830, %v1239, 0
      %v1294 = vsel %vm830, %v1240, 0
      %v1297 = vsel %vm830, %v1241, 0
      %v1300 = vsel %vm830, %v1242, 0
      %v1303 = vsel %vm830, %v1243, 0
      %v1306 = vsel %vm830, %v1244, 0
      %v1309 = vsel %vm830, %v1245, 0
      %v1312 = vsel %vm830, %v1246, 0
      %v1315 = vsel %vm830, %v1247, 0
      %v1318 = vsel %vm830, %v1248, 0
      %v1321 = vsel %vm830, %v1249, 0
      %v1324 = vsel %vm830, %v1250, 0
      %v1327 = vsel %vm830, %v1251, 0
      %v1330 = vsel %vm903, %v1256, 0
      %1332 = vmatprep.subr.bf16.mxu0 0
      %1333 = vmatpush1.bf16.msra.mxu0 0
      %1334 = vmatprep.subr.bf16.mxu0 0
      %1335 = vmatpush1.bf16.msra.mxu0 0
      %1336 = vmatprep.subr.bf16.mxu0 0
      %1337 = vmatpush1.bf16.msra.mxu0 0
      %1338 = vmatprep.subr.bf16.mxu0 0
      %1339 = vmatpush1.bf16.msra.mxu0 0
      %1340 = vmatprep.subr.bf16.mxu0 0
      %1341 = vmatpush1.bf16.msra.mxu0 0
      %1342 = vmatprep.subr.bf16.mxu0 0
      %1343 = vmatpush1.bf16.msra.mxu0 0
      %1344 = vmatprep.subr.bf16.mxu0 0
      %1345 = vmatpush1.bf16.msra.mxu0 0
      %1346 = vmatprep.subr.bf16.mxu0 0
      %1347 = vmatpush1.bf16.msra.mxu0 %v1330
      %1348 = vmatprep.subr.bf16.mxu0 0
      %1349 = vmatpush2.bf16.msra.mxu0 0
      %1350 = vmatprep.subr.bf16.mxu0 0
      %1351 = vmatpush2.bf16.msra.mxu0 0
      %1352 = vmatprep.subr.bf16.mxu0 0
      %1353 = vmatpush2.bf16.msra.mxu0 0
      %1354 = vmatprep.subr.bf16.mxu0 0
      %1355 = vmatpush2.bf16.msra.mxu0 0
      %1356 = vmatprep.subr.bf16.mxu0 0
      %1357 = vmatpush2.bf16.msra.mxu0 0
      %1358 = vmatprep.subr.bf16.mxu0 0
      %1359 = vmatpush2.bf16.msra.mxu0 0
      %1360 = vmatprep.subr.bf16.mxu0 0
      %1361 = vmatpush2.bf16.msra.mxu0 0
      %1362 = vmatprep.subr.bf16.mxu0 0
      %1363 = vmatpush2.bf16.msra.mxu0 0
      %1364 = vmatprep.mubr.bf16.mxu0 0
      %1365 = vmatmul.mubr.bf16.gmra.mxu0 %v1258
      %v1366 = vpop.f32.mrf.mxu0
      %v1367 = vadd.f32 %v942, %v1366
      %v1368 = vpop.f32.mrf.mxu0
      %v1369 = vpop.f32.mrf.mxu0
      %v1370 = vadd.f32 %v945, %v1369
      %v1371 = vpop.f32.mrf.mxu0
      %1372 = vmatprep.mubr.bf16.mxu0 0
      %1373 = vmatmul.mubr.bf16.gmra.mxu0 %v1261
      %v1374 = vpop.f32.mrf.mxu0
      %v1375 = vadd.f32 %v950, %v1374
      %v1376 = vpop.f32.mrf.mxu0
      %v1377 = vpop.f32.mrf.mxu0
      %v1378 = vadd.f32 %v953, %v1377
      %v1379 = vpop.f32.mrf.mxu0
      %1380 = vmatprep.mubr.bf16.mxu0 0
      %1381 = vmatmul.mubr.bf16.gmra.mxu0 %v1264
      %v1382 = vpop.f32.mrf.mxu0
      %v1383 = vadd.f32 %v958, %v1382
      %v1384 = vpop.f32.mrf.mxu0
      %v1385 = vpop.f32.mrf.mxu0
      %v1386 = vadd.f32 %v961, %v1385
      %v1387 = vpop.f32.mrf.mxu0
      %1388 = vmatprep.mubr.bf16.mxu0 0
      %1389 = vmatmul.mubr.bf16.gmra.mxu0 %v1267
      %v1390 = vpop.f32.mrf.mxu0
      %v1391 = vadd.f32 %v966, %v1390
      %v1392 = vpop.f32.mrf.mxu0
      %v1393 = vpop.f32.mrf.mxu0
      %v1394 = vadd.f32 %v969, %v1393
      %v1395 = vpop.f32.mrf.mxu0
      %1396 = vmatprep.mubr.bf16.mxu0 0
      %1397 = vmatmul.mubr.bf16.gmra.mxu0 %v1270
      %v1398 = vpop.f32.mrf.mxu0
      %v1399 = vadd.f32 %v974, %v1398
      %v1400 = vpop.f32.mrf.mxu0
      %v1401 = vpop.f32.mrf.mxu0
      %v1402 = vadd.f32 %v977, %v1401
      %v1403 = vpop.f32.mrf.mxu0
      %1404 = vmatprep.mubr.bf16.mxu0 0
      %1405 = vmatmul.mubr.bf16.gmra.mxu0 %v1273
      %v1406 = vpop.f32.mrf.mxu0
      %v1407 = vadd.f32 %v982, %v1406
      %v1408 = vpop.f32.mrf.mxu0
      %v1409 = vpop.f32.mrf.mxu0
      %v1410 = vadd.f32 %v985, %v1409
      %v1411 = vpop.f32.mrf.mxu0
      %1412 = vmatprep.mubr.bf16.mxu0 0
      %1413 = vmatmul.mubr.bf16.gmra.mxu0 %v1276
      %v1414 = vpop.f32.mrf.mxu0
      %v1415 = vadd.f32 %v990, %v1414
      %v1416 = vpop.f32.mrf.mxu0
      %v1417 = vpop.f32.mrf.mxu0
      %v1418 = vadd.f32 %v993, %v1417
      %v1419 = vpop.f32.mrf.mxu0
      %1420 = vmatprep.mubr.bf16.mxu0 0
      %1421 = vmatmul.mubr.bf16.gmra.mxu0 %v1279
      %v1422 = vpop.f32.mrf.mxu0
      %v1423 = vadd.f32 %v998, %v1422
      %v1424 = vpop.f32.mrf.mxu0
      %v1425 = vpop.f32.mrf.mxu0
      %v1426 = vadd.f32 %v1001, %v1425
      %v1427 = vpop.f32.mrf.mxu0
      %1428 = vmatprep.mubr.bf16.mxu0 0
      %1429 = vmatmul.mubr.bf16.gmra.mxu0 %v1282
      %v1430 = vpop.f32.mrf.mxu0
      %v1431 = vadd.f32 %v1006, %v1430
      %v1432 = vpop.f32.mrf.mxu0
      %v1433 = vpop.f32.mrf.mxu0
      %v1434 = vadd.f32 %v1009, %v1433
      %v1435 = vpop.f32.mrf.mxu0
      %1436 = vmatprep.mubr.bf16.mxu0 0
      %1437 = vmatmul.mubr.bf16.gmra.mxu0 %v1285
      %v1438 = vpop.f32.mrf.mxu0
      %v1439 = vadd.f32 %v1014, %v1438
      %v1440 = vpop.f32.mrf.mxu0
      %v1441 = vpop.f32.mrf.mxu0
      %v1442 = vadd.f32 %v1017, %v1441
      %v1443 = vpop.f32.mrf.mxu0
      %1444 = vmatprep.mubr.bf16.mxu0 0
      %1445 = vmatmul.mubr.bf16.gmra.mxu0 %v1288
      %v1446 = vpop.f32.mrf.mxu0
      %v1447 = vadd.f32 %v1022, %v1446
      %v1448 = vpop.f32.mrf.mxu0
      %v1449 = vpop.f32.mrf.mxu0
      %v1450 = vadd.f32 %v1025, %v1449
      %v1451 = vpop.f32.mrf.mxu0
      %1452 = vmatprep.mubr.bf16.mxu0 0
      %1453 = vmatmul.mubr.bf16.gmra.mxu0 %v1291
      %v1454 = vpop.f32.mrf.mxu0
      %v1455 = vadd.f32 %v1030, %v1454
      %v1456 = vpop.f32.mrf.mxu0
      %v1457 = vpop.f32.mrf.mxu0
      %v1458 = vadd.f32 %v1033, %v1457
      %v1459 = vpop.f32.mrf.mxu0
      %1460 = vmatprep.mubr.bf16.mxu0 0
      %1461 = vmatmul.mubr.bf16.gmra.mxu0 %v1294
      %v1462 = vpop.f32.mrf.mxu0
      %v1463 = vadd.f32 %v1038, %v1462
      %v1464 = vpop.f32.mrf.mxu0
      %v1465 = vpop.f32.mrf.mxu0
      %v1466 = vadd.f32 %v1041, %v1465
      %v1467 = vpop.f32.mrf.mxu0
      %1468 = vmatprep.mubr.bf16.mxu0 0
      %1469 = vmatmul.mubr.bf16.gmra.mxu0 %v1297
      %v1470 = vpop.f32.mrf.mxu0
      %v1471 = vadd.f32 %v1046, %v1470
      %v1472 = vpop.f32.mrf.mxu0
      %v1473 = vpop.f32.mrf.mxu0
      %v1474 = vadd.f32 %v1049, %v1473
      %v1475 = vpop.f32.mrf.mxu0
      %1476 = vmatprep.mubr.bf16.mxu0 0
      %1477 = vmatmul.mubr.bf16.gmra.mxu0 %v1300
      %v1478 = vpop.f32.mrf.mxu0
      %v1479 = vadd.f32 %v1054, %v1478
      %v1480 = vpop.f32.mrf.mxu0
      %v1481 = vpop.f32.mrf.mxu0
      %v1482 = vadd.f32 %v1057, %v1481
      %v1483 = vpop.f32.mrf.mxu0
      %1484 = vmatprep.mubr.bf16.mxu0 0
      %1485 = vmatmul.mubr.bf16.gmra.mxu0 %v1303
      %v1486 = vpop.f32.mrf.mxu0
      %v1487 = vadd.f32 %v1062, %v1486
      %v1488 = vpop.f32.mrf.mxu0
      %v1489 = vpop.f32.mrf.mxu0
      %v1490 = vadd.f32 %v1065, %v1489
      %v1491 = vpop.f32.mrf.mxu0
      %1492 = vmatprep.mubr.bf16.mxu0 0
      %1493 = vmatmul.mubr.bf16.gmra.mxu0 %v1306
      %v1494 = vpop.f32.mrf.mxu0
      %v1495 = vadd.f32 %v1070, %v1494
      %v1496 = vpop.f32.mrf.mxu0
      %v1497 = vpop.f32.mrf.mxu0
      %v1498 = vadd.f32 %v1073, %v1497
      %v1499 = vpop.f32.mrf.mxu0
      %1500 = vmatprep.mubr.bf16.mxu0 0
      %1501 = vmatmul.mubr.bf16.gmra.mxu0 %v1309
      %v1502 = vpop.f32.mrf.mxu0
      %v1503 = vadd.f32 %v1078, %v1502
      %v1504 = vpop.f32.mrf.mxu0
      %v1505 = vpop.f32.mrf.mxu0
      %v1506 = vadd.f32 %v1081, %v1505
      %v1507 = vpop.f32.mrf.mxu0
      %1508 = vmatprep.mubr.bf16.mxu0 0
      %1509 = vmatmul.mubr.bf16.gmra.mxu0 %v1312
      %v1510 = vpop.f32.mrf.mxu0
      %v1511 = vadd.f32 %v1086, %v1510
      %v1512 = vpop.f32.mrf.mxu0
      %v1513 = vpop.f32.mrf.mxu0
      %v1514 = vadd.f32 %v1089, %v1513
      %v1515 = vpop.f32.mrf.mxu0
      %1516 = vmatprep.mubr.bf16.mxu0 0
      %1517 = vmatmul.mubr.bf16.gmra.mxu0 %v1315
      %v1518 = vpop.f32.mrf.mxu0
      %v1519 = vadd.f32 %v1094, %v1518
      %v1520 = vpop.f32.mrf.mxu0
      %v1521 = vpop.f32.mrf.mxu0
      %v1522 = vadd.f32 %v1097, %v1521
      %v1523 = vpop.f32.mrf.mxu0
      %1524 = vmatprep.mubr.bf16.mxu0 0
      %1525 = vmatmul.mubr.bf16.gmra.mxu0 %v1318
      %v1526 = vpop.f32.mrf.mxu0
      %v1527 = vadd.f32 %v1102, %v1526
      %v1528 = vpop.f32.mrf.mxu0
      %v1529 = vpop.f32.mrf.mxu0
      %v1530 = vadd.f32 %v1105, %v1529
      %v1531 = vpop.f32.mrf.mxu0
      %1532 = vmatprep.mubr.bf16.mxu0 0
      %1533 = vmatmul.mubr.bf16.gmra.mxu0 %v1321
      %v1534 = vpop.f32.mrf.mxu0
      %v1535 = vadd.f32 %v1110, %v1534
      %v1536 = vpop.f32.mrf.mxu0
      %v1537 = vpop.f32.mrf.mxu0
      %v1538 = vadd.f32 %v1113, %v1537
      %v1539 = vpop.f32.mrf.mxu0
      %1540 = vmatprep.mubr.bf16.mxu0 0
      %1541 = vmatmul.mubr.bf16.gmra.mxu0 %v1324
      %v1542 = vpop.f32.mrf.mxu0
      %v1543 = vadd.f32 %v1118, %v1542
      %v1544 = vpop.f32.mrf.mxu0
      %v1545 = vpop.f32.mrf.mxu0
      %v1546 = vadd.f32 %v1121, %v1545
      %v1547 = vpop.f32.mrf.mxu0
      %1548 = vmatprep.mubr.bf16.mxu0 0
      %1549 = vmatmul.mubr.bf16.gmra.mxu0 %v1327
      %v1550 = vpop.f32.mrf.mxu0
      %v1551 = vadd.f32 %v1126, %v1550
      %v1552 = vpop.f32.mrf.mxu0
      %v1553 = vpop.f32.mrf.mxu0
      %v1554 = vadd.f32 %v1129, %v1553
      %v1555 = vpop.f32.mrf.mxu0
      %1556 = vdwg.mxu0
      %v1557 = vld [vmem:[%s535] sm:$0xf]
      %v1558 = vld [vmem:[%s535 + $0x4] sm:$0xf]
      %v1559 = vld [vmem:[%s535 + $0x8] sm:$0xf]
      %v1560 = vld [vmem:[%s535 + $0xc] sm:$0xf]
      %v1561 = vld [vmem:[%s535 + $0x10] sm:$0xf]
      %v1562 = vld [vmem:[%s535 + $0x14] sm:$0xf]
      %v1563 = vld [vmem:[%s535 + $0x18] sm:$0xf]
      %v1564 = vld [vmem:[%s535 + $0x1c] sm:$0xf]
      %v1565 = vld [vmem:[%s535 + $0x20] sm:$0xf]
      %v1566 = vld [vmem:[%s535 + $0x24] sm:$0xf]
      %v1567 = vld [vmem:[%s535 + $0x28] sm:$0xf]
      %v1568 = vld [vmem:[%s535 + $0x2c] sm:$0xf]
      %v1569 = vld [vmem:[%s535 + $0x30] sm:$0xf]
      %v1570 = vld [vmem:[%s535 + $0x34] sm:$0xf]
      %v1571 = vld [vmem:[%s535 + $0x38] sm:$0xf]
      %v1572 = vld [vmem:[%s535 + $0x3c] sm:$0xf]
      %v1573 = vld [vmem:[%s535 + $0x40] sm:$0xf]
      %v1574 = vld [vmem:[%s535 + $0x44] sm:$0xf]
      %v1575 = vld [vmem:[%s535 + $0x48] sm:$0xf]
      %v1576 = vld [vmem:[%s535 + $0x4c] sm:$0xf]
      %v1577 = vld [vmem:[%s535 + $0x50] sm:$0xf]
      %v1578 = vld [vmem:[%s535 + $0x54] sm:$0xf]
      %v1579 = vld [vmem:[%s535 + $0x58] sm:$0xf]
      %v1580 = vld [vmem:[%s535 + $0x5c] sm:$0xf]
      %v1581 = vld [vmem:[%s535 + $0x60] sm:$0xf]
      %v1582 = vld [vmem:[%s535 + $0x64] sm:$0xf]
      %v1583 = vld [vmem:[%s535 + $0x68] sm:$0xf]
      %v1584 = vld [vmem:[%s535 + $0x6c] sm:$0xf]
      %v1585 = vld [vmem:[%s535 + $0x70] sm:$0xf]
      %v1586 = vld [vmem:[%s535 + $0x74] sm:$0xf]
      %v1587 = vld [vmem:[%s535 + $0x78] sm:$0xf]
      %v1588 = vld [vmem:[%s535 + $0x7c] sm:$0xf]
      %v1589 = vld [vmem:[%s535 + $0x80] sm:$0xf]
      %v1590 = vld [vmem:[%s535 + $0x84] sm:$0xf]
      %v1591 = vld [vmem:[%s535 + $0x88] sm:$0xf]
      %v1592 = vld [vmem:[%s535 + $0x8c] sm:$0xf]
      %v1593 = vld [vmem:[%s535 + $0x90] sm:$0xf]
      %v1594 = vld [vmem:[%s535 + $0x94] sm:$0xf]
      %v1595 = vld [vmem:[%s535 + $0x98] sm:$0xf]
      %v1596 = vld [vmem:[%s535 + $0x9c] sm:$0xf]
      %v1597 = vld [vmem:[%s535 + $0xa0] sm:$0xf]
      %v1598 = vld [vmem:[%s535 + $0xa4] sm:$0xf]
      %v1599 = vld [vmem:[%s535 + $0xa8] sm:$0xf]
      %v1600 = vld [vmem:[%s535 + $0xac] sm:$0xf]
      %v1601 = vld [vmem:[%s535 + $0xb0] sm:$0xf]
      %v1602 = vld [vmem:[%s535 + $0xb4] sm:$0xf]
      %v1603 = vld [vmem:[%s535 + $0xb8] sm:$0xf]
      %v1604 = vld [vmem:[%s535 + $0xbc] sm:$0xf]
      %s1605 = scalar_lea.vmem %s4, 16
      %v1606 = vld [vmem:[%s1605] sm:$0xf]
      %v1607 = vld [vmem:[%s1605 + $0x4] sm:$0x3]
      %v1656 = vunpack.c.l.b16 %v1557
      %v1657 = vunpack.c.l.b16 %v1558
      %v1658 = vunpack.c.l.b16 %v1559
      %v1659 = vunpack.c.l.b16 %v1560
      %v1660 = vunpack.c.l.b16 %v1561
      %v1661 = vunpack.c.l.b16 %v1562
      %v1662 = vunpack.c.l.b16 %v1563
      %v1663 = vunpack.c.l.b16 %v1564
      %v1664 = vunpack.c.l.b16 %v1565
      %v1665 = vunpack.c.l.b16 %v1566
      %v1666 = vunpack.c.l.b16 %v1567
      %v1667 = vunpack.c.l.b16 %v1568
      %v1668 = vunpack.c.l.b16 %v1569
      %v1669 = vunpack.c.l.b16 %v1570
      %v1670 = vunpack.c.l.b16 %v1571
      %v1671 = vunpack.c.l.b16 %v1572
      %v1672 = vunpack.c.l.b16 %v1573
      %v1673 = vunpack.c.l.b16 %v1574
      %v1674 = vunpack.c.l.b16 %v1575
      %v1675 = vunpack.c.l.b16 %v1576
      %v1676 = vunpack.c.l.b16 %v1577
      %v1677 = vunpack.c.l.b16 %v1578
      %v1678 = vunpack.c.l.b16 %v1579
      %v1679 = vunpack.c.l.b16 %v1580
      %v1680 = vunpack.c.l.b16 %v1581
      %v1681 = vunpack.c.l.b16 %v1582
      %v1682 = vunpack.c.l.b16 %v1583
      %v1683 = vunpack.c.l.b16 %v1584
      %v1684 = vunpack.c.l.b16 %v1585
      %v1685 = vunpack.c.l.b16 %v1586
      %v1686 = vunpack.c.l.b16 %v1587
      %v1687 = vunpack.c.l.b16 %v1588
      %v1688 = vunpack.c.l.b16 %v1589
      %v1689 = vunpack.c.l.b16 %v1590
      %v1690 = vunpack.c.l.b16 %v1591
      %v1691 = vunpack.c.l.b16 %v1592
      %v1692 = vunpack.c.l.b16 %v1593
      %v1693 = vunpack.c.l.b16 %v1594
      %v1694 = vunpack.c.l.b16 %v1595
      %v1695 = vunpack.c.l.b16 %v1596
      %v1696 = vunpack.c.l.b16 %v1597
      %v1697 = vunpack.c.l.b16 %v1598
      %v1698 = vunpack.c.l.b16 %v1599
      %v1699 = vunpack.c.l.b16 %v1600
      %v1700 = vunpack.c.l.b16 %v1601
      %v1701 = vunpack.c.l.b16 %v1602
      %v1702 = vunpack.c.l.b16 %v1603
      %v1703 = vunpack.c.l.b16 %v1604
      %v1704 = vpack.c.b16 %v1657, %v1656
      %v1705 = vpack.c.b16 %v1659, %v1658
      %v1706 = vpack.c.b16 %v1661, %v1660
      %v1707 = vpack.c.b16 %v1663, %v1662
      %v1708 = vpack.c.b16 %v1665, %v1664
      %v1709 = vpack.c.b16 %v1667, %v1666
      %v1710 = vpack.c.b16 %v1669, %v1668
      %v1711 = vpack.c.b16 %v1671, %v1670
      %v1712 = vpack.c.b16 %v1673, %v1672
      %v1713 = vpack.c.b16 %v1675, %v1674
      %v1714 = vpack.c.b16 %v1677, %v1676
      %v1715 = vpack.c.b16 %v1679, %v1678
      %v1716 = vpack.c.b16 %v1681, %v1680
      %v1717 = vpack.c.b16 %v1683, %v1682
      %v1718 = vpack.c.b16 %v1685, %v1684
      %v1719 = vpack.c.b16 %v1687, %v1686
      %v1720 = vpack.c.b16 %v1689, %v1688
      %v1721 = vpack.c.b16 %v1691, %v1690
      %v1722 = vpack.c.b16 %v1693, %v1692
      %v1723 = vpack.c.b16 %v1695, %v1694
      %v1724 = vpack.c.b16 %v1697, %v1696
      %v1725 = vpack.c.b16 %v1699, %v1698
      %v1726 = vpack.c.b16 %v1701, %v1700
      %v1727 = vpack.c.b16 %v1703, %v1702
      %v1730 = vunpack.c.l.b16 %v1606
      %v1731 = vunpack.c.l.b16 %v1607
      %v1732 = vpack.c.b16 %v1731, %v1730
      %v1734 = vsel %vm830, %v1704, 0
      %v1737 = vsel %vm830, %v1705, 0
      %v1740 = vsel %vm830, %v1706, 0
      %v1743 = vsel %vm830, %v1707, 0
      %v1746 = vsel %vm830, %v1708, 0
      %v1749 = vsel %vm830, %v1709, 0
      %v1752 = vsel %vm830, %v1710, 0
      %v1755 = vsel %vm830, %v1711, 0
      %v1758 = vsel %vm830, %v1712, 0
      %v1761 = vsel %vm830, %v1713, 0
      %v1764 = vsel %vm830, %v1714, 0
      %v1767 = vsel %vm830, %v1715, 0
      %v1770 = vsel %vm830, %v1716, 0
      %v1773 = vsel %vm830, %v1717, 0
      %v1776 = vsel %vm830, %v1718, 0
      %v1779 = vsel %vm830, %v1719, 0
      %v1782 = vsel %vm830, %v1720, 0
      %v1785 = vsel %vm830, %v1721, 0
      %v1788 = vsel %vm830, %v1722, 0
      %v1791 = vsel %vm830, %v1723, 0
      %v1794 = vsel %vm830, %v1724, 0
      %v1797 = vsel %vm830, %v1725, 0
      %v1800 = vsel %vm830, %v1726, 0
      %v1803 = vsel %vm830, %v1727, 0
      %v1806 = vsel %vm903, %v1732, 0
      %1808 = vmatprep.subr.bf16.mxu0 0
      %1809 = vmatpush1.bf16.msra.mxu0 0
      %1810 = vmatprep.subr.bf16.mxu0 0
      %1811 = vmatpush1.bf16.msra.mxu0 0
      %1812 = vmatprep.subr.bf16.mxu0 0
      %1813 = vmatpush1.bf16.msra.mxu0 0
      %1814 = vmatprep.subr.bf16.mxu0 0
      %1815 = vmatpush1.bf16.msra.mxu0 0
      %1816 = vmatprep.subr.bf16.mxu0 0
      %1817 = vmatpush1.bf16.msra.mxu0 0
      %1818 = vmatprep.subr.bf16.mxu0 0
      %1819 = vmatpush1.bf16.msra.mxu0 0
      %1820 = vmatprep.subr.bf16.mxu0 0
      %1821 = vmatpush1.bf16.msra.mxu0 0
      %1822 = vmatprep.subr.bf16.mxu0 0
      %1823 = vmatpush1.bf16.msra.mxu0 %v1806
      %1824 = vmatprep.subr.bf16.mxu0 0
      %1825 = vmatpush2.bf16.msra.mxu0 0
      %1826 = vmatprep.subr.bf16.mxu0 0
      %1827 = vmatpush2.bf16.msra.mxu0 0
      %1828 = vmatprep.subr.bf16.mxu0 0
      %1829 = vmatpush2.bf16.msra.mxu0 0
      %1830 = vmatprep.subr.bf16.mxu0 0
      %1831 = vmatpush2.bf16.msra.mxu0 0
      %1832 = vmatprep.subr.bf16.mxu0 0
      %1833 = vmatpush2.bf16.msra.mxu0 0
      %1834 = vmatprep.subr.bf16.mxu0 0
      %1835 = vmatpush2.bf16.msra.mxu0 0
      %1836 = vmatprep.subr.bf16.mxu0 0
      %1837 = vmatpush2.bf16.msra.mxu0 0
      %1838 = vmatprep.subr.bf16.mxu0 0
      %1839 = vmatpush2.bf16.msra.mxu0 0
      %1840 = vmatprep.mubr.bf16.mxu0 0
      %1841 = vmatmul.mubr.bf16.gmra.mxu0 %v1734
      %v1842 = vpop.f32.mrf.mxu0
      %v1843 = vadd.f32 0.0, %v1842
      %v1844 = vpop.f32.mrf.mxu0
      %v1845 = vpop.f32.mrf.mxu0
      %v1846 = vadd.f32 0.0, %v1845
      %v1847 = vpop.f32.mrf.mxu0
      %1848 = vmatprep.mubr.bf16.mxu0 0
      %1849 = vmatmul.mubr.bf16.gmra.mxu0 %v1737
      %v1850 = vpop.f32.mrf.mxu0
      %v1851 = vadd.f32 0.0, %v1850
      %v1852 = vpop.f32.mrf.mxu0
      %v1853 = vpop.f32.mrf.mxu0
      %v1854 = vadd.f32 0.0, %v1853
      %v1855 = vpop.f32.mrf.mxu0
      %1856 = vmatprep.mubr.bf16.mxu0 0
      %1857 = vmatmul.mubr.bf16.gmra.mxu0 %v1740
      %v1858 = vpop.f32.mrf.mxu0
      %v1859 = vadd.f32 0.0, %v1858
      %v1860 = vpop.f32.mrf.mxu0
      %v1861 = vpop.f32.mrf.mxu0
      %v1862 = vadd.f32 0.0, %v1861
      %v1863 = vpop.f32.mrf.mxu0
      %1864 = vmatprep.mubr.bf16.mxu0 0
      %1865 = vmatmul.mubr.bf16.gmra.mxu0 %v1743
      %v1866 = vpop.f32.mrf.mxu0
      %v1867 = vadd.f32 0.0, %v1866
      %v1868 = vpop.f32.mrf.mxu0
      %v1869 = vpop.f32.mrf.mxu0
      %v1870 = vadd.f32 0.0, %v1869
      %v1871 = vpop.f32.mrf.mxu0
      %1872 = vmatprep.mubr.bf16.mxu0 0
      %1873 = vmatmul.mubr.bf16.gmra.mxu0 %v1746
      %v1874 = vpop.f32.mrf.mxu0
      %v1875 = vadd.f32 0.0, %v1874
      %v1876 = vpop.f32.mrf.mxu0
      %v1877 = vpop.f32.mrf.mxu0
      %v1878 = vadd.f32 0.0, %v1877
      %v1879 = vpop.f32.mrf.mxu0
      %1880 = vmatprep.mubr.bf16.mxu0 0
      %1881 = vmatmul.mubr.bf16.gmra.mxu0 %v1749
      %v1882 = vpop.f32.mrf.mxu0
      %v1883 = vadd.f32 0.0, %v1882
      %v1884 = vpop.f32.mrf.mxu0
      %v1885 = vpop.f32.mrf.mxu0
      %v1886 = vadd.f32 0.0, %v1885
      %v1887 = vpop.f32.mrf.mxu0
      %1888 = vmatprep.mubr.bf16.mxu0 0
      %1889 = vmatmul.mubr.bf16.gmra.mxu0 %v1752
      %v1890 = vpop.f32.mrf.mxu0
      %v1891 = vadd.f32 0.0, %v1890
      %v1892 = vpop.f32.mrf.mxu0
      %v1893 = vpop.f32.mrf.mxu0
      %v1894 = vadd.f32 0.0, %v1893
      %v1895 = vpop.f32.mrf.mxu0
      %1896 = vmatprep.mubr.bf16.mxu0 0
      %1897 = vmatmul.mubr.bf16.gmra.mxu0 %v1755
      %v1898 = vpop.f32.mrf.mxu0
      %v1899 = vadd.f32 0.0, %v1898
      %v1900 = vpop.f32.mrf.mxu0
      %v1901 = vpop.f32.mrf.mxu0
      %v1902 = vadd.f32 0.0, %v1901
      %v1903 = vpop.f32.mrf.mxu0
      %1904 = vmatprep.mubr.bf16.mxu0 0
      %1905 = vmatmul.mubr.bf16.gmra.mxu0 %v1758
      %v1906 = vpop.f32.mrf.mxu0
      %v1907 = vadd.f32 0.0, %v1906
      %v1908 = vpop.f32.mrf.mxu0
      %v1909 = vpop.f32.mrf.mxu0
      %v1910 = vadd.f32 0.0, %v1909
      %v1911 = vpop.f32.mrf.mxu0
      %1912 = vmatprep.mubr.bf16.mxu0 0
      %1913 = vmatmul.mubr.bf16.gmra.mxu0 %v1761
      %v1914 = vpop.f32.mrf.mxu0
      %v1915 = vadd.f32 0.0, %v1914
      %v1916 = vpop.f32.mrf.mxu0
      %v1917 = vpop.f32.mrf.mxu0
      %v1918 = vadd.f32 0.0, %v1917
      %v1919 = vpop.f32.mrf.mxu0
      %1920 = vmatprep.mubr.bf16.mxu0 0
      %1921 = vmatmul.mubr.bf16.gmra.mxu0 %v1764
      %v1922 = vpop.f32.mrf.mxu0
      %v1923 = vadd.f32 0.0, %v1922
      %v1924 = vpop.f32.mrf.mxu0
      %v1925 = vpop.f32.mrf.mxu0
      %v1926 = vadd.f32 0.0, %v1925
      %v1927 = vpop.f32.mrf.mxu0
      %1928 = vmatprep.mubr.bf16.mxu0 0
      %1929 = vmatmul.mubr.bf16.gmra.mxu0 %v1767
      %v1930 = vpop.f32.mrf.mxu0
      %v1931 = vadd.f32 0.0, %v1930
      %v1932 = vpop.f32.mrf.mxu0
      %v1933 = vpop.f32.mrf.mxu0
      %v1934 = vadd.f32 0.0, %v1933
      %v1935 = vpop.f32.mrf.mxu0
      %1936 = vmatprep.mubr.bf16.mxu0 0
      %1937 = vmatmul.mubr.bf16.gmra.mxu0 %v1770
      %v1938 = vpop.f32.mrf.mxu0
      %v1939 = vadd.f32 0.0, %v1938
      %v1940 = vpop.f32.mrf.mxu0
      %v1941 = vpop.f32.mrf.mxu0
      %v1942 = vadd.f32 0.0, %v1941
      %v1943 = vpop.f32.mrf.mxu0
      %1944 = vmatprep.mubr.bf16.mxu0 0
      %1945 = vmatmul.mubr.bf16.gmra.mxu0 %v1773
      %v1946 = vpop.f32.mrf.mxu0
      %v1947 = vadd.f32 0.0, %v1946
      %v1948 = vpop.f32.mrf.mxu0
      %v1949 = vpop.f32.mrf.mxu0
      %v1950 = vadd.f32 0.0, %v1949
      %v1951 = vpop.f32.mrf.mxu0
      %1952 = vmatprep.mubr.bf16.mxu0 0
      %1953 = vmatmul.mubr.bf16.gmra.mxu0 %v1776
      %v1954 = vpop.f32.mrf.mxu0
      %v1955 = vadd.f32 0.0, %v1954
      %v1956 = vpop.f32.mrf.mxu0
      %v1957 = vpop.f32.mrf.mxu0
      %v1958 = vadd.f32 0.0, %v1957
      %v1959 = vpop.f32.mrf.mxu0
      %1960 = vmatprep.mubr.bf16.mxu0 0
      %1961 = vmatmul.mubr.bf16.gmra.mxu0 %v1779
      %v1962 = vpop.f32.mrf.mxu0
      %v1963 = vadd.f32 0.0, %v1962
      %v1964 = vpop.f32.mrf.mxu0
      %v1965 = vpop.f32.mrf.mxu0
      %v1966 = vadd.f32 0.0, %v1965
      %v1967 = vpop.f32.mrf.mxu0
      %1968 = vmatprep.mubr.bf16.mxu0 0
      %1969 = vmatmul.mubr.bf16.gmra.mxu0 %v1782
      %v1970 = vpop.f32.mrf.mxu0
      %v1971 = vadd.f32 0.0, %v1970
      %v1972 = vpop.f32.mrf.mxu0
      %v1973 = vpop.f32.mrf.mxu0
      %v1974 = vadd.f32 0.0, %v1973
      %v1975 = vpop.f32.mrf.mxu0
      %1976 = vmatprep.mubr.bf16.mxu0 0
      %1977 = vmatmul.mubr.bf16.gmra.mxu0 %v1785
      %v1978 = vpop.f32.mrf.mxu0
      %v1979 = vadd.f32 0.0, %v1978
      %v1980 = vpop.f32.mrf.mxu0
      %v1981 = vpop.f32.mrf.mxu0
      %v1982 = vadd.f32 0.0, %v1981
      %v1983 = vpop.f32.mrf.mxu0
      %1984 = vmatprep.mubr.bf16.mxu0 0
      %1985 = vmatmul.mubr.bf16.gmra.mxu0 %v1788
      %v1986 = vpop.f32.mrf.mxu0
      %v1987 = vadd.f32 0.0, %v1986
      %v1988 = vpop.f32.mrf.mxu0
      %v1989 = vpop.f32.mrf.mxu0
      %v1990 = vadd.f32 0.0, %v1989
      %v1991 = vpop.f32.mrf.mxu0
      %1992 = vmatprep.mubr.bf16.mxu0 0
      %1993 = vmatmul.mubr.bf16.gmra.mxu0 %v1791
      %v1994 = vpop.f32.mrf.mxu0
      %v1995 = vadd.f32 0.0, %v1994
      %v1996 = vpop.f32.mrf.mxu0
      %v1997 = vpop.f32.mrf.mxu0
      %v1998 = vadd.f32 0.0, %v1997
      %v1999 = vpop.f32.mrf.mxu0
      %2000 = vmatprep.mubr.bf16.mxu0 0
      %2001 = vmatmul.mubr.bf16.gmra.mxu0 %v1794
      %v2002 = vpop.f32.mrf.mxu0
      %v2003 = vadd.f32 0.0, %v2002
      %v2004 = vpop.f32.mrf.mxu0
      %v2005 = vpop.f32.mrf.mxu0
      %v2006 = vadd.f32 0.0, %v2005
      %v2007 = vpop.f32.mrf.mxu0
      %2008 = vmatprep.mubr.bf16.mxu0 0
      %2009 = vmatmul.mubr.bf16.gmra.mxu0 %v1797
      %v2010 = vpop.f32.mrf.mxu0
      %v2011 = vadd.f32 0.0, %v2010
      %v2012 = vpop.f32.mrf.mxu0
      %v2013 = vpop.f32.mrf.mxu0
      %v2014 = vadd.f32 0.0, %v2013
      %v2015 = vpop.f32.mrf.mxu0
      %2016 = vmatprep.mubr.bf16.mxu0 0
      %2017 = vmatmul.mubr.bf16.gmra.mxu0 %v1800
      %v2018 = vpop.f32.mrf.mxu0
      %v2019 = vadd.f32 0.0, %v2018
      %v2020 = vpop.f32.mrf.mxu0
      %v2021 = vpop.f32.mrf.mxu0
      %v2022 = vadd.f32 0.0, %v2021
      %v2023 = vpop.f32.mrf.mxu0
      %2024 = vmatprep.mubr.bf16.mxu0 0
      %2025 = vmatmul.mubr.bf16.gmra.mxu0 %v1803
      %v2026 = vpop.f32.mrf.mxu0
      %v2027 = vadd.f32 0.0, %v2026
      %v2028 = vpop.f32.mrf.mxu0
      %v2029 = vpop.f32.mrf.mxu0
      %v2030 = vadd.f32 0.0, %v2029
      %v2031 = vpop.f32.mrf.mxu0
      %2032 = vdwg.mxu0
      %v2033 = vadd.f32 %v1367, %v1843
      %v2034 = vadd.f32 %v1370, %v1846
      %v2035 = vadd.f32 %v1375, %v1851
      %v2036 = vadd.f32 %v1378, %v1854
      %v2037 = vadd.f32 %v1383, %v1859
      %v2038 = vadd.f32 %v1386, %v1862
      %v2039 = vadd.f32 %v1391, %v1867
      %v2040 = vadd.f32 %v1394, %v1870
      %v2041 = vadd.f32 %v1399, %v1875
      %v2042 = vadd.f32 %v1402, %v1878
      %v2043 = vadd.f32 %v1407, %v1883
      %v2044 = vadd.f32 %v1410, %v1886
      %v2045 = vadd.f32 %v1415, %v1891
      %v2046 = vadd.f32 %v1418, %v1894
      %v2047 = vadd.f32 %v1423, %v1899
      %v2048 = vadd.f32 %v1426, %v1902
      %v2049 = vadd.f32 %v1431, %v1907
      %v2050 = vadd.f32 %v1434, %v1910
      %v2051 = vadd.f32 %v1439, %v1915
      %v2052 = vadd.f32 %v1442, %v1918
      %v2053 = vadd.f32 %v1447, %v1923
      %v2054 = vadd.f32 %v1450, %v1926
      %v2055 = vadd.f32 %v1455, %v1931
      %v2056 = vadd.f32 %v1458, %v1934
      %v2057 = vadd.f32 %v1463, %v1939
      %v2058 = vadd.f32 %v1466, %v1942
      %v2059 = vadd.f32 %v1471, %v1947
      %v2060 = vadd.f32 %v1474, %v1950
      %v2061 = vadd.f32 %v1479, %v1955
      %v2062 = vadd.f32 %v1482, %v1958
      %v2063 = vadd.f32 %v1487, %v1963
      %v2064 = vadd.f32 %v1490, %v1966
      %v2065 = vadd.f32 %v1495, %v1971
      %v2066 = vadd.f32 %v1498, %v1974
      %v2067 = vadd.f32 %v1503, %v1979
      %v2068 = vadd.f32 %v1506, %v1982
      %v2069 = vadd.f32 %v1511, %v1987
      %v2070 = vadd.f32 %v1514, %v1990
      %v2071 = vadd.f32 %v1519, %v1995
      %v2072 = vadd.f32 %v1522, %v1998
      %v2073 = vadd.f32 %v1527, %v2003
      %v2074 = vadd.f32 %v1530, %v2006
      %v2075 = vadd.f32 %v1535, %v2011
      %v2076 = vadd.f32 %v1538, %v2014
      %v2077 = vadd.f32 %v1543, %v2019
      %v2078 = vadd.f32 %v1546, %v2022
      %v2079 = vadd.f32 %v1551, %v2027
      %v2080 = vadd.f32 %v1554, %v2030
      %s2081 = scalar_lea.vmem [#allocation2], 36
      %v2082 = vld [vmem:[%s2081] sm:$0xf]
      %v2083 = vld [vmem:[%s2081 + $0x4] sm:$0xf]
      %v2084 = vld [vmem:[%s2081 + $0x8] sm:$0xf]
      %v2085 = vld [vmem:[%s2081 + $0xc] sm:$0xf]
      %v2086 = vld [vmem:[%s2081 + $0x10] sm:$0xf]
      %v2087 = vld [vmem:[%s2081 + $0x14] sm:$0xf]
      %v2088 = vld [vmem:[%s2081 + $0x18] sm:$0xf]
      %v2089 = vld [vmem:[%s2081 + $0x1c] sm:$0xf]
      %v2090 = vld [vmem:[%s2081 + $0x20] sm:$0xf]
      %v2091 = vld [vmem:[%s2081 + $0x24] sm:$0xf]
      %v2092 = vld [vmem:[%s2081 + $0x28] sm:$0xf]
      %v2093 = vld [vmem:[%s2081 + $0x2c] sm:$0xf]
      %v2094 = vld [vmem:[%s2081 + $0x30] sm:$0xf]
      %v2095 = vld [vmem:[%s2081 + $0x34] sm:$0xf]
      %v2096 = vld [vmem:[%s2081 + $0x38] sm:$0xf]
      %v2097 = vld [vmem:[%s2081 + $0x3c] sm:$0xf]
      %v2098 = vld [vmem:[%s2081 + $0x40] sm:$0xf]
      %v2099 = vld [vmem:[%s2081 + $0x44] sm:$0xf]
      %v2100 = vld [vmem:[%s2081 + $0x48] sm:$0xf]
      %v2101 = vld [vmem:[%s2081 + $0x4c] sm:$0xf]
      %v2102 = vld [vmem:[%s2081 + $0x50] sm:$0xf]
      %v2103 = vld [vmem:[%s2081 + $0x54] sm:$0xf]
      %v2104 = vld [vmem:[%s2081 + $0x58] sm:$0xf]
      %v2105 = vld [vmem:[%s2081 + $0x5c] sm:$0xf]
      %v2106 = vld [vmem:[%s2081 + $0x60] sm:$0xf]
      %v2107 = vld [vmem:[%s2081 + $0x64] sm:$0xf]
      %v2108 = vld [vmem:[%s2081 + $0x68] sm:$0xf]
      %v2109 = vld [vmem:[%s2081 + $0x6c] sm:$0xf]
      %v2110 = vld [vmem:[%s2081 + $0x70] sm:$0xf]
      %v2111 = vld [vmem:[%s2081 + $0x74] sm:$0xf]
      %v2112 = vld [vmem:[%s2081 + $0x78] sm:$0xf]
      %v2113 = vld [vmem:[%s2081 + $0x7c] sm:$0xf]
      %v2114 = vld [vmem:[%s2081 + $0x80] sm:$0xf]
      %v2115 = vld [vmem:[%s2081 + $0x84] sm:$0xf]
      %v2116 = vld [vmem:[%s2081 + $0x88] sm:$0xf]
      %v2117 = vld [vmem:[%s2081 + $0x8c] sm:$0xf]
      %v2118 = vld [vmem:[%s2081 + $0x90] sm:$0xf]
      %v2119 = vld [vmem:[%s2081 + $0x94] sm:$0xf]
      %v2120 = vld [vmem:[%s2081 + $0x98] sm:$0xf]
      %v2121 = vld [vmem:[%s2081 + $0x9c] sm:$0xf]
      %v2122 = vld [vmem:[%s2081 + $0xa0] sm:$0xf]
      %v2123 = vld [vmem:[%s2081 + $0xa4] sm:$0xf]
      %v2124 = vld [vmem:[%s2081 + $0xa8] sm:$0xf]
      %v2125 = vld [vmem:[%s2081 + $0xac] sm:$0xf]
      %v2126 = vld [vmem:[%s2081 + $0xb0] sm:$0xf]
      %v2127 = vld [vmem:[%s2081 + $0xb4] sm:$0xf]
      %v2128 = vld [vmem:[%s2081 + $0xb8] sm:$0xf]
      %v2129 = vld [vmem:[%s2081 + $0xbc] sm:$0xf]
      %s2130 = scalar_lea.vmem %s4, 24
      %v2131 = vld [vmem:[%s2130] sm:$0xf]
      %v2132 = vld [vmem:[%s2130 + $0x4] sm:$0x3]
      %v2181 = vunpack.c.l.b16 %v2082
      %v2182 = vunpack.c.l.b16 %v2083
      %v2183 = vunpack.c.l.b16 %v2084
      %v2184 = vunpack.c.l.b16 %v2085
      %v2185 = vunpack.c.l.b16 %v2086
      %v2186 = vunpack.c.l.b16 %v2087
      %v2187 = vunpack.c.l.b16 %v2088
      %v2188 = vunpack.c.l.b16 %v2089
      %v2189 = vunpack.c.l.b16 %v2090
      %v2190 = vunpack.c.l.b16 %v2091
      %v2191 = vunpack.c.l.b16 %v2092
      %v2192 = vunpack.c.l.b16 %v2093
      %v2193 = vunpack.c.l.b16 %v2094
      %v2194 = vunpack.c.l.b16 %v2095
      %v2195 = vunpack.c.l.b16 %v2096
      %v2196 = vunpack.c.l.b16 %v2097
      %v2197 = vunpack.c.l.b16 %v2098
      %v2198 = vunpack.c.l.b16 %v2099
      %v2199 = vunpack.c.l.b16 %v2100
      %v2200 = vunpack.c.l.b16 %v2101
      %v2201 = vunpack.c.l.b16 %v2102
      %v2202 = vunpack.c.l.b16 %v2103
      %v2203 = vunpack.c.l.b16 %v2104
      %v2204 = vunpack.c.l.b16 %v2105
      %v2205 = vunpack.c.l.b16 %v2106
      %v2206 = vunpack.c.l.b16 %v2107
      %v2207 = vunpack.c.l.b16 %v2108
      %v2208 = vunpack.c.l.b16 %v2109
      %v2209 = vunpack.c.l.b16 %v2110
      %v2210 = vunpack.c.l.b16 %v2111
      %v2211 = vunpack.c.l.b16 %v2112
      %v2212 = vunpack.c.l.b16 %v2113
      %v2213 = vunpack.c.l.b16 %v2114
      %v2214 = vunpack.c.l.b16 %v2115
      %v2215 = vunpack.c.l.b16 %v2116
      %v2216 = vunpack.c.l.b16 %v2117
      %v2217 = vunpack.c.l.b16 %v2118
      %v2218 = vunpack.c.l.b16 %v2119
      %v2219 = vunpack.c.l.b16 %v2120
      %v2220 = vunpack.c.l.b16 %v2121
      %v2221 = vunpack.c.l.b16 %v2122
      %v2222 = vunpack.c.l.b16 %v2123
      %v2223 = vunpack.c.l.b16 %v2124
      %v2224 = vunpack.c.l.b16 %v2125
      %v2225 = vunpack.c.l.b16 %v2126
      %v2226 = vunpack.c.l.b16 %v2127
      %v2227 = vunpack.c.l.b16 %v2128
      %v2228 = vunpack.c.l.b16 %v2129
      %v2229 = vpack.c.b16 %v2182, %v2181
      %v2230 = vpack.c.b16 %v2184, %v2183
      %v2231 = vpack.c.b16 %v2186, %v2185
      %v2232 = vpack.c.b16 %v2188, %v2187
      %v2233 = vpack.c.b16 %v2190, %v2189
      %v2234 = vpack.c.b16 %v2192, %v2191
      %v2235 = vpack.c.b16 %v2194, %v2193
      %v2236 = vpack.c.b16 %v2196, %v2195
      %v2237 = vpack.c.b16 %v2198, %v2197
      %v2238 = vpack.c.b16 %v2200, %v2199
      %v2239 = vpack.c.b16 %v2202, %v2201
      %v2240 = vpack.c.b16 %v2204, %v2203
      %v2241 = vpack.c.b16 %v2206, %v2205
      %v2242 = vpack.c.b16 %v2208, %v2207
      %v2243 = vpack.c.b16 %v2210, %v2209
      %v2244 = vpack.c.b16 %v2212, %v2211
      %v2245 = vpack.c.b16 %v2214, %v2213
      %v2246 = vpack.c.b16 %v2216, %v2215
      %v2247 = vpack.c.b16 %v2218, %v2217
      %v2248 = vpack.c.b16 %v2220, %v2219
      %v2249 = vpack.c.b16 %v2222, %v2221
      %v2250 = vpack.c.b16 %v2224, %v2223
      %v2251 = vpack.c.b16 %v2226, %v2225
      %v2252 = vpack.c.b16 %v2228, %v2227
      %v2255 = vunpack.c.l.b16 %v2131
      %v2256 = vunpack.c.l.b16 %v2132
      %v2257 = vpack.c.b16 %v2256, %v2255
      %v2259 = vsel %vm830, %v2229, 0
      %v2262 = vsel %vm830, %v2230, 0
      %v2265 = vsel %vm830, %v2231, 0
      %v2268 = vsel %vm830, %v2232, 0
      %v2271 = vsel %vm830, %v2233, 0
      %v2274 = vsel %vm830, %v2234, 0
      %v2277 = vsel %vm830, %v2235, 0
      %v2280 = vsel %vm830, %v2236, 0
      %v2283 = vsel %vm830, %v2237, 0
      %v2286 = vsel %vm830, %v2238, 0
      %v2289 = vsel %vm830, %v2239, 0
      %v2292 = vsel %vm830, %v2240, 0
      %v2295 = vsel %vm830, %v2241, 0
      %v2298 = vsel %vm830, %v2242, 0
      %v2301 = vsel %vm830, %v2243, 0
      %v2304 = vsel %vm830, %v2244, 0
      %v2307 = vsel %vm830, %v2245, 0
      %v2310 = vsel %vm830, %v2246, 0
      %v2313 = vsel %vm830, %v2247, 0
      %v2316 = vsel %vm830, %v2248, 0
      %v2319 = vsel %vm830, %v2249, 0
      %v2322 = vsel %vm830, %v2250, 0
      %v2325 = vsel %vm830, %v2251, 0
      %v2328 = vsel %vm830, %v2252, 0
      %v2331 = vsel %vm903, %v2257, 0
      %2333 = vmatprep.subr.bf16.mxu0 0
      %2334 = vmatpush1.bf16.msra.mxu0 0
      %2335 = vmatprep.subr.bf16.mxu0 0
      %2336 = vmatpush1.bf16.msra.mxu0 0
      %2337 = vmatprep.subr.bf16.mxu0 0
      %2338 = vmatpush1.bf16.msra.mxu0 0
      %2339 = vmatprep.subr.bf16.mxu0 0
      %2340 = vmatpush1.bf16.msra.mxu0 0
      %2341 = vmatprep.subr.bf16.mxu0 0
      %2342 = vmatpush1.bf16.msra.mxu0 0
      %2343 = vmatprep.subr.bf16.mxu0 0
      %2344 = vmatpush1.bf16.msra.mxu0 0
      %2345 = vmatprep.subr.bf16.mxu0 0
      %2346 = vmatpush1.bf16.msra.mxu0 0
      %2347 = vmatprep.subr.bf16.mxu0 0
      %2348 = vmatpush1.bf16.msra.mxu0 %v2331
      %2349 = vmatprep.subr.bf16.mxu0 0
      %2350 = vmatpush2.bf16.msra.mxu0 0
      %2351 = vmatprep.subr.bf16.mxu0 0
      %2352 = vmatpush2.bf16.msra.mxu0 0
      %2353 = vmatprep.subr.bf16.mxu0 0
      %2354 = vmatpush2.bf16.msra.mxu0 0
      %2355 = vmatprep.subr.bf16.mxu0 0
      %2356 = vmatpush2.bf16.msra.mxu0 0
      %2357 = vmatprep.subr.bf16.mxu0 0
      %2358 = vmatpush2.bf16.msra.mxu0 0
      %2359 = vmatprep.subr.bf16.mxu0 0
      %2360 = vmatpush2.bf16.msra.mxu0 0
      %2361 = vmatprep.subr.bf16.mxu0 0
      %2362 = vmatpush2.bf16.msra.mxu0 0
      %2363 = vmatprep.subr.bf16.mxu0 0
      %2364 = vmatpush2.bf16.msra.mxu0 0
      %2365 = vmatprep.mubr.bf16.mxu0 0
      %2366 = vmatmul.mubr.bf16.gmra.mxu0 %v2259
      %v2367 = vpop.f32.mrf.mxu0
      %v2368 = vadd.f32 0.0, %v2367
      %v2369 = vpop.f32.mrf.mxu0
      %v2370 = vpop.f32.mrf.mxu0
      %v2371 = vadd.f32 0.0, %v2370
      %v2372 = vpop.f32.mrf.mxu0
      %2373 = vmatprep.mubr.bf16.mxu0 0
      %2374 = vmatmul.mubr.bf16.gmra.mxu0 %v2262
      %v2375 = vpop.f32.mrf.mxu0
      %v2376 = vadd.f32 0.0, %v2375
      %v2377 = vpop.f32.mrf.mxu0
      %v2378 = vpop.f32.mrf.mxu0
      %v2379 = vadd.f32 0.0, %v2378
      %v2380 = vpop.f32.mrf.mxu0
      %2381 = vmatprep.mubr.bf16.mxu0 0
      %2382 = vmatmul.mubr.bf16.gmra.mxu0 %v2265
      %v2383 = vpop.f32.mrf.mxu0
      %v2384 = vadd.f32 0.0, %v2383
      %v2385 = vpop.f32.mrf.mxu0
      %v2386 = vpop.f32.mrf.mxu0
      %v2387 = vadd.f32 0.0, %v2386
      %v2388 = vpop.f32.mrf.mxu0
      %2389 = vmatprep.mubr.bf16.mxu0 0
      %2390 = vmatmul.mubr.bf16.gmra.mxu0 %v2268
      %v2391 = vpop.f32.mrf.mxu0
      %v2392 = vadd.f32 0.0, %v2391
      %v2393 = vpop.f32.mrf.mxu0
      %v2394 = vpop.f32.mrf.mxu0
      %v2395 = vadd.f32 0.0, %v2394
      %v2396 = vpop.f32.mrf.mxu0
      %2397 = vmatprep.mubr.bf16.mxu0 0
      %2398 = vmatmul.mubr.bf16.gmra.mxu0 %v2271
      %v2399 = vpop.f32.mrf.mxu0
      %v2400 = vadd.f32 0.0, %v2399
      %v2401 = vpop.f32.mrf.mxu0
      %v2402 = vpop.f32.mrf.mxu0
      %v2403 = vadd.f32 0.0, %v2402
      %v2404 = vpop.f32.mrf.mxu0
      %2405 = vmatprep.mubr.bf16.mxu0 0
      %2406 = vmatmul.mubr.bf16.gmra.mxu0 %v2274
      %v2407 = vpop.f32.mrf.mxu0
      %v2408 = vadd.f32 0.0, %v2407
      %v2409 = vpop.f32.mrf.mxu0
      %v2410 = vpop.f32.mrf.mxu0
      %v2411 = vadd.f32 0.0, %v2410
      %v2412 = vpop.f32.mrf.mxu0
      %2413 = vmatprep.mubr.bf16.mxu0 0
      %2414 = vmatmul.mubr.bf16.gmra.mxu0 %v2277
      %v2415 = vpop.f32.mrf.mxu0
      %v2416 = vadd.f32 0.0, %v2415
      %v2417 = vpop.f32.mrf.mxu0
      %v2418 = vpop.f32.mrf.mxu0
      %v2419 = vadd.f32 0.0, %v2418
      %v2420 = vpop.f32.mrf.mxu0
      %2421 = vmatprep.mubr.bf16.mxu0 0
      %2422 = vmatmul.mubr.bf16.gmra.mxu0 %v2280
      %v2423 = vpop.f32.mrf.mxu0
      %v2424 = vadd.f32 0.0, %v2423
      %v2425 = vpop.f32.mrf.mxu0
      %v2426 = vpop.f32.mrf.mxu0
      %v2427 = vadd.f32 0.0, %v2426
      %v2428 = vpop.f32.mrf.mxu0
      %2429 = vmatprep.mubr.bf16.mxu0 0
      %2430 = vmatmul.mubr.bf16.gmra.mxu0 %v2283
      %v2431 = vpop.f32.mrf.mxu0
      %v2432 = vadd.f32 0.0, %v2431
      %v2433 = vpop.f32.mrf.mxu0
      %v2434 = vpop.f32.mrf.mxu0
      %v2435 = vadd.f32 0.0, %v2434
      %v2436 = vpop.f32.mrf.mxu0
      %2437 = vmatprep.mubr.bf16.mxu0 0
      %2438 = vmatmul.mubr.bf16.gmra.mxu0 %v2286
      %v2439 = vpop.f32.mrf.mxu0
      %v2440 = vadd.f32 0.0, %v2439
      %v2441 = vpop.f32.mrf.mxu0
      %v2442 = vpop.f32.mrf.mxu0
      %v2443 = vadd.f32 0.0, %v2442
      %v2444 = vpop.f32.mrf.mxu0
      %2445 = vmatprep.mubr.bf16.mxu0 0
      %2446 = vmatmul.mubr.bf16.gmra.mxu0 %v2289
      %v2447 = vpop.f32.mrf.mxu0
      %v2448 = vadd.f32 0.0, %v2447
      %v2449 = vpop.f32.mrf.mxu0
      %v2450 = vpop.f32.mrf.mxu0
      %v2451 = vadd.f32 0.0, %v2450
      %v2452 = vpop.f32.mrf.mxu0
      %2453 = vmatprep.mubr.bf16.mxu0 0
      %2454 = vmatmul.mubr.bf16.gmra.mxu0 %v2292
      %v2455 = vpop.f32.mrf.mxu0
      %v2456 = vadd.f32 0.0, %v2455
      %v2457 = vpop.f32.mrf.mxu0
      %v2458 = vpop.f32.mrf.mxu0
      %v2459 = vadd.f32 0.0, %v2458
      %v2460 = vpop.f32.mrf.mxu0
      %2461 = vmatprep.mubr.bf16.mxu0 0
      %2462 = vmatmul.mubr.bf16.gmra.mxu0 %v2295
      %v2463 = vpop.f32.mrf.mxu0
      %v2464 = vadd.f32 0.0, %v2463
      %v2465 = vpop.f32.mrf.mxu0
      %v2466 = vpop.f32.mrf.mxu0
      %v2467 = vadd.f32 0.0, %v2466
      %v2468 = vpop.f32.mrf.mxu0
      %2469 = vmatprep.mubr.bf16.mxu0 0
      %2470 = vmatmul.mubr.bf16.gmra.mxu0 %v2298
      %v2471 = vpop.f32.mrf.mxu0
      %v2472 = vadd.f32 0.0, %v2471
      %v2473 = vpop.f32.mrf.mxu0
      %v2474 = vpop.f32.mrf.mxu0
      %v2475 = vadd.f32 0.0, %v2474
      %v2476 = vpop.f32.mrf.mxu0
      %2477 = vmatprep.mubr.bf16.mxu0 0
      %2478 = vmatmul.mubr.bf16.gmra.mxu0 %v2301
      %v2479 = vpop.f32.mrf.mxu0
      %v2480 = vadd.f32 0.0, %v2479
      %v2481 = vpop.f32.mrf.mxu0
      %v2482 = vpop.f32.mrf.mxu0
      %v2483 = vadd.f32 0.0, %v2482
      %v2484 = vpop.f32.mrf.mxu0
      %2485 = vmatprep.mubr.bf16.mxu0 0
      %2486 = vmatmul.mubr.bf16.gmra.mxu0 %v2304
      %v2487 = vpop.f32.mrf.mxu0
      %v2488 = vadd.f32 0.0, %v2487
      %v2489 = vpop.f32.mrf.mxu0
      %v2490 = vpop.f32.mrf.mxu0
      %v2491 = vadd.f32 0.0, %v2490
      %v2492 = vpop.f32.mrf.mxu0
      %2493 = vmatprep.mubr.bf16.mxu0 0
      %2494 = vmatmul.mubr.bf16.gmra.mxu0 %v2307
      %v2495 = vpop.f32.mrf.mxu0
      %v2496 = vadd.f32 0.0, %v2495
      %v2497 = vpop.f32.mrf.mxu0
      %v2498 = vpop.f32.mrf.mxu0
      %v2499 = vadd.f32 0.0, %v2498
      %v2500 = vpop.f32.mrf.mxu0
      %2501 = vmatprep.mubr.bf16.mxu0 0
      %2502 = vmatmul.mubr.bf16.gmra.mxu0 %v2310
      %v2503 = vpop.f32.mrf.mxu0
      %v2504 = vadd.f32 0.0, %v2503
      %v2505 = vpop.f32.mrf.mxu0
      %v2506 = vpop.f32.mrf.mxu0
      %v2507 = vadd.f32 0.0, %v2506
      %v2508 = vpop.f32.mrf.mxu0
      %2509 = vmatprep.mubr.bf16.mxu0 0
      %2510 = vmatmul.mubr.bf16.gmra.mxu0 %v2313
      %v2511 = vpop.f32.mrf.mxu0
      %v2512 = vadd.f32 0.0, %v2511
      %v2513 = vpop.f32.mrf.mxu0
      %v2514 = vpop.f32.mrf.mxu0
      %v2515 = vadd.f32 0.0, %v2514
      %v2516 = vpop.f32.mrf.mxu0
      %2517 = vmatprep.mubr.bf16.mxu0 0
      %2518 = vmatmul.mubr.bf16.gmra.mxu0 %v2316
      %v2519 = vpop.f32.mrf.mxu0
      %v2520 = vadd.f32 0.0, %v2519
      %v2521 = vpop.f32.mrf.mxu0
      %v2522 = vpop.f32.mrf.mxu0
      %v2523 = vadd.f32 0.0, %v2522
      %v2524 = vpop.f32.mrf.mxu0
      %2525 = vmatprep.mubr.bf16.mxu0 0
      %2526 = vmatmul.mubr.bf16.gmra.mxu0 %v2319
      %v2527 = vpop.f32.mrf.mxu0
      %v2528 = vadd.f32 0.0, %v2527
      %v2529 = vpop.f32.mrf.mxu0
      %v2530 = vpop.f32.mrf.mxu0
      %v2531 = vadd.f32 0.0, %v2530
      %v2532 = vpop.f32.mrf.mxu0
      %2533 = vmatprep.mubr.bf16.mxu0 0
      %2534 = vmatmul.mubr.bf16.gmra.mxu0 %v2322
      %v2535 = vpop.f32.mrf.mxu0
      %v2536 = vadd.f32 0.0, %v2535
      %v2537 = vpop.f32.mrf.mxu0
      %v2538 = vpop.f32.mrf.mxu0
      %v2539 = vadd.f32 0.0, %v2538
      %v2540 = vpop.f32.mrf.mxu0
      %2541 = vmatprep.mubr.bf16.mxu0 0
      %2542 = vmatmul.mubr.bf16.gmra.mxu0 %v2325
      %v2543 = vpop.f32.mrf.mxu0
      %v2544 = vadd.f32 0.0, %v2543
      %v2545 = vpop.f32.mrf.mxu0
      %v2546 = vpop.f32.mrf.mxu0
      %v2547 = vadd.f32 0.0, %v2546
      %v2548 = vpop.f32.mrf.mxu0
      %2549 = vmatprep.mubr.bf16.mxu0 0
      %2550 = vmatmul.mubr.bf16.gmra.mxu0 %v2328
      %v2551 = vpop.f32.mrf.mxu0
      %v2552 = vadd.f32 0.0, %v2551
      %v2553 = vpop.f32.mrf.mxu0
      %v2554 = vpop.f32.mrf.mxu0
      %v2555 = vadd.f32 0.0, %v2554
      %v2556 = vpop.f32.mrf.mxu0
      %2557 = vdwg.mxu0
      %v2558 = vadd.f32 %v2033, %v2368
      %v2559 = vadd.f32 %v2034, %v2371
      %v2560 = vadd.f32 %v2035, %v2376
      %v2561 = vadd.f32 %v2036, %v2379
      %v2562 = vadd.f32 %v2037, %v2384
      %v2563 = vadd.f32 %v2038, %v2387
      %v2564 = vadd.f32 %v2039, %v2392
      %v2565 = vadd.f32 %v2040, %v2395
      %v2566 = vadd.f32 %v2041, %v2400
      %v2567 = vadd.f32 %v2042, %v2403
      %v2568 = vadd.f32 %v2043, %v2408
      %v2569 = vadd.f32 %v2044, %v2411
      %v2570 = vadd.f32 %v2045, %v2416
      %v2571 = vadd.f32 %v2046, %v2419
      %v2572 = vadd.f32 %v2047, %v2424
      %v2573 = vadd.f32 %v2048, %v2427
      %v2574 = vadd.f32 %v2049, %v2432
      %v2575 = vadd.f32 %v2050, %v2435
      %v2576 = vadd.f32 %v2051, %v2440
      %v2577 = vadd.f32 %v2052, %v2443
      %v2578 = vadd.f32 %v2053, %v2448
      %v2579 = vadd.f32 %v2054, %v2451
      %v2580 = vadd.f32 %v2055, %v2456
      %v2581 = vadd.f32 %v2056, %v2459
      %v2582 = vadd.f32 %v2057, %v2464
      %v2583 = vadd.f32 %v2058, %v2467
      %v2584 = vadd.f32 %v2059, %v2472
      %v2585 = vadd.f32 %v2060, %v2475
      %v2586 = vadd.f32 %v2061, %v2480
      %v2587 = vadd.f32 %v2062, %v2483
      %v2588 = vadd.f32 %v2063, %v2488
      %v2589 = vadd.f32 %v2064, %v2491
      %v2590 = vadd.f32 %v2065, %v2496
      %v2591 = vadd.f32 %v2066, %v2499
      %v2592 = vadd.f32 %v2067, %v2504
      %v2593 = vadd.f32 %v2068, %v2507
      %v2594 = vadd.f32 %v2069, %v2512
      %v2595 = vadd.f32 %v2070, %v2515
      %v2596 = vadd.f32 %v2071, %v2520
      %v2597 = vadd.f32 %v2072, %v2523
      %v2598 = vadd.f32 %v2073, %v2528
      %v2599 = vadd.f32 %v2074, %v2531
      %v2600 = vadd.f32 %v2075, %v2536
      %v2601 = vadd.f32 %v2076, %v2539
      %v2602 = vadd.f32 %v2077, %v2544
      %v2603 = vadd.f32 %v2078, %v2547
      %v2604 = vadd.f32 %v2079, %v2552
      %v2605 = vadd.f32 %v2080, %v2555
      %v2606 = vrot.slane %v2558, 6
      %v2607 = vrot.slane %v2559, 6
      %v2608 = vrot.slane %v2560, 6
      %v2609 = vrot.slane %v2561, 6
      %v2610 = vrot.slane %v2562, 6
      %v2611 = vrot.slane %v2563, 6
      %v2612 = vrot.slane %v2564, 6
      %v2613 = vrot.slane %v2565, 6
      %v2614 = vrot.slane %v2566, 6
      %v2615 = vrot.slane %v2567, 6
      %v2616 = vrot.slane %v2568, 6
      %v2617 = vrot.slane %v2569, 6
      %v2618 = vrot.slane %v2570, 6
      %v2619 = vrot.slane %v2571, 6
      %v2620 = vrot.slane %v2572, 6
      %v2621 = vrot.slane %v2573, 6
      %v2622 = vrot.slane %v2574, 6
      %v2623 = vrot.slane %v2575, 6
      %v2624 = vrot.slane %v2576, 6
      %v2625 = vrot.slane %v2577, 6
      %v2626 = vrot.slane %v2578, 6
      %v2627 = vrot.slane %v2579, 6
      %v2628 = vrot.slane %v2580, 6
      %v2629 = vrot.slane %v2581, 6
      %v2630 = vrot.slane %v2582, 6
      %v2631 = vrot.slane %v2583, 6
      %v2632 = vrot.slane %v2584, 6
      %v2633 = vrot.slane %v2585, 6
      %v2634 = vrot.slane %v2586, 6
      %v2635 = vrot.slane %v2587, 6
      %v2636 = vrot.slane %v2588, 6
      %v2637 = vrot.slane %v2589, 6
      %v2638 = vrot.slane %v2590, 6
      %v2639 = vrot.slane %v2591, 6
      %v2640 = vrot.slane %v2592, 6
      %v2641 = vrot.slane %v2593, 6
      %v2642 = vrot.slane %v2594, 6
      %v2643 = vrot.slane %v2595, 6
      %v2644 = vrot.slane %v2596, 6
      %v2645 = vrot.slane %v2597, 6
      %v2646 = vrot.slane %v2598, 6
      %v2647 = vrot.slane %v2599, 6
      %v2648 = vrot.slane %v2600, 6
      %v2649 = vrot.slane %v2601, 6
      %v2650 = vrot.slane %v2602, 6
      %v2651 = vrot.slane %v2603, 6
      %v2652 = vrot.slane %v2604, 6
      %v2653 = vrot.slane %v2605, 6
      %v2654 = vlaneseq
      %v2655 = vshrl.u32 %v2654, 7
      %vm2656 = vcmp.lt.s32.totalorder %v2655, 2
      %v2657 = vsel %vm2656, %v2651, %v2652
      %v2658 = vsel %vm2656, %v2650, %v2651
      %v2659 = vsel %vm2656, %v2648, %v2649
      %v2660 = vsel %vm2656, %v2647, %v2648
      %v2661 = vsel %vm2656, %v2645, %v2646
      %v2662 = vsel %vm2656, %v2644, %v2645
      %v2663 = vsel %vm2656, %v2642, %v2643
      %v2664 = vsel %vm2656, %v2641, %v2642
      %v2665 = vsel %vm2656, %v2639, %v2640
      %v2666 = vsel %vm2656, %v2638, %v2639
      %v2667 = vsel %vm2656, %v2636, %v2637
      %v2668 = vsel %vm2656, %v2635, %v2636
      %v2669 = vsel %vm2656, %v2633, %v2634
      %v2670 = vsel %vm2656, %v2632, %v2633
      %v2671 = vsel %vm2656, %v2630, %v2631
      %v2672 = vsel %vm2656, %v2629, %v2630
      %v2673 = vsel %vm2656, %v2627, %v2628
      %v2674 = vsel %vm2656, %v2626, %v2627
      %v2675 = vsel %vm2656, %v2624, %v2625
      %v2676 = vsel %vm2656, %v2623, %v2624
      %v2677 = vsel %vm2656, %v2621, %v2622
      %v2678 = vsel %vm2656, %v2620, %v2621
      %v2679 = vsel %vm2656, %v2618, %v2619
      %v2680 = vsel %vm2656, %v2617, %v2618
      %v2681 = vsel %vm2656, %v2615, %v2616
      %v2682 = vsel %vm2656, %v2614, %v2615
      %v2683 = vsel %vm2656, %v2612, %v2613
      %v2684 = vsel %vm2656, %v2611, %v2612
      %v2685 = vsel %vm2656, %v2609, %v2610
      %v2686 = vsel %vm2656, %v2608, %v2609
      %v2687 = vsel %vm2656, %v2606, %v2607
      %v2688 = vsel %vm2656, %v2653, %v2606
      %2721 = vrot.lane.b32.xlu0 %v2688, 32
      %v2722 = vpop.permute.xlu0 %2721
      %2723 = vrot.lane.b32.xlu0 %v2687, 32
      %v2724 = vpop.permute.xlu0 %2723
      %2725 = vrot.lane.b32.xlu0 %v2686, 32
      %v2726 = vpop.permute.xlu0 %2725
      %2727 = vrot.lane.b32.xlu0 %v2685, 32
      %v2728 = vpop.permute.xlu0 %2727
      %2729 = vrot.lane.b32.xlu0 %v2684, 32
      %v2730 = vpop.permute.xlu0 %2729
      %2731 = vrot.lane.b32.xlu0 %v2683, 32
      %v2732 = vpop.permute.xlu0 %2731
      %2733 = vrot.lane.b32.xlu0 %v2682, 32
      %v2734 = vpop.permute.xlu0 %2733
      %2735 = vrot.lane.b32.xlu0 %v2681, 32
      %v2736 = vpop.permute.xlu0 %2735
      %2737 = vrot.lane.b32.xlu0 %v2680, 32
      %v2738 = vpop.permute.xlu0 %2737
      %2739 = vrot.lane.b32.xlu0 %v2679, 32
      %v2740 = vpop.permute.xlu0 %2739
      %2741 = vrot.lane.b32.xlu0 %v2678, 32
      %v2742 = vpop.permute.xlu0 %2741
      %2743 = vrot.lane.b32.xlu0 %v2677, 32
      %v2744 = vpop.permute.xlu0 %2743
      %2745 = vrot.lane.b32.xlu0 %v2676, 32
      %v2746 = vpop.permute.xlu0 %2745
      %2747 = vrot.lane.b32.xlu0 %v2675, 32
      %v2748 = vpop.permute.xlu0 %2747
      %2749 = vrot.lane.b32.xlu0 %v2674, 32
      %v2750 = vpop.permute.xlu0 %2749
      %2751 = vrot.lane.b32.xlu0 %v2673, 32
      %v2752 = vpop.permute.xlu0 %2751
      %2753 = vrot.lane.b32.xlu0 %v2672, 32
      %v2754 = vpop.permute.xlu0 %2753
      %2755 = vrot.lane.b32.xlu0 %v2671, 32
      %v2756 = vpop.permute.xlu0 %2755
      %2757 = vrot.lane.b32.xlu0 %v2670, 32
      %v2758 = vpop.permute.xlu0 %2757
      %2759 = vrot.lane.b32.xlu0 %v2669, 32
      %v2760 = vpop.permute.xlu0 %2759
      %2761 = vrot.lane.b32.xlu0 %v2668, 32
      %v2762 = vpop.permute.xlu0 %2761
      %2763 = vrot.lane.b32.xlu0 %v2667, 32
      %v2764 = vpop.permute.xlu0 %2763
      %2765 = vrot.lane.b32.xlu0 %v2666, 32
      %v2766 = vpop.permute.xlu0 %2765
      %2767 = vrot.lane.b32.xlu0 %v2665, 32
      %v2768 = vpop.permute.xlu0 %2767
      %2769 = vrot.lane.b32.xlu0 %v2664, 32
      %v2770 = vpop.permute.xlu0 %2769
      %2771 = vrot.lane.b32.xlu0 %v2663, 32
      %v2772 = vpop.permute.xlu0 %2771
      %2773 = vrot.lane.b32.xlu0 %v2662, 32
      %v2774 = vpop.permute.xlu0 %2773
      %2775 = vrot.lane.b32.xlu0 %v2661, 32
      %v2776 = vpop.permute.xlu0 %2775
      %2777 = vrot.lane.b32.xlu0 %v2660, 32
      %v2778 = vpop.permute.xlu0 %2777
      %2779 = vrot.lane.b32.xlu0 %v2659, 32
      %v2780 = vpop.permute.xlu0 %2779
      %2781 = vrot.lane.b32.xlu0 %v2658, 32
      %v2782 = vpop.permute.xlu0 %2781
      %2783 = vrot.lane.b32.xlu0 %v2657, 32
      %v2784 = vpop.permute.xlu0 %2783
      %v2817 = vadd.f32 %v2558, %v2722
      %v2818 = vadd.f32 %v2559, %v2724
      %v2819 = vadd.f32 %v2561, %v2726
      %v2820 = vadd.f32 %v2562, %v2728
      %v2821 = vadd.f32 %v2564, %v2730
      %v2822 = vadd.f32 %v2565, %v2732
      %v2823 = vadd.f32 %v2567, %v2734
      %v2824 = vadd.f32 %v2568, %v2736
      %v2825 = vadd.f32 %v2570, %v2738
      %v2826 = vadd.f32 %v2571, %v2740
      %v2827 = vadd.f32 %v2573, %v2742
      %v2828 = vadd.f32 %v2574, %v2744
      %v2829 = vadd.f32 %v2576, %v2746
      %v2830 = vadd.f32 %v2577, %v2748
      %v2831 = vadd.f32 %v2579, %v2750
      %v2832 = vadd.f32 %v2580, %v2752
      %v2833 = vadd.f32 %v2582, %v2754
      %v2834 = vadd.f32 %v2583, %v2756
      %v2835 = vadd.f32 %v2585, %v2758
      %v2836 = vadd.f32 %v2586, %v2760
      %v2837 = vadd.f32 %v2588, %v2762
      %v2838 = vadd.f32 %v2589, %v2764
      %v2839 = vadd.f32 %v2591, %v2766
      %v2840 = vadd.f32 %v2592, %v2768
      %v2841 = vadd.f32 %v2594, %v2770
      %v2842 = vadd.f32 %v2595, %v2772
      %v2843 = vadd.f32 %v2597, %v2774
      %v2844 = vadd.f32 %v2598, %v2776
      %v2845 = vadd.f32 %v2600, %v2778
      %v2846 = vadd.f32 %v2601, %v2780
      %v2847 = vadd.f32 %v2603, %v2782
      %v2848 = vadd.f32 %v2604, %v2784
      %2897 = vrot.lane.b32.xlu0 %v2558, 112
      %v2898 = vpop.permute.xlu0 %2897
      %2899 = vrot.lane.b32.xlu0 %v2559, 112
      %v2900 = vpop.permute.xlu0 %2899
      %2901 = vrot.lane.b32.xlu0 %v2560, 112
      %v2902 = vpop.permute.xlu0 %2901
      %2903 = vrot.lane.b32.xlu0 %v2561, 112
      %v2904 = vpop.permute.xlu0 %2903
      %2905 = vrot.lane.b32.xlu0 %v2562, 112
      %v2906 = vpop.permute.xlu0 %2905
      %2907 = vrot.lane.b32.xlu0 %v2563, 112
      %v2908 = vpop.permute.xlu0 %2907
      %2909 = vrot.lane.b32.xlu0 %v2564, 112
      %v2910 = vpop.permute.xlu0 %2909
      %2911 = vrot.lane.b32.xlu0 %v2565, 112
      %v2912 = vpop.permute.xlu0 %2911
      %2913 = vrot.lane.b32.xlu0 %v2566, 112
      %v2914 = vpop.permute.xlu0 %2913
      %2915 = vrot.lane.b32.xlu0 %v2567, 112
      %v2916 = vpop.permute.xlu0 %2915
      %2917 = vrot.lane.b32.xlu0 %v2568, 112
      %v2918 = vpop.permute.xlu0 %2917
      %2919 = vrot.lane.b32.xlu0 %v2569, 112
      %v2920 = vpop.permute.xlu0 %2919
      %2921 = vrot.lane.b32.xlu0 %v2570, 112
      %v2922 = vpop.permute.xlu0 %2921
      %2923 = vrot.lane.b32.xlu0 %v2571, 112
      %v2924 = vpop.permute.xlu0 %2923
      %2925 = vrot.lane.b32.xlu0 %v2572, 112
      %v2926 = vpop.permute.xlu0 %2925
      %2927 = vrot.lane.b32.xlu0 %v2573, 112
      %v2928 = vpop.permute.xlu0 %2927
      %2929 = vrot.lane.b32.xlu0 %v2574, 112
      %v2930 = vpop.permute.xlu0 %2929
      %2931 = vrot.lane.b32.xlu0 %v2575, 112
      %v2932 = vpop.permute.xlu0 %2931
      %2933 = vrot.lane.b32.xlu0 %v2576, 112
      %v2934 = vpop.permute.xlu0 %2933
      %2935 = vrot.lane.b32.xlu0 %v2577, 112
      %v2936 = vpop.permute.xlu0 %2935
      %2937 = vrot.lane.b32.xlu0 %v2578, 112
      %v2938 = vpop.permute.xlu0 %2937
      %2939 = vrot.lane.b32.xlu0 %v2579, 112
      %v2940 = vpop.permute.xlu0 %2939
      %2941 = vrot.lane.b32.xlu0 %v2580, 112
      %v2942 = vpop.permute.xlu0 %2941
      %2943 = vrot.lane.b32.xlu0 %v2581, 112
      %v2944 = vpop.permute.xlu0 %2943
      %2945 = vrot.lane.b32.xlu0 %v2582, 112
      %v2946 = vpop.permute.xlu0 %2945
      %2947 = vrot.lane.b32.xlu0 %v2583, 112
      %v2948 = vpop.permute.xlu0 %2947
      %2949 = vrot.lane.b32.xlu0 %v2584, 112
      %v2950 = vpop.permute.xlu0 %2949
      %2951 = vrot.lane.b32.xlu0 %v2585, 112
      %v2952 = vpop.permute.xlu0 %2951
      %2953 = vrot.lane.b32.xlu0 %v2586, 112
      %v2954 = vpop.permute.xlu0 %2953
      %2955 = vrot.lane.b32.xlu0 %v2587, 112
      %v2956 = vpop.permute.xlu0 %2955
      %2957 = vrot.lane.b32.xlu0 %v2588, 112
      %v2958 = vpop.permute.xlu0 %2957
      %2959 = vrot.lane.b32.xlu0 %v2589, 112
      %v2960 = vpop.permute.xlu0 %2959
      %2961 = vrot.lane.b32.xlu0 %v2590, 112
      %v2962 = vpop.permute.xlu0 %2961
      %2963 = vrot.lane.b32.xlu0 %v2591, 112
      %v2964 = vpop.permute.xlu0 %2963
      %2965 = vrot.lane.b32.xlu0 %v2592, 112
      %v2966 = vpop.permute.xlu0 %2965
      %2967 = vrot.lane.b32.xlu0 %v2593, 112
      %v2968 = vpop.permute.xlu0 %2967
      %2969 = vrot.lane.b32.xlu0 %v2594, 112
      %v2970 = vpop.permute.xlu0 %2969
      %2971 = vrot.lane.b32.xlu0 %v2595, 112
      %v2972 = vpop.permute.xlu0 %2971
      %2973 = vrot.lane.b32.xlu0 %v2596, 112
      %v2974 = vpop.permute.xlu0 %2973
      %2975 = vrot.lane.b32.xlu0 %v2597, 112
      %v2976 = vpop.permute.xlu0 %2975
      %2977 = vrot.lane.b32.xlu0 %v2598, 112
      %v2978 = vpop.permute.xlu0 %2977
      %2979 = vrot.lane.b32.xlu0 %v2599, 112
      %v2980 = vpop.permute.xlu0 %2979
      %2981 = vrot.lane.b32.xlu0 %v2600, 112
      %v2982 = vpop.permute.xlu0 %2981
      %2983 = vrot.lane.b32.xlu0 %v2601, 112
      %v2984 = vpop.permute.xlu0 %2983
      %2985 = vrot.lane.b32.xlu0 %v2602, 112
      %v2986 = vpop.permute.xlu0 %2985
      %2987 = vrot.lane.b32.xlu0 %v2603, 112
      %v2988 = vpop.permute.xlu0 %2987
      %2989 = vrot.lane.b32.xlu0 %v2604, 112
      %v2990 = vpop.permute.xlu0 %2989
      %2991 = vrot.lane.b32.xlu0 %v2605, 112
      %v2992 = vpop.permute.xlu0 %2991
      %v3041 = vrot.slane %v2898, 7
      %v3042 = vrot.slane %v2900, 7
      %v3043 = vrot.slane %v2902, 7
      %v3044 = vrot.slane %v2904, 7
      %v3045 = vrot.slane %v2906, 7
      %v3046 = vrot.slane %v2908, 7
      %v3047 = vrot.slane %v2910, 7
      %v3048 = vrot.slane %v2912, 7
      %v3049 = vrot.slane %v2914, 7
      %v3050 = vrot.slane %v2916, 7
      %v3051 = vrot.slane %v2918, 7
      %v3052 = vrot.slane %v2920, 7
      %v3053 = vrot.slane %v2922, 7
      %v3054 = vrot.slane %v2924, 7
      %v3055 = vrot.slane %v2926, 7
      %v3056 = vrot.slane %v2928, 7
      %v3057 = vrot.slane %v2930, 7
      %v3058 = vrot.slane %v2932, 7
      %v3059 = vrot.slane %v2934, 7
      %v3060 = vrot.slane %v2936, 7
      %v3061 = vrot.slane %v2938, 7
      %v3062 = vrot.slane %v2940, 7
      %v3063 = vrot.slane %v2942, 7
      %v3064 = vrot.slane %v2944, 7
      %v3065 = vrot.slane %v2946, 7
      %v3066 = vrot.slane %v2948, 7
      %v3067 = vrot.slane %v2950, 7
      %v3068 = vrot.slane %v2952, 7
      %v3069 = vrot.slane %v2954, 7
      %v3070 = vrot.slane %v2956, 7
      %v3071 = vrot.slane %v2958, 7
      %v3072 = vrot.slane %v2960, 7
      %v3073 = vrot.slane %v2962, 7
      %v3074 = vrot.slane %v2964, 7
      %v3075 = vrot.slane %v2966, 7
      %v3076 = vrot.slane %v2968, 7
      %v3077 = vrot.slane %v2970, 7
      %v3078 = vrot.slane %v2972, 7
      %v3079 = vrot.slane %v2974, 7
      %v3080 = vrot.slane %v2976, 7
      %v3081 = vrot.slane %v2978, 7
      %v3082 = vrot.slane %v2980, 7
      %v3083 = vrot.slane %v2982, 7
      %v3084 = vrot.slane %v2984, 7
      %v3085 = vrot.slane %v2986, 7
      %v3086 = vrot.slane %v2988, 7
      %v3087 = vrot.slane %v2990, 7
      %v3088 = vrot.slane %v2992, 7
      %vm3089 = vcmp.lt.s32.totalorder %v2655, 1
      %v3090 = vsel %vm3089, %v3086, %v3087
      %v3091 = vsel %vm3089, %v3085, %v3086
      %v3092 = vsel %vm3089, %v3083, %v3084
      %v3093 = vsel %vm3089, %v3082, %v3083
      %v3094 = vsel %vm3089, %v3080, %v3081
      %v3095 = vsel %vm3089, %v3079, %v3080
      %v3096 = vsel %vm3089, %v3077, %v3078
      %v3097 = vsel %vm3089, %v3076, %v3077
      %v3098 = vsel %vm3089, %v3074, %v3075
      %v3099 = vsel %vm3089, %v3073, %v3074
      %v3100 = vsel %vm3089, %v3071, %v3072
      %v3101 = vsel %vm3089, %v3070, %v3071
      %v3102 = vsel %vm3089, %v3068, %v3069
      %v3103 = vsel %vm3089, %v3067, %v3068
      %v3104 = vsel %vm3089, %v3065, %v3066
      %v3105 = vsel %vm3089, %v3064, %v3065
      %v3106 = vsel %vm3089, %v3062, %v3063
      %v3107 = vsel %vm3089, %v3061, %v3062
      %v3108 = vsel %vm3089, %v3059, %v3060
      %v3109 = vsel %vm3089, %v3058, %v3059
      %v3110 = vsel %vm3089, %v3056, %v3057
      %v3111 = vsel %vm3089, %v3055, %v3056
      %v3112 = vsel %vm3089, %v3053, %v3054
      %v3113 = vsel %vm3089, %v3052, %v3053
      %v3114 = vsel %vm3089, %v3050, %v3051
      %v3115 = vsel %vm3089, %v3049, %v3050
      %v3116 = vsel %vm3089, %v3047, %v3048
      %v3117 = vsel %vm3089, %v3046, %v3047
      %v3118 = vsel %vm3089, %v3044, %v3045
      %v3119 = vsel %vm3089, %v3043, %v3044
      %v3120 = vsel %vm3089, %v3041, %v3042
      %v3121 = vsel %vm3089, %v3088, %v3041
      %3154 = vrot.lane.b32.xlu0 %v3121, 32
      %v3155 = vpop.permute.xlu0 %3154
      %3156 = vrot.lane.b32.xlu0 %v3120, 32
      %v3157 = vpop.permute.xlu0 %3156
      %3158 = vrot.lane.b32.xlu0 %v3119, 32
      %v3159 = vpop.permute.xlu0 %3158
      %3160 = vrot.lane.b32.xlu0 %v3118, 32
      %v3161 = vpop.permute.xlu0 %3160
      %3162 = vrot.lane.b32.xlu0 %v3117, 32
      %v3163 = vpop.permute.xlu0 %3162
      %3164 = vrot.lane.b32.xlu0 %v3116, 32
      %v3165 = vpop.permute.xlu0 %3164
      %3166 = vrot.lane.b32.xlu0 %v3115, 32
      %v3167 = vpop.permute.xlu0 %3166
      %3168 = vrot.lane.b32.xlu0 %v3114, 32
      %v3169 = vpop.permute.xlu0 %3168
      %3170 = vrot.lane.b32.xlu0 %v3113, 32
      %v3171 = vpop.permute.xlu0 %3170
      %3172 = vrot.lane.b32.xlu0 %v3112, 32
      %v3173 = vpop.permute.xlu0 %3172
      %3174 = vrot.lane.b32.xlu0 %v3111, 32
      %v3175 = vpop.permute.xlu0 %3174
      %3176 = vrot.lane.b32.xlu0 %v3110, 32
      %v3177 = vpop.permute.xlu0 %3176
      %3178 = vrot.lane.b32.xlu0 %v3109, 32
      %v3179 = vpop.permute.xlu0 %3178
      %3180 = vrot.lane.b32.xlu0 %v3108, 32
      %v3181 = vpop.permute.xlu0 %3180
      %3182 = vrot.lane.b32.xlu0 %v3107, 32
      %v3183 = vpop.permute.xlu0 %3182
      %3184 = vrot.lane.b32.xlu0 %v3106, 32
      %v3185 = vpop.permute.xlu0 %3184
      %3186 = vrot.lane.b32.xlu0 %v3105, 32
      %v3187 = vpop.permute.xlu0 %3186
      %3188 = vrot.lane.b32.xlu0 %v3104, 32
      %v3189 = vpop.permute.xlu0 %3188
      %3190 = vrot.lane.b32.xlu0 %v3103, 32
      %v3191 = vpop.permute.xlu0 %3190
      %3192 = vrot.lane.b32.xlu0 %v3102, 32
      %v3193 = vpop.permute.xlu0 %3192
      %3194 = vrot.lane.b32.xlu0 %v3101, 32
      %v3195 = vpop.permute.xlu0 %3194
      %3196 = vrot.lane.b32.xlu0 %v3100, 32
      %v3197 = vpop.permute.xlu0 %3196
      %3198 = vrot.lane.b32.xlu0 %v3099, 32
      %v3199 = vpop.permute.xlu0 %3198
      %3200 = vrot.lane.b32.xlu0 %v3098, 32
      %v3201 = vpop.permute.xlu0 %3200
      %3202 = vrot.lane.b32.xlu0 %v3097, 32
      %v3203 = vpop.permute.xlu0 %3202
      %3204 = vrot.lane.b32.xlu0 %v3096, 32
      %v3205 = vpop.permute.xlu0 %3204
      %3206 = vrot.lane.b32.xlu0 %v3095, 32
      %v3207 = vpop.permute.xlu0 %3206
      %3208 = vrot.lane.b32.xlu0 %v3094, 32
      %v3209 = vpop.permute.xlu0 %3208
      %3210 = vrot.lane.b32.xlu0 %v3093, 32
      %v3211 = vpop.permute.xlu0 %3210
      %3212 = vrot.lane.b32.xlu0 %v3092, 32
      %v3213 = vpop.permute.xlu0 %3212
      %3214 = vrot.lane.b32.xlu0 %v3091, 32
      %v3215 = vpop.permute.xlu0 %3214
      %3216 = vrot.lane.b32.xlu0 %v3090, 32
      %v3217 = vpop.permute.xlu0 %3216
      %v3250 = vadd.f32 %v2817, %v3155
      %v3251 = vadd.f32 %v2818, %v3157
      %v3252 = vadd.f32 %v2819, %v3159
      %v3253 = vadd.f32 %v2820, %v3161
      %v3254 = vadd.f32 %v2821, %v3163
      %v3255 = vadd.f32 %v2822, %v3165
      %v3256 = vadd.f32 %v2823, %v3167
      %v3257 = vadd.f32 %v2824, %v3169
      %v3258 = vadd.f32 %v2825, %v3171
      %v3259 = vadd.f32 %v2826, %v3173
      %v3260 = vadd.f32 %v2827, %v3175
      %v3261 = vadd.f32 %v2828, %v3177
      %v3262 = vadd.f32 %v2829, %v3179
      %v3263 = vadd.f32 %v2830, %v3181
      %v3264 = vadd.f32 %v2831, %v3183
      %v3265 = vadd.f32 %v2832, %v3185
      %v3266 = vadd.f32 %v2833, %v3187
      %v3267 = vadd.f32 %v2834, %v3189
      %v3268 = vadd.f32 %v2835, %v3191
      %v3269 = vadd.f32 %v2836, %v3193
      %v3270 = vadd.f32 %v2837, %v3195
      %v3271 = vadd.f32 %v2838, %v3197
      %v3272 = vadd.f32 %v2839, %v3199
      %v3273 = vadd.f32 %v2840, %v3201
      %v3274 = vadd.f32 %v2841, %v3203
      %v3275 = vadd.f32 %v2842, %v3205
      %v3276 = vadd.f32 %v2843, %v3207
      %v3277 = vadd.f32 %v2844, %v3209
      %v3278 = vadd.f32 %v2845, %v3211
      %v3279 = vadd.f32 %v2846, %v3213
      %v3280 = vadd.f32 %v2847, %v3215
      %v3281 = vadd.f32 %v2848, %v3217
      %3282 = vrot.lane.b32.xlu0 %v2558, 80
      %v3283 = vpop.permute.xlu0 %3282
      %3284 = vrot.lane.b32.xlu0 %v2559, 80
      %v3285 = vpop.permute.xlu0 %3284
      %3286 = vrot.lane.b32.xlu0 %v2560, 80
      %v3287 = vpop.permute.xlu0 %3286
      %3288 = vrot.lane.b32.xlu0 %v2561, 80
      %v3289 = vpop.permute.xlu0 %3288
      %3290 = vrot.lane.b32.xlu0 %v2562, 80
      %v3291 = vpop.permute.xlu0 %3290
      %3292 = vrot.lane.b32.xlu0 %v2563, 80
      %v3293 = vpop.permute.xlu0 %3292
      %3294 = vrot.lane.b32.xlu0 %v2564, 80
      %v3295 = vpop.permute.xlu0 %3294
      %3296 = vrot.lane.b32.xlu0 %v2565, 80
      %v3297 = vpop.permute.xlu0 %3296
      %3298 = vrot.lane.b32.xlu0 %v2566, 80
      %v3299 = vpop.permute.xlu0 %3298
      %3300 = vrot.lane.b32.xlu0 %v2567, 80
      %v3301 = vpop.permute.xlu0 %3300
      %3302 = vrot.lane.b32.xlu0 %v2568, 80
      %v3303 = vpop.permute.xlu0 %3302
      %3304 = vrot.lane.b32.xlu0 %v2569, 80
      %v3305 = vpop.permute.xlu0 %3304
      %3306 = vrot.lane.b32.xlu0 %v2570, 80
      %v3307 = vpop.permute.xlu0 %3306
      %3308 = vrot.lane.b32.xlu0 %v2571, 80
      %v3309 = vpop.permute.xlu0 %3308
      %3310 = vrot.lane.b32.xlu0 %v2572, 80
      %v3311 = vpop.permute.xlu0 %3310
      %3312 = vrot.lane.b32.xlu0 %v2573, 80
      %v3313 = vpop.permute.xlu0 %3312
      %3314 = vrot.lane.b32.xlu0 %v2574, 80
      %v3315 = vpop.permute.xlu0 %3314
      %3316 = vrot.lane.b32.xlu0 %v2575, 80
      %v3317 = vpop.permute.xlu0 %3316
      %3318 = vrot.lane.b32.xlu0 %v2576, 80
      %v3319 = vpop.permute.xlu0 %3318
      %3320 = vrot.lane.b32.xlu0 %v2577, 80
      %v3321 = vpop.permute.xlu0 %3320
      %3322 = vrot.lane.b32.xlu0 %v2578, 80
      %v3323 = vpop.permute.xlu0 %3322
      %3324 = vrot.lane.b32.xlu0 %v2579, 80
      %v3325 = vpop.permute.xlu0 %3324
      %3326 = vrot.lane.b32.xlu0 %v2580, 80
      %v3327 = vpop.permute.xlu0 %3326
      %3328 = vrot.lane.b32.xlu0 %v2581, 80
      %v3329 = vpop.permute.xlu0 %3328
      %3330 = vrot.lane.b32.xlu0 %v2582, 80
      %v3331 = vpop.permute.xlu0 %3330
      %3332 = vrot.lane.b32.xlu0 %v2583, 80
      %v3333 = vpop.permute.xlu0 %3332
      %3334 = vrot.lane.b32.xlu0 %v2584, 80
      %v3335 = vpop.permute.xlu0 %3334
      %3336 = vrot.lane.b32.xlu0 %v2585, 80
      %v3337 = vpop.permute.xlu0 %3336
      %3338 = vrot.lane.b32.xlu0 %v2586, 80
      %v3339 = vpop.permute.xlu0 %3338
      %3340 = vrot.lane.b32.xlu0 %v2587, 80
      %v3341 = vpop.permute.xlu0 %3340
      %3342 = vrot.lane.b32.xlu0 %v2588, 80
      %v3343 = vpop.permute.xlu0 %3342
      %3344 = vrot.lane.b32.xlu0 %v2589, 80
      %v3345 = vpop.permute.xlu0 %3344
      %3346 = vrot.lane.b32.xlu0 %v2590, 80
      %v3347 = vpop.permute.xlu0 %3346
      %3348 = vrot.lane.b32.xlu0 %v2591, 80
      %v3349 = vpop.permute.xlu0 %3348
      %3350 = vrot.lane.b32.xlu0 %v2592, 80
      %v3351 = vpop.permute.xlu0 %3350
      %3352 = vrot.lane.b32.xlu0 %v2593, 80
      %v3353 = vpop.permute.xlu0 %3352
      %3354 = vrot.lane.b32.xlu0 %v2594, 80
      %v3355 = vpop.permute.xlu0 %3354
      %3356 = vrot.lane.b32.xlu0 %v2595, 80
      %v3357 = vpop.permute.xlu0 %3356
      %3358 = vrot.lane.b32.xlu0 %v2596, 80
      %v3359 = vpop.permute.xlu0 %3358
      %3360 = vrot.lane.b32.xlu0 %v2597, 80
      %v3361 = vpop.permute.xlu0 %3360
      %3362 = vrot.lane.b32.xlu0 %v2598, 80
      %v3363 = vpop.permute.xlu0 %3362
      %3364 = vrot.lane.b32.xlu0 %v2599, 80
      %v3365 = vpop.permute.xlu0 %3364
      %3366 = vrot.lane.b32.xlu0 %v2600, 80
      %v3367 = vpop.permute.xlu0 %3366
      %3368 = vrot.lane.b32.xlu0 %v2601, 80
      %v3369 = vpop.permute.xlu0 %3368
      %3370 = vrot.lane.b32.xlu0 %v2602, 80
      %v3371 = vpop.permute.xlu0 %3370
      %3372 = vrot.lane.b32.xlu0 %v2603, 80
      %v3373 = vpop.permute.xlu0 %3372
      %3374 = vrot.lane.b32.xlu0 %v2604, 80
      %v3375 = vpop.permute.xlu0 %3374
      %3376 = vrot.lane.b32.xlu0 %v2605, 80
      %v3377 = vpop.permute.xlu0 %3376
      %v3426 = vrot.slane %v3283, 1
      %v3427 = vrot.slane %v3285, 1
      %v3428 = vrot.slane %v3287, 1
      %v3429 = vrot.slane %v3289, 1
      %v3430 = vrot.slane %v3291, 1
      %v3431 = vrot.slane %v3293, 1
      %v3432 = vrot.slane %v3295, 1
      %v3433 = vrot.slane %v3297, 1
      %v3434 = vrot.slane %v3299, 1
      %v3435 = vrot.slane %v3301, 1
      %v3436 = vrot.slane %v3303, 1
      %v3437 = vrot.slane %v3305, 1
      %v3438 = vrot.slane %v3307, 1
      %v3439 = vrot.slane %v3309, 1
      %v3440 = vrot.slane %v3311, 1
      %v3441 = vrot.slane %v3313, 1
      %v3442 = vrot.slane %v3315, 1
      %v3443 = vrot.slane %v3317, 1
      %v3444 = vrot.slane %v3319, 1
      %v3445 = vrot.slane %v3321, 1
      %v3446 = vrot.slane %v3323, 1
      %v3447 = vrot.slane %v3325, 1
      %v3448 = vrot.slane %v3327, 1
      %v3449 = vrot.slane %v3329, 1
      %v3450 = vrot.slane %v3331, 1
      %v3451 = vrot.slane %v3333, 1
      %v3452 = vrot.slane %v3335, 1
      %v3453 = vrot.slane %v3337, 1
      %v3454 = vrot.slane %v3339, 1
      %v3455 = vrot.slane %v3341, 1
      %v3456 = vrot.slane %v3343, 1
      %v3457 = vrot.slane %v3345, 1
      %v3458 = vrot.slane %v3347, 1
      %v3459 = vrot.slane %v3349, 1
      %v3460 = vrot.slane %v3351, 1
      %v3461 = vrot.slane %v3353, 1
      %v3462 = vrot.slane %v3355, 1
      %v3463 = vrot.slane %v3357, 1
      %v3464 = vrot.slane %v3359, 1
      %v3465 = vrot.slane %v3361, 1
      %v3466 = vrot.slane %v3363, 1
      %v3467 = vrot.slane %v3365, 1
      %v3468 = vrot.slane %v3367, 1
      %v3469 = vrot.slane %v3369, 1
      %v3470 = vrot.slane %v3371, 1
      %v3471 = vrot.slane %v3373, 1
      %v3472 = vrot.slane %v3375, 1
      %v3473 = vrot.slane %v3377, 1
      %vm3474 = vcmp.lt.s32.totalorder %v2655, 7
      %v3475 = vsel %vm3474, %v3472, %v3473
      %v3476 = vsel %vm3474, %v3471, %v3472
      %v3477 = vsel %vm3474, %v3469, %v3470
      %v3478 = vsel %vm3474, %v3468, %v3469
      %v3479 = vsel %vm3474, %v3466, %v3467
      %v3480 = vsel %vm3474, %v3465, %v3466
      %v3481 = vsel %vm3474, %v3463, %v3464
      %v3482 = vsel %vm3474, %v3462, %v3463
      %v3483 = vsel %vm3474, %v3460, %v3461
      %v3484 = vsel %vm3474, %v3459, %v3460
      %v3485 = vsel %vm3474, %v3457, %v3458
      %v3486 = vsel %vm3474, %v3456, %v3457
      %v3487 = vsel %vm3474, %v3454, %v3455
      %v3488 = vsel %vm3474, %v3453, %v3454
      %v3489 = vsel %vm3474, %v3451, %v3452
      %v3490 = vsel %vm3474, %v3450, %v3451
      %v3491 = vsel %vm3474, %v3448, %v3449
      %v3492 = vsel %vm3474, %v3447, %v3448
      %v3493 = vsel %vm3474, %v3445, %v3446
      %v3494 = vsel %vm3474, %v3444, %v3445
      %v3495 = vsel %vm3474, %v3442, %v3443
      %v3496 = vsel %vm3474, %v3441, %v3442
      %v3497 = vsel %vm3474, %v3439, %v3440
      %v3498 = vsel %vm3474, %v3438, %v3439
      %v3499 = vsel %vm3474, %v3436, %v3437
      %v3500 = vsel %vm3474, %v3435, %v3436
      %v3501 = vsel %vm3474, %v3433, %v3434
      %v3502 = vsel %vm3474, %v3432, %v3433
      %v3503 = vsel %vm3474, %v3430, %v3431
      %v3504 = vsel %vm3474, %v3429, %v3430
      %v3505 = vsel %vm3474, %v3427, %v3428
      %v3506 = vsel %vm3474, %v3426, %v3427
      %3539 = vrot.lane.b32.xlu0 %v3506, 32
      %v3540 = vpop.permute.xlu0 %3539
      %3541 = vrot.lane.b32.xlu0 %v3505, 32
      %v3542 = vpop.permute.xlu0 %3541
      %3543 = vrot.lane.b32.xlu0 %v3504, 32
      %v3544 = vpop.permute.xlu0 %3543
      %3545 = vrot.lane.b32.xlu0 %v3503, 32
      %v3546 = vpop.permute.xlu0 %3545
      %3547 = vrot.lane.b32.xlu0 %v3502, 32
      %v3548 = vpop.permute.xlu0 %3547
      %3549 = vrot.lane.b32.xlu0 %v3501, 32
      %v3550 = vpop.permute.xlu0 %3549
      %3551 = vrot.lane.b32.xlu0 %v3500, 32
      %v3552 = vpop.permute.xlu0 %3551
      %3553 = vrot.lane.b32.xlu0 %v3499, 32
      %v3554 = vpop.permute.xlu0 %3553
      %3555 = vrot.lane.b32.xlu0 %v3498, 32
      %v3556 = vpop.permute.xlu0 %3555
      %3557 = vrot.lane.b32.xlu0 %v3497, 32
      %v3558 = vpop.permute.xlu0 %3557
      %3559 = vrot.lane.b32.xlu0 %v3496, 32
      %v3560 = vpop.permute.xlu0 %3559
      %3561 = vrot.lane.b32.xlu0 %v3495, 32
      %v3562 = vpop.permute.xlu0 %3561
      %3563 = vrot.lane.b32.xlu0 %v3494, 32
      %v3564 = vpop.permute.xlu0 %3563
      %3565 = vrot.lane.b32.xlu0 %v3493, 32
      %v3566 = vpop.permute.xlu0 %3565
      %3567 = vrot.lane.b32.xlu0 %v3492, 32
      %v3568 = vpop.permute.xlu0 %3567
      %3569 = vrot.lane.b32.xlu0 %v3491, 32
      %v3570 = vpop.permute.xlu0 %3569
      %3571 = vrot.lane.b32.xlu0 %v3490, 32
      %v3572 = vpop.permute.xlu0 %3571
      %3573 = vrot.lane.b32.xlu0 %v3489, 32
      %v3574 = vpop.permute.xlu0 %3573
      %3575 = vrot.lane.b32.xlu0 %v3488, 32
      %v3576 = vpop.permute.xlu0 %3575
      %3577 = vrot.lane.b32.xlu0 %v3487, 32
      %v3578 = vpop.permute.xlu0 %3577
      %3579 = vrot.lane.b32.xlu0 %v3486, 32
      %v3580 = vpop.permute.xlu0 %3579
      %3581 = vrot.lane.b32.xlu0 %v3485, 32
      %v3582 = vpop.permute.xlu0 %3581
      %3583 = vrot.lane.b32.xlu0 %v3484, 32
      %v3584 = vpop.permute.xlu0 %3583
      %3585 = vrot.lane.b32.xlu0 %v3483, 32
      %v3586 = vpop.permute.xlu0 %3585
      %3587 = vrot.lane.b32.xlu0 %v3482, 32
      %v3588 = vpop.permute.xlu0 %3587
      %3589 = vrot.lane.b32.xlu0 %v3481, 32
      %v3590 = vpop.permute.xlu0 %3589
      %3591 = vrot.lane.b32.xlu0 %v3480, 32
      %v3592 = vpop.permute.xlu0 %3591
      %3593 = vrot.lane.b32.xlu0 %v3479, 32
      %v3594 = vpop.permute.xlu0 %3593
      %3595 = vrot.lane.b32.xlu0 %v3478, 32
      %v3596 = vpop.permute.xlu0 %3595
      %3597 = vrot.lane.b32.xlu0 %v3477, 32
      %v3598 = vpop.permute.xlu0 %3597
      %3599 = vrot.lane.b32.xlu0 %v3476, 32
      %v3600 = vpop.permute.xlu0 %3599
      %3601 = vrot.lane.b32.xlu0 %v3475, 32
      %v3602 = vpop.permute.xlu0 %3601
      %v3635 = vadd.f32 %v3250, %v3540
      %v3636 = vadd.f32 %v3251, %v3542
      %v3637 = vadd.f32 %v3252, %v3544
      %v3638 = vadd.f32 %v3253, %v3546
      %v3639 = vadd.f32 %v3254, %v3548
      %v3640 = vadd.f32 %v3255, %v3550
      %v3641 = vadd.f32 %v3256, %v3552
      %v3642 = vadd.f32 %v3257, %v3554
      %v3643 = vadd.f32 %v3258, %v3556
      %v3644 = vadd.f32 %v3259, %v3558
      %v3645 = vadd.f32 %v3260, %v3560
      %v3646 = vadd.f32 %v3261, %v3562
      %v3647 = vadd.f32 %v3262, %v3564
      %v3648 = vadd.f32 %v3263, %v3566
      %v3649 = vadd.f32 %v3264, %v3568
      %v3650 = vadd.f32 %v3265, %v3570
      %v3651 = vadd.f32 %v3266, %v3572
      %v3652 = vadd.f32 %v3267, %v3574
      %v3653 = vadd.f32 %v3268, %v3576
      %v3654 = vadd.f32 %v3269, %v3578
      %v3655 = vadd.f32 %v3270, %v3580
      %v3656 = vadd.f32 %v3271, %v3582
      %v3657 = vadd.f32 %v3272, %v3584
      %v3658 = vadd.f32 %v3273, %v3586
      %v3659 = vadd.f32 %v3274, %v3588
      %v3660 = vadd.f32 %v3275, %v3590
      %v3661 = vadd.f32 %v3276, %v3592
      %v3662 = vadd.f32 %v3277, %v3594
      %v3663 = vadd.f32 %v3278, %v3596
      %v3664 = vadd.f32 %v3279, %v3598
      %v3665 = vadd.f32 %v3280, %v3600
      %v3666 = vadd.f32 %v3281, %v3602
      %v3667 = vld [vmem:[%s5] sm:$0x1]
      %v3669 = vlaneseq
      %v3670 = vshrl.u32 %v3669, 7
      %v3671 = vsub.s32 0, %v3670
      %v3672 = vrot.slane %v3667, %v3671
      %3673 = vrot.lane.b32.xlu0 %v3672, 32
      %v3674 = vpop.permute.xlu0 %3673
      %v3676 = vadd.f32 %v3635, %v3674
      %v3677 = vadd.f32 %v3636, %v3674
      %v3678 = vadd.f32 %v3637, %v3674
      %v3679 = vadd.f32 %v3638, %v3674
      %v3680 = vadd.f32 %v3639, %v3674
      %v3681 = vadd.f32 %v3640, %v3674
      %v3682 = vadd.f32 %v3641, %v3674
      %v3683 = vadd.f32 %v3642, %v3674
      %v3684 = vadd.f32 %v3643, %v3674
      %v3685 = vadd.f32 %v3644, %v3674
      %v3686 = vadd.f32 %v3645, %v3674
      %v3687 = vadd.f32 %v3646, %v3674
      %v3688 = vadd.f32 %v3647, %v3674
      %v3689 = vadd.f32 %v3648, %v3674
      %v3690 = vadd.f32 %v3649, %v3674
      %v3691 = vadd.f32 %v3650, %v3674
      %v3692 = vadd.f32 %v3651, %v3674
      %v3693 = vadd.f32 %v3652, %v3674
      %v3694 = vadd.f32 %v3653, %v3674
      %v3695 = vadd.f32 %v3654, %v3674
      %v3696 = vadd.f32 %v3655, %v3674
      %v3697 = vadd.f32 %v3656, %v3674
      %v3698 = vadd.f32 %v3657, %v3674
      %v3699 = vadd.f32 %v3658, %v3674
      %v3700 = vadd.f32 %v3659, %v3674
      %v3701 = vadd.f32 %v3660, %v3674
      %v3702 = vadd.f32 %v3661, %v3674
      %v3703 = vadd.f32 %v3662, %v3674
      %v3704 = vadd.f32 %v3663, %v3674
      %v3705 = vadd.f32 %v3664, %v3674
      %v3706 = vadd.f32 %v3665, %v3674
      %v3707 = vadd.f32 %v3666, %v3674
      %v3708 = vmax.f32 %v3676, 0.0
      %v3709 = vmax.f32 %v3677, 0.0
      %v3710 = vmax.f32 %v3678, 0.0
      %v3711 = vmax.f32 %v3679, 0.0
      %v3712 = vmax.f32 %v3680, 0.0
      %v3713 = vmax.f32 %v3681, 0.0
      %v3714 = vmax.f32 %v3682, 0.0
      %v3715 = vmax.f32 %v3683, 0.0
      %v3716 = vmax.f32 %v3684, 0.0
      %v3717 = vmax.f32 %v3685, 0.0
      %v3718 = vmax.f32 %v3686, 0.0
      %v3719 = vmax.f32 %v3687, 0.0
      %v3720 = vmax.f32 %v3688, 0.0
      %v3721 = vmax.f32 %v3689, 0.0
      %v3722 = vmax.f32 %v3690, 0.0
      %v3723 = vmax.f32 %v3691, 0.0
      %v3724 = vmax.f32 %v3692, 0.0
      %v3725 = vmax.f32 %v3693, 0.0
      %v3726 = vmax.f32 %v3694, 0.0
      %v3727 = vmax.f32 %v3695, 0.0
      %v3728 = vmax.f32 %v3696, 0.0
      %v3729 = vmax.f32 %v3697, 0.0
      %v3730 = vmax.f32 %v3698, 0.0
      %v3731 = vmax.f32 %v3699, 0.0
      %v3732 = vmax.f32 %v3700, 0.0
      %v3733 = vmax.f32 %v3701, 0.0
      %v3734 = vmax.f32 %v3702, 0.0
      %v3735 = vmax.f32 %v3703, 0.0
      %v3736 = vmax.f32 %v3704, 0.0
      %v3737 = vmax.f32 %v3705, 0.0
      %v3738 = vmax.f32 %v3706, 0.0
      %v3739 = vmax.f32 %v3707, 0.0
      %v3740 = vpack.c.bf16 %v3709, %v3708
      %v3741 = vpack.c.bf16 %v3711, %v3710
      %v3742 = vpack.c.bf16 %v3713, %v3712
      %v3743 = vpack.c.bf16 %v3715, %v3714
      %v3744 = vpack.c.bf16 %v3717, %v3716
      %v3745 = vpack.c.bf16 %v3719, %v3718
      %v3746 = vpack.c.bf16 %v3721, %v3720
      %v3747 = vpack.c.bf16 %v3723, %v3722
      %v3748 = vpack.c.bf16 %v3725, %v3724
      %v3749 = vpack.c.bf16 %v3727, %v3726
      %v3750 = vpack.c.bf16 %v3729, %v3728
      %v3751 = vpack.c.bf16 %v3731, %v3730
      %v3752 = vpack.c.bf16 %v3733, %v3732
      %v3753 = vpack.c.bf16 %v3735, %v3734
      %v3754 = vpack.c.bf16 %v3737, %v3736
      %v3755 = vpack.c.bf16 %v3739, %v3738
      %v3772 = vunpack.c.l.b16 %v3740
      %v3773 = vunpack.c.h.b16 %v3740
      %v3774 = vunpack.c.l.b16 %v3741
      %v3775 = vunpack.c.h.b16 %v3741
      %v3776 = vunpack.c.l.b16 %v3742
      %v3777 = vunpack.c.h.b16 %v3742
      %v3778 = vunpack.c.l.b16 %v3743
      %v3779 = vunpack.c.h.b16 %v3743
      %v3780 = vunpack.c.l.b16 %v3744
      %v3781 = vunpack.c.h.b16 %v3744
      %v3782 = vunpack.c.l.b16 %v3745
      %v3783 = vunpack.c.h.b16 %v3745
      %v3784 = vunpack.c.l.b16 %v3746
      %v3785 = vunpack.c.h.b16 %v3746
      %v3786 = vunpack.c.l.b16 %v3747
      %v3787 = vunpack.c.h.b16 %v3747
      %v3788 = vunpack.c.l.b16 %v3748
      %v3789 = vunpack.c.h.b16 %v3748
      %v3790 = vunpack.c.l.b16 %v3749
      %v3791 = vunpack.c.h.b16 %v3749
      %v3792 = vunpack.c.l.b16 %v3750
      %v3793 = vunpack.c.h.b16 %v3750
      %v3794 = vunpack.c.l.b16 %v3751
      %v3795 = vunpack.c.h.b16 %v3751
      %v3796 = vunpack.c.l.b16 %v3752
      %v3797 = vunpack.c.h.b16 %v3752
      %v3798 = vunpack.c.l.b16 %v3753
      %v3799 = vunpack.c.h.b16 %v3753
      %v3800 = vunpack.c.l.b16 %v3754
      %v3801 = vunpack.c.h.b16 %v3754
      %v3802 = vunpack.c.l.b16 %v3755
      %v3803 = vunpack.c.h.b16 %v3755
      %v3804 = vpack.c.b16 %v3772, %v3772
      %v3805 = vpack.c.b16 %v3773, %v3773
      %v3806 = vpack.c.b16 %v3774, %v3774
      %v3807 = vpack.c.b16 %v3775, %v3775
      %v3808 = vpack.c.b16 %v3776, %v3776
      %v3809 = vpack.c.b16 %v3777, %v3777
      %v3810 = vpack.c.b16 %v3778, %v3778
      %v3811 = vpack.c.b16 %v3779, %v3779
      %v3812 = vpack.c.b16 %v3780, %v3780
      %v3813 = vpack.c.b16 %v3781, %v3781
      %v3814 = vpack.c.b16 %v3782, %v3782
      %v3815 = vpack.c.b16 %v3783, %v3783
      %v3816 = vpack.c.b16 %v3784, %v3784
      %v3817 = vpack.c.b16 %v3785, %v3785
      %v3818 = vpack.c.b16 %v3786, %v3786
      %v3819 = vpack.c.b16 %v3787, %v3787
      %v3820 = vpack.c.b16 %v3788, %v3788
      %v3821 = vpack.c.b16 %v3789, %v3789
      %v3822 = vpack.c.b16 %v3790, %v3790
      %v3823 = vpack.c.b16 %v3791, %v3791
      %v3824 = vpack.c.b16 %v3792, %v3792
      %v3825 = vpack.c.b16 %v3793, %v3793
      %v3826 = vpack.c.b16 %v3794, %v3794
      %v3827 = vpack.c.b16 %v3795, %v3795
      %v3828 = vpack.c.b16 %v3796, %v3796
      %v3829 = vpack.c.b16 %v3797, %v3797
      %v3830 = vpack.c.b16 %v3798, %v3798
      %v3831 = vpack.c.b16 %v3799, %v3799
      %v3832 = vpack.c.b16 %v3800, %v3800
      %v3833 = vpack.c.b16 %v3801, %v3801
      %v3834 = vpack.c.b16 %v3802, %v3802
      %v3835 = vpack.c.b16 %v3803, %v3803
      %3836 = vrot.lane.b32.xlu0 %v3804, 96
      %v3837 = vpop.permute.xlu0 %3836
      %3838 = vrot.lane.b32.xlu0 %v3805, 96
      %v3839 = vpop.permute.xlu0 %3838
      %3840 = vrot.lane.b32.xlu0 %v3806, 96
      %v3841 = vpop.permute.xlu0 %3840
      %3842 = vrot.lane.b32.xlu0 %v3807, 96
      %v3843 = vpop.permute.xlu0 %3842
      %3844 = vrot.lane.b32.xlu0 %v3808, 96
      %v3845 = vpop.permute.xlu0 %3844
      %3846 = vrot.lane.b32.xlu0 %v3809, 96
      %v3847 = vpop.permute.xlu0 %3846
      %3848 = vrot.lane.b32.xlu0 %v3810, 96
      %v3849 = vpop.permute.xlu0 %3848
      %3850 = vrot.lane.b32.xlu0 %v3811, 96
      %v3851 = vpop.permute.xlu0 %3850
      %3852 = vrot.lane.b32.xlu0 %v3812, 96
      %v3853 = vpop.permute.xlu0 %3852
      %3854 = vrot.lane.b32.xlu0 %v3813, 96
      %v3855 = vpop.permute.xlu0 %3854
      %3856 = vrot.lane.b32.xlu0 %v3814, 96
      %v3857 = vpop.permute.xlu0 %3856
      %3858 = vrot.lane.b32.xlu0 %v3815, 96
      %v3859 = vpop.permute.xlu0 %3858
      %3860 = vrot.lane.b32.xlu0 %v3816, 96
      %v3861 = vpop.permute.xlu0 %3860
      %3862 = vrot.lane.b32.xlu0 %v3817, 96
      %v3863 = vpop.permute.xlu0 %3862
      %3864 = vrot.lane.b32.xlu0 %v3818, 96
      %v3865 = vpop.permute.xlu0 %3864
      %3866 = vrot.lane.b32.xlu0 %v3819, 96
      %v3867 = vpop.permute.xlu0 %3866
      %3868 = vrot.lane.b32.xlu0 %v3820, 96
      %v3869 = vpop.permute.xlu0 %3868
      %3870 = vrot.lane.b32.xlu0 %v3821, 96
      %v3871 = vpop.permute.xlu0 %3870
      %3872 = vrot.lane.b32.xlu0 %v3822, 96
      %v3873 = vpop.permute.xlu0 %3872
      %3874 = vrot.lane.b32.xlu0 %v3823, 96
      %v3875 = vpop.permute.xlu0 %3874
      %3876 = vrot.lane.b32.xlu0 %v3824, 96
      %v3877 = vpop.permute.xlu0 %3876
      %3878 = vrot.lane.b32.xlu0 %v3825, 96
      %v3879 = vpop.permute.xlu0 %3878
      %3880 = vrot.lane.b32.xlu0 %v3826, 96
      %v3881 = vpop.permute.xlu0 %3880
      %3882 = vrot.lane.b32.xlu0 %v3827, 96
      %v3883 = vpop.permute.xlu0 %3882
      %3884 = vrot.lane.b32.xlu0 %v3828, 96
      %v3885 = vpop.permute.xlu0 %3884
      %3886 = vrot.lane.b32.xlu0 %v3829, 96
      %v3887 = vpop.permute.xlu0 %3886
      %3888 = vrot.lane.b32.xlu0 %v3830, 96
      %v3889 = vpop.permute.xlu0 %3888
      %3890 = vrot.lane.b32.xlu0 %v3831, 96
      %v3891 = vpop.permute.xlu0 %3890
      %3892 = vrot.lane.b32.xlu0 %v3832, 96
      %v3893 = vpop.permute.xlu0 %3892
      %3894 = vrot.lane.b32.xlu0 %v3833, 96
      %v3895 = vpop.permute.xlu0 %3894
      %3896 = vrot.lane.b32.xlu0 %v3834, 96
      %v3897 = vpop.permute.xlu0 %3896
      %3898 = vrot.lane.b32.xlu0 %v3835, 96
      %v3899 = vpop.permute.xlu0 %3898
      %vm3932 = vcmask 125952
      %3933 = vst.msk [vmem:[%s480] sm:$0xf] %vm3932, %v3837
      %3934 = vst.msk [vmem:[%s480 + $0x4] sm:$0xf] %vm3932, %v3839
      %3935 = vst.msk [vmem:[%s480 + $0x8] sm:$0xf] %vm3932, %v3841
      %3936 = vst.msk [vmem:[%s480 + $0xc] sm:$0xf] %vm3932, %v3843
      %3937 = vst.msk [vmem:[%s480 + $0x10] sm:$0xf] %vm3932, %v3845
      %3938 = vst.msk [vmem:[%s480 + $0x14] sm:$0xf] %vm3932, %v3847
      %3939 = vst.msk [vmem:[%s480 + $0x18] sm:$0xf] %vm3932, %v3849
      %3940 = vst.msk [vmem:[%s480 + $0x1c] sm:$0xf] %vm3932, %v3851
      %3941 = vst.msk [vmem:[%s480 + $0x20] sm:$0xf] %vm3932, %v3853
      %3942 = vst.msk [vmem:[%s480 + $0x24] sm:$0xf] %vm3932, %v3855
      %3943 = vst.msk [vmem:[%s480 + $0x28] sm:$0xf] %vm3932, %v3857
      %3944 = vst.msk [vmem:[%s480 + $0x2c] sm:$0xf] %vm3932, %v3859
      %3945 = vst.msk [vmem:[%s480 + $0x30] sm:$0xf] %vm3932, %v3861
      %3946 = vst.msk [vmem:[%s480 + $0x34] sm:$0xf] %vm3932, %v3863
      %3947 = vst.msk [vmem:[%s480 + $0x38] sm:$0xf] %vm3932, %v3865
      %3948 = vst.msk [vmem:[%s480 + $0x3c] sm:$0xf] %vm3932, %v3867
      %3949 = vst.msk [vmem:[%s480 + $0x40] sm:$0xf] %vm3932, %v3869
      %3950 = vst.msk [vmem:[%s480 + $0x44] sm:$0xf] %vm3932, %v3871
      %3951 = vst.msk [vmem:[%s480 + $0x48] sm:$0xf] %vm3932, %v3873
      %3952 = vst.msk [vmem:[%s480 + $0x4c] sm:$0xf] %vm3932, %v3875
      %3953 = vst.msk [vmem:[%s480 + $0x50] sm:$0xf] %vm3932, %v3877
      %3954 = vst.msk [vmem:[%s480 + $0x54] sm:$0xf] %vm3932, %v3879
      %3955 = vst.msk [vmem:[%s480 + $0x58] sm:$0xf] %vm3932, %v3881
      %3956 = vst.msk [vmem:[%s480 + $0x5c] sm:$0xf] %vm3932, %v3883
      %3957 = vst.msk [vmem:[%s480 + $0x60] sm:$0xf] %vm3932, %v3885
      %3958 = vst.msk [vmem:[%s480 + $0x64] sm:$0xf] %vm3932, %v3887
      %3959 = vst.msk [vmem:[%s480 + $0x68] sm:$0xf] %vm3932, %v3889
      %3960 = vst.msk [vmem:[%s480 + $0x6c] sm:$0xf] %vm3932, %v3891
      %3961 = vst.msk [vmem:[%s480 + $0x70] sm:$0xf] %vm3932, %v3893
      %3962 = vst.msk [vmem:[%s480 + $0x74] sm:$0xf] %vm3932, %v3895
      %3963 = vst.msk [vmem:[%s480 + $0x78] sm:$0xf] %vm3932, %v3897
      %3964 = vst.msk [vmem:[%s480 + $0x7c] sm:$0xf] %vm3932, %v3899
      %s3965 = smul.u32 16, %s22
      %p3966 = scmp.lt.s32.totalorder %s21, 1
      %s3967 = scalar_select %p3966, %s21, 1
      %p3968 = scmp.lt.s32.totalorder %s3965, 15
      %s3969 = scalar_select %p3968, %s3965, 15
      %s3970 = smul.addr %s3969, 2
      %s3971 = smul.addr %s3967, 32
      %s3972 = sadd.s32 %s3970, %s3971
      %s3973 = smul.addr %s3972, 4
      %s3974 = scalar_lea.vmem %s6, %s3973
      // Predicated region
      $region45: #{densenet_forward.20} parent=43 // pred_check
        %p3975 = pneg %p227
      $region46: #{densenet_forward.20} parent=43 // pred_check_branch
        %3977 = sbr.rel (%p3975) target = $region48
      $region47: #{densenet_forward.20} parent=43 // pred_region
        %s3978 = smul.u32 16, %s22
      $region48: #{densenet_forward.20} parent=43 // pred_fallthru
        _
    $region44: #{densenet_forward.20} parent=5 // pred_fallthru
      _
    %p3979 = scmp.le.s32.totalorder 2, %s12
    // Predicated region
    $region49: #{densenet_forward.20} parent=5 // pred_check
      %p3980 = pneg %p3979
    $region50: #{densenet_forward.20} parent=5 // pred_check_branch
      %3982 = sbr.rel (%p3980) target = $region52
    $region51: #{densenet_forward.20} parent=5 // pred_region
      %s3983 = ssub.s32 %s12, 2
      // Predicated region
      $region53: #{densenet_forward.20} parent=51 // pred_check
        %p3984 = pneg %p233
      $region54: #{densenet_forward.20} parent=51 // pred_check_branch
        %3986 = sbr.rel (%p3984) target = $region56
      $region55: #{densenet_forward.20} parent=51 // pred_region
        %s3987 = smul.u32 16, %s24
        %p3988 = scmp.lt.s32.totalorder %s23, 1
        %s3989 = scalar_select %p3988, %s23, 1
        %p3990 = scmp.lt.s32.totalorder %s3987, 15
        %s3991 = scalar_select %p3990, %s3987, 15
        %s3992 = smul.addr %s3991, 2
        %s3993 = smul.addr %s3989, 32
        %s3994 = sadd.s32 %s3992, %s3993
        %s3995 = smul.addr %s3994, 4
        %s3996 = scalar_lea.vmem %s6, %s3995
      $region56: #{densenet_forward.20} parent=51 // pred_fallthru
        _
    $region52: #{densenet_forward.20} parent=5 // pred_fallthru
      _
  $region6: #{densenet_forward.20} parent=0 // loop_footer
    %s16 = sadd.s32 1, %s12
  $region7: #{densenet_forward.20} parent=0 // loop_footer_branch
    %11 = sbr.rel target = $region3
  $region8: #{densenet_forward.20} parent=0 // loop_exit
    _

// kernel: densenet_forward.22
$region0: #{densenet_forward.22}
  #allocation0 [shape = 'u32[]', space=smem, size = 0x4, offset = 0x4, fixed_abs, tag = 'smem constant byte address 0x4 - core index']
  #allocation1 [shape = 'u32[144,128]{1,0:T(1,128)}', space=vmem, size = 0x12000, scoped, tag = 'internal scratch']
  #allocation2 [shape = 'bf16[10,16,16]{2,1,0:T(8,128)(2,1)}', space=vmem, size = 0xa000, scoped, tag = 'scratch operand']
  %s0 = inlined_call_operand.vmem [shape: bf16[2,8,8,16], index: 0, kind: input, shape index: {}, may-alias: {0,1,2}]
  %s1 = inlined_call_operand.vmem [shape: bf16[2,8,8,16], index: 1, kind: input, shape index: {}, may-alias: {0,1,2}]
  %s2 = inlined_call_operand.vmem [shape: bf16[2,8,8,16], index: 2, kind: input, shape index: {}, may-alias: {0,1,2}]
  %s3 = inlined_call_operand.vmem [shape: bf16[3,16,24], index: 3, kind: input, shape index: {}]
  %s4 = inlined_call_operand.vmem [shape: bf16[2,8,8,8], index: 4, kind: output, shape index: {}]
  %s5 = sld [smem:[#allocation0]]
  $region49: #{densenet_forward.22} parent=0
    _
  %s7 = ssub.s32 1, %s5
  %s8 = scalar_select 0, %s7, %s5
  loop: start=0, step=1, limit=4
  $region2: #{densenet_forward.22} parent=0 // loop_pre_header
    _
  $region3: #{densenet_forward.22} parent=0 // loop_header
    %s10 = sphi 0, %s14
    %p11 = scmp.ge.s32.totalorder %s10, 4
    %s17 = sphi 0, %s29
    %s18 = sphi 0, %s25
    %s19 = sphi 0, %s17
    %s20 = sphi 0, %s18
    %s21 = sphi 0, %s19
    %s22 = sphi 0, %s20
    %s42 = sphi 0, %s44
    %s45 = sphi 0, %s42
    %s46 = sphi 0, %s45
    %s62 = sphi 0, %s46
    %s70 = sphi 0, %s72
    %s73 = sphi 0, %s70
    %s74 = sphi 0, %s73
    %s90 = sphi 0, %s74
    %s106 = sphi 0, %s108
    %s109 = sphi 0, %s106
    %s110 = sphi 0, %s109
    %s126 = sphi 0, %s110
    %s130 = sphi 0, %s130
    %s132 = sphi 0, %s130
    %s133 = sphi 0, %s132
    %s147 = sphi 0, %s133
    %s155 = sphi 0, %s157
    %s158 = sphi 0, %s155
    %s159 = sphi 0, %s158
    %s175 = sphi 0, %s159
  $region4: #{densenet_forward.22} parent=0 // loop_header_branch
    %13 = sbr.rel (%p11) target = $region8
  $region5: #{densenet_forward.22} parent=0 // loop_body
    %s15 = ssub.s32 %s10, 1
    %s16 = ssub.s32 %s10, 2
    %s23 = sadd.s32 1, %s18
    %p24 = scmp.ge.s32.totalorder %s23, 1
    %s25 = scalar_select %p24, 0, %s23
    %s26 = sadd.s32 1, %s17
    %s27 = scalar_select %p24, %s26, %s17
    %p28 = scmp.ge.s32.totalorder %s27, 2
    %s29 = scalar_select %p28, 0, %s27
    %s30 = smul.u32 %s18, 8
    %s31 = sadd.s32 %s30, 4294967295
    %p32 = scmp.gt.s32.totalorder %s31, 0
    %s33 = scalar_select %p32, %s31, 0
    %s34 = smul.u32 %s25, 8
    %s35 = sadd.s32 %s34, 4294967295
    %p36 = scmp.gt.s32.totalorder %s35, 0
    %s37 = scalar_select %p36, %s35, 0
    %s38 = ssub.s32 %s17, %s29
    %s39 = ssub.s32 %s33, %s37
    %s40 = sor.u32 %s38, %s39
    %p41 = scmp.eq.s32.totalorder %s40, 0
    %s43 = sadd.s32 %s42, 1
    %s44 = scalar_select %p41, %s42, %s43
    %p47 = pneg %p41
    %p48 = scmp.eq.s32.totalorder %s10, 1
    %p49 = por %p47, %p48
    %p50 = scmp.ne.s32.totalorder %s42, %s45
    %p51 = scmp.eq.s32.totalorder %s10, 0
    %p52 = por %p50, %p51
    %p53 = scmp.ne.s32.totalorder %s42, %s45
    %p54 = scmp.eq.s32.totalorder %s15, 1
    %p55 = por %p53, %p54
    %p56 = scmp.ne.s32.totalorder %s45, %s46
    %p57 = scmp.eq.s32.totalorder %s15, 0
    %p58 = por %p56, %p57
    %p59 = scmp.ne.s32.totalorder %s45, %s46
    %p60 = scmp.eq.s32.totalorder %s16, 1
    %p61 = por %p59, %p60
    %p63 = scmp.ne.s32.totalorder %s46, %s62
    %p64 = scmp.eq.s32.totalorder %s16, 0
    %p65 = por %p63, %p64
    %s66 = ssub.s32 %s17, %s29
    %s67 = ssub.s32 %s18, %s25
    %s68 = sor.u32 %s66, %s67
    %p69 = scmp.eq.s32.totalorder %s68, 0
    %s71 = sadd.s32 %s70, 1
    %s72 = scalar_select %p69, %s70, %s71
    %p75 = pneg %p69
    %p76 = scmp.eq.s32.totalorder %s10, 1
    %p77 = por %p75, %p76
    %p78 = scmp.ne.s32.totalorder %s70, %s73
    %p79 = scmp.eq.s32.totalorder %s10, 0
    %p80 = por %p78, %p79
    %p81 = scmp.ne.s32.totalorder %s70, %s73
    %p82 = scmp.eq.s32.totalorder %s15, 1
    %p83 = por %p81, %p82
    %p84 = scmp.ne.s32.totalorder %s73, %s74
    %p85 = scmp.eq.s32.totalorder %s15, 0
    %p86 = por %p84, %p85
    %p87 = scmp.ne.s32.totalorder %s73, %s74
    %p88 = scmp.eq.s32.totalorder %s16, 1
    %p89 = por %p87, %p88
    %p91 = scmp.ne.s32.totalorder %s74, %s90
    %p92 = scmp.eq.s32.totalorder %s16, 0
    %p93 = por %p91, %p92
    %s94 = smul.u32 %s18, 8
    %s95 = sadd.s32 %s94, 8
    %p96 = scmp.lt.s32.totalorder %s95, 7
    %s97 = scalar_select %p96, %s95, 7
    %s98 = smul.u32 %s25, 8
    %s99 = sadd.s32 %s98, 8
    %p100 = scmp.lt.s32.totalorder %s99, 7
    %s101 = scalar_select %p100, %s99, 7
    %s102 = ssub.s32 %s17, %s29
    %s103 = ssub.s32 %s97, %s101
    %s104 = sor.u32 %s102, %s103
    %p105 = scmp.eq.s32.totalorder %s104, 0
    %s107 = sadd.s32 %s106, 1
    %s108 = scalar_select %p105, %s106, %s107
    %p111 = pneg %p105
    %p112 = scmp.eq.s32.totalorder %s10, 1
    %p113 = por %p111, %p112
    %p114 = scmp.ne.s32.totalorder %s106, %s109
    %p115 = scmp.eq.s32.totalorder %s10, 0
    %p116 = por %p114, %p115
    %p117 = scmp.ne.s32.totalorder %s106, %s109
    %p118 = scmp.eq.s32.totalorder %s15, 1
    %p119 = por %p117, %p118
    %p120 = scmp.ne.s32.totalorder %s109, %s110
    %p121 = scmp.eq.s32.totalorder %s15, 0
    %p122 = por %p120, %p121
    %p123 = scmp.ne.s32.totalorder %s109, %s110
    %p124 = scmp.eq.s32.totalorder %s16, 1
    %p125 = por %p123, %p124
    %p127 = scmp.ne.s32.totalorder %s110, %s126
    %p128 = scmp.eq.s32.totalorder %s16, 0
    %p129 = por %p127, %p128
    %s131 = sadd.s32 %s130, 1
    %p134 = scmp.eq.s32.totalorder %s10, 1
    %p135 = scmp.ne.s32.totalorder %s130, %s132
    %p136 = scmp.eq.s32.totalorder %s10, 0
    %p137 = por %p135, %p136
    %p138 = scmp.ne.s32.totalorder %s130, %s132
    %p139 = scmp.eq.s32.totalorder %s15, 1
    %p140 = por %p138, %p139
    %p141 = scmp.ne.s32.totalorder %s132, %s133
    %p142 = scmp.eq.s32.totalorder %s15, 0
    %p143 = por %p141, %p142
    %p144 = scmp.ne.s32.totalorder %s132, %s133
    %p145 = scmp.eq.s32.totalorder %s16, 1
    %p146 = por %p144, %p145
    %p148 = scmp.ne.s32.totalorder %s133, %s147
    %p149 = scmp.eq.s32.totalorder %s16, 0
    %p150 = por %p148, %p149
    %s151 = ssub.s32 %s17, %s29
    %s152 = ssub.s32 %s18, %s25
    %s153 = sor.u32 %s151, %s152
    %p154 = scmp.eq.s32.totalorder %s153, 0
    %s156 = sadd.s32 %s155, 1
    %s157 = scalar_select %p154, %s155, %s156
    %p160 = pneg %p154
    %p161 = scmp.eq.s32.totalorder %s10, 1
    %p162 = por %p160, %p161
    %p163 = scmp.ne.s32.totalorder %s155, %s158
    %p164 = scmp.eq.s32.totalorder %s10, 0
    %p165 = por %p163, %p164
    %p166 = scmp.ne.s32.totalorder %s155, %s158
    %p167 = scmp.eq.s32.totalorder %s15, 1
    %p168 = por %p166, %p167
    %p169 = scmp.ne.s32.totalorder %s158, %s159
    %p170 = scmp.eq.s32.totalorder %s15, 0
    %p171 = por %p169, %p170
    %p172 = scmp.ne.s32.totalorder %s158, %s159
    %p173 = scmp.eq.s32.totalorder %s16, 1
    %p174 = por %p172, %p173
    %p176 = scmp.ne.s32.totalorder %s159, %s175
    %p177 = scmp.eq.s32.totalorder %s16, 0
    %p178 = por %p176, %p177
    %p179 = scmp.le.s32.totalorder 1, %s10
    %p180 = scmp.lt.s32.totalorder %s10, 3
    %p181 = pnand %p179, %p180
    %p182 = pneg %p181
    // Predicated region
    $region9: #{densenet_forward.22} parent=5 // pred_check
      _
    $region10: #{densenet_forward.22} parent=5 // pred_check_branch
      %184 = sbr.rel (%p181) target = $region12
    $region11: #{densenet_forward.22} parent=5 // pred_region
      %s185 = ssub.s32 %s10, 1
      // Predicated region
      $region13: #{densenet_forward.22} parent=11 // pred_check
        %p186 = pneg %p143
      $region14: #{densenet_forward.22} parent=11 // pred_check_branch
        %188 = sbr.rel (%p186) target = $region16
      $region15: #{densenet_forward.22} parent=11 // pred_region
        _
      $region16: #{densenet_forward.22} parent=11 // pred_fallthru
        _
    $region12: #{densenet_forward.22} parent=5 // pred_fallthru
      _
    %p189 = scmp.lt.s32.totalorder %s10, 2
    // Predicated region
    $region17: #{densenet_forward.22} parent=5 // pred_check
      %p190 = pneg %p189
    $region18: #{densenet_forward.22} parent=5 // pred_check_branch
      %192 = sbr.rel (%p190) target = $region20
    $region19: #{densenet_forward.22} parent=5 // pred_region
      // Predicated region
      $region21: #{densenet_forward.22} parent=19 // pred_check
        %p193 = pneg %p52
      $region22: #{densenet_forward.22} parent=19 // pred_check_branch
        %195 = sbr.rel (%p193) target = $region24
      $region23: #{densenet_forward.22} parent=19 // pred_region
        %s196 = smul.u32 %s18, 8
        %s197 = sadd.s32 %s196, 4294967295
        %p198 = scmp.gt.s32.totalorder %s197, 0
        %s199 = scalar_select %p198, %s197, 0
        %p200 = scmp.lt.s32.totalorder %s17, 1
        %s201 = scalar_select %p200, %s17, 1
        %p202 = scmp.lt.s32.totalorder %s199, 7
        %s203 = scalar_select %p202, %s199, 7
        %s204 = smul.addr %s201, 8
        %s205 = sadd.s32 %s203, %s204
        %s206 = smul.addr %s205, 4
        %s207 = scalar_lea.vmem %s0, %s206
        %s208 = smul.u32 %s18, 8
        %s209 = sadd.s32 %s208, 4294967295
        %p210 = scmp.gt.s32.totalorder %s209, 0
        %s211 = scalar_select %p210, %s209, 0
      $region24: #{densenet_forward.22} parent=19 // pred_fallthru
        _
      // Predicated region
      $region25: #{densenet_forward.22} parent=19 // pred_check
        %p212 = pneg %p80
      $region26: #{densenet_forward.22} parent=19 // pred_check_branch
        %214 = sbr.rel (%p212) target = $region28
      $region27: #{densenet_forward.22} parent=19 // pred_region
        %s215 = smul.u32 8, %s18
        %p216 = scmp.lt.s32.totalorder %s17, 1
        %s217 = scalar_select %p216, %s17, 1
        %p218 = scmp.lt.s32.totalorder %s215, 7
        %s219 = scalar_select %p218, %s215, 7
        %s220 = smul.addr %s217, 8
        %s221 = sadd.s32 %s219, %s220
        %s222 = smul.addr %s221, 4
        %s223 = scalar_lea.vmem %s1, %s222
        %s224 = smul.u32 8, %s18
      $region28: #{densenet_forward.22} parent=19 // pred_fallthru
        _
      // Predicated region
      $region29: #{densenet_forward.22} parent=19 // pred_check
        %p225 = pneg %p116
      $region30: #{densenet_forward.22} parent=19 // pred_check_branch
        %227 = sbr.rel (%p225) target = $region32
      $region31: #{densenet_forward.22} parent=19 // pred_region
        %s228 = smul.u32 %s18, 8
        %s229 = sadd.s32 %s228, 8
        %p230 = scmp.lt.s32.totalorder %s229, 7
        %s231 = scalar_select %p230, %s229, 7
        %p232 = scmp.lt.s32.totalorder %s17, 1
        %s233 = scalar_select %p232, %s17, 1
        %p234 = scmp.lt.s32.totalorder %s231, 7
        %s235 = scalar_select %p234, %s231, 7
        %s236 = smul.addr %s233, 8
        %s237 = sadd.s32 %s235, %s236
        %s238 = smul.addr %s237, 4
        %s239 = scalar_lea.vmem %s2, %s238
        %s240 = smul.u32 %s18, 8
        %s241 = sadd.s32 %s240, 8
        %p242 = scmp.lt.s32.totalorder %s241, 7
        %s243 = scalar_select %p242, %s241, 7
      $region32: #{densenet_forward.22} parent=19 // pred_fallthru
        _
    $region20: #{densenet_forward.22} parent=5 // pred_fallthru
      _
    %p244 = scmp.le.s32.totalorder 1, %s10
    %p245 = scmp.lt.s32.totalorder %s10, 3
    %p246 = pnand %p244, %p245
    %p247 = pneg %p246
    // Predicated region
    $region33: #{densenet_forward.22} parent=5 // pred_check
      _
    $region34: #{densenet_forward.22} parent=5 // pred_check_branch
      %249 = sbr.rel (%p246) target = $region36
    $region35: #{densenet_forward.22} parent=5 // pred_region
      %s250 = ssub.s32 %s10, 1
      %s251 = smul.u32 %s20, 8
      %s252 = sadd.s32 %s251, 4294967295
      %p253 = scmp.gt.s32.totalorder %s252, 0
      %s254 = scalar_select %p253, %s252, 0
      %p255 = scmp.lt.s32.totalorder %s19, 1
      %s256 = scalar_select %p255, %s19, 1
      %p257 = scmp.lt.s32.totalorder %s254, 7
      %s258 = scalar_select %p257, %s254, 7
      %s259 = smul.addr %s256, 8
      %s260 = sadd.s32 %s258, %s259
      %s261 = smul.addr %s260, 4
      %s262 = scalar_lea.vmem %s0, %s261
      %p263 = pneg %p58
      %p264 = pneg %p55
      %s265 = smul.u32 8, %s20
      %p266 = scmp.lt.s32.totalorder %s19, 1
      %s267 = scalar_select %p266, %s19, 1
      %p268 = scmp.lt.s32.totalorder %s265, 7
      %s269 = scalar_select %p268, %s265, 7
      %s270 = smul.addr %s267, 8
      %s271 = sadd.s32 %s269, %s270
      %s272 = smul.addr %s271, 4
      %s273 = scalar_lea.vmem %s1, %s272
      %p274 = pneg %p86
      %p275 = pneg %p83
      %s276 = smul.u32 %s20, 8
      %s277 = sadd.s32 %s276, 8
      %p278 = scmp.lt.s32.totalorder %s277, 7
      %s279 = scalar_select %p278, %s277, 7
      %p280 = scmp.lt.s32.totalorder %s19, 1
      %s281 = scalar_select %p280, %s19, 1
      %p282 = scmp.lt.s32.totalorder %s279, 7
      %s283 = scalar_select %p282, %s279, 7
      %s284 = smul.addr %s281, 8
      %s285 = sadd.s32 %s283, %s284
      %s286 = smul.addr %s285, 4
      %s287 = scalar_lea.vmem %s2, %s286
      %p288 = pneg %p122
      %p289 = pneg %p119
      %p290 = pneg %p143
      %p291 = pneg %p140
      %p292 = pneg %p171
      %p293 = pneg %p168
      %s294 = smul.u32 8, %s20
      %p295 = scmp.lt.s32.totalorder %s19, 1
      %s296 = scalar_select %p295, %s19, 1
      %p297 = scmp.lt.s32.totalorder %s294, 7
      %s298 = scalar_select %p297, %s294, 7
      %s299 = smul.addr %s296, 8
      %s300 = sadd.s32 %s298, %s299
      %s301 = smul.addr %s300, 4
      %s302 = scalar_lea.vmem %s4, %s301
      %s303 = smul.u32 %s20, 8
      %s304 = sadd.s32 %s303, 4294967295
      %p305 = scmp.gt.s32.totalorder %s304, 0
      %s306 = scalar_select %p305, %s304, 0
      %p307 = scmp.lt.s32.totalorder %s19, 1
      %s308 = scalar_select %p307, %s19, 1
      %p309 = scmp.lt.s32.totalorder %s306, 7
      %s310 = scalar_select %p309, %s306, 7
      %s311 = smul.addr %s308, 8
      %s312 = sadd.s32 %s310, %s311
      %s313 = smul.addr %s312, 4
      %s314 = scalar_lea.vmem %s0, %s313
      %s315 = smul.u32 %s20, 8
      %s316 = sadd.s32 %s315, 4294967295
      %p317 = scmp.gt.s32.totalorder %s316, 0
      %s318 = scalar_select %p317, %s316, 0
      %s319 = smul.u32 8, %s20
      %p320 = scmp.lt.s32.totalorder %s19, 1
      %s321 = scalar_select %p320, %s19, 1
      %p322 = scmp.lt.s32.totalorder %s319, 7
      %s323 = scalar_select %p322, %s319, 7
      %s324 = smul.addr %s321, 8
      %s325 = sadd.s32 %s323, %s324
      %s326 = smul.addr %s325, 4
      %s327 = scalar_lea.vmem %s1, %s326
      %s328 = smul.u32 8, %s20
      %s329 = smul.u32 %s20, 8
      %s330 = sadd.s32 %s329, 8
      %p331 = scmp.lt.s32.totalorder %s330, 7
      %s332 = scalar_select %p331, %s330, 7
      %p333 = scmp.lt.s32.totalorder %s19, 1
      %s334 = scalar_select %p333, %s19, 1
      %p335 = scmp.lt.s32.totalorder %s332, 7
      %s336 = scalar_select %p335, %s332, 7
      %s337 = smul.addr %s334, 8
      %s338 = sadd.s32 %s336, %s337
      %s339 = smul.addr %s338, 4
      %s340 = scalar_lea.vmem %s2, %s339
      %s341 = smul.u32 %s20, 8
      %s342 = sadd.s32 %s341, 8
      %p343 = scmp.lt.s32.totalorder %s342, 7
      %s344 = scalar_select %p343, %s342, 7
      %s345 = smul.u32 8, %s20
      %p346 = scmp.lt.s32.totalorder %s19, 1
      %s347 = scalar_select %p346, %s19, 1
      %p348 = scmp.lt.s32.totalorder %s345, 7
      %s349 = scalar_select %p348, %s345, 7
      %s350 = smul.addr %s347, 8
      %s351 = sadd.s32 %s349, %s350
      %s352 = smul.addr %s351, 4
      %s353 = scalar_lea.vmem %s4, %s352
      %s354 = smul.u32 8, %s20
      %vm356 = vcmask 125952
      %357 = vst.msk [vmem:[#allocation2 + $0x4] sm:$0xf] %vm356, 0
      %358 = vst.msk [vmem:[#allocation2 + $0xc] sm:$0xf] %vm356, 0
      %359 = vst.msk [vmem:[#allocation2 + $0x14] sm:$0xf] %vm356, 0
      %360 = vst.msk [vmem:[#allocation2 + $0x1c] sm:$0xf] %vm356, 0
      %361 = vst.msk [vmem:[#allocation2 + $0x24] sm:$0xf] %vm356, 0
      %362 = vst.msk [vmem:[#allocation2 + $0x2c] sm:$0xf] %vm356, 0
      %363 = vst.msk [vmem:[#allocation2 + $0x34] sm:$0xf] %vm356, 0
      %364 = vst.msk [vmem:[#allocation2 + $0x3c] sm:$0xf] %vm356, 0
      %365 = vst.msk [vmem:[#allocation2 + $0x44] sm:$0xf] %vm356, 0
      %366 = vst.msk [vmem:[#allocation2 + $0x4c] sm:$0xf] %vm356, 0
      %v367 = vld [vmem:[%s327] sm:$0xf]
      %v368 = vld [vmem:[%s327 + $0x4] sm:$0xf]
      %v369 = vld [vmem:[%s327 + $0x8] sm:$0xf]
      %v370 = vld [vmem:[%s327 + $0xc] sm:$0xf]
      %v371 = vld [vmem:[%s327 + $0x10] sm:$0xf]
      %v372 = vld [vmem:[%s327 + $0x14] sm:$0xf]
      %v373 = vld [vmem:[%s327 + $0x18] sm:$0xf]
      %v374 = vld [vmem:[%s327 + $0x1c] sm:$0xf]
      %s375 = scalar_lea.vmem [#allocation2], 8
      %376 = vst.msk [vmem:[%s375] sm:$0xf] %vm356, %v367
      %377 = vst.msk [vmem:[%s375 + $0x8] sm:$0xf] %vm356, %v368
      %378 = vst.msk [vmem:[%s375 + $0x10] sm:$0xf] %vm356, %v369
      %379 = vst.msk [vmem:[%s375 + $0x18] sm:$0xf] %vm356, %v370
      %380 = vst.msk [vmem:[%s375 + $0x20] sm:$0xf] %vm356, %v371
      %381 = vst.msk [vmem:[%s375 + $0x28] sm:$0xf] %vm356, %v372
      %382 = vst.msk [vmem:[%s375 + $0x30] sm:$0xf] %vm356, %v373
      %383 = vst.msk [vmem:[%s375 + $0x38] sm:$0xf] %vm356, %v374
      %v384 = vld [vmem:[%s314] sm:$0xf]
      %s385 = smul.u32 %s20, 8
      %s386 = sadd.s32 %s385, 4294967295
      %p387 = scmp.ge.s32.totalorder %s386, 0
      %s388 = scalar_select %p387, 1, 0
      %v389 = vstv %s388
      %vm390 = vcmp.eq.s32.totalorder %v389, 1
      %v391 = vsel %vm390, %v384, 0
      %392 = vst.msk [vmem:[#allocation2] sm:$0xf] %vm356, %v391
      %v393 = vld [vmem:[%s340] sm:$0xf]
      %s394 = sadd.s32 %s385, 8
      %p395 = scmp.lt.s32.totalorder %s394, 8
      %s396 = scalar_select %p395, 1, 0
      %v397 = vstv %s396
      %vm398 = vcmp.eq.s32.totalorder %v397, 1
      %v399 = vsel %vm398, %v393, 0
      %s400 = scalar_lea.vmem [#allocation2], 72
      %401 = vst.msk [vmem:[%s400] sm:$0xf] %vm356, %v399
      %v402 = vld [vmem:[#allocation2] sm:$0xf]
      %v403 = vld [vmem:[#allocation2 + $0x4] sm:$0xf]
      %v404 = vld [vmem:[#allocation2 + $0x8] sm:$0xf]
      %v405 = vld [vmem:[#allocation2 + $0xc] sm:$0xf]
      %v406 = vld [vmem:[#allocation2 + $0x10] sm:$0xf]
      %v407 = vld [vmem:[#allocation2 + $0x14] sm:$0xf]
      %v408 = vld [vmem:[#allocation2 + $0x18] sm:$0xf]
      %v409 = vld [vmem:[#allocation2 + $0x1c] sm:$0xf]
      %v410 = vld [vmem:[#allocation2 + $0x20] sm:$0xf]
      %v411 = vld [vmem:[#allocation2 + $0x24] sm:$0xf]
      %v412 = vld [vmem:[#allocation2 + $0x28] sm:$0xf]
      %v413 = vld [vmem:[#allocation2 + $0x2c] sm:$0xf]
      %v414 = vld [vmem:[#allocation2 + $0x30] sm:$0xf]
      %v415 = vld [vmem:[#allocation2 + $0x34] sm:$0xf]
      %v416 = vld [vmem:[#allocation2 + $0x38] sm:$0xf]
      %v417 = vld [vmem:[#allocation2 + $0x3c] sm:$0xf]
      %v418 = vld [vmem:[%s3] sm:$0xf]
      %v419 = vld [vmem:[%s3 + $0x4] sm:$0xf]
      %v420 = vld [vmem:[%s375] sm:$0xf]
      %v421 = vld [vmem:[%s375 + $0x4] sm:$0xf]
      %v422 = vld [vmem:[%s375 + $0x8] sm:$0xf]
      %v423 = vld [vmem:[%s375 + $0xc] sm:$0xf]
      %v424 = vld [vmem:[%s375 + $0x10] sm:$0xf]
      %v425 = vld [vmem:[%s375 + $0x14] sm:$0xf]
      %v426 = vld [vmem:[%s375 + $0x18] sm:$0xf]
      %v427 = vld [vmem:[%s375 + $0x1c] sm:$0xf]
      %v428 = vld [vmem:[%s375 + $0x20] sm:$0xf]
      %v429 = vld [vmem:[%s375 + $0x24] sm:$0xf]
      %v430 = vld [vmem:[%s375 + $0x28] sm:$0xf]
      %v431 = vld [vmem:[%s375 + $0x2c] sm:$0xf]
      %v432 = vld [vmem:[%s375 + $0x30] sm:$0xf]
      %v433 = vld [vmem:[%s375 + $0x34] sm:$0xf]
      %v434 = vld [vmem:[%s375 + $0x38] sm:$0xf]
      %v435 = vld [vmem:[%s375 + $0x3c] sm:$0xf]
      %s436 = scalar_lea.vmem %s3, 8
      %v437 = vld [vmem:[%s436] sm:$0xf]
      %v438 = vld [vmem:[%s436 + $0x4] sm:$0xf]
      %v455 = vunpack.c.l.b16 %v420
      %v456 = vunpack.c.l.b16 %v421
      %v457 = vunpack.c.l.b16 %v422
      %v458 = vunpack.c.l.b16 %v423
      %v459 = vunpack.c.l.b16 %v424
      %v460 = vunpack.c.l.b16 %v425
      %v461 = vunpack.c.l.b16 %v426
      %v462 = vunpack.c.l.b16 %v427
      %v463 = vunpack.c.l.b16 %v428
      %v464 = vunpack.c.l.b16 %v429
      %v465 = vunpack.c.l.b16 %v430
      %v466 = vunpack.c.l.b16 %v431
      %v467 = vunpack.c.l.b16 %v432
      %v468 = vunpack.c.l.b16 %v433
      %v469 = vunpack.c.l.b16 %v434
      %v470 = vunpack.c.l.b16 %v435
      %v471 = vpack.c.b16 %v456, %v455
      %v472 = vpack.c.b16 %v458, %v457
      %v473 = vpack.c.b16 %v460, %v459
      %v474 = vpack.c.b16 %v462, %v461
      %v475 = vpack.c.b16 %v464, %v463
      %v476 = vpack.c.b16 %v466, %v465
      %v477 = vpack.c.b16 %v468, %v467
      %v478 = vpack.c.b16 %v470, %v469
      %v481 = vunpack.c.l.b16 %v437
      %v482 = vunpack.c.l.b16 %v438
      %v483 = vpack.c.b16 %v482, %v481
      %vm485 = vcmask 130048
      %v487 = vsel %vm485, %v471, 0
      %v490 = vsel %vm485, %v472, 0
      %v493 = vsel %vm485, %v473, 0
      %v496 = vsel %vm485, %v474, 0
      %v499 = vsel %vm485, %v475, 0
      %v502 = vsel %vm485, %v476, 0
      %v505 = vsel %vm485, %v477, 0
      %v508 = vsel %vm485, %v478, 0
      %510 = vmatprep.subr.bf16.mxu0 0
      %511 = vmatpush1.bf16.msra.mxu0 0
      %512 = vmatprep.subr.bf16.mxu0 0
      %513 = vmatpush1.bf16.msra.mxu0 0
      %514 = vmatprep.subr.bf16.mxu0 0
      %515 = vmatpush1.bf16.msra.mxu0 0
      %516 = vmatprep.subr.bf16.mxu0 0
      %517 = vmatpush1.bf16.msra.mxu0 0
      %518 = vmatprep.subr.bf16.mxu0 0
      %519 = vmatpush1.bf16.msra.mxu0 0
      %520 = vmatprep.subr.bf16.mxu0 0
      %521 = vmatpush1.bf16.msra.mxu0 0
      %522 = vmatprep.subr.bf16.mxu0 0
      %523 = vmatpush1.bf16.msra.mxu0 0
      %524 = vmatprep.subr.bf16.mxu0 0
      %525 = vmatpush1.bf16.msra.mxu0 %v483
      %526 = vmatprep.subr.bf16.mxu0 0
      %527 = vmatpush2.bf16.msra.mxu0 0
      %528 = vmatprep.subr.bf16.mxu0 0
      %529 = vmatpush2.bf16.msra.mxu0 0
      %530 = vmatprep.subr.bf16.mxu0 0
      %531 = vmatpush2.bf16.msra.mxu0 0
      %532 = vmatprep.subr.bf16.mxu0 0
      %533 = vmatpush2.bf16.msra.mxu0 0
      %534 = vmatprep.subr.bf16.mxu0 0
      %535 = vmatpush2.bf16.msra.mxu0 0
      %536 = vmatprep.subr.bf16.mxu0 0
      %537 = vmatpush2.bf16.msra.mxu0 0
      %538 = vmatprep.subr.bf16.mxu0 0
      %539 = vmatpush2.bf16.msra.mxu0 0
      %540 = vmatprep.subr.bf16.mxu0 0
      %541 = vmatpush2.bf16.msra.mxu0 0
      %542 = vmatprep.mubr.bf16.mxu0 0
      %543 = vmatmul.mubr.bf16.gmra.mxu0 %v487
      %v544 = vpop.f32.mrf.mxu0
      %v545 = vadd.f32 0.0, %v544
      %v546 = vpop.f32.mrf.mxu0
      %v547 = vpop.f32.mrf.mxu0
      %v548 = vadd.f32 0.0, %v547
      %v549 = vpop.f32.mrf.mxu0
      %550 = vmatprep.mubr.bf16.mxu0 0
      %551 = vmatmul.mubr.bf16.gmra.mxu0 %v490
      %v552 = vpop.f32.mrf.mxu0
      %v553 = vadd.f32 0.0, %v552
      %v554 = vpop.f32.mrf.mxu0
      %v555 = vpop.f32.mrf.mxu0
      %v556 = vadd.f32 0.0, %v555
      %v557 = vpop.f32.mrf.mxu0
      %558 = vmatprep.mubr.bf16.mxu0 0
      %559 = vmatmul.mubr.bf16.gmra.mxu0 %v493
      %v560 = vpop.f32.mrf.mxu0
      %v561 = vadd.f32 0.0, %v560
      %v562 = vpop.f32.mrf.mxu0
      %v563 = vpop.f32.mrf.mxu0
      %v564 = vadd.f32 0.0, %v563
      %v565 = vpop.f32.mrf.mxu0
      %566 = vmatprep.mubr.bf16.mxu0 0
      %567 = vmatmul.mubr.bf16.gmra.mxu0 %v496
      %v568 = vpop.f32.mrf.mxu0
      %v569 = vadd.f32 0.0, %v568
      %v570 = vpop.f32.mrf.mxu0
      %v571 = vpop.f32.mrf.mxu0
      %v572 = vadd.f32 0.0, %v571
      %v573 = vpop.f32.mrf.mxu0
      %574 = vmatprep.mubr.bf16.mxu0 0
      %575 = vmatmul.mubr.bf16.gmra.mxu0 %v499
      %v576 = vpop.f32.mrf.mxu0
      %v577 = vadd.f32 0.0, %v576
      %v578 = vpop.f32.mrf.mxu0
      %v579 = vpop.f32.mrf.mxu0
      %v580 = vadd.f32 0.0, %v579
      %v581 = vpop.f32.mrf.mxu0
      %582 = vmatprep.mubr.bf16.mxu0 0
      %583 = vmatmul.mubr.bf16.gmra.mxu0 %v502
      %v584 = vpop.f32.mrf.mxu0
      %v585 = vadd.f32 0.0, %v584
      %v586 = vpop.f32.mrf.mxu0
      %v587 = vpop.f32.mrf.mxu0
      %v588 = vadd.f32 0.0, %v587
      %v589 = vpop.f32.mrf.mxu0
      %590 = vmatprep.mubr.bf16.mxu0 0
      %591 = vmatmul.mubr.bf16.gmra.mxu0 %v505
      %v592 = vpop.f32.mrf.mxu0
      %v593 = vadd.f32 0.0, %v592
      %v594 = vpop.f32.mrf.mxu0
      %v595 = vpop.f32.mrf.mxu0
      %v596 = vadd.f32 0.0, %v595
      %v597 = vpop.f32.mrf.mxu0
      %598 = vmatprep.mubr.bf16.mxu0 0
      %599 = vmatmul.mubr.bf16.gmra.mxu0 %v508
      %v600 = vpop.f32.mrf.mxu0
      %v601 = vadd.f32 0.0, %v600
      %v602 = vpop.f32.mrf.mxu0
      %v603 = vpop.f32.mrf.mxu0
      %v604 = vadd.f32 0.0, %v603
      %v605 = vpop.f32.mrf.mxu0
      %606 = vdwg.mxu0
      %v623 = vunpack.c.l.b16 %v402
      %v624 = vunpack.c.l.b16 %v403
      %v625 = vunpack.c.l.b16 %v404
      %v626 = vunpack.c.l.b16 %v405
      %v627 = vunpack.c.l.b16 %v406
      %v628 = vunpack.c.l.b16 %v407
      %v629 = vunpack.c.l.b16 %v408
      %v630 = vunpack.c.l.b16 %v409
      %v631 = vunpack.c.l.b16 %v410
      %v632 = vunpack.c.l.b16 %v411
      %v633 = vunpack.c.l.b16 %v412
      %v634 = vunpack.c.l.b16 %v413
      %v635 = vunpack.c.l.b16 %v414
      %v636 = vunpack.c.l.b16 %v415
      %v637 = vunpack.c.l.b16 %v416
      %v638 = vunpack.c.l.b16 %v417
      %v639 = vpack.c.b16 %v624, %v623
      %v640 = vpack.c.b16 %v626, %v625
      %v641 = vpack.c.b16 %v628, %v627
      %v642 = vpack.c.b16 %v630, %v629
      %v643 = vpack.c.b16 %v632, %v631
      %v644 = vpack.c.b16 %v634, %v633
      %v645 = vpack.c.b16 %v636, %v635
      %v646 = vpack.c.b16 %v638, %v637
      %v649 = vunpack.c.l.b16 %v418
      %v650 = vunpack.c.l.b16 %v419
      %v651 = vpack.c.b16 %v650, %v649
      %v654 = vsel %vm485, %v639, 0
      %v657 = vsel %vm485, %v640, 0
      %v660 = vsel %vm485, %v641, 0
      %v663 = vsel %vm485, %v642, 0
      %v666 = vsel %vm485, %v643, 0
      %v669 = vsel %vm485, %v644, 0
      %v672 = vsel %vm485, %v645, 0
      %v675 = vsel %vm485, %v646, 0
      %677 = vmatprep.subr.bf16.mxu0 0
      %678 = vmatpush1.bf16.msra.mxu0 0
      %679 = vmatprep.subr.bf16.mxu0 0
      %680 = vmatpush1.bf16.msra.mxu0 0
      %681 = vmatprep.subr.bf16.mxu0 0
      %682 = vmatpush1.bf16.msra.mxu0 0
      %683 = vmatprep.subr.bf16.mxu0 0
      %684 = vmatpush1.bf16.msra.mxu0 0
      %685 = vmatprep.subr.bf16.mxu0 0
      %686 = vmatpush1.bf16.msra.mxu0 0
      %687 = vmatprep.subr.bf16.mxu0 0
      %688 = vmatpush1.bf16.msra.mxu0 0
      %689 = vmatprep.subr.bf16.mxu0 0
      %690 = vmatpush1.bf16.msra.mxu0 0
      %691 = vmatprep.subr.bf16.mxu0 0
      %692 = vmatpush1.bf16.msra.mxu0 %v651
      %693 = vmatprep.subr.bf16.mxu0 0
      %694 = vmatpush2.bf16.msra.mxu0 0
      %695 = vmatprep.subr.bf16.mxu0 0
      %696 = vmatpush2.bf16.msra.mxu0 0
      %697 = vmatprep.subr.bf16.mxu0 0
      %698 = vmatpush2.bf16.msra.mxu0 0
      %699 = vmatprep.subr.bf16.mxu0 0
      %700 = vmatpush2.bf16.msra.mxu0 0
      %701 = vmatprep.subr.bf16.mxu0 0
      %702 = vmatpush2.bf16.msra.mxu0 0
      %703 = vmatprep.subr.bf16.mxu0 0
      %704 = vmatpush2.bf16.msra.mxu0 0
      %705 = vmatprep.subr.bf16.mxu0 0
      %706 = vmatpush2.bf16.msra.mxu0 0
      %707 = vmatprep.subr.bf16.mxu0 0
      %708 = vmatpush2.bf16.msra.mxu0 0
      %709 = vmatprep.mubr.bf16.mxu0 0
      %710 = vmatmul.mubr.bf16.gmra.mxu0 %v654
      %v711 = vpop.f32.mrf.mxu0
      %v712 = vadd.f32 %v545, %v711
      %v713 = vpop.f32.mrf.mxu0
      %v714 = vpop.f32.mrf.mxu0
      %v715 = vadd.f32 %v548, %v714
      %v716 = vpop.f32.mrf.mxu0
      %717 = vmatprep.mubr.bf16.mxu0 0
      %718 = vmatmul.mubr.bf16.gmra.mxu0 %v657
      %v719 = vpop.f32.mrf.mxu0
      %v720 = vadd.f32 %v553, %v719
      %v721 = vpop.f32.mrf.mxu0
      %v722 = vpop.f32.mrf.mxu0
      %v723 = vadd.f32 %v556, %v722
      %v724 = vpop.f32.mrf.mxu0
      %725 = vmatprep.mubr.bf16.mxu0 0
      %726 = vmatmul.mubr.bf16.gmra.mxu0 %v660
      %v727 = vpop.f32.mrf.mxu0
      %v728 = vadd.f32 %v561, %v727
      %v729 = vpop.f32.mrf.mxu0
      %v730 = vpop.f32.mrf.mxu0
      %v731 = vadd.f32 %v564, %v730
      %v732 = vpop.f32.mrf.mxu0
      %733 = vmatprep.mubr.bf16.mxu0 0
      %734 = vmatmul.mubr.bf16.gmra.mxu0 %v663
      %v735 = vpop.f32.mrf.mxu0
      %v736 = vadd.f32 %v569, %v735
      %v737 = vpop.f32.mrf.mxu0
      %v738 = vpop.f32.mrf.mxu0
      %v739 = vadd.f32 %v572, %v738
      %v740 = vpop.f32.mrf.mxu0
      %741 = vmatprep.mubr.bf16.mxu0 0
      %742 = vmatmul.mubr.bf16.gmra.mxu0 %v666
      %v743 = vpop.f32.mrf.mxu0
      %v744 = vadd.f32 %v577, %v743
      %v745 = vpop.f32.mrf.mxu0
      %v746 = vpop.f32.mrf.mxu0
      %v747 = vadd.f32 %v580, %v746
      %v748 = vpop.f32.mrf.mxu0
      %749 = vmatprep.mubr.bf16.mxu0 0
      %750 = vmatmul.mubr.bf16.gmra.mxu0 %v669
      %v751 = vpop.f32.mrf.mxu0
      %v752 = vadd.f32 %v585, %v751
      %v753 = vpop.f32.mrf.mxu0
      %v754 = vpop.f32.mrf.mxu0
      %v755 = vadd.f32 %v588, %v754
      %v756 = vpop.f32.mrf.mxu0
      %757 = vmatprep.mubr.bf16.mxu0 0
      %758 = vmatmul.mubr.bf16.gmra.mxu0 %v672
      %v759 = vpop.f32.mrf.mxu0
      %v760 = vadd.f32 %v593, %v759
      %v761 = vpop.f32.mrf.mxu0
      %v762 = vpop.f32.mrf.mxu0
      %v763 = vadd.f32 %v596, %v762
      %v764 = vpop.f32.mrf.mxu0
      %765 = vmatprep.mubr.bf16.mxu0 0
      %766 = vmatmul.mubr.bf16.gmra.mxu0 %v675
      %v767 = vpop.f32.mrf.mxu0
      %v768 = vadd.f32 %v601, %v767
      %v769 = vpop.f32.mrf.mxu0
      %v770 = vpop.f32.mrf.mxu0
      %v771 = vadd.f32 %v604, %v770
      %v772 = vpop.f32.mrf.mxu0
      %773 = vdwg.mxu0
      %s774 = scalar_lea.vmem [#allocation2], 16
      %v775 = vld [vmem:[%s774] sm:$0xf]
      %v776 = vld [vmem:[%s774 + $0x4] sm:$0xf]
      %v777 = vld [vmem:[%s774 + $0x8] sm:$0xf]
      %v778 = vld [vmem:[%s774 + $0xc] sm:$0xf]
      %v779 = vld [vmem:[%s774 + $0x10] sm:$0xf]
      %v780 = vld [vmem:[%s774 + $0x14] sm:$0xf]
      %v781 = vld [vmem:[%s774 + $0x18] sm:$0xf]
      %v782 = vld [vmem:[%s774 + $0x1c] sm:$0xf]
      %v783 = vld [vmem:[%s774 + $0x20] sm:$0xf]
      %v784 = vld [vmem:[%s774 + $0x24] sm:$0xf]
      %v785 = vld [vmem:[%s774 + $0x28] sm:$0xf]
      %v786 = vld [vmem:[%s774 + $0x2c] sm:$0xf]
      %v787 = vld [vmem:[%s774 + $0x30] sm:$0xf]
      %v788 = vld [vmem:[%s774 + $0x34] sm:$0xf]
      %v789 = vld [vmem:[%s774 + $0x38] sm:$0xf]
      %v790 = vld [vmem:[%s774 + $0x3c] sm:$0xf]
      %s791 = scalar_lea.vmem %s3, 16
      %v792 = vld [vmem:[%s791] sm:$0xf]
      %v793 = vld [vmem:[%s791 + $0x4] sm:$0xf]
      %v810 = vunpack.c.l.b16 %v775
      %v811 = vunpack.c.l.b16 %v776
      %v812 = vunpack.c.l.b16 %v777
      %v813 = vunpack.c.l.b16 %v778
      %v814 = vunpack.c.l.b16 %v779
      %v815 = vunpack.c.l.b16 %v780
      %v816 = vunpack.c.l.b16 %v781
      %v817 = vunpack.c.l.b16 %v782
      %v818 = vunpack.c.l.b16 %v783
      %v819 = vunpack.c.l.b16 %v784
      %v820 = vunpack.c.l.b16 %v785
      %v821 = vunpack.c.l.b16 %v786
      %v822 = vunpack.c.l.b16 %v787
      %v823 = vunpack.c.l.b16 %v788
      %v824 = vunpack.c.l.b16 %v789
      %v825 = vunpack.c.l.b16 %v790
      %v826 = vpack.c.b16 %v811, %v810
      %v827 = vpack.c.b16 %v813, %v812
      %v828 = vpack.c.b16 %v815, %v814
      %v829 = vpack.c.b16 %v817, %v816
      %v830 = vpack.c.b16 %v819, %v818
      %v831 = vpack.c.b16 %v821, %v820
      %v832 = vpack.c.b16 %v823, %v822
      %v833 = vpack.c.b16 %v825, %v824
      %v836 = vunpack.c.l.b16 %v792
      %v837 = vunpack.c.l.b16 %v793
      %v838 = vpack.c.b16 %v837, %v836
      %v841 = vsel %vm485, %v826, 0
      %v844 = vsel %vm485, %v827, 0
      %v847 = vsel %vm485, %v828, 0
      %v850 = vsel %vm485, %v829, 0
      %v853 = vsel %vm485, %v830, 0
      %v856 = vsel %vm485, %v831, 0
      %v859 = vsel %vm485, %v832, 0
      %v862 = vsel %vm485, %v833, 0
      %864 = vmatprep.subr.bf16.mxu0 0
      %865 = vmatpush1.bf16.msra.mxu0 0
      %866 = vmatprep.subr.bf16.mxu0 0
      %867 = vmatpush1.bf16.msra.mxu0 0
      %868 = vmatprep.subr.bf16.mxu0 0
      %869 = vmatpush1.bf16.msra.mxu0 0
      %870 = vmatprep.subr.bf16.mxu0 0
      %871 = vmatpush1.bf16.msra.mxu0 0
      %872 = vmatprep.subr.bf16.mxu0 0
      %873 = vmatpush1.bf16.msra.mxu0 0
      %874 = vmatprep.subr.bf16.mxu0 0
      %875 = vmatpush1.bf16.msra.mxu0 0
      %876 = vmatprep.subr.bf16.mxu0 0
      %877 = vmatpush1.bf16.msra.mxu0 0
      %878 = vmatprep.subr.bf16.mxu0 0
      %879 = vmatpush1.bf16.msra.mxu0 %v838
      %880 = vmatprep.subr.bf16.mxu0 0
      %881 = vmatpush2.bf16.msra.mxu0 0
      %882 = vmatprep.subr.bf16.mxu0 0
      %883 = vmatpush2.bf16.msra.mxu0 0
      %884 = vmatprep.subr.bf16.mxu0 0
      %885 = vmatpush2.bf16.msra.mxu0 0
      %886 = vmatprep.subr.bf16.mxu0 0
      %887 = vmatpush2.bf16.msra.mxu0 0
      %888 = vmatprep.subr.bf16.mxu0 0
      %889 = vmatpush2.bf16.msra.mxu0 0
      %890 = vmatprep.subr.bf16.mxu0 0
      %891 = vmatpush2.bf16.msra.mxu0 0
      %892 = vmatprep.subr.bf16.mxu0 0
      %893 = vmatpush2.bf16.msra.mxu0 0
      %894 = vmatprep.subr.bf16.mxu0 0
      %895 = vmatpush2.bf16.msra.mxu0 0
      %896 = vmatprep.mubr.bf16.mxu0 0
      %897 = vmatmul.mubr.bf16.gmra.mxu0 %v841
      %v898 = vpop.f32.mrf.mxu0
      %v899 = vadd.f32 0.0, %v898
      %v900 = vpop.f32.mrf.mxu0
      %v901 = vpop.f32.mrf.mxu0
      %v902 = vadd.f32 0.0, %v901
      %v903 = vpop.f32.mrf.mxu0
      %904 = vmatprep.mubr.bf16.mxu0 0
      %905 = vmatmul.mubr.bf16.gmra.mxu0 %v844
      %v906 = vpop.f32.mrf.mxu0
      %v907 = vadd.f32 0.0, %v906
      %v908 = vpop.f32.mrf.mxu0
      %v909 = vpop.f32.mrf.mxu0
      %v910 = vadd.f32 0.0, %v909
      %v911 = vpop.f32.mrf.mxu0
      %912 = vmatprep.mubr.bf16.mxu0 0
      %913 = vmatmul.mubr.bf16.gmra.mxu0 %v847
      %v914 = vpop.f32.mrf.mxu0
      %v915 = vadd.f32 0.0, %v914
      %v916 = vpop.f32.mrf.mxu0
      %v917 = vpop.f32.mrf.mxu0
      %v918 = vadd.f32 0.0, %v917
      %v919 = vpop.f32.mrf.mxu0
      %920 = vmatprep.mubr.bf16.mxu0 0
      %921 = vmatmul.mubr.bf16.gmra.mxu0 %v850
      %v922 = vpop.f32.mrf.mxu0
      %v923 = vadd.f32 0.0, %v922
      %v924 = vpop.f32.mrf.mxu0
      %v925 = vpop.f32.mrf.mxu0
      %v926 = vadd.f32 0.0, %v925
      %v927 = vpop.f32.mrf.mxu0
      %928 = vmatprep.mubr.bf16.mxu0 0
      %929 = vmatmul.mubr.bf16.gmra.mxu0 %v853
      %v930 = vpop.f32.mrf.mxu0
      %v931 = vadd.f32 0.0, %v930
      %v932 = vpop.f32.mrf.mxu0
      %v933 = vpop.f32.mrf.mxu0
      %v934 = vadd.f32 0.0, %v933
      %v935 = vpop.f32.mrf.mxu0
      %936 = vmatprep.mubr.bf16.mxu0 0
      %937 = vmatmul.mubr.bf16.gmra.mxu0 %v856
      %v938 = vpop.f32.mrf.mxu0
      %v939 = vadd.f32 0.0, %v938
      %v940 = vpop.f32.mrf.mxu0
      %v941 = vpop.f32.mrf.mxu0
      %v942 = vadd.f32 0.0, %v941
      %v943 = vpop.f32.mrf.mxu0
      %944 = vmatprep.mubr.bf16.mxu0 0
      %945 = vmatmul.mubr.bf16.gmra.mxu0 %v859
      %v946 = vpop.f32.mrf.mxu0
      %v947 = vadd.f32 0.0, %v946
      %v948 = vpop.f32.mrf.mxu0
      %v949 = vpop.f32.mrf.mxu0
      %v950 = vadd.f32 0.0, %v949
      %v951 = vpop.f32.mrf.mxu0
      %952 = vmatprep.mubr.bf16.mxu0 0
      %953 = vmatmul.mubr.bf16.gmra.mxu0 %v862
      %v954 = vpop.f32.mrf.mxu0
      %v955 = vadd.f32 0.0, %v954
      %v956 = vpop.f32.mrf.mxu0
      %v957 = vpop.f32.mrf.mxu0
      %v958 = vadd.f32 0.0, %v957
      %v959 = vpop.f32.mrf.mxu0
      %960 = vdwg.mxu0
      %v961 = vadd.f32 %v712, %v899
      %v962 = vadd.f32 %v715, %v902
      %v963 = vadd.f32 %v720, %v907
      %v964 = vadd.f32 %v723, %v910
      %v965 = vadd.f32 %v728, %v915
      %v966 = vadd.f32 %v731, %v918
      %v967 = vadd.f32 %v736, %v923
      %v968 = vadd.f32 %v739, %v926
      %v969 = vadd.f32 %v744, %v931
      %v970 = vadd.f32 %v747, %v934
      %v971 = vadd.f32 %v752, %v939
      %v972 = vadd.f32 %v755, %v942
      %v973 = vadd.f32 %v760, %v947
      %v974 = vadd.f32 %v763, %v950
      %v975 = vadd.f32 %v768, %v955
      %v976 = vadd.f32 %v771, %v958
      %v977 = vrot.slane %v961, 7
      %v978 = vrot.slane %v962, 7
      %v979 = vrot.slane %v963, 7
      %v980 = vrot.slane %v964, 7
      %v981 = vrot.slane %v965, 7
      %v982 = vrot.slane %v966, 7
      %v983 = vrot.slane %v967, 7
      %v984 = vrot.slane %v968, 7
      %v985 = vrot.slane %v969, 7
      %v986 = vrot.slane %v970, 7
      %v987 = vrot.slane %v971, 7
      %v988 = vrot.slane %v972, 7
      %v989 = vrot.slane %v973, 7
      %v990 = vrot.slane %v974, 7
      %v991 = vrot.slane %v975, 7
      %v992 = vrot.slane %v976, 7
      %v993 = vlaneseq
      %v994 = vshrl.u32 %v993, 7
      %vm995 = vcmp.lt.s32.totalorder %v994, 1
      %v996 = vsel %vm995, %v990, %v991
      %v997 = vsel %vm995, %v988, %v989
      %v998 = vsel %vm995, %v986, %v987
      %v999 = vsel %vm995, %v984, %v985
      %v1000 = vsel %vm995, %v982, %v983
      %v1001 = vsel %vm995, %v980, %v981
      %v1002 = vsel %vm995, %v978, %v979
      %v1003 = vsel %vm995, %v992, %v977
      %1012 = vrot.lane.b32.xlu0 %v1003, 8
      %v1013 = vpop.permute.xlu0 %1012
      %1014 = vrot.lane.b32.xlu0 %v1002, 8
      %v1015 = vpop.permute.xlu0 %1014
      %1016 = vrot.lane.b32.xlu0 %v1001, 8
      %v1017 = vpop.permute.xlu0 %1016
      %1018 = vrot.lane.b32.xlu0 %v1000, 8
      %v1019 = vpop.permute.xlu0 %1018
      %1020 = vrot.lane.b32.xlu0 %v999, 8
      %v1021 = vpop.permute.xlu0 %1020
      %1022 = vrot.lane.b32.xlu0 %v998, 8
      %v1023 = vpop.permute.xlu0 %1022
      %1024 = vrot.lane.b32.xlu0 %v997, 8
      %v1025 = vpop.permute.xlu0 %1024
      %1026 = vrot.lane.b32.xlu0 %v996, 8
      %v1027 = vpop.permute.xlu0 %1026
      %v1036 = vadd.f32 %v961, %v1013
      %v1037 = vadd.f32 %v963, %v1015
      %v1038 = vadd.f32 %v965, %v1017
      %v1039 = vadd.f32 %v967, %v1019
      %v1040 = vadd.f32 %v969, %v1021
      %v1041 = vadd.f32 %v971, %v1023
      %v1042 = vadd.f32 %v973, %v1025
      %v1043 = vadd.f32 %v975, %v1027
      %1060 = vrot.lane.b32.xlu0 %v961, 112
      %v1061 = vpop.permute.xlu0 %1060
      %1062 = vrot.lane.b32.xlu0 %v962, 112
      %v1063 = vpop.permute.xlu0 %1062
      %1064 = vrot.lane.b32.xlu0 %v963, 112
      %v1065 = vpop.permute.xlu0 %1064
      %1066 = vrot.lane.b32.xlu0 %v964, 112
      %v1067 = vpop.permute.xlu0 %1066
      %1068 = vrot.lane.b32.xlu0 %v965, 112
      %v1069 = vpop.permute.xlu0 %1068
      %1070 = vrot.lane.b32.xlu0 %v966, 112
      %v1071 = vpop.permute.xlu0 %1070
      %1072 = vrot.lane.b32.xlu0 %v967, 112
      %v1073 = vpop.permute.xlu0 %1072
      %1074 = vrot.lane.b32.xlu0 %v968, 112
      %v1075 = vpop.permute.xlu0 %1074
      %1076 = vrot.lane.b32.xlu0 %v969, 112
      %v1077 = vpop.permute.xlu0 %1076
      %1078 = vrot.lane.b32.xlu0 %v970, 112
      %v1079 = vpop.permute.xlu0 %1078
      %1080 = vrot.lane.b32.xlu0 %v971, 112
      %v1081 = vpop.permute.xlu0 %1080
      %1082 = vrot.lane.b32.xlu0 %v972, 112
      %v1083 = vpop.permute.xlu0 %1082
      %1084 = vrot.lane.b32.xlu0 %v973, 112
      %v1085 = vpop.permute.xlu0 %1084
      %1086 = vrot.lane.b32.xlu0 %v974, 112
      %v1087 = vpop.permute.xlu0 %1086
      %1088 = vrot.lane.b32.xlu0 %v975, 112
      %v1089 = vpop.permute.xlu0 %1088
      %1090 = vrot.lane.b32.xlu0 %v976, 112
      %v1091 = vpop.permute.xlu0 %1090
      %v1108 = vrot.slane %v1061, 1
      %v1109 = vrot.slane %v1063, 1
      %v1110 = vrot.slane %v1065, 1
      %v1111 = vrot.slane %v1067, 1
      %v1112 = vrot.slane %v1069, 1
      %v1113 = vrot.slane %v1071, 1
      %v1114 = vrot.slane %v1073, 1
      %v1115 = vrot.slane %v1075, 1
      %v1116 = vrot.slane %v1077, 1
      %v1117 = vrot.slane %v1079, 1
      %v1118 = vrot.slane %v1081, 1
      %v1119 = vrot.slane %v1083, 1
      %v1120 = vrot.slane %v1085, 1
      %v1121 = vrot.slane %v1087, 1
      %v1122 = vrot.slane %v1089, 1
      %v1123 = vrot.slane %v1091, 1
      %vm1124 = vcmp.lt.s32.totalorder %v994, 7
      %v1125 = vsel %vm1124, %v1122, %v1123
      %v1126 = vsel %vm1124, %v1120, %v1121
      %v1127 = vsel %vm1124, %v1118, %v1119
      %v1128 = vsel %vm1124, %v1116, %v1117
      %v1129 = vsel %vm1124, %v1114, %v1115
      %v1130 = vsel %vm1124, %v1112, %v1113
      %v1131 = vsel %vm1124, %v1110, %v1111
      %v1132 = vsel %vm1124, %v1108, %v1109
      %1141 = vrot.lane.b32.xlu0 %v1132, 8
      %v1142 = vpop.permute.xlu0 %1141
      %1143 = vrot.lane.b32.xlu0 %v1131, 8
      %v1144 = vpop.permute.xlu0 %1143
      %1145 = vrot.lane.b32.xlu0 %v1130, 8
      %v1146 = vpop.permute.xlu0 %1145
      %1147 = vrot.lane.b32.xlu0 %v1129, 8
      %v1148 = vpop.permute.xlu0 %1147
      %1149 = vrot.lane.b32.xlu0 %v1128, 8
      %v1150 = vpop.permute.xlu0 %1149
      %1151 = vrot.lane.b32.xlu0 %v1127, 8
      %v1152 = vpop.permute.xlu0 %1151
      %1153 = vrot.lane.b32.xlu0 %v1126, 8
      %v1154 = vpop.permute.xlu0 %1153
      %1155 = vrot.lane.b32.xlu0 %v1125, 8
      %v1156 = vpop.permute.xlu0 %1155
      %v1165 = vadd.f32 %v1036, %v1142
      %v1166 = vadd.f32 %v1037, %v1144
      %v1167 = vadd.f32 %v1038, %v1146
      %v1168 = vadd.f32 %v1039, %v1148
      %v1169 = vadd.f32 %v1040, %v1150
      %v1170 = vadd.f32 %v1041, %v1152
      %v1171 = vadd.f32 %v1042, %v1154
      %v1172 = vadd.f32 %v1043, %v1156
      %v1173 = vpack.c.bf16 %v1165, %v1165
      %v1174 = vpack.c.bf16 %v1166, %v1166
      %v1175 = vpack.c.bf16 %v1167, %v1167
      %v1176 = vpack.c.bf16 %v1168, %v1168
      %v1177 = vpack.c.bf16 %v1169, %v1169
      %v1178 = vpack.c.bf16 %v1170, %v1170
      %v1179 = vpack.c.bf16 %v1171, %v1171
      %v1180 = vpack.c.bf16 %v1172, %v1172
      %v1189 = vunpack.c.l.b16 %v1173
      %v1190 = vunpack.c.l.b16 %v1174
      %v1191 = vunpack.c.l.b16 %v1175
      %v1192 = vunpack.c.l.b16 %v1176
      %v1193 = vunpack.c.l.b16 %v1177
      %v1194 = vunpack.c.l.b16 %v1178
      %v1195 = vunpack.c.l.b16 %v1179
      %v1196 = vunpack.c.l.b16 %v1180
      %v1197 = vpack.c.b16 %v1189, %v1189
      %v1198 = vpack.c.b16 %v1190, %v1190
      %v1199 = vpack.c.b16 %v1191, %v1191
      %v1200 = vpack.c.b16 %v1192, %v1192
      %v1201 = vpack.c.b16 %v1193, %v1193
      %v1202 = vpack.c.b16 %v1194, %v1194
      %v1203 = vpack.c.b16 %v1195, %v1195
      %v1204 = vpack.c.b16 %v1196, %v1196
      %1205 = vrot.lane.b32.xlu0 %v1197, 120
      %v1206 = vpop.permute.xlu0 %1205
      %1207 = vrot.lane.b32.xlu0 %v1198, 120
      %v1208 = vpop.permute.xlu0 %1207
      %1209 = vrot.lane.b32.xlu0 %v1199, 120
      %v1210 = vpop.permute.xlu0 %1209
      %1211 = vrot.lane.b32.xlu0 %v1200, 120
      %v1212 = vpop.permute.xlu0 %1211
      %1213 = vrot.lane.b32.xlu0 %v1201, 120
      %v1214 = vpop.permute.xlu0 %1213
      %1215 = vrot.lane.b32.xlu0 %v1202, 120
      %v1216 = vpop.permute.xlu0 %1215
      %1217 = vrot.lane.b32.xlu0 %v1203, 120
      %v1218 = vpop.permute.xlu0 %1217
      %1219 = vrot.lane.b32.xlu0 %v1204, 120
      %v1220 = vpop.permute.xlu0 %1219
      %vm1229 = vcmask 60416
      %1230 = vst.msk [vmem:[%s353] sm:$0xf] %vm1229, %v1206
      %1231 = vst.msk [vmem:[%s353 + $0x4] sm:$0xf] %vm1229, %v1208
      %1232 = vst.msk [vmem:[%s353 + $0x8] sm:$0xf] %vm1229, %v1210
      %1233 = vst.msk [vmem:[%s353 + $0xc] sm:$0xf] %vm1229, %v1212
      %1234 = vst.msk [vmem:[%s353 + $0x10] sm:$0xf] %vm1229, %v1214
      %1235 = vst.msk [vmem:[%s353 + $0x14] sm:$0xf] %vm1229, %v1216
      %1236 = vst.msk [vmem:[%s353 + $0x18] sm:$0xf] %vm1229, %v1218
      %1237 = vst.msk [vmem:[%s353 + $0x1c] sm:$0xf] %vm1229, %v1220
      %s1238 = smul.u32 8, %s20
      %p1239 = scmp.lt.s32.totalorder %s19, 1
      %s1240 = scalar_select %p1239, %s19, 1
      %p1241 = scmp.lt.s32.totalorder %s1238, 7
      %s1242 = scalar_select %p1241, %s1238, 7
      %s1243 = smul.addr %s1240, 8
      %s1244 = sadd.s32 %s1242, %s1243
      %s1245 = smul.addr %s1244, 4
      %s1246 = scalar_lea.vmem %s4, %s1245
      // Predicated region
      $region37: #{densenet_forward.22} parent=35 // pred_check
        %p1247 = pneg %p168
      $region38: #{densenet_forward.22} parent=35 // pred_check_branch
        %1249 = sbr.rel (%p1247) target = $region40
      $region39: #{densenet_forward.22} parent=35 // pred_region
        %s1250 = smul.u32 8, %s20
      $region40: #{densenet_forward.22} parent=35 // pred_fallthru
        _
    $region36: #{densenet_forward.22} parent=5 // pred_fallthru
      _
    %p1251 = scmp.le.s32.totalorder 2, %s10
    // Predicated region
    $region41: #{densenet_forward.22} parent=5 // pred_check
      %p1252 = pneg %p1251
    $region42: #{densenet_forward.22} parent=5 // pred_check_branch
      %1254 = sbr.rel (%p1252) target = $region44
    $region43: #{densenet_forward.22} parent=5 // pred_region
      %s1255 = ssub.s32 %s10, 2
      // Predicated region
      $region45: #{densenet_forward.22} parent=43 // pred_check
        %p1256 = pneg %p174
      $region46: #{densenet_forward.22} parent=43 // pred_check_branch
        %1258 = sbr.rel (%p1256) target = $region48
      $region47: #{densenet_forward.22} parent=43 // pred_region
        %s1259 = smul.u32 8, %s22
        %p1260 = scmp.lt.s32.totalorder %s21, 1
        %s1261 = scalar_select %p1260, %s21, 1
        %p1262 = scmp.lt.s32.totalorder %s1259, 7
        %s1263 = scalar_select %p1262, %s1259, 7
        %s1264 = smul.addr %s1261, 8
        %s1265 = sadd.s32 %s1263, %s1264
        %s1266 = smul.addr %s1265, 4
        %s1267 = scalar_lea.vmem %s4, %s1266
      $region48: #{densenet_forward.22} parent=43 // pred_fallthru
        _
    $region44: #{densenet_forward.22} parent=5 // pred_fallthru
      _
  $region6: #{densenet_forward.22} parent=0 // loop_footer
    %s14 = sadd.s32 1, %s10
  $region7: #{densenet_forward.22} parent=0 // loop_footer_branch
    %9 = sbr.rel target = $region3
  $region8: #{densenet_forward.22} parent=0 // loop_exit
    _

// kernel: densenet_forward.25
$region0: #{densenet_forward.25}
  #allocation0 [shape = 'u32[]', space=smem, size = 0x4, offset = 0x4, fixed_abs, tag = 'smem constant byte address 0x4 - core index']
  #allocation1 [shape = 'u32[144,128]{1,0:T(1,128)}', space=vmem, size = 0x12000, scoped, tag = 'internal scratch']
  #allocation2 [shape = 'f32[4,8,32]{2,1,0:T(8,128)}', space=vmem, size = 0x4000, scoped, tag = 'scratch operand']
  %s0 = inlined_call_operand.vmem [shape: bf16[2,8,8,32], index: 0, kind: input, shape index: {}]
  %s1 = inlined_call_operand.vmem [shape: f32[1,32], index: 1, kind: input, shape index: {}]
  %s2 = inlined_call_operand.vmem [shape: f32[1,32], index: 2, kind: input, shape index: {}]
  %s3 = inlined_call_operand.vmem [shape: bf16[32,16], index: 3, kind: input, shape index: {}]
  %s4 = inlined_call_operand.vmem [shape: bf16[2,4,4,16], index: 4, kind: output, shape index: {}]
  %s5 = sld [smem:[#allocation0]]
  $region49: #{densenet_forward.25} parent=0
    _
  %s7 = ssub.s32 1, %s5
  %s8 = scalar_select 0, %s7, %s5
  loop: start=0, step=1, limit=4
  $region2: #{densenet_forward.25} parent=0 // loop_pre_header
    _
  $region3: #{densenet_forward.25} parent=0 // loop_header
    %s10 = sphi 0, %s14
    %p11 = scmp.ge.s32.totalorder %s10, 4
    %s17 = sphi 0, %s29
    %s18 = sphi 0, %s25
    %s19 = sphi 0, %s17
    %s20 = sphi 0, %s18
    %s21 = sphi 0, %s19
    %s22 = sphi 0, %s20
    %s34 = sphi 0, %s36
    %s37 = sphi 0, %s34
    %s38 = sphi 0, %s37
    %s54 = sphi 0, %s38
    %s58 = sphi 0, %s58
    %s60 = sphi 0, %s58
    %s61 = sphi 0, %s60
    %s75 = sphi 0, %s61
    %s79 = sphi 0, %s79
    %s81 = sphi 0, %s79
    %s82 = sphi 0, %s81
    %s96 = sphi 0, %s82
    %s100 = sphi 0, %s100
    %s102 = sphi 0, %s100
    %s103 = sphi 0, %s102
    %s117 = sphi 0, %s103
    %s125 = sphi 0, %s127
    %s128 = sphi 0, %s125
    %s129 = sphi 0, %s128
    %s145 = sphi 0, %s129
  $region4: #{densenet_forward.25} parent=0 // loop_header_branch
    %13 = sbr.rel (%p11) target = $region8
  $region5: #{densenet_forward.25} parent=0 // loop_body
    %s15 = ssub.s32 %s10, 1
    %s16 = ssub.s32 %s10, 2
    %s23 = sadd.s32 1, %s18
    %p24 = scmp.ge.s32.totalorder %s23, 1
    %s25 = scalar_select %p24, 0, %s23
    %s26 = sadd.s32 1, %s17
    %s27 = scalar_select %p24, %s26, %s17
    %p28 = scmp.ge.s32.totalorder %s27, 2
    %s29 = scalar_select %p28, 0, %s27
    %s30 = ssub.s32 %s17, %s29
    %s31 = ssub.s32 %s18, %s25
    %s32 = sor.u32 %s30, %s31
    %p33 = scmp.eq.s32.totalorder %s32, 0
    %s35 = sadd.s32 %s34, 1
    %s36 = scalar_select %p33, %s34, %s35
    %p39 = pneg %p33
    %p40 = scmp.eq.s32.totalorder %s10, 1
    %p41 = por %p39, %p40
    %p42 = scmp.ne.s32.totalorder %s34, %s37
    %p43 = scmp.eq.s32.totalorder %s10, 0
    %p44 = por %p42, %p43
    %p45 = scmp.ne.s32.totalorder %s34, %s37
    %p46 = scmp.eq.s32.totalorder %s15, 1
    %p47 = por %p45, %p46
    %p48 = scmp.ne.s32.totalorder %s37, %s38
    %p49 = scmp.eq.s32.totalorder %s15, 0
    %p50 = por %p48, %p49
    %p51 = scmp.ne.s32.totalorder %s37, %s38
    %p52 = scmp.eq.s32.totalorder %s16, 1
    %p53 = por %p51, %p52
    %p55 = scmp.ne.s32.totalorder %s38, %s54
    %p56 = scmp.eq.s32.totalorder %s16, 0
    %p57 = por %p55, %p56
    %s59 = sadd.s32 %s58, 1
    %p62 = scmp.eq.s32.totalorder %s10, 1
    %p63 = scmp.ne.s32.totalorder %s58, %s60
    %p64 = scmp.eq.s32.totalorder %s10, 0
    %p65 = por %p63, %p64
    %p66 = scmp.ne.s32.totalorder %s58, %s60
    %p67 = scmp.eq.s32.totalorder %s15, 1
    %p68 = por %p66, %p67
    %p69 = scmp.ne.s32.totalorder %s60, %s61
    %p70 = scmp.eq.s32.totalorder %s15, 0
    %p71 = por %p69, %p70
    %p72 = scmp.ne.s32.totalorder %s60, %s61
    %p73 = scmp.eq.s32.totalorder %s16, 1
    %p74 = por %p72, %p73
    %p76 = scmp.ne.s32.totalorder %s61, %s75
    %p77 = scmp.eq.s32.totalorder %s16, 0
    %p78 = por %p76, %p77
    %s80 = sadd.s32 %s79, 1
    %p83 = scmp.eq.s32.totalorder %s10, 1
    %p84 = scmp.ne.s32.totalorder %s79, %s81
    %p85 = scmp.eq.s32.totalorder %s10, 0
    %p86 = por %p84, %p85
    %p87 = scmp.ne.s32.totalorder %s79, %s81
    %p88 = scmp.eq.s32.totalorder %s15, 1
    %p89 = por %p87, %p88
    %p90 = scmp.ne.s32.totalorder %s81, %s82
    %p91 = scmp.eq.s32.totalorder %s15, 0
    %p92 = por %p90, %p91
    %p93 = scmp.ne.s32.totalorder %s81, %s82
    %p94 = scmp.eq.s32.totalorder %s16, 1
    %p95 = por %p93, %p94
    %p97 = scmp.ne.s32.totalorder %s82, %s96
    %p98 = scmp.eq.s32.totalorder %s16, 0
    %p99 = por %p97, %p98
    %s101 = sadd.s32 %s100, 1
    %p104 = scmp.eq.s32.totalorder %s10, 1
    %p105 = scmp.ne.s32.totalorder %s100, %s102
    %p106 = scmp.eq.s32.totalorder %s10, 0
    %p107 = por %p105, %p106
    %p108 = scmp.ne.s32.totalorder %s100, %s102
    %p109 = scmp.eq.s32.totalorder %s15, 1
    %p110 = por %p108, %p109
    %p111 = scmp.ne.s32.totalorder %s102, %s103
    %p112 = scmp.eq.s32.totalorder %s15, 0
    %p113 = por %p111, %p112
    %p114 = scmp.ne.s32.totalorder %s102, %s103
    %p115 = scmp.eq.s32.totalorder %s16, 1
    %p116 = por %p114, %p115
    %p118 = scmp.ne.s32.totalorder %s103, %s117
    %p119 = scmp.eq.s32.totalorder %s16, 0
    %p120 = por %p118, %p119
    %s121 = ssub.s32 %s17, %s29
    %s122 = ssub.s32 %s18, %s25
    %s123 = sor.u32 %s121, %s122
    %p124 = scmp.eq.s32.totalorder %s123, 0
    %s126 = sadd.s32 %s125, 1
    %s127 = scalar_select %p124, %s125, %s126
    %p130 = pneg %p124
    %p131 = scmp.eq.s32.totalorder %s10, 1
    %p132 = por %p130, %p131
    %p133 = scmp.ne.s32.totalorder %s125, %s128
    %p134 = scmp.eq.s32.totalorder %s10, 0
    %p135 = por %p133, %p134
    %p136 = scmp.ne.s32.totalorder %s125, %s128
    %p137 = scmp.eq.s32.totalorder %s15, 1
    %p138 = por %p136, %p137
    %p139 = scmp.ne.s32.totalorder %s128, %s129
    %p140 = scmp.eq.s32.totalorder %s15, 0
    %p141 = por %p139, %p140
    %p142 = scmp.ne.s32.totalorder %s128, %s129
    %p143 = scmp.eq.s32.totalorder %s16, 1
    %p144 = por %p142, %p143
    %p146 = scmp.ne.s32.totalorder %s129, %s145
    %p147 = scmp.eq.s32.totalorder %s16, 0
    %p148 = por %p146, %p147
    %p149 = scmp.le.s32.totalorder 1, %s10
    %p150 = scmp.lt.s32.totalorder %s10, 3
    %p151 = pnand %p149, %p150
    %p152 = pneg %p151
    // Predicated region
    $region9: #{densenet_forward.25} parent=5 // pred_check
      _
    $region10: #{densenet_forward.25} parent=5 // pred_check_branch
      %154 = sbr.rel (%p151) target = $region12
    $region11: #{densenet_forward.25} parent=5 // pred_region
      %s155 = ssub.s32 %s10, 1
      // Predicated region
      $region13: #{densenet_forward.25} parent=11 // pred_check
        %p156 = pneg %p71
      $region14: #{densenet_forward.25} parent=11 // pred_check_branch
        %158 = sbr.rel (%p156) target = $region16
      $region15: #{densenet_forward.25} parent=11 // pred_region
        _
      $region16: #{densenet_forward.25} parent=11 // pred_fallthru
        _
      // Predicated region
      $region17: #{densenet_forward.25} parent=11 // pred_check
        %p159 = pneg %p92
      $region18: #{densenet_forward.25} parent=11 // pred_check_branch
        %161 = sbr.rel (%p159) target = $region20
      $region19: #{densenet_forward.25} parent=11 // pred_region
        _
      $region20: #{densenet_forward.25} parent=11 // pred_fallthru
        _
      // Predicated region
      $region21: #{densenet_forward.25} parent=11 // pred_check
        %p162 = pneg %p113
      $region22: #{densenet_forward.25} parent=11 // pred_check_branch
        %164 = sbr.rel (%p162) target = $region24
      $region23: #{densenet_forward.25} parent=11 // pred_region
        _
      $region24: #{densenet_forward.25} parent=11 // pred_fallthru
        _
    $region12: #{densenet_forward.25} parent=5 // pred_fallthru
      _
    %p165 = scmp.lt.s32.totalorder %s10, 2
    // Predicated region
    $region25: #{densenet_forward.25} parent=5 // pred_check
      %p166 = pneg %p165
    $region26: #{densenet_forward.25} parent=5 // pred_check_branch
      %168 = sbr.rel (%p166) target = $region28
    $region27: #{densenet_forward.25} parent=5 // pred_region
      // Predicated region
      $region29: #{densenet_forward.25} parent=27 // pred_check
        %p169 = pneg %p44
      $region30: #{densenet_forward.25} parent=27 // pred_check_branch
        %171 = sbr.rel (%p169) target = $region32
      $region31: #{densenet_forward.25} parent=27 // pred_region
        %s172 = smul.u32 8, %s18
        %p173 = scmp.lt.s32.totalorder %s17, 1
        %s174 = scalar_select %p173, %s17, 1
        %p175 = scmp.lt.s32.totalorder %s172, 7
        %s176 = scalar_select %p175, %s172, 7
        %s177 = smul.addr %s174, 8
        %s178 = sadd.s32 %s176, %s177
        %s179 = smul.addr %s178, 4
        %s180 = scalar_lea.vmem %s0, %s179
        %s181 = smul.u32 8, %s18
      $region32: #{densenet_forward.25} parent=27 // pred_fallthru
        _
    $region28: #{densenet_forward.25} parent=5 // pred_fallthru
      _
    %p182 = scmp.le.s32.totalorder 1, %s10
    %p183 = scmp.lt.s32.totalorder %s10, 3
    %p184 = pnand %p182, %p183
    %p185 = pneg %p184
    // Predicated region
    $region33: #{densenet_forward.25} parent=5 // pred_check
      _
    $region34: #{densenet_forward.25} parent=5 // pred_check_branch
      %187 = sbr.rel (%p184) target = $region36
    $region35: #{densenet_forward.25} parent=5 // pred_region
      %s188 = ssub.s32 %s10, 1
      %s189 = smul.u32 8, %s20
      %p190 = scmp.lt.s32.totalorder %s19, 1
      %s191 = scalar_select %p190, %s19, 1
      %p192 = scmp.lt.s32.totalorder %s189, 7
      %s193 = scalar_select %p192, %s189, 7
      %s194 = smul.addr %s191, 8
      %s195 = sadd.s32 %s193, %s194
      %s196 = smul.addr %s195, 4
      %s197 = scalar_lea.vmem %s0, %s196
      %p198 = pneg %p50
      %p199 = pneg %p47
      %p200 = pneg %p71
      %p201 = pneg %p68
      %p202 = pneg %p92
      %p203 = pneg %p89
      %p204 = pneg %p113
      %p205 = pneg %p110
      %p206 = pneg %p141
      %p207 = pneg %p138
      %s208 = smul.u32 4, %s20
      %p209 = scmp.lt.s32.totalorder %s19, 1
      %s210 = scalar_select %p209, %s19, 1
      %p211 = scmp.lt.s32.totalorder %s208, 3
      %s212 = scalar_select %p211, %s208, 3
      %s213 = smul.addr %s210, 4
      %s214 = sadd.s32 %s212, %s213
      %s215 = smul.addr %s214, 2
      %s216 = scalar_lea.vmem %s4, %s215
      %s217 = smul.u32 8, %s20
      %p218 = scmp.lt.s32.totalorder %s19, 1
      %s219 = scalar_select %p218, %s19, 1
      %p220 = scmp.lt.s32.totalorder %s217, 7
      %s221 = scalar_select %p220, %s217, 7
      %s222 = smul.addr %s219, 8
      %s223 = sadd.s32 %s221, %s222
      %s224 = smul.addr %s223, 4
      %s225 = scalar_lea.vmem %s0, %s224
      %s226 = smul.u32 8, %s20
      %s227 = smul.u32 4, %s20
      %p228 = scmp.lt.s32.totalorder %s19, 1
      %s229 = scalar_select %p228, %s19, 1
      %p230 = scmp.lt.s32.totalorder %s227, 3
      %s231 = scalar_select %p230, %s227, 3
      %s232 = smul.addr %s229, 4
      %s233 = sadd.s32 %s231, %s232
      %s234 = smul.addr %s233, 2
      %s235 = scalar_lea.vmem %s4, %s234
      %s236 = smul.u32 4, %s20
      %v238 = vld [vmem:[%s225] sm:$0xf]
      %v239 = vld [vmem:[%s225 + $0x4] sm:$0xf]
      %v240 = vld [vmem:[%s225 + $0x8] sm:$0xf]
      %v241 = vld [vmem:[%s225 + $0xc] sm:$0xf]
      %v242 = vld [vmem:[%s225 + $0x10] sm:$0xf]
      %v243 = vld [vmem:[%s225 + $0x14] sm:$0xf]
      %v244 = vld [vmem:[%s225 + $0x18] sm:$0xf]
      %v245 = vld [vmem:[%s225 + $0x1c] sm:$0xf]
      %v246 = vunpack.c.l.bf16 %v238
      %v247 = vunpack.c.l.bf16 %v239
      %v248 = vunpack.c.l.bf16 %v240
      %v249 = vunpack.c.l.bf16 %v241
      %v250 = vunpack.c.l.bf16 %v242
      %v251 = vunpack.c.l.bf16 %v243
      %v252 = vunpack.c.l.bf16 %v244
      %v253 = vunpack.c.l.bf16 %v245
      %v254 = vld [vmem:[%s1] sm:$0x1]
      %v256 = vlaneseq
      %v257 = vshrl.u32 %v256, 7
      %v258 = vsub.s32 0, %v257
      %v259 = vrot.slane %v254, %v258
      %v261 = vmul.f32 %v246, %v259
      %v262 = vmul.f32 %v247, %v259
      %v263 = vmul.f32 %v248, %v259
      %v264 = vmul.f32 %v249, %v259
      %v265 = vmul.f32 %v250, %v259
      %v266 = vmul.f32 %v251, %v259
      %v267 = vmul.f32 %v252, %v259
      %v268 = vmul.f32 %v253, %v259
      %v269 = vld [vmem:[%s2] sm:$0x1]
      %v271 = vlaneseq
      %v272 = vshrl.u32 %v271, 7
      %v273 = vsub.s32 0, %v272
      %v274 = vrot.slane %v269, %v273
      %v276 = vadd.f32 %v261, %v274
      %v277 = vadd.f32 %v262, %v274
      %v278 = vadd.f32 %v263, %v274
      %v279 = vadd.f32 %v264, %v274
      %v280 = vadd.f32 %v265, %v274
      %v281 = vadd.f32 %v266, %v274
      %v282 = vadd.f32 %v267, %v274
      %v283 = vadd.f32 %v268, %v274
      %v284 = vmax.f32 %v276, 0.0
      %v285 = vmax.f32 %v277, 0.0
      %v286 = vmax.f32 %v278, 0.0
      %v287 = vmax.f32 %v279, 0.0
      %v288 = vmax.f32 %v280, 0.0
      %v289 = vmax.f32 %v281, 0.0
      %v290 = vmax.f32 %v282, 0.0
      %v291 = vmax.f32 %v283, 0.0
      %v292 = vadd.f32 %v284, %v285
      %v293 = vadd.f32 %v286, %v287
      %v294 = vadd.f32 %v288, %v289
      %v295 = vadd.f32 %v290, %v291
      %vm296 = vcmask 261120
      %297 = vst.msk [vmem:[#allocation2] sm:$0xff] %vm296, %v292
      %298 = vst.msk [vmem:[#allocation2 + $0x8] sm:$0xff] %vm296, %v293
      %299 = vst.msk [vmem:[#allocation2 + $0x10] sm:$0xff] %vm296, %v294
      %300 = vst.msk [vmem:[#allocation2 + $0x18] sm:$0xff] %vm296, %v295
      %v301 = vld [vmem:[#allocation2] ss:$2 sm:$0xf]
      %s302 = scalar_lea.vmem [#allocation2], 8
      %v303 = vld [vmem:[%s302] ss:$2 sm:$0xf]
      %s304 = scalar_lea.vmem [#allocation2], 16
      %v305 = vld [vmem:[%s304] ss:$2 sm:$0xf]
      %s306 = scalar_lea.vmem [#allocation2], 24
      %v307 = vld [vmem:[%s306] ss:$2 sm:$0xf]
      %s308 = scalar_lea.vmem [#allocation2], 1
      %v309 = vld [vmem:[%s308] ss:$2 sm:$0xf]
      %s310 = scalar_lea.vmem [#allocation2], 9
      %v311 = vld [vmem:[%s310] ss:$2 sm:$0xf]
      %s312 = scalar_lea.vmem [#allocation2], 17
      %v313 = vld [vmem:[%s312] ss:$2 sm:$0xf]
      %s314 = scalar_lea.vmem [#allocation2], 25
      %v315 = vld [vmem:[%s314] ss:$2 sm:$0xf]
      %v316 = vadd.f32 %v301, %v309
      %v317 = vadd.f32 %v303, %v311
      %v318 = vadd.f32 %v305, %v313
      %v319 = vadd.f32 %v307, %v315
      %v320 = vmul.f32 %v316, 0.25
      %v321 = vmul.f32 %v317, 0.25
      %v322 = vmul.f32 %v318, 0.25
      %v323 = vmul.f32 %v319, 0.25
      %v328 = vcombine.low %v320, %v321
      %v329 = vcombine.low %v322, %v323
      %v332 = vpack.c.bf16 %v329, %v328
      %v333 = vld [vmem:[%s3] sm:$0xf]
      %v334 = vld [vmem:[%s3 + $0x4] sm:$0xf]
      %v335 = vld [vmem:[%s3 + $0x8] sm:$0xf]
      %v336 = vld [vmem:[%s3 + $0xc] sm:$0xf]
      %v341 = vunpack.c.l.b16 %v333
      %v342 = vunpack.c.l.b16 %v334
      %v343 = vunpack.c.l.b16 %v335
      %v344 = vunpack.c.l.b16 %v336
      %v345 = vpack.c.b16 %v342, %v341
      %v346 = vpack.c.b16 %v344, %v343
      %v350 = vsel %vm296, %v332, 0
      %352 = vmatprep.subr.bf16.mxu0 0
      %353 = vmatpush1.bf16.msra.mxu0 0
      %354 = vmatprep.subr.bf16.mxu0 0
      %355 = vmatpush1.bf16.msra.mxu0 0
      %356 = vmatprep.subr.bf16.mxu0 0
      %357 = vmatpush1.bf16.msra.mxu0 0
      %358 = vmatprep.subr.bf16.mxu0 0
      %359 = vmatpush1.bf16.msra.mxu0 0
      %360 = vmatprep.subr.bf16.mxu0 0
      %361 = vmatpush1.bf16.msra.mxu0 0
      %362 = vmatprep.subr.bf16.mxu0 0
      %363 = vmatpush1.bf16.msra.mxu0 0
      %364 = vmatprep.subr.bf16.mxu0 0
      %365 = vmatpush1.bf16.msra.mxu0 %v346
      %366 = vmatprep.subr.bf16.mxu0 0
      %367 = vmatpush1.bf16.msra.mxu0 %v345
      %368 = vmatprep.subr.bf16.mxu0 0
      %369 = vmatpush2.bf16.msra.mxu0 0
      %370 = vmatprep.subr.bf16.mxu0 0
      %371 = vmatpush2.bf16.msra.mxu0 0
      %372 = vmatprep.subr.bf16.mxu0 0
      %373 = vmatpush2.bf16.msra.mxu0 0
      %374 = vmatprep.subr.bf16.mxu0 0
      %375 = vmatpush2.bf16.msra.mxu0 0
      %376 = vmatprep.subr.bf16.mxu0 0
      %377 = vmatpush2.bf16.msra.mxu0 0
      %378 = vmatprep.subr.bf16.mxu0 0
      %379 = vmatpush2.bf16.msra.mxu0 0
      %380 = vmatprep.subr.bf16.mxu0 0
      %381 = vmatpush2.bf16.msra.mxu0 0
      %382 = vmatprep.subr.bf16.mxu0 0
      %383 = vmatpush2.bf16.msra.mxu0 0
      %384 = vmatprep.mubr.bf16.mxu0 0
      %385 = vmatmul.mubr.bf16.gmra.mxu0 %v350
      %v386 = vpop.f32.mrf.mxu0
      %v387 = vadd.f32 0.0, %v386
      %v388 = vpop.f32.mrf.mxu0
      %v389 = vpop.f32.mrf.mxu0
      %v390 = vadd.f32 0.0, %v389
      %v391 = vpop.f32.mrf.mxu0
      %392 = vdwg.mxu0
      %v395 = vcombine.high %v387, %v387
      %v396 = vcombine.high %v390, %v390
      %v399 = vpack.c.bf16 %v387, %v387
      %v400 = vpack.c.bf16 %v395, %v395
      %v401 = vpack.c.bf16 %v390, %v390
      %v402 = vpack.c.bf16 %v396, %v396
      %vm403 = vcmask 123904
      %404 = vst.msk [vmem:[%s235] sm:$0x3] %vm403, %v399
      %405 = vst.msk [vmem:[%s235 + $0x2] sm:$0x3] %vm403, %v400
      %406 = vst.msk [vmem:[%s235 + $0x4] sm:$0x3] %vm403, %v401
      %407 = vst.msk [vmem:[%s235 + $0x6] sm:$0x3] %vm403, %v402
      %s408 = smul.u32 4, %s20
      %p409 = scmp.lt.s32.totalorder %s19, 1
      %s410 = scalar_select %p409, %s19, 1
      %p411 = scmp.lt.s32.totalorder %s408, 3
      %s412 = scalar_select %p411, %s408, 3
      %s413 = smul.addr %s410, 4
      %s414 = sadd.s32 %s412, %s413
      %s415 = smul.addr %s414, 2
      %s416 = scalar_lea.vmem %s4, %s415
      // Predicated region
      $region37: #{densenet_forward.25} parent=35 // pred_check
        %p417 = pneg %p138
      $region38: #{densenet_forward.25} parent=35 // pred_check_branch
        %419 = sbr.rel (%p417) target = $region40
      $region39: #{densenet_forward.25} parent=35 // pred_region
        %s420 = smul.u32 4, %s20
      $region40: #{densenet_forward.25} parent=35 // pred_fallthru
        _
    $region36: #{densenet_forward.25} parent=5 // pred_fallthru
      _
    %p421 = scmp.le.s32.totalorder 2, %s10
    // Predicated region
    $region41: #{densenet_forward.25} parent=5 // pred_check
      %p422 = pneg %p421
    $region42: #{densenet_forward.25} parent=5 // pred_check_branch
      %424 = sbr.rel (%p422) target = $region44
    $region43: #{densenet_forward.25} parent=5 // pred_region
      %s425 = ssub.s32 %s10, 2
      // Predicated region
      $region45: #{densenet_forward.25} parent=43 // pred_check
        %p426 = pneg %p144
      $region46: #{densenet_forward.25} parent=43 // pred_check_branch
        %428 = sbr.rel (%p426) target = $region48
      $region47: #{densenet_forward.25} parent=43 // pred_region
        %s429 = smul.u32 4, %s22
        %p430 = scmp.lt.s32.totalorder %s21, 1
        %s431 = scalar_select %p430, %s21, 1
        %p432 = scmp.lt.s32.totalorder %s429, 3
        %s433 = scalar_select %p432, %s429, 3
        %s434 = smul.addr %s431, 4
        %s435 = sadd.s32 %s433, %s434
        %s436 = smul.addr %s435, 2
        %s437 = scalar_lea.vmem %s4, %s436
      $region48: #{densenet_forward.25} parent=43 // pred_fallthru
        _
    $region44: #{densenet_forward.25} parent=5 // pred_fallthru
      _
  $region6: #{densenet_forward.25} parent=0 // loop_footer
    %s14 = sadd.s32 1, %s10
  $region7: #{densenet_forward.25} parent=0 // loop_footer_branch
    %9 = sbr.rel target = $region3
  $region8: #{densenet_forward.25} parent=0 // loop_exit
    _

// kernel: densenet_forward.26
$region0: #{densenet_forward.26}
  #allocation0 [shape = 'u32[]', space=smem, size = 0x4, offset = 0x4, fixed_abs, tag = 'smem constant byte address 0x4 - core index']
  #allocation1 [shape = 'u32[144,128]{1,0:T(1,128)}', space=vmem, size = 0x12000, scoped, tag = 'internal scratch']
  %s0 = inlined_call_operand.vmem [shape: bf16[32,32], index: 0, kind: input, shape index: {}]
  %s1 = inlined_call_operand.vmem [shape: f32[1,32], index: 1, kind: input, shape index: {}]
  %s2 = inlined_call_operand.vmem [shape: f32[1,32], index: 2, kind: input, shape index: {}]
  %s3 = inlined_call_operand.vmem [shape: bf16[32,16], index: 3, kind: input, shape index: {}]
  %s4 = inlined_call_operand.vmem [shape: f32[1,16], index: 4, kind: input, shape index: {}]
  %s5 = inlined_call_operand.vmem [shape: bf16[32,16], index: 5, kind: output, shape index: {}]
  %s6 = sld [smem:[#allocation0]]
  $region53: #{densenet_forward.26} parent=0
    _
  %s8 = ssub.s32 1, %s6
  %s9 = scalar_select 0, %s8, %s6
  loop: start=0, step=1, limit=4
  $region2: #{densenet_forward.26} parent=0 // loop_pre_header
    _
  $region3: #{densenet_forward.26} parent=0 // loop_header
    %s11 = sphi 0, %s15
    %p12 = scmp.ge.s32.totalorder %s11, 4
    %s21 = sphi 0, %s23
    %s24 = sphi 0, %s21
    %s25 = sphi 0, %s24
    %s41 = sphi 0, %s25
    %s45 = sphi 0, %s45
    %s47 = sphi 0, %s45
    %s48 = sphi 0, %s47
    %s62 = sphi 0, %s48
    %s66 = sphi 0, %s66
    %s68 = sphi 0, %s66
    %s69 = sphi 0, %s68
    %s83 = sphi 0, %s69
    %s87 = sphi 0, %s87
    %s89 = sphi 0, %s87
    %s90 = sphi 0, %s89
    %s104 = sphi 0, %s90
    %s108 = sphi 0, %s108
    %s110 = sphi 0, %s108
    %s111 = sphi 0, %s110
    %s125 = sphi 0, %s111
    %s131 = sphi 0, %s133
    %s134 = sphi 0, %s131
    %s135 = sphi 0, %s134
    %s151 = sphi 0, %s135
  $region4: #{densenet_forward.26} parent=0 // loop_header_branch
    %14 = sbr.rel (%p12) target = $region8
  $region5: #{densenet_forward.26} parent=0 // loop_body
    %s16 = ssub.s32 %s11, 1
    %s17 = ssub.s32 %s11, 2
    %s18 = sadd.s32 %s11, 1
    %s19 = ssub.s32 %s11, %s18
    %p20 = scmp.eq.s32.totalorder %s19, 0
    %s22 = sadd.s32 %s21, 1
    %s23 = scalar_select %p20, %s21, %s22
    %p26 = pneg %p20
    %p27 = scmp.eq.s32.totalorder %s11, 1
    %p28 = por %p26, %p27
    %p29 = scmp.ne.s32.totalorder %s21, %s24
    %p30 = scmp.eq.s32.totalorder %s11, 0
    %p31 = por %p29, %p30
    %p32 = scmp.ne.s32.totalorder %s21, %s24
    %p33 = scmp.eq.s32.totalorder %s16, 1
    %p34 = por %p32, %p33
    %p35 = scmp.ne.s32.totalorder %s24, %s25
    %p36 = scmp.eq.s32.totalorder %s16, 0
    %p37 = por %p35, %p36
    %p38 = scmp.ne.s32.totalorder %s24, %s25
    %p39 = scmp.eq.s32.totalorder %s17, 1
    %p40 = por %p38, %p39
    %p42 = scmp.ne.s32.totalorder %s25, %s41
    %p43 = scmp.eq.s32.totalorder %s17, 0
    %p44 = por %p42, %p43
    %s46 = sadd.s32 %s45, 1
    %p49 = scmp.eq.s32.totalorder %s11, 1
    %p50 = scmp.ne.s32.totalorder %s45, %s47
    %p51 = scmp.eq.s32.totalorder %s11, 0
    %p52 = por %p50, %p51
    %p53 = scmp.ne.s32.totalorder %s45, %s47
    %p54 = scmp.eq.s32.totalorder %s16, 1
    %p55 = por %p53, %p54
    %p56 = scmp.ne.s32.totalorder %s47, %s48
    %p57 = scmp.eq.s32.totalorder %s16, 0
    %p58 = por %p56, %p57
    %p59 = scmp.ne.s32.totalorder %s47, %s48
    %p60 = scmp.eq.s32.totalorder %s17, 1
    %p61 = por %p59, %p60
    %p63 = scmp.ne.s32.totalorder %s48, %s62
    %p64 = scmp.eq.s32.totalorder %s17, 0
    %p65 = por %p63, %p64
    %s67 = sadd.s32 %s66, 1
    %p70 = scmp.eq.s32.totalorder %s11, 1
    %p71 = scmp.ne.s32.totalorder %s66, %s68
    %p72 = scmp.eq.s32.totalorder %s11, 0
    %p73 = por %p71, %p72
    %p74 = scmp.ne.s32.totalorder %s66, %s68
    %p75 = scmp.eq.s32.totalorder %s16, 1
    %p76 = por %p74, %p75
    %p77 = scmp.ne.s32.totalorder %s68, %s69
    %p78 = scmp.eq.s32.totalorder %s16, 0
    %p79 = por %p77, %p78
    %p80 = scmp.ne.s32.totalorder %s68, %s69
    %p81 = scmp.eq.s32.totalorder %s17, 1
    %p82 = por %p80, %p81
    %p84 = scmp.ne.s32.totalorder %s69, %s83
    %p85 = scmp.eq.s32.totalorder %s17, 0
    %p86 = por %p84, %p85
    %s88 = sadd.s32 %s87, 1
    %p91 = scmp.eq.s32.totalorder %s11, 1
    %p92 = scmp.ne.s32.totalorder %s87, %s89
    %p93 = scmp.eq.s32.totalorder %s11, 0
    %p94 = por %p92, %p93
    %p95 = scmp.ne.s32.totalorder %s87, %s89
    %p96 = scmp.eq.s32.totalorder %s16, 1
    %p97 = por %p95, %p96
    %p98 = scmp.ne.s32.totalorder %s89, %s90
    %p99 = scmp.eq.s32.totalorder %s16, 0
    %p100 = por %p98, %p99
    %p101 = scmp.ne.s32.totalorder %s89, %s90
    %p102 = scmp.eq.s32.totalorder %s17, 1
    %p103 = por %p101, %p102
    %p105 = scmp.ne.s32.totalorder %s90, %s104
    %p106 = scmp.eq.s32.totalorder %s17, 0
    %p107 = por %p105, %p106
    %s109 = sadd.s32 %s108, 1
    %p112 = scmp.eq.s32.totalorder %s11, 1
    %p113 = scmp.ne.s32.totalorder %s108, %s110
    %p114 = scmp.eq.s32.totalorder %s11, 0
    %p115 = por %p113, %p114
    %p116 = scmp.ne.s32.totalorder %s108, %s110
    %p117 = scmp.eq.s32.totalorder %s16, 1
    %p118 = por %p116, %p117
    %p119 = scmp.ne.s32.totalorder %s110, %s111
    %p120 = scmp.eq.s32.totalorder %s16, 0
    %p121 = por %p119, %p120
    %p122 = scmp.ne.s32.totalorder %s110, %s111
    %p123 = scmp.eq.s32.totalorder %s17, 1
    %p124 = por %p122, %p123
    %p126 = scmp.ne.s32.totalorder %s111, %s125
    %p127 = scmp.eq.s32.totalorder %s17, 0
    %p128 = por %p126, %p127
    %s129 = ssub.s32 %s11, %s18
    %p130 = scmp.eq.s32.totalorder %s129, 0
    %s132 = sadd.s32 %s131, 1
    %s133 = scalar_select %p130, %s131, %s132
    %p136 = pneg %p130
    %p137 = scmp.eq.s32.totalorder %s11, 1
    %p138 = por %p136, %p137
    %p139 = scmp.ne.s32.totalorder %s131, %s134
    %p140 = scmp.eq.s32.totalorder %s11, 0
    %p141 = por %p139, %p140
    %p142 = scmp.ne.s32.totalorder %s131, %s134
    %p143 = scmp.eq.s32.totalorder %s16, 1
    %p144 = por %p142, %p143
    %p145 = scmp.ne.s32.totalorder %s134, %s135
    %p146 = scmp.eq.s32.totalorder %s16, 0
    %p147 = por %p145, %p146
    %p148 = scmp.ne.s32.totalorder %s134, %s135
    %p149 = scmp.eq.s32.totalorder %s17, 1
    %p150 = por %p148, %p149
    %p152 = scmp.ne.s32.totalorder %s135, %s151
    %p153 = scmp.eq.s32.totalorder %s17, 0
    %p154 = por %p152, %p153
    %p155 = scmp.le.s32.totalorder 1, %s11
    %p156 = scmp.lt.s32.totalorder %s11, 3
    %p157 = pnand %p155, %p156
    %p158 = pneg %p157
    // Predicated region
    $region9: #{densenet_forward.26} parent=5 // pred_check
      _
    $region10: #{densenet_forward.26} parent=5 // pred_check_branch
      %160 = sbr.rel (%p157) target = $region12
    $region11: #{densenet_forward.26} parent=5 // pred_region
      %s161 = ssub.s32 %s11, 1
      // Predicated region
      $region13: #{densenet_forward.26} parent=11 // pred_check
        %p162 = pneg %p58
      $region14: #{densenet_forward.26} parent=11 // pred_check_branch
        %164 = sbr.rel (%p162) target = $region16
      $region15: #{densenet_forward.26} parent=11 // pred_region
        _
      $region16: #{densenet_forward.26} parent=11 // pred_fallthru
        _
      // Predicated region
      $region17: #{densenet_forward.26} parent=11 // pred_check
        %p165 = pneg %p79
      $region18: #{densenet_forward.26} parent=11 // pred_check_branch
        %167 = sbr.rel (%p165) target = $region20
      $region19: #{densenet_forward.26} parent=11 // pred_region
        _
      $region20: #{densenet_forward.26} parent=11 // pred_fallthru
        _
      // Predicated region
      $region21: #{densenet_forward.26} parent=11 // pred_check
        %p168 = pneg %p100
      $region22: #{densenet_forward.26} parent=11 // pred_check_branch
        %170 = sbr.rel (%p168) target = $region24
      $region23: #{densenet_forward.26} parent=11 // pred_region
        _
      $region24: #{densenet_forward.26} parent=11 // pred_fallthru
        _
      // Predicated region
      $region25: #{densenet_forward.26} parent=11 // pred_check
        %p171 = pneg %p121
      $region26: #{densenet_forward.26} parent=11 // pred_check_branch
        %173 = sbr.rel (%p171) target = $region28
      $region27: #{densenet_forward.26} parent=11 // pred_region
        _
      $region28: #{densenet_forward.26} parent=11 // pred_fallthru
        _
    $region12: #{densenet_forward.26} parent=5 // pred_fallthru
      _
    %p174 = scmp.lt.s32.totalorder %s11, 2
    // Predicated region
    $region29: #{densenet_forward.26} parent=5 // pred_check
      %p175 = pneg %p174
    $region30: #{densenet_forward.26} parent=5 // pred_check_branch
      %177 = sbr.rel (%p175) target = $region32
    $region31: #{densenet_forward.26} parent=5 // pred_region
      // Predicated region
      $region33: #{densenet_forward.26} parent=31 // pred_check
        %p178 = pneg %p31
      $region34: #{densenet_forward.26} parent=31 // pred_check_branch
        %180 = sbr.rel (%p178) target = $region36
      $region35: #{densenet_forward.26} parent=31 // pred_region
        %s181 = smul.u32 2, %s11
        %p182 = scmp.lt.s32.totalorder %s181, 3
        %s183 = scalar_select %p182, %s181, 3
        %s184 = smul.addr %s183, 4
        %s185 = scalar_lea.vmem %s0, %s184
        %s186 = smul.u32 2, %s11
      $region36: #{densenet_forward.26} parent=31 // pred_fallthru
        _
    $region32: #{densenet_forward.26} parent=5 // pred_fallthru
      _
    %p187 = scmp.le.s32.totalorder 1, %s11
    %p188 = scmp.lt.s32.totalorder %s11, 3
    %p189 = pnand %p187, %p188
    %p190 = pneg %p189
    // Predicated region
    $region37: #{densenet_forward.26} parent=5 // pred_check
      _
    $region38: #{densenet_forward.26} parent=5 // pred_check_branch
      %192 = sbr.rel (%p189) target = $region40
    $region39: #{densenet_forward.26} parent=5 // pred_region
      %s193 = ssub.s32 %s11, 1
      %s194 = smul.u32 2, %s16
      %p195 = scmp.lt.s32.totalorder %s194, 3
      %s196 = scalar_select %p195, %s194, 3
      %s197 = smul.addr %s196, 4
      %s198 = scalar_lea.vmem %s0, %s197
      %p199 = pneg %p37
      %p200 = pneg %p34
      %p201 = pneg %p58
      %p202 = pneg %p55
      %p203 = pneg %p79
      %p204 = pneg %p76
      %p205 = pneg %p100
      %p206 = pneg %p97
      %p207 = pneg %p121
      %p208 = pneg %p118
      %p209 = pneg %p147
      %p210 = pneg %p144
      %s211 = smul.u32 2, %s16
      %p212 = scmp.lt.s32.totalorder %s211, 3
      %s213 = scalar_select %p212, %s211, 3
      %s214 = smul.addr %s213, 4
      %s215 = scalar_lea.vmem %s5, %s214
      %s216 = smul.u32 2, %s16
      %p217 = scmp.lt.s32.totalorder %s216, 3
      %s218 = scalar_select %p217, %s216, 3
      %s219 = smul.addr %s218, 4
      %s220 = scalar_lea.vmem %s0, %s219
      %s221 = smul.u32 2, %s16
      %s222 = smul.u32 2, %s16
      %p223 = scmp.lt.s32.totalorder %s222, 3
      %s224 = scalar_select %p223, %s222, 3
      %s225 = smul.addr %s224, 4
      %s226 = scalar_lea.vmem %s5, %s225
      %s227 = smul.u32 2, %s16
      %v229 = vld [vmem:[%s220] sm:$0xf]
      %v230 = vld [vmem:[%s220 + $0x4] sm:$0xf]
      %v231 = vunpack.c.l.bf16 %v229
      %v232 = vunpack.c.l.bf16 %v230
      %v233 = vld [vmem:[%s1] sm:$0x1]
      %v235 = vlaneseq
      %v236 = vshrl.u32 %v235, 7
      %v237 = vsub.s32 0, %v236
      %v238 = vrot.slane %v233, %v237
      %v240 = vmul.f32 %v231, %v238
      %v241 = vmul.f32 %v232, %v238
      %v242 = vld [vmem:[%s2] sm:$0x1]
      %v244 = vlaneseq
      %v245 = vshrl.u32 %v244, 7
      %v246 = vsub.s32 0, %v245
      %v247 = vrot.slane %v242, %v246
      %v249 = vadd.f32 %v240, %v247
      %v250 = vadd.f32 %v241, %v247
      %v251 = vmax.f32 %v249, 0.0
      %v252 = vmax.f32 %v250, 0.0
      %v253 = vpack.c.bf16 %v252, %v251
      %v254 = vld [vmem:[%s3] sm:$0xf]
      %v255 = vld [vmem:[%s3 + $0x4] sm:$0xf]
      %v256 = vld [vmem:[%s3 + $0x8] sm:$0xf]
      %v257 = vld [vmem:[%s3 + $0xc] sm:$0xf]
      %v258 = vld [vmem:[%s4] sm:$0x1]
      %v260 = vlaneseq
      %v261 = vshrl.u32 %v260, 7
      %v262 = vsub.s32 0, %v261
      %v263 = vrot.slane %v258, %v262
      %v269 = vunpack.c.l.b16 %v254
      %v270 = vunpack.c.l.b16 %v255
      %v271 = vunpack.c.l.b16 %v256
      %v272 = vunpack.c.l.b16 %v257
      %v273 = vpack.c.b16 %v270, %v269
      %v274 = vpack.c.b16 %v272, %v271
      %vm277 = vcmask 261120
      %v279 = vsel %vm277, %v253, 0
      %281 = vmatprep.subr.bf16.mxu0 0
      %282 = vmatpush1.bf16.msra.mxu0 0
      %283 = vmatprep.subr.bf16.mxu0 0
      %284 = vmatpush1.bf16.msra.mxu0 0
      %285 = vmatprep.subr.bf16.mxu0 0
      %286 = vmatpush1.bf16.msra.mxu0 0
      %287 = vmatprep.subr.bf16.mxu0 0
      %288 = vmatpush1.bf16.msra.mxu0 0
      %289 = vmatprep.subr.bf16.mxu0 0
      %290 = vmatpush1.bf16.msra.mxu0 0
      %291 = vmatprep.subr.bf16.mxu0 0
      %292 = vmatpush1.bf16.msra.mxu0 0
      %293 = vmatprep.subr.bf16.mxu0 0
      %294 = vmatpush1.bf16.msra.mxu0 %v274
      %295 = vmatprep.subr.bf16.mxu0 0
      %296 = vmatpush1.bf16.msra.mxu0 %v273
      %297 = vmatprep.subr.bf16.mxu0 0
      %298 = vmatpush2.bf16.msra.mxu0 0
      %299 = vmatprep.subr.bf16.mxu0 0
      %300 = vmatpush2.bf16.msra.mxu0 0
      %301 = vmatprep.subr.bf16.mxu0 0
      %302 = vmatpush2.bf16.msra.mxu0 0
      %303 = vmatprep.subr.bf16.mxu0 0
      %304 = vmatpush2.bf16.msra.mxu0 0
      %305 = vmatprep.subr.bf16.mxu0 0
      %306 = vmatpush2.bf16.msra.mxu0 0
      %307 = vmatprep.subr.bf16.mxu0 0
      %308 = vmatpush2.bf16.msra.mxu0 0
      %309 = vmatprep.subr.bf16.mxu0 0
      %310 = vmatpush2.bf16.msra.mxu0 0
      %311 = vmatprep.subr.bf16.mxu0 0
      %312 = vmatpush2.bf16.msra.mxu0 0
      %313 = vmatprep.mubr.bf16.mxu0 0
      %314 = vmatmul.mubr.bf16.gmra.mxu0 %v279
      %v315 = vpop.f32.mrf.mxu0
      %v316 = vadd.f32 %v263, %v315
      %v317 = vpop.f32.mrf.mxu0
      %v318 = vpop.f32.mrf.mxu0
      %v319 = vadd.f32 %v263, %v318
      %v320 = vpop.f32.mrf.mxu0
      %321 = vdwg.mxu0
      %v322 = vmax.f32 %v316, 0.0
      %v323 = vmax.f32 %v319, 0.0
      %v324 = vpack.c.bf16 %v323, %v322
      %v326 = vunpack.c.l.b16 %v324
      %v327 = vunpack.c.h.b16 %v324
      %v328 = vpack.c.b16 %v326, %v326
      %v329 = vpack.c.b16 %v327, %v327
      %vm332 = vcmask 125952
      %333 = vst.msk [vmem:[%s226] sm:$0xf] %vm332, %v328
      %334 = vst.msk [vmem:[%s226 + $0x4] sm:$0xf] %vm332, %v329
      %s335 = smul.u32 2, %s16
      %p336 = scmp.lt.s32.totalorder %s335, 3
      %s337 = scalar_select %p336, %s335, 3
      %s338 = smul.addr %s337, 4
      %s339 = scalar_lea.vmem %s5, %s338
      // Predicated region
      $region41: #{densenet_forward.26} parent=39 // pred_check
        %p340 = pneg %p144
      $region42: #{densenet_forward.26} parent=39 // pred_check_branch
        %342 = sbr.rel (%p340) target = $region44
      $region43: #{densenet_forward.26} parent=39 // pred_region
        %s343 = smul.u32 2, %s16
      $region44: #{densenet_forward.26} parent=39 // pred_fallthru
        _
    $region40: #{densenet_forward.26} parent=5 // pred_fallthru
      _
    %p344 = scmp.le.s32.totalorder 2, %s11
    // Predicated region
    $region45: #{densenet_forward.26} parent=5 // pred_check
      %p345 = pneg %p344
    $region46: #{densenet_forward.26} parent=5 // pred_check_branch
      %347 = sbr.rel (%p345) target = $region48
    $region47: #{densenet_forward.26} parent=5 // pred_region
      %s348 = ssub.s32 %s11, 2
      // Predicated region
      $region49: #{densenet_forward.26} parent=47 // pred_check
        %p349 = pneg %p150
      $region50: #{densenet_forward.26} parent=47 // pred_check_branch
        %351 = sbr.rel (%p349) target = $region52
      $region51: #{densenet_forward.26} parent=47 // pred_region
        %s352 = smul.u32 2, %s17
        %p353 = scmp.lt.s32.totalorder %s352, 3
        %s354 = scalar_select %p353, %s352, 3
        %s355 = smul.addr %s354, 4
        %s356 = scalar_lea.vmem %s5, %s355
      $region52: #{densenet_forward.26} parent=47 // pred_fallthru
        _
    $region48: #{densenet_forward.26} parent=5 // pred_fallthru
      _
  $region6: #{densenet_forward.26} parent=0 // loop_footer
    %s15 = sadd.s32 1, %s11
  $region7: #{densenet_forward.26} parent=0 // loop_footer_branch
    %10 = sbr.rel target = $region3
  $region8: #{densenet_forward.26} parent=0 // loop_exit
    _

// kernel: densenet_forward.27
$region0: #{densenet_forward.27}
  #allocation0 [shape = 'u32[]', space=smem, size = 0x4, offset = 0x4, fixed_abs, tag = 'smem constant byte address 0x4 - core index']
  #allocation1 [shape = 'u32[144,128]{1,0:T(1,128)}', space=vmem, size = 0x12000, scoped, tag = 'internal scratch']
  #allocation2 [shape = 'bf16[6,8,16]{2,1,0:T(8,128)(2,1)}', space=vmem, size = 0x3000, scoped, tag = 'scratch operand']
  %s0 = inlined_call_operand.vmem [shape: bf16[2,4,4,16], index: 0, kind: input, shape index: {}, may-alias: {0,1,2}]
  %s1 = inlined_call_operand.vmem [shape: bf16[2,4,4,16], index: 1, kind: input, shape index: {}, may-alias: {0,1,2}]
  %s2 = inlined_call_operand.vmem [shape: bf16[2,4,4,16], index: 2, kind: input, shape index: {}, may-alias: {0,1,2}]
  %s3 = inlined_call_operand.vmem [shape: bf16[3,16,24], index: 3, kind: input, shape index: {}]
  %s4 = inlined_call_operand.vmem [shape: bf16[2,4,4,8], index: 4, kind: output, shape index: {}]
  %s5 = sld [smem:[#allocation0]]
  $region49: #{densenet_forward.27} parent=0
    _
  %s7 = ssub.s32 1, %s5
  %s8 = scalar_select 0, %s7, %s5
  loop: start=0, step=1, limit=4
  $region2: #{densenet_forward.27} parent=0 // loop_pre_header
    _
  $region3: #{densenet_forward.27} parent=0 // loop_header
    %s10 = sphi 0, %s14
    %p11 = scmp.ge.s32.totalorder %s10, 4
    %s17 = sphi 0, %s29
    %s18 = sphi 0, %s25
    %s19 = sphi 0, %s17
    %s20 = sphi 0, %s18
    %s21 = sphi 0, %s19
    %s22 = sphi 0, %s20
    %s42 = sphi 0, %s44
    %s45 = sphi 0, %s42
    %s46 = sphi 0, %s45
    %s62 = sphi 0, %s46
    %s70 = sphi 0, %s72
    %s73 = sphi 0, %s70
    %s74 = sphi 0, %s73
    %s90 = sphi 0, %s74
    %s106 = sphi 0, %s108
    %s109 = sphi 0, %s106
    %s110 = sphi 0, %s109
    %s126 = sphi 0, %s110
    %s130 = sphi 0, %s130
    %s132 = sphi 0, %s130
    %s133 = sphi 0, %s132
    %s147 = sphi 0, %s133
    %s155 = sphi 0, %s157
    %s158 = sphi 0, %s155
    %s159 = sphi 0, %s158
    %s175 = sphi 0, %s159
  $region4: #{densenet_forward.27} parent=0 // loop_header_branch
    %13 = sbr.rel (%p11) target = $region8
  $region5: #{densenet_forward.27} parent=0 // loop_body
    %s15 = ssub.s32 %s10, 1
    %s16 = ssub.s32 %s10, 2
    %s23 = sadd.s32 1, %s18
    %p24 = scmp.ge.s32.totalorder %s23, 1
    %s25 = scalar_select %p24, 0, %s23
    %s26 = sadd.s32 1, %s17
    %s27 = scalar_select %p24, %s26, %s17
    %p28 = scmp.ge.s32.totalorder %s27, 2
    %s29 = scalar_select %p28, 0, %s27
    %s30 = smul.u32 %s18, 4
    %s31 = sadd.s32 %s30, 4294967295
    %p32 = scmp.gt.s32.totalorder %s31, 0
    %s33 = scalar_select %p32, %s31, 0
    %s34 = smul.u32 %s25, 4
    %s35 = sadd.s32 %s34, 4294967295
    %p36 = scmp.gt.s32.totalorder %s35, 0
    %s37 = scalar_select %p36, %s35, 0
    %s38 = ssub.s32 %s17, %s29
    %s39 = ssub.s32 %s33, %s37
    %s40 = sor.u32 %s38, %s39
    %p41 = scmp.eq.s32.totalorder %s40, 0
    %s43 = sadd.s32 %s42, 1
    %s44 = scalar_select %p41, %s42, %s43
    %p47 = pneg %p41
    %p48 = scmp.eq.s32.totalorder %s10, 1
    %p49 = por %p47, %p48
    %p50 = scmp.ne.s32.totalorder %s42, %s45
    %p51 = scmp.eq.s32.totalorder %s10, 0
    %p52 = por %p50, %p51
    %p53 = scmp.ne.s32.totalorder %s42, %s45
    %p54 = scmp.eq.s32.totalorder %s15, 1
    %p55 = por %p53, %p54
    %p56 = scmp.ne.s32.totalorder %s45, %s46
    %p57 = scmp.eq.s32.totalorder %s15, 0
    %p58 = por %p56, %p57
    %p59 = scmp.ne.s32.totalorder %s45, %s46
    %p60 = scmp.eq.s32.totalorder %s16, 1
    %p61 = por %p59, %p60
    %p63 = scmp.ne.s32.totalorder %s46, %s62
    %p64 = scmp.eq.s32.totalorder %s16, 0
    %p65 = por %p63, %p64
    %s66 = ssub.s32 %s17, %s29
    %s67 = ssub.s32 %s18, %s25
    %s68 = sor.u32 %s66, %s67
    %p69 = scmp.eq.s32.totalorder %s68, 0
    %s71 = sadd.s32 %s70, 1
    %s72 = scalar_select %p69, %s70, %s71
    %p75 = pneg %p69
    %p76 = scmp.eq.s32.totalorder %s10, 1
    %p77 = por %p75, %p76
    %p78 = scmp.ne.s32.totalorder %s70, %s73
    %p79 = scmp.eq.s32.totalorder %s10, 0
    %p80 = por %p78, %p79
    %p81 = scmp.ne.s32.totalorder %s70, %s73
    %p82 = scmp.eq.s32.totalorder %s15, 1
    %p83 = por %p81, %p82
    %p84 = scmp.ne.s32.totalorder %s73, %s74
    %p85 = scmp.eq.s32.totalorder %s15, 0
    %p86 = por %p84, %p85
    %p87 = scmp.ne.s32.totalorder %s73, %s74
    %p88 = scmp.eq.s32.totalorder %s16, 1
    %p89 = por %p87, %p88
    %p91 = scmp.ne.s32.totalorder %s74, %s90
    %p92 = scmp.eq.s32.totalorder %s16, 0
    %p93 = por %p91, %p92
    %s94 = smul.u32 %s18, 4
    %s95 = sadd.s32 %s94, 4
    %p96 = scmp.lt.s32.totalorder %s95, 3
    %s97 = scalar_select %p96, %s95, 3
    %s98 = smul.u32 %s25, 4
    %s99 = sadd.s32 %s98, 4
    %p100 = scmp.lt.s32.totalorder %s99, 3
    %s101 = scalar_select %p100, %s99, 3
    %s102 = ssub.s32 %s17, %s29
    %s103 = ssub.s32 %s97, %s101
    %s104 = sor.u32 %s102, %s103
    %p105 = scmp.eq.s32.totalorder %s104, 0
    %s107 = sadd.s32 %s106, 1
    %s108 = scalar_select %p105, %s106, %s107
    %p111 = pneg %p105
    %p112 = scmp.eq.s32.totalorder %s10, 1
    %p113 = por %p111, %p112
    %p114 = scmp.ne.s32.totalorder %s106, %s109
    %p115 = scmp.eq.s32.totalorder %s10, 0
    %p116 = por %p114, %p115
    %p117 = scmp.ne.s32.totalorder %s106, %s109
    %p118 = scmp.eq.s32.totalorder %s15, 1
    %p119 = por %p117, %p118
    %p120 = scmp.ne.s32.totalorder %s109, %s110
    %p121 = scmp.eq.s32.totalorder %s15, 0
    %p122 = por %p120, %p121
    %p123 = scmp.ne.s32.totalorder %s109, %s110
    %p124 = scmp.eq.s32.totalorder %s16, 1
    %p125 = por %p123, %p124
    %p127 = scmp.ne.s32.totalorder %s110, %s126
    %p128 = scmp.eq.s32.totalorder %s16, 0
    %p129 = por %p127, %p128
    %s131 = sadd.s32 %s130, 1
    %p134 = scmp.eq.s32.totalorder %s10, 1
    %p135 = scmp.ne.s32.totalorder %s130, %s132
    %p136 = scmp.eq.s32.totalorder %s10, 0
    %p137 = por %p135, %p136
    %p138 = scmp.ne.s32.totalorder %s130, %s132
    %p139 = scmp.eq.s32.totalorder %s15, 1
    %p140 = por %p138, %p139
    %p141 = scmp.ne.s32.totalorder %s132, %s133
    %p142 = scmp.eq.s32.totalorder %s15, 0
    %p143 = por %p141, %p142
    %p144 = scmp.ne.s32.totalorder %s132, %s133
    %p145 = scmp.eq.s32.totalorder %s16, 1
    %p146 = por %p144, %p145
    %p148 = scmp.ne.s32.totalorder %s133, %s147
    %p149 = scmp.eq.s32.totalorder %s16, 0
    %p150 = por %p148, %p149
    %s151 = ssub.s32 %s17, %s29
    %s152 = ssub.s32 %s18, %s25
    %s153 = sor.u32 %s151, %s152
    %p154 = scmp.eq.s32.totalorder %s153, 0
    %s156 = sadd.s32 %s155, 1
    %s157 = scalar_select %p154, %s155, %s156
    %p160 = pneg %p154
    %p161 = scmp.eq.s32.totalorder %s10, 1
    %p162 = por %p160, %p161
    %p163 = scmp.ne.s32.totalorder %s155, %s158
    %p164 = scmp.eq.s32.totalorder %s10, 0
    %p165 = por %p163, %p164
    %p166 = scmp.ne.s32.totalorder %s155, %s158
    %p167 = scmp.eq.s32.totalorder %s15, 1
    %p168 = por %p166, %p167
    %p169 = scmp.ne.s32.totalorder %s158, %s159
    %p170 = scmp.eq.s32.totalorder %s15, 0
    %p171 = por %p169, %p170
    %p172 = scmp.ne.s32.totalorder %s158, %s159
    %p173 = scmp.eq.s32.totalorder %s16, 1
    %p174 = por %p172, %p173
    %p176 = scmp.ne.s32.totalorder %s159, %s175
    %p177 = scmp.eq.s32.totalorder %s16, 0
    %p178 = por %p176, %p177
    %p179 = scmp.le.s32.totalorder 1, %s10
    %p180 = scmp.lt.s32.totalorder %s10, 3
    %p181 = pnand %p179, %p180
    %p182 = pneg %p181
    // Predicated region
    $region9: #{densenet_forward.27} parent=5 // pred_check
      _
    $region10: #{densenet_forward.27} parent=5 // pred_check_branch
      %184 = sbr.rel (%p181) target = $region12
    $region11: #{densenet_forward.27} parent=5 // pred_region
      %s185 = ssub.s32 %s10, 1
      // Predicated region
      $region13: #{densenet_forward.27} parent=11 // pred_check
        %p186 = pneg %p143
      $region14: #{densenet_forward.27} parent=11 // pred_check_branch
        %188 = sbr.rel (%p186) target = $region16
      $region15: #{densenet_forward.27} parent=11 // pred_region
        _
      $region16: #{densenet_forward.27} parent=11 // pred_fallthru
        _
    $region12: #{densenet_forward.27} parent=5 // pred_fallthru
      _
    %p189 = scmp.lt.s32.totalorder %s10, 2
    // Predicated region
    $region17: #{densenet_forward.27} parent=5 // pred_check
      %p190 = pneg %p189
    $region18: #{densenet_forward.27} parent=5 // pred_check_branch
      %192 = sbr.rel (%p190) target = $region20
    $region19: #{densenet_forward.27} parent=5 // pred_region
      // Predicated region
      $region21: #{densenet_forward.27} parent=19 // pred_check
        %p193 = pneg %p52
      $region22: #{densenet_forward.27} parent=19 // pred_check_branch
        %195 = sbr.rel (%p193) target = $region24
      $region23: #{densenet_forward.27} parent=19 // pred_region
        %s196 = smul.u32 %s18, 4
        %s197 = sadd.s32 %s196, 4294967295
        %p198 = scmp.gt.s32.totalorder %s197, 0
        %s199 = scalar_select %p198, %s197, 0
        %p200 = scmp.lt.s32.totalorder %s17, 1
        %s201 = scalar_select %p200, %s17, 1
        %p202 = scmp.lt.s32.totalorder %s199, 3
        %s203 = scalar_select %p202, %s199, 3
        %s204 = smul.addr %s201, 4
        %s205 = sadd.s32 %s203, %s204
        %s206 = smul.addr %s205, 2
        %s207 = scalar_lea.vmem %s0, %s206
        %s208 = smul.u32 %s18, 4
        %s209 = sadd.s32 %s208, 4294967295
        %p210 = scmp.gt.s32.totalorder %s209, 0
        %s211 = scalar_select %p210, %s209, 0
      $region24: #{densenet_forward.27} parent=19 // pred_fallthru
        _
      // Predicated region
      $region25: #{densenet_forward.27} parent=19 // pred_check
        %p212 = pneg %p80
      $region26: #{densenet_forward.27} parent=19 // pred_check_branch
        %214 = sbr.rel (%p212) target = $region28
      $region27: #{densenet_forward.27} parent=19 // pred_region
        %s215 = smul.u32 4, %s18
        %p216 = scmp.lt.s32.totalorder %s17, 1
        %s217 = scalar_select %p216, %s17, 1
        %p218 = scmp.lt.s32.totalorder %s215, 3
        %s219 = scalar_select %p218, %s215, 3
        %s220 = smul.addr %s217, 4
        %s221 = sadd.s32 %s219, %s220
        %s222 = smul.addr %s221, 2
        %s223 = scalar_lea.vmem %s1, %s222
        %s224 = smul.u32 4, %s18
      $region28: #{densenet_forward.27} parent=19 // pred_fallthru
        _
      // Predicated region
      $region29: #{densenet_forward.27} parent=19 // pred_check
        %p225 = pneg %p116
      $region30: #{densenet_forward.27} parent=19 // pred_check_branch
        %227 = sbr.rel (%p225) target = $region32
      $region31: #{densenet_forward.27} parent=19 // pred_region
        %s228 = smul.u32 %s18, 4
        %s229 = sadd.s32 %s228, 4
        %p230 = scmp.lt.s32.totalorder %s229, 3
        %s231 = scalar_select %p230, %s229, 3
        %p232 = scmp.lt.s32.totalorder %s17, 1
        %s233 = scalar_select %p232, %s17, 1
        %p234 = scmp.lt.s32.totalorder %s231, 3
        %s235 = scalar_select %p234, %s231, 3
        %s236 = smul.addr %s233, 4
        %s237 = sadd.s32 %s235, %s236
        %s238 = smul.addr %s237, 2
        %s239 = scalar_lea.vmem %s2, %s238
        %s240 = smul.u32 %s18, 4
        %s241 = sadd.s32 %s240, 4
        %p242 = scmp.lt.s32.totalorder %s241, 3
        %s243 = scalar_select %p242, %s241, 3
      $region32: #{densenet_forward.27} parent=19 // pred_fallthru
        _
    $region20: #{densenet_forward.27} parent=5 // pred_fallthru
      _
    %p244 = scmp.le.s32.totalorder 1, %s10
    %p245 = scmp.lt.s32.totalorder %s10, 3
    %p246 = pnand %p244, %p245
    %p247 = pneg %p246
    // Predicated region
    $region33: #{densenet_forward.27} parent=5 // pred_check
      _
    $region34: #{densenet_forward.27} parent=5 // pred_check_branch
      %249 = sbr.rel (%p246) target = $region36
    $region35: #{densenet_forward.27} parent=5 // pred_region
      %s250 = ssub.s32 %s10, 1
      %s251 = smul.u32 %s20, 4
      %s252 = sadd.s32 %s251, 4294967295
      %p253 = scmp.gt.s32.totalorder %s252, 0
      %s254 = scalar_select %p253, %s252, 0
      %p255 = scmp.lt.s32.totalorder %s19, 1
      %s256 = scalar_select %p255, %s19, 1
      %p257 = scmp.lt.s32.totalorder %s254, 3
      %s258 = scalar_select %p257, %s254, 3
      %s259 = smul.addr %s256, 4
      %s260 = sadd.s32 %s258, %s259
      %s261 = smul.addr %s260, 2
      %s262 = scalar_lea.vmem %s0, %s261
      %p263 = pneg %p58
      %p264 = pneg %p55
      %s265 = smul.u32 4, %s20
      %p266 = scmp.lt.s32.totalorder %s19, 1
      %s267 = scalar_select %p266, %s19, 1
      %p268 = scmp.lt.s32.totalorder %s265, 3
      %s269 = scalar_select %p268, %s265, 3
      %s270 = smul.addr %s267, 4
      %s271 = sadd.s32 %s269, %s270
      %s272 = smul.addr %s271, 2
      %s273 = scalar_lea.vmem %s1, %s272
      %p274 = pneg %p86
      %p275 = pneg %p83
      %s276 = smul.u32 %s20, 4
      %s277 = sadd.s32 %s276, 4
      %p278 = scmp.lt.s32.totalorder %s277, 3
      %s279 = scalar_select %p278, %s277, 3
      %p280 = scmp.lt.s32.totalorder %s19, 1
      %s281 = scalar_select %p280, %s19, 1
      %p282 = scmp.lt.s32.totalorder %s279, 3
      %s283 = scalar_select %p282, %s279, 3
      %s284 = smul.addr %s281, 4
      %s285 = sadd.s32 %s283, %s284
      %s286 = smul.addr %s285, 2
      %s287 = scalar_lea.vmem %s2, %s286
      %p288 = pneg %p122
      %p289 = pneg %p119
      %p290 = pneg %p143
      %p291 = pneg %p140
      %p292 = pneg %p171
      %p293 = pneg %p168
      %s294 = smul.u32 4, %s20
      %p295 = scmp.lt.s32.totalorder %s19, 1
      %s296 = scalar_select %p295, %s19, 1
      %p297 = scmp.lt.s32.totalorder %s294, 3
      %s298 = scalar_select %p297, %s294, 3
      %s299 = smul.addr %s296, 4
      %s300 = sadd.s32 %s298, %s299
      %s301 = smul.addr %s300, 2
      %s302 = scalar_lea.vmem %s4, %s301
      %s303 = smul.u32 %s20, 4
      %s304 = sadd.s32 %s303, 4294967295
      %p305 = scmp.gt.s32.totalorder %s304, 0
      %s306 = scalar_select %p305, %s304, 0
      %p307 = scmp.lt.s32.totalorder %s19, 1
      %s308 = scalar_select %p307, %s19, 1
      %p309 = scmp.lt.s32.totalorder %s306, 3
      %s310 = scalar_select %p309, %s306, 3
      %s311 = smul.addr %s308, 4
      %s312 = sadd.s32 %s310, %s311
      %s313 = smul.addr %s312, 2
      %s314 = scalar_lea.vmem %s0, %s313
      %s315 = smul.u32 %s20, 4
      %s316 = sadd.s32 %s315, 4294967295
      %p317 = scmp.gt.s32.totalorder %s316, 0
      %s318 = scalar_select %p317, %s316, 0
      %s319 = smul.u32 4, %s20
      %p320 = scmp.lt.s32.totalorder %s19, 1
      %s321 = scalar_select %p320, %s19, 1
      %p322 = scmp.lt.s32.totalorder %s319, 3
      %s323 = scalar_select %p322, %s319, 3
      %s324 = smul.addr %s321, 4
      %s325 = sadd.s32 %s323, %s324
      %s326 = smul.addr %s325, 2
      %s327 = scalar_lea.vmem %s1, %s326
      %s328 = smul.u32 4, %s20
      %s329 = smul.u32 %s20, 4
      %s330 = sadd.s32 %s329, 4
      %p331 = scmp.lt.s32.totalorder %s330, 3
      %s332 = scalar_select %p331, %s330, 3
      %p333 = scmp.lt.s32.totalorder %s19, 1
      %s334 = scalar_select %p333, %s19, 1
      %p335 = scmp.lt.s32.totalorder %s332, 3
      %s336 = scalar_select %p335, %s332, 3
      %s337 = smul.addr %s334, 4
      %s338 = sadd.s32 %s336, %s337
      %s339 = smul.addr %s338, 2
      %s340 = scalar_lea.vmem %s2, %s339
      %s341 = smul.u32 %s20, 4
      %s342 = sadd.s32 %s341, 4
      %p343 = scmp.lt.s32.totalorder %s342, 3
      %s344 = scalar_select %p343, %s342, 3
      %s345 = smul.u32 4, %s20
      %p346 = scmp.lt.s32.totalorder %s19, 1
      %s347 = scalar_select %p346, %s19, 1
      %p348 = scmp.lt.s32.totalorder %s345, 3
      %s349 = scalar_select %p348, %s345, 3
      %s350 = smul.addr %s347, 4
      %s351 = sadd.s32 %s349, %s350
      %s352 = smul.addr %s351, 2
      %s353 = scalar_lea.vmem %s4, %s352
      %s354 = smul.u32 4, %s20
      %vm357 = vcmask 125954
      %358 = vst.msk [vmem:[#allocation2] sm:$0xc] %vm357, 0
      %359 = vst.msk [vmem:[#allocation2 + $0x4] sm:$0xc] %vm357, 0
      %360 = vst.msk [vmem:[#allocation2 + $0x8] sm:$0xc] %vm357, 0
      %361 = vst.msk [vmem:[#allocation2 + $0xc] sm:$0xc] %vm357, 0
      %362 = vst.msk [vmem:[#allocation2 + $0x10] sm:$0xc] %vm357, 0
      %363 = vst.msk [vmem:[#allocation2 + $0x14] sm:$0xc] %vm357, 0
      %v364 = vld [vmem:[%s327] sm:$0x3]
      %v365 = vld [vmem:[%s327 + $0x2] sm:$0x3]
      %v366 = vld [vmem:[%s327 + $0x4] sm:$0x3]
      %v367 = vld [vmem:[%s327 + $0x6] sm:$0x3]
      %s368 = scalar_lea.vmem [#allocation2], 4
      %vm369 = vcmask 123904
      %370 = vst.msk [vmem:[%s368] sm:$0x3] %vm369, %v364
      %371 = vst.msk [vmem:[%s368 + $0x4] sm:$0x3] %vm369, %v365
      %372 = vst.msk [vmem:[%s368 + $0x8] sm:$0x3] %vm369, %v366
      %373 = vst.msk [vmem:[%s368 + $0xc] sm:$0x3] %vm369, %v367
      %v374 = vld [vmem:[%s314] sm:$0x3]
      %s375 = smul.u32 %s20, 4
      %s376 = sadd.s32 %s375, 4294967295
      %p377 = scmp.ge.s32.totalorder %s376, 0
      %s378 = scalar_select %p377, 1, 0
      %v379 = vstv %s378
      %vm380 = vcmp.eq.s32.totalorder %v379, 1
      %v381 = vsel %vm380, 1, 0
      %v382 = vpack.c.b16 %v381, %v381
      %vm383 = vcmp.ne.s16.totalorder %v382, 0
      %v384 = vsel %vm383, %v374, 0
      %385 = vst.msk [vmem:[#allocation2] sm:$0x3] %vm369, %v384
      %v386 = vld [vmem:[%s340] sm:$0x3]
      %s387 = sadd.s32 %s375, 4
      %p388 = scmp.lt.s32.totalorder %s387, 4
      %s389 = scalar_select %p388, 1, 0
      %v390 = vstv %s389
      %vm391 = vcmp.eq.s32.totalorder %v390, 1
      %v392 = vsel %vm391, 1, 0
      %v393 = vpack.c.b16 %v392, %v392
      %vm394 = vcmp.ne.s16.totalorder %v393, 0
      %v395 = vsel %vm394, %v386, 0
      %s396 = scalar_lea.vmem [#allocation2], 20
      %397 = vst.msk [vmem:[%s396] sm:$0x3] %vm369, %v395
      %v398 = vld [vmem:[#allocation2] sm:$0xf]
      %v399 = vld [vmem:[#allocation2 + $0x4] sm:$0xf]
      %v400 = vld [vmem:[#allocation2 + $0x8] sm:$0xf]
      %v401 = vld [vmem:[#allocation2 + $0xc] sm:$0xf]
      %v402 = vld [vmem:[%s3] sm:$0xf]
      %v403 = vld [vmem:[%s3 + $0x4] sm:$0xf]
      %v404 = vld [vmem:[%s368] sm:$0xf]
      %v405 = vld [vmem:[%s368 + $0x4] sm:$0xf]
      %v406 = vld [vmem:[%s368 + $0x8] sm:$0xf]
      %v407 = vld [vmem:[%s368 + $0xc] sm:$0xf]
      %s408 = scalar_lea.vmem %s3, 8
      %v409 = vld [vmem:[%s408] sm:$0xf]
      %v410 = vld [vmem:[%s408 + $0x4] sm:$0xf]
      %v415 = vunpack.c.l.b16 %v404
      %v416 = vunpack.c.l.b16 %v405
      %v417 = vunpack.c.l.b16 %v406
      %v418 = vunpack.c.l.b16 %v407
      %v419 = vpack.c.b16 %v416, %v415
      %v420 = vpack.c.b16 %v418, %v417
      %v423 = vunpack.c.l.b16 %v409
      %v424 = vunpack.c.l.b16 %v410
      %v425 = vpack.c.b16 %v424, %v423
      %vm427 = vcmask 130048
      %v429 = vsel %vm427, %v419, 0
      %v432 = vsel %vm427, %v420, 0
      %434 = vmatprep.subr.bf16.mxu0 0
      %435 = vmatpush1.bf16.msra.mxu0 0
      %436 = vmatprep.subr.bf16.mxu0 0
      %437 = vmatpush1.bf16.msra.mxu0 0
      %438 = vmatprep.subr.bf16.mxu0 0
      %439 = vmatpush1.bf16.msra.mxu0 0
      %440 = vmatprep.subr.bf16.mxu0 0
      %441 = vmatpush1.bf16.msra.mxu0 0
      %442 = vmatprep.subr.bf16.mxu0 0
      %443 = vmatpush1.bf16.msra.mxu0 0
      %444 = vmatprep.subr.bf16.mxu0 0
      %445 = vmatpush1.bf16.msra.mxu0 0
      %446 = vmatprep.subr.bf16.mxu0 0
      %447 = vmatpush1.bf16.msra.mxu0 0
      %448 = vmatprep.subr.bf16.mxu0 0
      %449 = vmatpush1.bf16.msra.mxu0 %v425
      %450 = vmatprep.subr.bf16.mxu0 0
      %451 = vmatpush2.bf16.msra.mxu0 0
      %452 = vmatprep.subr.bf16.mxu0 0
      %453 = vmatpush2.bf16.msra.mxu0 0
      %454 = vmatprep.subr.bf16.mxu0 0
      %455 = vmatpush2.bf16.msra.mxu0 0
      %456 = vmatprep.subr.bf16.mxu0 0
      %457 = vmatpush2.bf16.msra.mxu0 0
      %458 = vmatprep.subr.bf16.mxu0 0
      %459 = vmatpush2.bf16.msra.mxu0 0
      %460 = vmatprep.subr.bf16.mxu0 0
      %461 = vmatpush2.bf16.msra.mxu0 0
      %462 = vmatprep.subr.bf16.mxu0 0
      %463 = vmatpush2.bf16.msra.mxu0 0
      %464 = vmatprep.subr.bf16.mxu0 0
      %465 = vmatpush2.bf16.msra.mxu0 0
      %466 = vmatprep.mubr.bf16.mxu0 0
      %467 = vmatmul.mubr.bf16.gmra.mxu0 %v429
      %v468 = vpop.f32.mrf.mxu0
      %v469 = vadd.f32 0.0, %v468
      %v470 = vpop.f32.mrf.mxu0
      %v471 = vpop.f32.mrf.mxu0
      %v472 = vadd.f32 0.0, %v471
      %v473 = vpop.f32.mrf.mxu0
      %474 = vmatprep.mubr.bf16.mxu0 0
      %475 = vmatmul.mubr.bf16.gmra.mxu0 %v432
      %v476 = vpop.f32.mrf.mxu0
      %v477 = vadd.f32 0.0, %v476
      %v478 = vpop.f32.mrf.mxu0
      %v479 = vpop.f32.mrf.mxu0
      %v480 = vadd.f32 0.0, %v479
      %v481 = vpop.f32.mrf.mxu0
      %482 = vdwg.mxu0
      %v487 = vunpack.c.l.b16 %v398
      %v488 = vunpack.c.l.b16 %v399
      %v489 = vunpack.c.l.b16 %v400
      %v490 = vunpack.c.l.b16 %v401
      %v491 = vpack.c.b16 %v488, %v487
      %v492 = vpack.c.b16 %v490, %v489
      %v495 = vunpack.c.l.b16 %v402
      %v496 = vunpack.c.l.b16 %v403
      %v497 = vpack.c.b16 %v496, %v495
      %v500 = vsel %vm427, %v491, 0
      %v503 = vsel %vm427, %v492, 0
      %505 = vmatprep.subr.bf16.mxu0 0
      %506 = vmatpush1.bf16.msra.mxu0 0
      %507 = vmatprep.subr.bf16.mxu0 0
      %508 = vmatpush1.bf16.msra.mxu0 0
      %509 = vmatprep.subr.bf16.mxu0 0
      %510 = vmatpush1.bf16.msra.mxu0 0
      %511 = vmatprep.subr.bf16.mxu0 0
      %512 = vmatpush1.bf16.msra.mxu0 0
      %513 = vmatprep.subr.bf16.mxu0 0
      %514 = vmatpush1.bf16.msra.mxu0 0
      %515 = vmatprep.subr.bf16.mxu0 0
      %516 = vmatpush1.bf16.msra.mxu0 0
      %517 = vmatprep.subr.bf16.mxu0 0
      %518 = vmatpush1.bf16.msra.mxu0 0
      %519 = vmatprep.subr.bf16.mxu0 0
      %520 = vmatpush1.bf16.msra.mxu0 %v497
      %521 = vmatprep.subr.bf16.mxu0 0
      %522 = vmatpush2.bf16.msra.mxu0 0
      %523 = vmatprep.subr.bf16.mxu0 0
      %524 = vmatpush2.bf16.msra.mxu0 0
      %525 = vmatprep.subr.bf16.mxu0 0
      %526 = vmatpush2.bf16.msra.mxu0 0
      %527 = vmatprep.subr.bf16.mxu0 0
      %528 = vmatpush2.bf16.msra.mxu0 0
      %529 = vmatprep.subr.bf16.mxu0 0
      %530 = vmatpush2.bf16.msra.mxu0 0
      %531 = vmatprep.subr.bf16.mxu0 0
      %532 = vmatpush2.bf16.msra.mxu0 0
      %533 = vmatprep.subr.bf16.mxu0 0
      %534 = vmatpush2.bf16.msra.mxu0 0
      %535 = vmatprep.subr.bf16.mxu0 0
      %536 = vmatpush2.bf16.msra.mxu0 0
      %537 = vmatprep.mubr.bf16.mxu0 0
      %538 = vmatmul.mubr.bf16.gmra.mxu0 %v500
      %v539 = vpop.f32.mrf.mxu0
      %v540 = vadd.f32 %v469, %v539
      %v541 = vpop.f32.mrf.mxu0
      %v542 = vpop.f32.mrf.mxu0
      %v543 = vadd.f32 %v472, %v542
      %v544 = vpop.f32.mrf.mxu0
      %545 = vmatprep.mubr.bf16.mxu0 0
      %546 = vmatmul.mubr.bf16.gmra.mxu0 %v503
      %v547 = vpop.f32.mrf.mxu0
      %v548 = vadd.f32 %v477, %v547
      %v549 = vpop.f32.mrf.mxu0
      %v550 = vpop.f32.mrf.mxu0
      %v551 = vadd.f32 %v480, %v550
      %v552 = vpop.f32.mrf.mxu0
      %553 = vdwg.mxu0
      %s554 = scalar_lea.vmem [#allocation2], 8
      %v555 = vld [vmem:[%s554] sm:$0xf]
      %v556 = vld [vmem:[%s554 + $0x4] sm:$0xf]
      %v557 = vld [vmem:[%s554 + $0x8] sm:$0xf]
      %v558 = vld [vmem:[%s554 + $0xc] sm:$0xf]
      %s559 = scalar_lea.vmem %s3, 16
      %v560 = vld [vmem:[%s559] sm:$0xf]
      %v561 = vld [vmem:[%s559 + $0x4] sm:$0xf]
      %v566 = vunpack.c.l.b16 %v555
      %v567 = vunpack.c.l.b16 %v556
      %v568 = vunpack.c.l.b16 %v557
      %v569 = vunpack.c.l.b16 %v558
      %v570 = vpack.c.b16 %v567, %v566
      %v571 = vpack.c.b16 %v569, %v568
      %v574 = vunpack.c.l.b16 %v560
      %v575 = vunpack.c.l.b16 %v561
      %v576 = vpack.c.b16 %v575, %v574
      %v579 = vsel %vm427, %v570, 0
      %v582 = vsel %vm427, %v571, 0
      %584 = vmatprep.subr.bf16.mxu0 0
      %585 = vmatpush1.bf16.msra.mxu0 0
      %586 = vmatprep.subr.bf16.mxu0 0
      %587 = vmatpush1.bf16.msra.mxu0 0
      %588 = vmatprep.subr.bf16.mxu0 0
      %589 = vmatpush1.bf16.msra.mxu0 0
      %590 = vmatprep.subr.bf16.mxu0 0
      %591 = vmatpush1.bf16.msra.mxu0 0
      %592 = vmatprep.subr.bf16.mxu0 0
      %593 = vmatpush1.bf16.msra.mxu0 0
      %594 = vmatprep.subr.bf16.mxu0 0
      %595 = vmatpush1.bf16.msra.mxu0 0
      %596 = vmatprep.subr.bf16.mxu0 0
      %597 = vmatpush1.bf16.msra.mxu0 0
      %598 = vmatprep.subr.bf16.mxu0 0
      %599 = vmatpush1.bf16.msra.mxu0 %v576
      %600 = vmatprep.subr.bf16.mxu0 0
      %601 = vmatpush2.bf16.msra.mxu0 0
      %602 = vmatprep.subr.bf16.mxu0 0
      %603 = vmatpush2.bf16.msra.mxu0 0
      %604 = vmatprep.subr.bf16.mxu0 0
      %605 = vmatpush2.bf16.msra.mxu0 0
      %606 = vmatprep.subr.bf16.mxu0 0
      %607 = vmatpush2.bf16.msra.mxu0 0
      %608 = vmatprep.subr.bf16.mxu0 0
      %609 = vmatpush2.bf16.msra.mxu0 0
      %610 = vmatprep.subr.bf16.mxu0 0
      %611 = vmatpush2.bf16.msra.mxu0 0
      %612 = vmatprep.subr.bf16.mxu0 0
      %613 = vmatpush2.bf16.msra.mxu0 0
      %614 = vmatprep.subr.bf16.mxu0 0
      %615 = vmatpush2.bf16.msra.mxu0 0
      %616 = vmatprep.mubr.bf16.mxu0 0
      %617 = vmatmul.mubr.bf16.gmra.mxu0 %v579
      %v618 = vpop.f32.mrf.mxu0
      %v619 = vadd.f32 0.0, %v618
      %v620 = vpop.f32.mrf.mxu0
      %v621 = vpop.f32.mrf.mxu0
      %v622 = vadd.f32 0.0, %v621
      %v623 = vpop.f32.mrf.mxu0
      %624 = vmatprep.mubr.bf16.mxu0 0
      %625 = vmatmul.mubr.bf16.gmra.mxu0 %v582
      %v626 = vpop.f32.mrf.mxu0
      %v627 = vadd.f32 0.0, %v626
      %v628 = vpop.f32.mrf.mxu0
      %v629 = vpop.f32.mrf.mxu0
      %v630 = vadd.f32 0.0, %v629
      %v631 = vpop.f32.mrf.mxu0
      %632 = vdwg.mxu0
      %v633 = vadd.f32 %v540, %v619
      %v634 = vadd.f32 %v543, %v622
      %v635 = vadd.f32 %v548, %v627
      %v636 = vadd.f32 %v551, %v630
      %v637 = vrot.slane %v633, 7
      %v638 = vrot.slane %v634, 7
      %v639 = vrot.slane %v635, 7
      %v640 = vrot.slane %v636, 7
      %v641 = vlaneseq
      %v642 = vshrl.u32 %v641, 7
      %vm643 = vcmp.lt.s32.totalorder %v642, 1
      %v644 = vsel %vm643, %v639, %v640
      %v645 = vsel %vm643, %v638, %v639
      %v646 = vsel %vm643, %v637, %v638
      %v647 = vsel %vm643, %v640, %v637
      %652 = vrot.lane.b32.xlu0 %v647, 8
      %v653 = vpop.permute.xlu0 %652
      %654 = vrot.lane.b32.xlu0 %v646, 8
      %v655 = vpop.permute.xlu0 %654
      %656 = vrot.lane.b32.xlu0 %v645, 8
      %v657 = vpop.permute.xlu0 %656
      %658 = vrot.lane.b32.xlu0 %v644, 8
      %v659 = vpop.permute.xlu0 %658
      %v664 = vadd.f32 %v633, %v653
      %v665 = vadd.f32 %v634, %v655
      %v666 = vadd.f32 %v635, %v657
      %v667 = vadd.f32 %v636, %v659
      %672 = vrot.lane.b32.xlu0 %v633, 112
      %v673 = vpop.permute.xlu0 %672
      %674 = vrot.lane.b32.xlu0 %v634, 112
      %v675 = vpop.permute.xlu0 %674
      %676 = vrot.lane.b32.xlu0 %v635, 112
      %v677 = vpop.permute.xlu0 %676
      %678 = vrot.lane.b32.xlu0 %v636, 112
      %v679 = vpop.permute.xlu0 %678
      %v684 = vrot.slane %v673, 1
      %v685 = vrot.slane %v675, 1
      %v686 = vrot.slane %v677, 1
      %v687 = vrot.slane %v679, 1
      %vm688 = vcmp.lt.s32.totalorder %v642, 7
      %v689 = vsel %vm688, %v686, %v687
      %v690 = vsel %vm688, %v685, %v686
      %v691 = vsel %vm688, %v684, %v685
      %v692 = vsel %vm688, %v687, %v684
      %697 = vrot.lane.b32.xlu0 %v691, 8
      %v698 = vpop.permute.xlu0 %697
      %699 = vrot.lane.b32.xlu0 %v690, 8
      %v700 = vpop.permute.xlu0 %699
      %701 = vrot.lane.b32.xlu0 %v689, 8
      %v702 = vpop.permute.xlu0 %701
      %703 = vrot.lane.b32.xlu0 %v692, 8
      %v704 = vpop.permute.xlu0 %703
      %v709 = vadd.f32 %v664, %v698
      %v710 = vadd.f32 %v665, %v700
      %v711 = vadd.f32 %v666, %v702
      %v712 = vadd.f32 %v667, %v704
      %v713 = vpack.c.bf16 %v709, %v709
      %v714 = vpack.c.bf16 %v710, %v710
      %v715 = vpack.c.bf16 %v711, %v711
      %v716 = vpack.c.bf16 %v712, %v712
      %v722 = vunpack.c.l.s4 1983009808
      %v723 = vunpack.c.0.s8 %v722
      %v724 = vlaneseq
      %v725 = vshrl.u32 %v724, 7
      %v726 = vsub.s32 %v723, %v725
      %v727 = vrot.slane %v713, %v726
      %v729 = vunpack.c.l.s4 1983009808
      %v730 = vunpack.c.0.s8 %v729
      %v731 = vlaneseq
      %v732 = vshrl.u32 %v731, 7
      %v733 = vsub.s32 %v730, %v732
      %v734 = vrot.slane %v714, %v733
      %v736 = vunpack.c.l.s4 1983009808
      %v737 = vunpack.c.0.s8 %v736
      %v738 = vlaneseq
      %v739 = vshrl.u32 %v738, 7
      %v740 = vsub.s32 %v737, %v739
      %v741 = vrot.slane %v715, %v740
      %v743 = vunpack.c.l.s4 1983009808
      %v744 = vunpack.c.0.s8 %v743
      %v745 = vlaneseq
      %v746 = vshrl.u32 %v745, 7
      %v747 = vsub.s32 %v744, %v746
      %v748 = vrot.slane %v716, %v747
      %749 = vrot.lane.b32.xlu0 %v727, 120
      %v750 = vpop.permute.xlu0 %749
      %751 = vrot.lane.b32.xlu0 %v734, 120
      %v752 = vpop.permute.xlu0 %751
      %753 = vrot.lane.b32.xlu0 %v741, 120
      %v754 = vpop.permute.xlu0 %753
      %755 = vrot.lane.b32.xlu0 %v748, 120
      %v756 = vpop.permute.xlu0 %755
      %vm761 = vcmask 58368
      %762 = vst.msk [vmem:[%s353] sm:$0x3] %vm761, %v750
      %763 = vst.msk [vmem:[%s353 + $0x2] sm:$0x3] %vm761, %v752
      %764 = vst.msk [vmem:[%s353 + $0x4] sm:$0x3] %vm761, %v754
      %765 = vst.msk [vmem:[%s353 + $0x6] sm:$0x3] %vm761, %v756
      %s766 = smul.u32 4, %s20
      %p767 = scmp.lt.s32.totalorder %s19, 1
      %s768 = scalar_select %p767, %s19, 1
      %p769 = scmp.lt.s32.totalorder %s766, 3
      %s770 = scalar_select %p769, %s766, 3
      %s771 = smul.addr %s768, 4
      %s772 = sadd.s32 %s770, %s771
      %s773 = smul.addr %s772, 2
      %s774 = scalar_lea.vmem %s4, %s773
      // Predicated region
      $region37: #{densenet_forward.27} parent=35 // pred_check
        %p775 = pneg %p168
      $region38: #{densenet_forward.27} parent=35 // pred_check_branch
        %777 = sbr.rel (%p775) target = $region40
      $region39: #{densenet_forward.27} parent=35 // pred_region
        %s778 = smul.u32 4, %s20
      $region40: #{densenet_forward.27} parent=35 // pred_fallthru
        _
    $region36: #{densenet_forward.27} parent=5 // pred_fallthru
      _
    %p779 = scmp.le.s32.totalorder 2, %s10
    // Predicated region
    $region41: #{densenet_forward.27} parent=5 // pred_check
      %p780 = pneg %p779
    $region42: #{densenet_forward.27} parent=5 // pred_check_branch
      %782 = sbr.rel (%p780) target = $region44
    $region43: #{densenet_forward.27} parent=5 // pred_region
      %s783 = ssub.s32 %s10, 2
      // Predicated region
      $region45: #{densenet_forward.27} parent=43 // pred_check
        %p784 = pneg %p174
      $region46: #{densenet_forward.27} parent=43 // pred_check_branch
        %786 = sbr.rel (%p784) target = $region48
      $region47: #{densenet_forward.27} parent=43 // pred_region
        %s787 = smul.u32 4, %s22
        %p788 = scmp.lt.s32.totalorder %s21, 1
        %s789 = scalar_select %p788, %s21, 1
        %p790 = scmp.lt.s32.totalorder %s787, 3
        %s791 = scalar_select %p790, %s787, 3
        %s792 = smul.addr %s789, 4
        %s793 = sadd.s32 %s791, %s792
        %s794 = smul.addr %s793, 2
        %s795 = scalar_lea.vmem %s4, %s794
      $region48: #{densenet_forward.27} parent=43 // pred_fallthru
        _
    $region44: #{densenet_forward.27} parent=5 // pred_fallthru
      _
  $region6: #{densenet_forward.27} parent=0 // loop_footer
    %s14 = sadd.s32 1, %s10
  $region7: #{densenet_forward.27} parent=0 // loop_footer_branch
    %9 = sbr.rel target = $region3
  $region8: #{densenet_forward.27} parent=0 // loop_exit
    _

// kernel: densenet_forward.30
$region0: #{densenet_forward.30}
  #allocation0 [shape = 'u32[]', space=smem, size = 0x4, offset = 0x4, fixed_abs, tag = 'smem constant byte address 0x4 - core index']
  #allocation1 [shape = 'u32[144,128]{1,0:T(1,128)}', space=vmem, size = 0x12000, scoped, tag = 'internal scratch']
  #allocation2 [shape = 'f32[2,4,32]{2,1,0:T(4,128)}', space=vmem, size = 0x1000, scoped, tag = 'scratch operand']
  %s0 = inlined_call_operand.vmem [shape: bf16[2,4,4,32], index: 0, kind: input, shape index: {}]
  %s1 = inlined_call_operand.vmem [shape: f32[1,32], index: 1, kind: input, shape index: {}]
  %s2 = inlined_call_operand.vmem [shape: f32[1,32], index: 2, kind: input, shape index: {}]
  %s3 = inlined_call_operand.vmem [shape: bf16[32,16], index: 3, kind: input, shape index: {}]
  %s4 = inlined_call_operand.vmem [shape: bf16[2,2,2,16], index: 4, kind: output, shape index: {}]
  %s5 = sld [smem:[#allocation0]]
  $region49: #{densenet_forward.30} parent=0
    _
  %s7 = ssub.s32 1, %s5
  %s8 = scalar_select 0, %s7, %s5
  loop: start=0, step=1, limit=4
  $region2: #{densenet_forward.30} parent=0 // loop_pre_header
    _
  $region3: #{densenet_forward.30} parent=0 // loop_header
    %s10 = sphi 0, %s14
    %p11 = scmp.ge.s32.totalorder %s10, 4
    %s17 = sphi 0, %s29
    %s18 = sphi 0, %s25
    %s19 = sphi 0, %s17
    %s20 = sphi 0, %s18
    %s21 = sphi 0, %s19
    %s22 = sphi 0, %s20
    %s34 = sphi 0, %s36
    %s37 = sphi 0, %s34
    %s38 = sphi 0, %s37
    %s54 = sphi 0, %s38
    %s58 = sphi 0, %s58
    %s60 = sphi 0, %s58
    %s61 = sphi 0, %s60
    %s75 = sphi 0, %s61
    %s79 = sphi 0, %s79
    %s81 = sphi 0, %s79
    %s82 = sphi 0, %s81
    %s96 = sphi 0, %s82
    %s100 = sphi 0, %s100
    %s102 = sphi 0, %s100
    %s103 = sphi 0, %s102
    %s117 = sphi 0, %s103
    %s125 = sphi 0, %s127
    %s128 = sphi 0, %s125
    %s129 = sphi 0, %s128
    %s145 = sphi 0, %s129
  $region4: #{densenet_forward.30} parent=0 // loop_header_branch
    %13 = sbr.rel (%p11) target = $region8
  $region5: #{densenet_forward.30} parent=0 // loop_body
    %s15 = ssub.s32 %s10, 1
    %s16 = ssub.s32 %s10, 2
    %s23 = sadd.s32 1, %s18
    %p24 = scmp.ge.s32.totalorder %s23, 1
    %s25 = scalar_select %p24, 0, %s23
    %s26 = sadd.s32 1, %s17
    %s27 = scalar_select %p24, %s26, %s17
    %p28 = scmp.ge.s32.totalorder %s27, 2
    %s29 = scalar_select %p28, 0, %s27
    %s30 = ssub.s32 %s17, %s29
    %s31 = ssub.s32 %s18, %s25
    %s32 = sor.u32 %s30, %s31
    %p33 = scmp.eq.s32.totalorder %s32, 0
    %s35 = sadd.s32 %s34, 1
    %s36 = scalar_select %p33, %s34, %s35
    %p39 = pneg %p33
    %p40 = scmp.eq.s32.totalorder %s10, 1
    %p41 = por %p39, %p40
    %p42 = scmp.ne.s32.totalorder %s34, %s37
    %p43 = scmp.eq.s32.totalorder %s10, 0
    %p44 = por %p42, %p43
    %p45 = scmp.ne.s32.totalorder %s34, %s37
    %p46 = scmp.eq.s32.totalorder %s15, 1
    %p47 = por %p45, %p46
    %p48 = scmp.ne.s32.totalorder %s37, %s38
    %p49 = scmp.eq.s32.totalorder %s15, 0
    %p50 = por %p48, %p49
    %p51 = scmp.ne.s32.totalorder %s37, %s38
    %p52 = scmp.eq.s32.totalorder %s16, 1
    %p53 = por %p51, %p52
    %p55 = scmp.ne.s32.totalorder %s38, %s54
    %p56 = scmp.eq.s32.totalorder %s16, 0
    %p57 = por %p55, %p56
    %s59 = sadd.s32 %s58, 1
    %p62 = scmp.eq.s32.totalorder %s10, 1
    %p63 = scmp.ne.s32.totalorder %s58, %s60
    %p64 = scmp.eq.s32.totalorder %s10, 0
    %p65 = por %p63, %p64
    %p66 = scmp.ne.s32.totalorder %s58, %s60
    %p67 = scmp.eq.s32.totalorder %s15, 1
    %p68 = por %p66, %p67
    %p69 = scmp.ne.s32.totalorder %s60, %s61
    %p70 = scmp.eq.s32.totalorder %s15, 0
    %p71 = por %p69, %p70
    %p72 = scmp.ne.s32.totalorder %s60, %s61
    %p73 = scmp.eq.s32.totalorder %s16, 1
    %p74 = por %p72, %p73
    %p76 = scmp.ne.s32.totalorder %s61, %s75
    %p77 = scmp.eq.s32.totalorder %s16, 0
    %p78 = por %p76, %p77
    %s80 = sadd.s32 %s79, 1
    %p83 = scmp.eq.s32.totalorder %s10, 1
    %p84 = scmp.ne.s32.totalorder %s79, %s81
    %p85 = scmp.eq.s32.totalorder %s10, 0
    %p86 = por %p84, %p85
    %p87 = scmp.ne.s32.totalorder %s79, %s81
    %p88 = scmp.eq.s32.totalorder %s15, 1
    %p89 = por %p87, %p88
    %p90 = scmp.ne.s32.totalorder %s81, %s82
    %p91 = scmp.eq.s32.totalorder %s15, 0
    %p92 = por %p90, %p91
    %p93 = scmp.ne.s32.totalorder %s81, %s82
    %p94 = scmp.eq.s32.totalorder %s16, 1
    %p95 = por %p93, %p94
    %p97 = scmp.ne.s32.totalorder %s82, %s96
    %p98 = scmp.eq.s32.totalorder %s16, 0
    %p99 = por %p97, %p98
    %s101 = sadd.s32 %s100, 1
    %p104 = scmp.eq.s32.totalorder %s10, 1
    %p105 = scmp.ne.s32.totalorder %s100, %s102
    %p106 = scmp.eq.s32.totalorder %s10, 0
    %p107 = por %p105, %p106
    %p108 = scmp.ne.s32.totalorder %s100, %s102
    %p109 = scmp.eq.s32.totalorder %s15, 1
    %p110 = por %p108, %p109
    %p111 = scmp.ne.s32.totalorder %s102, %s103
    %p112 = scmp.eq.s32.totalorder %s15, 0
    %p113 = por %p111, %p112
    %p114 = scmp.ne.s32.totalorder %s102, %s103
    %p115 = scmp.eq.s32.totalorder %s16, 1
    %p116 = por %p114, %p115
    %p118 = scmp.ne.s32.totalorder %s103, %s117
    %p119 = scmp.eq.s32.totalorder %s16, 0
    %p120 = por %p118, %p119
    %s121 = ssub.s32 %s17, %s29
    %s122 = ssub.s32 %s18, %s25
    %s123 = sor.u32 %s121, %s122
    %p124 = scmp.eq.s32.totalorder %s123, 0
    %s126 = sadd.s32 %s125, 1
    %s127 = scalar_select %p124, %s125, %s126
    %p130 = pneg %p124
    %p131 = scmp.eq.s32.totalorder %s10, 1
    %p132 = por %p130, %p131
    %p133 = scmp.ne.s32.totalorder %s125, %s128
    %p134 = scmp.eq.s32.totalorder %s10, 0
    %p135 = por %p133, %p134
    %p136 = scmp.ne.s32.totalorder %s125, %s128
    %p137 = scmp.eq.s32.totalorder %s15, 1
    %p138 = por %p136, %p137
    %p139 = scmp.ne.s32.totalorder %s128, %s129
    %p140 = scmp.eq.s32.totalorder %s15, 0
    %p141 = por %p139, %p140
    %p142 = scmp.ne.s32.totalorder %s128, %s129
    %p143 = scmp.eq.s32.totalorder %s16, 1
    %p144 = por %p142, %p143
    %p146 = scmp.ne.s32.totalorder %s129, %s145
    %p147 = scmp.eq.s32.totalorder %s16, 0
    %p148 = por %p146, %p147
    %p149 = scmp.le.s32.totalorder 1, %s10
    %p150 = scmp.lt.s32.totalorder %s10, 3
    %p151 = pnand %p149, %p150
    %p152 = pneg %p151
    // Predicated region
    $region9: #{densenet_forward.30} parent=5 // pred_check
      _
    $region10: #{densenet_forward.30} parent=5 // pred_check_branch
      %154 = sbr.rel (%p151) target = $region12
    $region11: #{densenet_forward.30} parent=5 // pred_region
      %s155 = ssub.s32 %s10, 1
      // Predicated region
      $region13: #{densenet_forward.30} parent=11 // pred_check
        %p156 = pneg %p71
      $region14: #{densenet_forward.30} parent=11 // pred_check_branch
        %158 = sbr.rel (%p156) target = $region16
      $region15: #{densenet_forward.30} parent=11 // pred_region
        _
      $region16: #{densenet_forward.30} parent=11 // pred_fallthru
        _
      // Predicated region
      $region17: #{densenet_forward.30} parent=11 // pred_check
        %p159 = pneg %p92
      $region18: #{densenet_forward.30} parent=11 // pred_check_branch
        %161 = sbr.rel (%p159) target = $region20
      $region19: #{densenet_forward.30} parent=11 // pred_region
        _
      $region20: #{densenet_forward.30} parent=11 // pred_fallthru
        _
      // Predicated region
      $region21: #{densenet_forward.30} parent=11 // pred_check
        %p162 = pneg %p113
      $region22: #{densenet_forward.30} parent=11 // pred_check_branch
        %164 = sbr.rel (%p162) target = $region24
      $region23: #{densenet_forward.30} parent=11 // pred_region
        _
      $region24: #{densenet_forward.30} parent=11 // pred_fallthru
        _
    $region12: #{densenet_forward.30} parent=5 // pred_fallthru
      _
    %p165 = scmp.lt.s32.totalorder %s10, 2
    // Predicated region
    $region25: #{densenet_forward.30} parent=5 // pred_check
      %p166 = pneg %p165
    $region26: #{densenet_forward.30} parent=5 // pred_check_branch
      %168 = sbr.rel (%p166) target = $region28
    $region27: #{densenet_forward.30} parent=5 // pred_region
      // Predicated region
      $region29: #{densenet_forward.30} parent=27 // pred_check
        %p169 = pneg %p44
      $region30: #{densenet_forward.30} parent=27 // pred_check_branch
        %171 = sbr.rel (%p169) target = $region32
      $region31: #{densenet_forward.30} parent=27 // pred_region
        %s172 = smul.u32 4, %s18
        %p173 = scmp.lt.s32.totalorder %s17, 1
        %s174 = scalar_select %p173, %s17, 1
        %p175 = scmp.lt.s32.totalorder %s172, 3
        %s176 = scalar_select %p175, %s172, 3
        %s177 = smul.addr %s174, 4
        %s178 = sadd.s32 %s176, %s177
        %s179 = smul.addr %s178, 2
        %s180 = scalar_lea.vmem %s0, %s179
        %s181 = smul.u32 4, %s18
      $region32: #{densenet_forward.30} parent=27 // pred_fallthru
        _
    $region28: #{densenet_forward.30} parent=5 // pred_fallthru
      _
    %p182 = scmp.le.s32.totalorder 1, %s10
    %p183 = scmp.lt.s32.totalorder %s10, 3
    %p184 = pnand %p182, %p183
    %p185 = pneg %p184
    // Predicated region
    $region33: #{densenet_forward.30} parent=5 // pred_check
      _
    $region34: #{densenet_forward.30} parent=5 // pred_check_branch
      %187 = sbr.rel (%p184) target = $region36
    $region35: #{densenet_forward.30} parent=5 // pred_region
      %s188 = ssub.s32 %s10, 1
      %s189 = smul.u32 4, %s20
      %p190 = scmp.lt.s32.totalorder %s19, 1
      %s191 = scalar_select %p190, %s19, 1
      %p192 = scmp.lt.s32.totalorder %s189, 3
      %s193 = scalar_select %p192, %s189, 3
      %s194 = smul.addr %s191, 4
      %s195 = sadd.s32 %s193, %s194
      %s196 = smul.addr %s195, 2
      %s197 = scalar_lea.vmem %s0, %s196
      %p198 = pneg %p50
      %p199 = pneg %p47
      %p200 = pneg %p71
      %p201 = pneg %p68
      %p202 = pneg %p92
      %p203 = pneg %p89
      %p204 = pneg %p113
      %p205 = pneg %p110
      %p206 = pneg %p141
      %p207 = pneg %p138
      %s208 = smul.u32 2, %s20
      %p209 = scmp.lt.s32.totalorder %s19, 1
      %s210 = scalar_select %p209, %s19, 1
      %p211 = scmp.lt.s32.totalorder %s208, 1
      %s212 = scalar_select %p211, %s208, 1
      %s213 = smul.addr %s210, 2
      %s214 = sadd.s32 %s212, %s213
      %s215 = scalar_lea.vmem %s4, %s214
      %s216 = smul.u32 4, %s20
      %p217 = scmp.lt.s32.totalorder %s19, 1
      %s218 = scalar_select %p217, %s19, 1
      %p219 = scmp.lt.s32.totalorder %s216, 3
      %s220 = scalar_select %p219, %s216, 3
      %s221 = smul.addr %s218, 4
      %s222 = sadd.s32 %s220, %s221
      %s223 = smul.addr %s222, 2
      %s224 = scalar_lea.vmem %s0, %s223
      %s225 = smul.u32 4, %s20
      %s226 = smul.u32 2, %s20
      %p227 = scmp.lt.s32.totalorder %s19, 1
      %s228 = scalar_select %p227, %s19, 1
      %p229 = scmp.lt.s32.totalorder %s226, 1
      %s230 = scalar_select %p229, %s226, 1
      %s231 = smul.addr %s228, 2
      %s232 = sadd.s32 %s230, %s231
      %s233 = scalar_lea.vmem %s4, %s232
      %s234 = smul.u32 2, %s20
      %v236 = vld [vmem:[%s224] sm:$0x3]
      %v237 = vld [vmem:[%s224 + $0x2] sm:$0x3]
      %v238 = vld [vmem:[%s224 + $0x4] sm:$0x3]
      %v239 = vld [vmem:[%s224 + $0x6] sm:$0x3]
      %v240 = vunpack.c.l.bf16 %v236
      %v241 = vunpack.c.l.bf16 %v237
      %v242 = vunpack.c.l.bf16 %v238
      %v243 = vunpack.c.l.bf16 %v239
      %v244 = vld [vmem:[%s1] sm:$0x1]
      %v246 = vlaneseq
      %v247 = vshrl.u32 %v246, 7
      %v248 = vsub.s32 0, %v247
      %v249 = vrot.slane %v244, %v248
      %v251 = vmul.f32 %v240, %v249
      %v252 = vmul.f32 %v241, %v249
      %v253 = vmul.f32 %v242, %v249
      %v254 = vmul.f32 %v243, %v249
      %v255 = vld [vmem:[%s2] sm:$0x1]
      %v257 = vlaneseq
      %v258 = vshrl.u32 %v257, 7
      %v259 = vsub.s32 0, %v258
      %v260 = vrot.slane %v255, %v259
      %v262 = vadd.f32 %v251, %v260
      %v263 = vadd.f32 %v252, %v260
      %v264 = vadd.f32 %v253, %v260
      %v265 = vadd.f32 %v254, %v260
      %v266 = vmax.f32 %v262, 0.0
      %v267 = vmax.f32 %v263, 0.0
      %v268 = vmax.f32 %v264, 0.0
      %v269 = vmax.f32 %v265, 0.0
      %v270 = vadd.f32 %v266, %v267
      %v271 = vadd.f32 %v268, %v269
      %vm272 = vcmask 257024
      %273 = vst.msk [vmem:[#allocation2] sm:$0xf] %vm272, %v270
      %274 = vst.msk [vmem:[#allocation2 + $0x4] sm:$0xf] %vm272, %v271
      %v275 = vld [vmem:[#allocation2] ss:$2 sm:$0x3]
      %s276 = scalar_lea.vmem [#allocation2], 4
      %v277 = vld [vmem:[%s276] ss:$2 sm:$0x3]
      %s278 = scalar_lea.vmem [#allocation2], 1
      %v279 = vld [vmem:[%s278] ss:$2 sm:$0x3]
      %s280 = scalar_lea.vmem [#allocation2], 5
      %v281 = vld [vmem:[%s280] ss:$2 sm:$0x3]
      %v282 = vadd.f32 %v275, %v279
      %v283 = vadd.f32 %v277, %v281
      %v284 = vmul.f32 %v282, 0.25
      %v285 = vmul.f32 %v283, 0.25
      %v288 = vcombine.low %v284, %v285
      %v290 = vunpack.c.l.s4 1983009808
      %v291 = vunpack.c.0.s8 %v290
      %v292 = vlaneseq
      %v293 = vshrl.u32 %v292, 7
      %v294 = vsub.s32 %v291, %v293
      %v295 = vrot.slane %v288, %v294
      %v297 = vpack.c.bf16 %v295, %v295
      %v298 = vld [vmem:[%s3] sm:$0xf]
      %v299 = vld [vmem:[%s3 + $0x4] sm:$0xf]
      %v300 = vld [vmem:[%s3 + $0x8] sm:$0xf]
      %v301 = vld [vmem:[%s3 + $0xc] sm:$0xf]
      %v306 = vunpack.c.l.b16 %v298
      %v307 = vunpack.c.l.b16 %v299
      %v308 = vunpack.c.l.b16 %v300
      %v309 = vunpack.c.l.b16 %v301
      %v310 = vpack.c.b16 %v307, %v306
      %v311 = vpack.c.b16 %v309, %v308
      %vm314 = vcmask 261120
      %v316 = vsel %vm314, %v297, 0
      %318 = vmatprep.subr.bf16.mxu0 0
      %319 = vmatpush1.bf16.msra.mxu0 0
      %320 = vmatprep.subr.bf16.mxu0 0
      %321 = vmatpush1.bf16.msra.mxu0 0
      %322 = vmatprep.subr.bf16.mxu0 0
      %323 = vmatpush1.bf16.msra.mxu0 0
      %324 = vmatprep.subr.bf16.mxu0 0
      %325 = vmatpush1.bf16.msra.mxu0 0
      %326 = vmatprep.subr.bf16.mxu0 0
      %327 = vmatpush1.bf16.msra.mxu0 0
      %328 = vmatprep.subr.bf16.mxu0 0
      %329 = vmatpush1.bf16.msra.mxu0 0
      %330 = vmatprep.subr.bf16.mxu0 0
      %331 = vmatpush1.bf16.msra.mxu0 %v311
      %332 = vmatprep.subr.bf16.mxu0 0
      %333 = vmatpush1.bf16.msra.mxu0 %v310
      %334 = vmatprep.subr.bf16.mxu0 0
      %335 = vmatpush2.bf16.msra.mxu0 0
      %336 = vmatprep.subr.bf16.mxu0 0
      %337 = vmatpush2.bf16.msra.mxu0 0
      %338 = vmatprep.subr.bf16.mxu0 0
      %339 = vmatpush2.bf16.msra.mxu0 0
      %340 = vmatprep.subr.bf16.mxu0 0
      %341 = vmatpush2.bf16.msra.mxu0 0
      %342 = vmatprep.subr.bf16.mxu0 0
      %343 = vmatpush2.bf16.msra.mxu0 0
      %344 = vmatprep.subr.bf16.mxu0 0
      %345 = vmatpush2.bf16.msra.mxu0 0
      %346 = vmatprep.subr.bf16.mxu0 0
      %347 = vmatpush2.bf16.msra.mxu0 0
      %348 = vmatprep.subr.bf16.mxu0 0
      %349 = vmatpush2.bf16.msra.mxu0 0
      %350 = vmatprep.mubr.bf16.mxu0 0
      %351 = vmatmul.mubr.bf16.gmra.mxu0 %v316
      %v352 = vpop.f32.mrf.mxu0
      %v353 = vadd.f32 0.0, %v352
      %v354 = vpop.f32.mrf.mxu0
      %v355 = vpop.f32.mrf.mxu0
      %v356 = vpop.f32.mrf.mxu0
      %357 = vdwg.mxu0
      %v360 = vunpack.c.l.s4 1983009808
      %v361 = vunpack.c.0.s8 %v360
      %v362 = vlaneseq
      %v363 = vshrl.u32 %v362, 7
      %v364 = vsub.s32 %v361, %v363
      %v365 = vrot.slane %v353, %v364
      %v366 = vcombine.high %v365, %v365
      %v369 = vpack.c.bf16 %v365, %v365
      %v370 = vpack.c.bf16 %v366, %v366
      %vm371 = vcmask 122880
      %372 = vst.msk [vmem:[%s233] sm:$0x1] %vm371, %v369
      %373 = vst.msk [vmem:[%s233 + $0x1] sm:$0x1] %vm371, %v370
      %s374 = smul.u32 2, %s20
      %p375 = scmp.lt.s32.totalorder %s19, 1
      %s376 = scalar_select %p375, %s19, 1
      %p377 = scmp.lt.s32.totalorder %s374, 1
      %s378 = scalar_select %p377, %s374, 1
      %s379 = smul.addr %s376, 2
      %s380 = sadd.s32 %s378, %s379
      %s381 = scalar_lea.vmem %s4, %s380
      // Predicated region
      $region37: #{densenet_forward.30} parent=35 // pred_check
        %p382 = pneg %p138
      $region38: #{densenet_forward.30} parent=35 // pred_check_branch
        %384 = sbr.rel (%p382) target = $region40
      $region39: #{densenet_forward.30} parent=35 // pred_region
        %s385 = smul.u32 2, %s20
      $region40: #{densenet_forward.30} parent=35 // pred_fallthru
        _
    $region36: #{densenet_forward.30} parent=5 // pred_fallthru
      _
    %p386 = scmp.le.s32.totalorder 2, %s10
    // Predicated region
    $region41: #{densenet_forward.30} parent=5 // pred_check
      %p387 = pneg %p386
    $region42: #{densenet_forward.30} parent=5 // pred_check_branch
      %389 = sbr.rel (%p387) target = $region44
    $region43: #{densenet_forward.30} parent=5 // pred_region
      %s390 = ssub.s32 %s10, 2
      // Predicated region
      $region45: #{densenet_forward.30} parent=43 // pred_check
        %p391 = pneg %p144
      $region46: #{densenet_forward.30} parent=43 // pred_check_branch
        %393 = sbr.rel (%p391) target = $region48
      $region47: #{densenet_forward.30} parent=43 // pred_region
        %s394 = smul.u32 2, %s22
        %p395 = scmp.lt.s32.totalorder %s21, 1
        %s396 = scalar_select %p395, %s21, 1
        %p397 = scmp.lt.s32.totalorder %s394, 1
        %s398 = scalar_select %p397, %s394, 1
        %s399 = smul.addr %s396, 2
        %s400 = sadd.s32 %s398, %s399
        %s401 = scalar_lea.vmem %s4, %s400
      $region48: #{densenet_forward.30} parent=43 // pred_fallthru
        _
    $region44: #{densenet_forward.30} parent=5 // pred_fallthru
      _
  $region6: #{densenet_forward.30} parent=0 // loop_footer
    %s14 = sadd.s32 1, %s10
  $region7: #{densenet_forward.30} parent=0 // loop_footer_branch
    %9 = sbr.rel target = $region3
  $region8: #{densenet_forward.30} parent=0 // loop_exit
    _

// kernel: densenet_forward.31
$region0: #{densenet_forward.31}
  #allocation0 [shape = 'u32[]', space=smem, size = 0x4, offset = 0x4, fixed_abs, tag = 'smem constant byte address 0x4 - core index']
  #allocation1 [shape = 'u32[144,128]{1,0:T(1,128)}', space=vmem, size = 0x12000, scoped, tag = 'internal scratch']
  %s0 = inlined_call_operand.vmem [shape: bf16[8,32], index: 0, kind: input, shape index: {}]
  %s1 = inlined_call_operand.vmem [shape: f32[1,32], index: 1, kind: input, shape index: {}]
  %s2 = inlined_call_operand.vmem [shape: f32[1,32], index: 2, kind: input, shape index: {}]
  %s3 = inlined_call_operand.vmem [shape: bf16[32,16], index: 3, kind: input, shape index: {}]
  %s4 = inlined_call_operand.vmem [shape: f32[1,16], index: 4, kind: input, shape index: {}]
  %s5 = inlined_call_operand.vmem [shape: bf16[8,16], index: 5, kind: output, shape index: {}]
  %s6 = sld [smem:[#allocation0]]
  $region30: #{densenet_forward.31} parent=0
    _
  %s8 = ssub.s32 1, %s6
  %s9 = scalar_select 0, %s8, %s6
  // Predicated region
  $region2: #{densenet_forward.31} parent=0 // pred_check
    _
  $region3: #{densenet_forward.31} parent=0 // pred_check_branch
    %11 = sbr.rel (0) target = $region5
  $region4: #{densenet_forward.31} parent=0 // pred_region
    _
  $region5: #{densenet_forward.31} parent=0 // pred_fallthru
    _
  // Predicated region
  $region6: #{densenet_forward.31} parent=0 // pred_check
    _
  $region7: #{densenet_forward.31} parent=0 // pred_check_branch
    %13 = sbr.rel (0) target = $region9
  $region8: #{densenet_forward.31} parent=0 // pred_region
    _
  $region9: #{densenet_forward.31} parent=0 // pred_fallthru
    _
  // Predicated region
  $region10: #{densenet_forward.31} parent=0 // pred_check
    _
  $region11: #{densenet_forward.31} parent=0 // pred_check_branch
    %15 = sbr.rel (0) target = $region13
  $region12: #{densenet_forward.31} parent=0 // pred_region
    _
  $region13: #{densenet_forward.31} parent=0 // pred_fallthru
    _
  // Predicated region
  $region14: #{densenet_forward.31} parent=0 // pred_check
    _
  $region15: #{densenet_forward.31} parent=0 // pred_check_branch
    %17 = sbr.rel (0) target = $region17
  $region16: #{densenet_forward.31} parent=0 // pred_region
    _
  $region17: #{densenet_forward.31} parent=0 // pred_fallthru
    _
  // Predicated region
  $region18: #{densenet_forward.31} parent=0 // pred_check
    _
  $region19: #{densenet_forward.31} parent=0 // pred_check_branch
    %19 = sbr.rel (0) target = $region21
  $region20: #{densenet_forward.31} parent=0 // pred_region
    _
  $region21: #{densenet_forward.31} parent=0 // pred_fallthru
    _
  %v21 = vld [vmem:[%s0] sm:$0xf]
  %v22 = vunpack.c.l.bf16 %v21
  %v23 = vld [vmem:[%s1] sm:$0x1]
  %v25 = vlaneseq
  %v26 = vshrl.u32 %v25, 7
  %v27 = vsub.s32 0, %v26
  %v28 = vrot.slane %v23, %v27
  %v30 = vmul.f32 %v22, %v28
  %v31 = vld [vmem:[%s2] sm:$0x1]
  %v33 = vlaneseq
  %v34 = vshrl.u32 %v33, 7
  %v35 = vsub.s32 0, %v34
  %v36 = vrot.slane %v31, %v35
  %v38 = vadd.f32 %v30, %v36
  %v39 = vmax.f32 %v38, 0.0
  %v40 = vpack.c.bf16 %v39, %v39
  %v41 = vld [vmem:[%s3] sm:$0xf]
  %v42 = vld [vmem:[%s3 + $0x4] sm:$0xf]
  %v43 = vld [vmem:[%s3 + $0x8] sm:$0xf]
  %v44 = vld [vmem:[%s3 + $0xc] sm:$0xf]
  %v45 = vld [vmem:[%s4] sm:$0x1]
  %v47 = vlaneseq
  %v48 = vshrl.u32 %v47, 7
  %v49 = vsub.s32 0, %v48
  %v50 = vrot.slane %v45, %v49
  %v56 = vunpack.c.l.b16 %v41
  %v57 = vunpack.c.l.b16 %v42
  %v58 = vunpack.c.l.b16 %v43
  %v59 = vunpack.c.l.b16 %v44
  %v60 = vpack.c.b16 %v57, %v56
  %v61 = vpack.c.b16 %v59, %v58
  %vm64 = vcmask 261120
  %v66 = vsel %vm64, %v40, 0
  %68 = vmatprep.subr.bf16.mxu0 0
  %69 = vmatpush1.bf16.msra.mxu0 0
  %70 = vmatprep.subr.bf16.mxu0 0
  %71 = vmatpush1.bf16.msra.mxu0 0
  %72 = vmatprep.subr.bf16.mxu0 0
  %73 = vmatpush1.bf16.msra.mxu0 0
  %74 = vmatprep.subr.bf16.mxu0 0
  %75 = vmatpush1.bf16.msra.mxu0 0
  %76 = vmatprep.subr.bf16.mxu0 0
  %77 = vmatpush1.bf16.msra.mxu0 0
  %78 = vmatprep.subr.bf16.mxu0 0
  %79 = vmatpush1.bf16.msra.mxu0 0
  %80 = vmatprep.subr.bf16.mxu0 0
  %81 = vmatpush1.bf16.msra.mxu0 %v61
  %82 = vmatprep.subr.bf16.mxu0 0
  %83 = vmatpush1.bf16.msra.mxu0 %v60
  %84 = vmatprep.subr.bf16.mxu0 0
  %85 = vmatpush2.bf16.msra.mxu0 0
  %86 = vmatprep.subr.bf16.mxu0 0
  %87 = vmatpush2.bf16.msra.mxu0 0
  %88 = vmatprep.subr.bf16.mxu0 0
  %89 = vmatpush2.bf16.msra.mxu0 0
  %90 = vmatprep.subr.bf16.mxu0 0
  %91 = vmatpush2.bf16.msra.mxu0 0
  %92 = vmatprep.subr.bf16.mxu0 0
  %93 = vmatpush2.bf16.msra.mxu0 0
  %94 = vmatprep.subr.bf16.mxu0 0
  %95 = vmatpush2.bf16.msra.mxu0 0
  %96 = vmatprep.subr.bf16.mxu0 0
  %97 = vmatpush2.bf16.msra.mxu0 0
  %98 = vmatprep.subr.bf16.mxu0 0
  %99 = vmatpush2.bf16.msra.mxu0 0
  %100 = vmatprep.mubr.bf16.mxu0 0
  %101 = vmatmul.mubr.bf16.gmra.mxu0 %v66
  %v102 = vpop.f32.mrf.mxu0
  %v103 = vadd.f32 %v50, %v102
  %v104 = vpop.f32.mrf.mxu0
  %v105 = vpop.f32.mrf.mxu0
  %v106 = vpop.f32.mrf.mxu0
  %107 = vdwg.mxu0
  %v108 = vmax.f32 %v103, 0.0
  %v109 = vpack.c.bf16 %v108, %v108
  %vm110 = vcmask 125952
  %111 = vst.msk [vmem:[%s5] sm:$0xf] %vm110, %v109
  // Predicated region
  $region22: #{densenet_forward.31} parent=0 // pred_check
    _
  $region23: #{densenet_forward.31} parent=0 // pred_check_branch
    %113 = sbr.rel (0) target = $region25
  $region24: #{densenet_forward.31} parent=0 // pred_region
    _
  $region25: #{densenet_forward.31} parent=0 // pred_fallthru
    _
  // Predicated region
  $region26: #{densenet_forward.31} parent=0 // pred_check
    _
  $region27: #{densenet_forward.31} parent=0 // pred_check_branch
    %115 = sbr.rel (0) target = $region29
  $region28: #{densenet_forward.31} parent=0 // pred_region
    _
  $region29: #{densenet_forward.31} parent=0 // pred_fallthru
    _

// kernel: densenet_forward.32
$region0: #{densenet_forward.32}
  #allocation0 [shape = 'u32[]', space=smem, size = 0x4, offset = 0x4, fixed_abs, tag = 'smem constant byte address 0x4 - core index']
  #allocation1 [shape = 'u32[144,128]{1,0:T(1,128)}', space=vmem, size = 0x12000, scoped, tag = 'internal scratch']
  #allocation2 [shape = 'bf16[4,8,16]{2,1,0:T(8,128)(2,1)}', space=vmem, size = 0x2000, scoped, tag = 'scratch operand']
  %s0 = inlined_call_operand.vmem [shape: bf16[2,2,2,16], index: 0, kind: input, shape index: {}, may-alias: {0,1,2}]
  %s1 = inlined_call_operand.vmem [shape: bf16[2,2,2,16], index: 1, kind: input, shape index: {}, may-alias: {0,1,2}]
  %s2 = inlined_call_operand.vmem [shape: bf16[2,2,2,16], index: 2, kind: input, shape index: {}, may-alias: {0,1,2}]
  %s3 = inlined_call_operand.vmem [shape: bf16[3,16,24], index: 3, kind: input, shape index: {}]
  %s4 = inlined_call_operand.vmem [shape: bf16[2,2,2,8], index: 4, kind: output, shape index: {}]
  %s5 = sld [smem:[#allocation0]]
  $region49: #{densenet_forward.32} parent=0
    _
  %s7 = ssub.s32 1, %s5
  %s8 = scalar_select 0, %s7, %s5
  loop: start=0, step=1, limit=4
  $region2: #{densenet_forward.32} parent=0 // loop_pre_header
    _
  $region3: #{densenet_forward.32} parent=0 // loop_header
    %s10 = sphi 0, %s14
    %p11 = scmp.ge.s32.totalorder %s10, 4
    %s17 = sphi 0, %s29
    %s18 = sphi 0, %s25
    %s19 = sphi 0, %s17
    %s20 = sphi 0, %s18
    %s21 = sphi 0, %s19
    %s22 = sphi 0, %s20
    %s42 = sphi 0, %s44
    %s45 = sphi 0, %s42
    %s46 = sphi 0, %s45
    %s62 = sphi 0, %s46
    %s70 = sphi 0, %s72
    %s73 = sphi 0, %s70
    %s74 = sphi 0, %s73
    %s90 = sphi 0, %s74
    %s106 = sphi 0, %s108
    %s109 = sphi 0, %s106
    %s110 = sphi 0, %s109
    %s126 = sphi 0, %s110
    %s130 = sphi 0, %s130
    %s132 = sphi 0, %s130
    %s133 = sphi 0, %s132
    %s147 = sphi 0, %s133
    %s155 = sphi 0, %s157
    %s158 = sphi 0, %s155
    %s159 = sphi 0, %s158
    %s175 = sphi 0, %s159
  $region4: #{densenet_forward.32} parent=0 // loop_header_branch
    %13 = sbr.rel (%p11) target = $region8
  $region5: #{densenet_forward.32} parent=0 // loop_body
    %s15 = ssub.s32 %s10, 1
    %s16 = ssub.s32 %s10, 2
    %s23 = sadd.s32 1, %s18
    %p24 = scmp.ge.s32.totalorder %s23, 1
    %s25 = scalar_select %p24, 0, %s23
    %s26 = sadd.s32 1, %s17
    %s27 = scalar_select %p24, %s26, %s17
    %p28 = scmp.ge.s32.totalorder %s27, 2
    %s29 = scalar_select %p28, 0, %s27
    %s30 = smul.u32 %s18, 2
    %s31 = sadd.s32 %s30, 4294967295
    %p32 = scmp.gt.s32.totalorder %s31, 0
    %s33 = scalar_select %p32, %s31, 0
    %s34 = smul.u32 %s25, 2
    %s35 = sadd.s32 %s34, 4294967295
    %p36 = scmp.gt.s32.totalorder %s35, 0
    %s37 = scalar_select %p36, %s35, 0
    %s38 = ssub.s32 %s17, %s29
    %s39 = ssub.s32 %s33, %s37
    %s40 = sor.u32 %s38, %s39
    %p41 = scmp.eq.s32.totalorder %s40, 0
    %s43 = sadd.s32 %s42, 1
    %s44 = scalar_select %p41, %s42, %s43
    %p47 = pneg %p41
    %p48 = scmp.eq.s32.totalorder %s10, 1
    %p49 = por %p47, %p48
    %p50 = scmp.ne.s32.totalorder %s42, %s45
    %p51 = scmp.eq.s32.totalorder %s10, 0
    %p52 = por %p50, %p51
    %p53 = scmp.ne.s32.totalorder %s42, %s45
    %p54 = scmp.eq.s32.totalorder %s15, 1
    %p55 = por %p53, %p54
    %p56 = scmp.ne.s32.totalorder %s45, %s46
    %p57 = scmp.eq.s32.totalorder %s15, 0
    %p58 = por %p56, %p57
    %p59 = scmp.ne.s32.totalorder %s45, %s46
    %p60 = scmp.eq.s32.totalorder %s16, 1
    %p61 = por %p59, %p60
    %p63 = scmp.ne.s32.totalorder %s46, %s62
    %p64 = scmp.eq.s32.totalorder %s16, 0
    %p65 = por %p63, %p64
    %s66 = ssub.s32 %s17, %s29
    %s67 = ssub.s32 %s18, %s25
    %s68 = sor.u32 %s66, %s67
    %p69 = scmp.eq.s32.totalorder %s68, 0
    %s71 = sadd.s32 %s70, 1
    %s72 = scalar_select %p69, %s70, %s71
    %p75 = pneg %p69
    %p76 = scmp.eq.s32.totalorder %s10, 1
    %p77 = por %p75, %p76
    %p78 = scmp.ne.s32.totalorder %s70, %s73
    %p79 = scmp.eq.s32.totalorder %s10, 0
    %p80 = por %p78, %p79
    %p81 = scmp.ne.s32.totalorder %s70, %s73
    %p82 = scmp.eq.s32.totalorder %s15, 1
    %p83 = por %p81, %p82
    %p84 = scmp.ne.s32.totalorder %s73, %s74
    %p85 = scmp.eq.s32.totalorder %s15, 0
    %p86 = por %p84, %p85
    %p87 = scmp.ne.s32.totalorder %s73, %s74
    %p88 = scmp.eq.s32.totalorder %s16, 1
    %p89 = por %p87, %p88
    %p91 = scmp.ne.s32.totalorder %s74, %s90
    %p92 = scmp.eq.s32.totalorder %s16, 0
    %p93 = por %p91, %p92
    %s94 = smul.u32 %s18, 2
    %s95 = sadd.s32 %s94, 2
    %p96 = scmp.lt.s32.totalorder %s95, 1
    %s97 = scalar_select %p96, %s95, 1
    %s98 = smul.u32 %s25, 2
    %s99 = sadd.s32 %s98, 2
    %p100 = scmp.lt.s32.totalorder %s99, 1
    %s101 = scalar_select %p100, %s99, 1
    %s102 = ssub.s32 %s17, %s29
    %s103 = ssub.s32 %s97, %s101
    %s104 = sor.u32 %s102, %s103
    %p105 = scmp.eq.s32.totalorder %s104, 0
    %s107 = sadd.s32 %s106, 1
    %s108 = scalar_select %p105, %s106, %s107
    %p111 = pneg %p105
    %p112 = scmp.eq.s32.totalorder %s10, 1
    %p113 = por %p111, %p112
    %p114 = scmp.ne.s32.totalorder %s106, %s109
    %p115 = scmp.eq.s32.totalorder %s10, 0
    %p116 = por %p114, %p115
    %p117 = scmp.ne.s32.totalorder %s106, %s109
    %p118 = scmp.eq.s32.totalorder %s15, 1
    %p119 = por %p117, %p118
    %p120 = scmp.ne.s32.totalorder %s109, %s110
    %p121 = scmp.eq.s32.totalorder %s15, 0
    %p122 = por %p120, %p121
    %p123 = scmp.ne.s32.totalorder %s109, %s110
    %p124 = scmp.eq.s32.totalorder %s16, 1
    %p125 = por %p123, %p124
    %p127 = scmp.ne.s32.totalorder %s110, %s126
    %p128 = scmp.eq.s32.totalorder %s16, 0
    %p129 = por %p127, %p128
    %s131 = sadd.s32 %s130, 1
    %p134 = scmp.eq.s32.totalorder %s10, 1
    %p135 = scmp.ne.s32.totalorder %s130, %s132
    %p136 = scmp.eq.s32.totalorder %s10, 0
    %p137 = por %p135, %p136
    %p138 = scmp.ne.s32.totalorder %s130, %s132
    %p139 = scmp.eq.s32.totalorder %s15, 1
    %p140 = por %p138, %p139
    %p141 = scmp.ne.s32.totalorder %s132, %s133
    %p142 = scmp.eq.s32.totalorder %s15, 0
    %p143 = por %p141, %p142
    %p144 = scmp.ne.s32.totalorder %s132, %s133
    %p145 = scmp.eq.s32.totalorder %s16, 1
    %p146 = por %p144, %p145
    %p148 = scmp.ne.s32.totalorder %s133, %s147
    %p149 = scmp.eq.s32.totalorder %s16, 0
    %p150 = por %p148, %p149
    %s151 = ssub.s32 %s17, %s29
    %s152 = ssub.s32 %s18, %s25
    %s153 = sor.u32 %s151, %s152
    %p154 = scmp.eq.s32.totalorder %s153, 0
    %s156 = sadd.s32 %s155, 1
    %s157 = scalar_select %p154, %s155, %s156
    %p160 = pneg %p154
    %p161 = scmp.eq.s32.totalorder %s10, 1
    %p162 = por %p160, %p161
    %p163 = scmp.ne.s32.totalorder %s155, %s158
    %p164 = scmp.eq.s32.totalorder %s10, 0
    %p165 = por %p163, %p164
    %p166 = scmp.ne.s32.totalorder %s155, %s158
    %p167 = scmp.eq.s32.totalorder %s15, 1
    %p168 = por %p166, %p167
    %p169 = scmp.ne.s32.totalorder %s158, %s159
    %p170 = scmp.eq.s32.totalorder %s15, 0
    %p171 = por %p169, %p170
    %p172 = scmp.ne.s32.totalorder %s158, %s159
    %p173 = scmp.eq.s32.totalorder %s16, 1
    %p174 = por %p172, %p173
    %p176 = scmp.ne.s32.totalorder %s159, %s175
    %p177 = scmp.eq.s32.totalorder %s16, 0
    %p178 = por %p176, %p177
    %p179 = scmp.le.s32.totalorder 1, %s10
    %p180 = scmp.lt.s32.totalorder %s10, 3
    %p181 = pnand %p179, %p180
    %p182 = pneg %p181
    // Predicated region
    $region9: #{densenet_forward.32} parent=5 // pred_check
      _
    $region10: #{densenet_forward.32} parent=5 // pred_check_branch
      %184 = sbr.rel (%p181) target = $region12
    $region11: #{densenet_forward.32} parent=5 // pred_region
      %s185 = ssub.s32 %s10, 1
      // Predicated region
      $region13: #{densenet_forward.32} parent=11 // pred_check
        %p186 = pneg %p143
      $region14: #{densenet_forward.32} parent=11 // pred_check_branch
        %188 = sbr.rel (%p186) target = $region16
      $region15: #{densenet_forward.32} parent=11 // pred_region
        _
      $region16: #{densenet_forward.32} parent=11 // pred_fallthru
        _
    $region12: #{densenet_forward.32} parent=5 // pred_fallthru
      _
    %p189 = scmp.lt.s32.totalorder %s10, 2
    // Predicated region
    $region17: #{densenet_forward.32} parent=5 // pred_check
      %p190 = pneg %p189
    $region18: #{densenet_forward.32} parent=5 // pred_check_branch
      %192 = sbr.rel (%p190) target = $region20
    $region19: #{densenet_forward.32} parent=5 // pred_region
      // Predicated region
      $region21: #{densenet_forward.32} parent=19 // pred_check
        %p193 = pneg %p52
      $region22: #{densenet_forward.32} parent=19 // pred_check_branch
        %195 = sbr.rel (%p193) target = $region24
      $region23: #{densenet_forward.32} parent=19 // pred_region
        %s196 = smul.u32 %s18, 2
        %s197 = sadd.s32 %s196, 4294967295
        %p198 = scmp.gt.s32.totalorder %s197, 0
        %s199 = scalar_select %p198, %s197, 0
        %p200 = scmp.lt.s32.totalorder %s17, 1
        %s201 = scalar_select %p200, %s17, 1
        %p202 = scmp.lt.s32.totalorder %s199, 1
        %s203 = scalar_select %p202, %s199, 1
        %s204 = smul.addr %s201, 2
        %s205 = sadd.s32 %s203, %s204
        %s206 = scalar_lea.vmem %s0, %s205
        %s207 = smul.u32 %s18, 2
        %s208 = sadd.s32 %s207, 4294967295
        %p209 = scmp.gt.s32.totalorder %s208, 0
        %s210 = scalar_select %p209, %s208, 0
      $region24: #{densenet_forward.32} parent=19 // pred_fallthru
        _
      // Predicated region
      $region25: #{densenet_forward.32} parent=19 // pred_check
        %p211 = pneg %p80
      $region26: #{densenet_forward.32} parent=19 // pred_check_branch
        %213 = sbr.rel (%p211) target = $region28
      $region27: #{densenet_forward.32} parent=19 // pred_region
        %s214 = smul.u32 2, %s18
        %p215 = scmp.lt.s32.totalorder %s17, 1
        %s216 = scalar_select %p215, %s17, 1
        %p217 = scmp.lt.s32.totalorder %s214, 1
        %s218 = scalar_select %p217, %s214, 1
        %s219 = smul.addr %s216, 2
        %s220 = sadd.s32 %s218, %s219
        %s221 = scalar_lea.vmem %s1, %s220
        %s222 = smul.u32 2, %s18
      $region28: #{densenet_forward.32} parent=19 // pred_fallthru
        _
      // Predicated region
      $region29: #{densenet_forward.32} parent=19 // pred_check
        %p223 = pneg %p116
      $region30: #{densenet_forward.32} parent=19 // pred_check_branch
        %225 = sbr.rel (%p223) target = $region32
      $region31: #{densenet_forward.32} parent=19 // pred_region
        %s226 = smul.u32 %s18, 2
        %s227 = sadd.s32 %s226, 2
        %p228 = scmp.lt.s32.totalorder %s227, 1
        %s229 = scalar_select %p228, %s227, 1
        %p230 = scmp.lt.s32.totalorder %s17, 1
        %s231 = scalar_select %p230, %s17, 1
        %p232 = scmp.lt.s32.totalorder %s229, 1
        %s233 = scalar_select %p232, %s229, 1
        %s234 = smul.addr %s231, 2
        %s235 = sadd.s32 %s233, %s234
        %s236 = scalar_lea.vmem %s2, %s235
        %s237 = smul.u32 %s18, 2
        %s238 = sadd.s32 %s237, 2
        %p239 = scmp.lt.s32.totalorder %s238, 1
        %s240 = scalar_select %p239, %s238, 1
      $region32: #{densenet_forward.32} parent=19 // pred_fallthru
        _
    $region20: #{densenet_forward.32} parent=5 // pred_fallthru
      _
    %p241 = scmp.le.s32.totalorder 1, %s10
    %p242 = scmp.lt.s32.totalorder %s10, 3
    %p243 = pnand %p241, %p242
    %p244 = pneg %p243
    // Predicated region
    $region33: #{densenet_forward.32} parent=5 // pred_check
      _
    $region34: #{densenet_forward.32} parent=5 // pred_check_branch
      %246 = sbr.rel (%p243) target = $region36
    $region35: #{densenet_forward.32} parent=5 // pred_region
      %s247 = ssub.s32 %s10, 1
      %s248 = smul.u32 %s20, 2
      %s249 = sadd.s32 %s248, 4294967295
      %p250 = scmp.gt.s32.totalorder %s249, 0
      %s251 = scalar_select %p250, %s249, 0
      %p252 = scmp.lt.s32.totalorder %s19, 1
      %s253 = scalar_select %p252, %s19, 1
      %p254 = scmp.lt.s32.totalorder %s251, 1
      %s255 = scalar_select %p254, %s251, 1
      %s256 = smul.addr %s253, 2
      %s257 = sadd.s32 %s255, %s256
      %s258 = scalar_lea.vmem %s0, %s257
      %p259 = pneg %p58
      %p260 = pneg %p55
      %s261 = smul.u32 2, %s20
      %p262 = scmp.lt.s32.totalorder %s19, 1
      %s263 = scalar_select %p262, %s19, 1
      %p264 = scmp.lt.s32.totalorder %s261, 1
      %s265 = scalar_select %p264, %s261, 1
      %s266 = smul.addr %s263, 2
      %s267 = sadd.s32 %s265, %s266
      %s268 = scalar_lea.vmem %s1, %s267
      %p269 = pneg %p86
      %p270 = pneg %p83
      %s271 = smul.u32 %s20, 2
      %s272 = sadd.s32 %s271, 2
      %p273 = scmp.lt.s32.totalorder %s272, 1
      %s274 = scalar_select %p273, %s272, 1
      %p275 = scmp.lt.s32.totalorder %s19, 1
      %s276 = scalar_select %p275, %s19, 1
      %p277 = scmp.lt.s32.totalorder %s274, 1
      %s278 = scalar_select %p277, %s274, 1
      %s279 = smul.addr %s276, 2
      %s280 = sadd.s32 %s278, %s279
      %s281 = scalar_lea.vmem %s2, %s280
      %p282 = pneg %p122
      %p283 = pneg %p119
      %p284 = pneg %p143
      %p285 = pneg %p140
      %p286 = pneg %p171
      %p287 = pneg %p168
      %s288 = smul.u32 2, %s20
      %p289 = scmp.lt.s32.totalorder %s19, 1
      %s290 = scalar_select %p289, %s19, 1
      %p291 = scmp.lt.s32.totalorder %s288, 1
      %s292 = scalar_select %p291, %s288, 1
      %s293 = smul.addr %s290, 2
      %s294 = sadd.s32 %s292, %s293
      %s295 = scalar_lea.vmem %s4, %s294
      %s296 = smul.u32 %s20, 2
      %s297 = sadd.s32 %s296, 4294967295
      %p298 = scmp.gt.s32.totalorder %s297, 0
      %s299 = scalar_select %p298, %s297, 0
      %p300 = scmp.lt.s32.totalorder %s19, 1
      %s301 = scalar_select %p300, %s19, 1
      %p302 = scmp.lt.s32.totalorder %s299, 1
      %s303 = scalar_select %p302, %s299, 1
      %s304 = smul.addr %s301, 2
      %s305 = sadd.s32 %s303, %s304
      %s306 = scalar_lea.vmem %s0, %s305
      %s307 = smul.u32 %s20, 2
      %s308 = sadd.s32 %s307, 4294967295
      %p309 = scmp.gt.s32.totalorder %s308, 0
      %s310 = scalar_select %p309, %s308, 0
      %s311 = smul.u32 2, %s20
      %p312 = scmp.lt.s32.totalorder %s19, 1
      %s313 = scalar_select %p312, %s19, 1
      %p314 = scmp.lt.s32.totalorder %s311, 1
      %s315 = scalar_select %p314, %s311, 1
      %s316 = smul.addr %s313, 2
      %s317 = sadd.s32 %s315, %s316
      %s318 = scalar_lea.vmem %s1, %s317
      %s319 = smul.u32 2, %s20
      %s320 = smul.u32 %s20, 2
      %s321 = sadd.s32 %s320, 2
      %p322 = scmp.lt.s32.totalorder %s321, 1
      %s323 = scalar_select %p322, %s321, 1
      %p324 = scmp.lt.s32.totalorder %s19, 1
      %s325 = scalar_select %p324, %s19, 1
      %p326 = scmp.lt.s32.totalorder %s323, 1
      %s327 = scalar_select %p326, %s323, 1
      %s328 = smul.addr %s325, 2
      %s329 = sadd.s32 %s327, %s328
      %s330 = scalar_lea.vmem %s2, %s329
      %s331 = smul.u32 %s20, 2
      %s332 = sadd.s32 %s331, 2
      %p333 = scmp.lt.s32.totalorder %s332, 1
      %s334 = scalar_select %p333, %s332, 1
      %s335 = smul.u32 2, %s20
      %p336 = scmp.lt.s32.totalorder %s19, 1
      %s337 = scalar_select %p336, %s19, 1
      %p338 = scmp.lt.s32.totalorder %s335, 1
      %s339 = scalar_select %p338, %s335, 1
      %s340 = smul.addr %s337, 2
      %s341 = sadd.s32 %s339, %s340
      %s342 = scalar_lea.vmem %s4, %s341
      %s343 = smul.u32 2, %s20
      %vm346 = vcmask 125953
      %347 = vst.msk [vmem:[#allocation2] sm:$0xe] %vm346, 0
      %348 = vst.msk [vmem:[#allocation2 + $0x4] sm:$0xe] %vm346, 0
      %349 = vst.msk [vmem:[#allocation2 + $0x8] sm:$0xe] %vm346, 0
      %350 = vst.msk [vmem:[#allocation2 + $0xc] sm:$0xe] %vm346, 0
      %v351 = vld [vmem:[%s318] sm:$0x1]
      %v352 = vld [vmem:[%s318 + $0x1] sm:$0x1]
      %s353 = scalar_lea.vmem [#allocation2], 4
      %vm354 = vcmask 122880
      %355 = vst.msk [vmem:[%s353] sm:$0x1] %vm354, %v351
      %356 = vst.msk [vmem:[%s353 + $0x4] sm:$0x1] %vm354, %v352
      %v357 = vld [vmem:[%s306] sm:$0x1]
      %s358 = smul.u32 %s20, 2
      %s359 = sadd.s32 %s358, 4294967295
      %p360 = scmp.ge.s32.totalorder %s359, 0
      %s361 = scalar_select %p360, 1, 0
      %v362 = vstv %s361
      %vm363 = vcmp.eq.s32.totalorder %v362, 1
      %v364 = vsel %vm363, 1, 0
      %v365 = vpack.c.b16 %v364, %v364
      %vm366 = vcmp.ne.s16.totalorder %v365, 0
      %v367 = vsel %vm366, %v357, 0
      %368 = vst.msk [vmem:[#allocation2] sm:$0x1] %vm354, %v367
      %v369 = vld [vmem:[%s330] sm:$0x1]
      %s370 = sadd.s32 %s358, 2
      %p371 = scmp.lt.s32.totalorder %s370, 2
      %s372 = scalar_select %p371, 1, 0
      %v373 = vstv %s372
      %vm374 = vcmp.eq.s32.totalorder %v373, 1
      %v375 = vsel %vm374, 1, 0
      %v376 = vpack.c.b16 %v375, %v375
      %vm377 = vcmp.ne.s16.totalorder %v376, 0
      %v378 = vsel %vm377, %v369, 0
      %s379 = scalar_lea.vmem [#allocation2], 12
      %380 = vst.msk [vmem:[%s379] sm:$0x1] %vm354, %v378
      %v381 = vld [vmem:[#allocation2] sm:$0xf]
      %v382 = vld [vmem:[#allocation2 + $0x4] sm:$0xf]
      %v383 = vld [vmem:[%s3] sm:$0xf]
      %v384 = vld [vmem:[%s3 + $0x4] sm:$0xf]
      %v385 = vld [vmem:[%s353] sm:$0xf]
      %v386 = vld [vmem:[%s353 + $0x4] sm:$0xf]
      %s387 = scalar_lea.vmem %s3, 8
      %v388 = vld [vmem:[%s387] sm:$0xf]
      %v389 = vld [vmem:[%s387 + $0x4] sm:$0xf]
      %v392 = vunpack.c.l.b16 %v385
      %v393 = vunpack.c.l.b16 %v386
      %v394 = vpack.c.b16 %v393, %v392
      %v397 = vunpack.c.l.b16 %v388
      %v398 = vunpack.c.l.b16 %v389
      %v399 = vpack.c.b16 %v398, %v397
      %vm401 = vcmask 130048
      %v403 = vsel %vm401, %v394, 0
      %405 = vmatprep.subr.bf16.mxu0 0
      %406 = vmatpush1.bf16.msra.mxu0 0
      %407 = vmatprep.subr.bf16.mxu0 0
      %408 = vmatpush1.bf16.msra.mxu0 0
      %409 = vmatprep.subr.bf16.mxu0 0
      %410 = vmatpush1.bf16.msra.mxu0 0
      %411 = vmatprep.subr.bf16.mxu0 0
      %412 = vmatpush1.bf16.msra.mxu0 0
      %413 = vmatprep.subr.bf16.mxu0 0
      %414 = vmatpush1.bf16.msra.mxu0 0
      %415 = vmatprep.subr.bf16.mxu0 0
      %416 = vmatpush1.bf16.msra.mxu0 0
      %417 = vmatprep.subr.bf16.mxu0 0
      %418 = vmatpush1.bf16.msra.mxu0 0
      %419 = vmatprep.subr.bf16.mxu0 0
      %420 = vmatpush1.bf16.msra.mxu0 %v399
      %421 = vmatprep.subr.bf16.mxu0 0
      %422 = vmatpush2.bf16.msra.mxu0 0
      %423 = vmatprep.subr.bf16.mxu0 0
      %424 = vmatpush2.bf16.msra.mxu0 0
      %425 = vmatprep.subr.bf16.mxu0 0
      %426 = vmatpush2.bf16.msra.mxu0 0
      %427 = vmatprep.subr.bf16.mxu0 0
      %428 = vmatpush2.bf16.msra.mxu0 0
      %429 = vmatprep.subr.bf16.mxu0 0
      %430 = vmatpush2.bf16.msra.mxu0 0
      %431 = vmatprep.subr.bf16.mxu0 0
      %432 = vmatpush2.bf16.msra.mxu0 0
      %433 = vmatprep.subr.bf16.mxu0 0
      %434 = vmatpush2.bf16.msra.mxu0 0
      %435 = vmatprep.subr.bf16.mxu0 0
      %436 = vmatpush2.bf16.msra.mxu0 0
      %437 = vmatprep.mubr.bf16.mxu0 0
      %438 = vmatmul.mubr.bf16.gmra.mxu0 %v403
      %v439 = vpop.f32.mrf.mxu0
      %v440 = vadd.f32 0.0, %v439
      %v441 = vpop.f32.mrf.mxu0
      %v442 = vpop.f32.mrf.mxu0
      %v443 = vadd.f32 0.0, %v442
      %v444 = vpop.f32.mrf.mxu0
      %445 = vdwg.mxu0
      %v448 = vunpack.c.l.b16 %v381
      %v449 = vunpack.c.l.b16 %v382
      %v450 = vpack.c.b16 %v449, %v448
      %v453 = vunpack.c.l.b16 %v383
      %v454 = vunpack.c.l.b16 %v384
      %v455 = vpack.c.b16 %v454, %v453
      %v458 = vsel %vm401, %v450, 0
      %460 = vmatprep.subr.bf16.mxu0 0
      %461 = vmatpush1.bf16.msra.mxu0 0
      %462 = vmatprep.subr.bf16.mxu0 0
      %463 = vmatpush1.bf16.msra.mxu0 0
      %464 = vmatprep.subr.bf16.mxu0 0
      %465 = vmatpush1.bf16.msra.mxu0 0
      %466 = vmatprep.subr.bf16.mxu0 0
      %467 = vmatpush1.bf16.msra.mxu0 0
      %468 = vmatprep.subr.bf16.mxu0 0
      %469 = vmatpush1.bf16.msra.mxu0 0
      %470 = vmatprep.subr.bf16.mxu0 0
      %471 = vmatpush1.bf16.msra.mxu0 0
      %472 = vmatprep.subr.bf16.mxu0 0
      %473 = vmatpush1.bf16.msra.mxu0 0
      %474 = vmatprep.subr.bf16.mxu0 0
      %475 = vmatpush1.bf16.msra.mxu0 %v455
      %476 = vmatprep.subr.bf16.mxu0 0
      %477 = vmatpush2.bf16.msra.mxu0 0
      %478 = vmatprep.subr.bf16.mxu0 0
      %479 = vmatpush2.bf16.msra.mxu0 0
      %480 = vmatprep.subr.bf16.mxu0 0
      %481 = vmatpush2.bf16.msra.mxu0 0
      %482 = vmatprep.subr.bf16.mxu0 0
      %483 = vmatpush2.bf16.msra.mxu0 0
      %484 = vmatprep.subr.bf16.mxu0 0
      %485 = vmatpush2.bf16.msra.mxu0 0
      %486 = vmatprep.subr.bf16.mxu0 0
      %487 = vmatpush2.bf16.msra.mxu0 0
      %488 = vmatprep.subr.bf16.mxu0 0
      %489 = vmatpush2.bf16.msra.mxu0 0
      %490 = vmatprep.subr.bf16.mxu0 0
      %491 = vmatpush2.bf16.msra.mxu0 0
      %492 = vmatprep.mubr.bf16.mxu0 0
      %493 = vmatmul.mubr.bf16.gmra.mxu0 %v458
      %v494 = vpop.f32.mrf.mxu0
      %v495 = vadd.f32 %v440, %v494
      %v496 = vpop.f32.mrf.mxu0
      %v497 = vpop.f32.mrf.mxu0
      %v498 = vadd.f32 %v443, %v497
      %v499 = vpop.f32.mrf.mxu0
      %500 = vdwg.mxu0
      %s501 = scalar_lea.vmem [#allocation2], 8
      %v502 = vld [vmem:[%s501] sm:$0xf]
      %v503 = vld [vmem:[%s501 + $0x4] sm:$0xf]
      %s504 = scalar_lea.vmem %s3, 16
      %v505 = vld [vmem:[%s504] sm:$0xf]
      %v506 = vld [vmem:[%s504 + $0x4] sm:$0xf]
      %v509 = vunpack.c.l.b16 %v502
      %v510 = vunpack.c.l.b16 %v503
      %v511 = vpack.c.b16 %v510, %v509
      %v514 = vunpack.c.l.b16 %v505
      %v515 = vunpack.c.l.b16 %v506
      %v516 = vpack.c.b16 %v515, %v514
      %v519 = vsel %vm401, %v511, 0
      %521 = vmatprep.subr.bf16.mxu0 0
      %522 = vmatpush1.bf16.msra.mxu0 0
      %523 = vmatprep.subr.bf16.mxu0 0
      %524 = vmatpush1.bf16.msra.mxu0 0
      %525 = vmatprep.subr.bf16.mxu0 0
      %526 = vmatpush1.bf16.msra.mxu0 0
      %527 = vmatprep.subr.bf16.mxu0 0
      %528 = vmatpush1.bf16.msra.mxu0 0
      %529 = vmatprep.subr.bf16.mxu0 0
      %530 = vmatpush1.bf16.msra.mxu0 0
      %531 = vmatprep.subr.bf16.mxu0 0
      %532 = vmatpush1.bf16.msra.mxu0 0
      %533 = vmatprep.subr.bf16.mxu0 0
      %534 = vmatpush1.bf16.msra.mxu0 0
      %535 = vmatprep.subr.bf16.mxu0 0
      %536 = vmatpush1.bf16.msra.mxu0 %v516
      %537 = vmatprep.subr.bf16.mxu0 0
      %538 = vmatpush2.bf16.msra.mxu0 0
      %539 = vmatprep.subr.bf16.mxu0 0
      %540 = vmatpush2.bf16.msra.mxu0 0
      %541 = vmatprep.subr.bf16.mxu0 0
      %542 = vmatpush2.bf16.msra.mxu0 0
      %543 = vmatprep.subr.bf16.mxu0 0
      %544 = vmatpush2.bf16.msra.mxu0 0
      %545 = vmatprep.subr.bf16.mxu0 0
      %546 = vmatpush2.bf16.msra.mxu0 0
      %547 = vmatprep.subr.bf16.mxu0 0
      %548 = vmatpush2.bf16.msra.mxu0 0
      %549 = vmatprep.subr.bf16.mxu0 0
      %550 = vmatpush2.bf16.msra.mxu0 0
      %551 = vmatprep.subr.bf16.mxu0 0
      %552 = vmatpush2.bf16.msra.mxu0 0
      %553 = vmatprep.mubr.bf16.mxu0 0
      %554 = vmatmul.mubr.bf16.gmra.mxu0 %v519
      %v555 = vpop.f32.mrf.mxu0
      %v556 = vadd.f32 0.0, %v555
      %v557 = vpop.f32.mrf.mxu0
      %v558 = vpop.f32.mrf.mxu0
      %v559 = vadd.f32 0.0, %v558
      %v560 = vpop.f32.mrf.mxu0
      %561 = vdwg.mxu0
      %v562 = vadd.f32 %v495, %v556
      %v563 = vadd.f32 %v498, %v559
      %v564 = vrot.slane %v562, 7
      %v565 = vrot.slane %v563, 7
      %v566 = vlaneseq
      %v567 = vshrl.u32 %v566, 7
      %vm568 = vcmp.lt.s32.totalorder %v567, 1
      %v569 = vsel %vm568, %v564, %v565
      %v570 = vsel %vm568, %v565, %v564
      %573 = vrot.lane.b32.xlu0 %v570, 8
      %v574 = vpop.permute.xlu0 %573
      %575 = vrot.lane.b32.xlu0 %v569, 8
      %v576 = vpop.permute.xlu0 %575
      %v579 = vadd.f32 %v562, %v574
      %v580 = vadd.f32 %v563, %v576
      %583 = vrot.lane.b32.xlu0 %v562, 112
      %v584 = vpop.permute.xlu0 %583
      %585 = vrot.lane.b32.xlu0 %v563, 112
      %v586 = vpop.permute.xlu0 %585
      %v589 = vrot.slane %v584, 1
      %v590 = vrot.slane %v586, 1
      %vm591 = vcmp.lt.s32.totalorder %v567, 7
      %v592 = vsel %vm591, %v589, %v590
      %v593 = vsel %vm591, %v590, %v589
      %596 = vrot.lane.b32.xlu0 %v592, 8
      %v597 = vpop.permute.xlu0 %596
      %598 = vrot.lane.b32.xlu0 %v593, 8
      %v599 = vpop.permute.xlu0 %598
      %v602 = vadd.f32 %v579, %v597
      %v603 = vadd.f32 %v580, %v599
      %v604 = vpack.c.bf16 %v602, %v602
      %v605 = vpack.c.bf16 %v603, %v603
      %v609 = vunpack.c.l.s4 1966171168
      %v610 = vunpack.c.0.s8 %v609
      %v611 = vlaneseq
      %v612 = vshrl.u32 %v611, 7
      %v613 = vsub.s32 %v610, %v612
      %v614 = vrot.slane %v604, %v613
      %v616 = vunpack.c.l.s4 1966171168
      %v617 = vunpack.c.0.s8 %v616
      %v618 = vlaneseq
      %v619 = vshrl.u32 %v618, 7
      %v620 = vsub.s32 %v617, %v619
      %v621 = vrot.slane %v614, %v620
      %v623 = vunpack.c.l.s4 1966171168
      %v624 = vunpack.c.0.s8 %v623
      %v625 = vlaneseq
      %v626 = vshrl.u32 %v625, 7
      %v627 = vsub.s32 %v624, %v626
      %v628 = vrot.slane %v605, %v627
      %v630 = vunpack.c.l.s4 1966171168
      %v631 = vunpack.c.0.s8 %v630
      %v632 = vlaneseq
      %v633 = vshrl.u32 %v632, 7
      %v634 = vsub.s32 %v631, %v633
      %v635 = vrot.slane %v628, %v634
      %636 = vrot.lane.b32.xlu0 %v621, 120
      %v637 = vpop.permute.xlu0 %636
      %638 = vrot.lane.b32.xlu0 %v635, 120
      %v639 = vpop.permute.xlu0 %638
      %vm642 = vcmask 57344
      %643 = vst.msk [vmem:[%s342] sm:$0x1] %vm642, %v637
      %644 = vst.msk [vmem:[%s342 + $0x1] sm:$0x1] %vm642, %v639
      %s645 = smul.u32 2, %s20
      %p646 = scmp.lt.s32.totalorder %s19, 1
      %s647 = scalar_select %p646, %s19, 1
      %p648 = scmp.lt.s32.totalorder %s645, 1
      %s649 = scalar_select %p648, %s645, 1
      %s650 = smul.addr %s647, 2
      %s651 = sadd.s32 %s649, %s650
      %s652 = scalar_lea.vmem %s4, %s651
      // Predicated region
      $region37: #{densenet_forward.32} parent=35 // pred_check
        %p653 = pneg %p168
      $region38: #{densenet_forward.32} parent=35 // pred_check_branch
        %655 = sbr.rel (%p653) target = $region40
      $region39: #{densenet_forward.32} parent=35 // pred_region
        %s656 = smul.u32 2, %s20
      $region40: #{densenet_forward.32} parent=35 // pred_fallthru
        _
    $region36: #{densenet_forward.32} parent=5 // pred_fallthru
      _
    %p657 = scmp.le.s32.totalorder 2, %s10
    // Predicated region
    $region41: #{densenet_forward.32} parent=5 // pred_check
      %p658 = pneg %p657
    $region42: #{densenet_forward.32} parent=5 // pred_check_branch
      %660 = sbr.rel (%p658) target = $region44
    $region43: #{densenet_forward.32} parent=5 // pred_region
      %s661 = ssub.s32 %s10, 2
      // Predicated region
      $region45: #{densenet_forward.32} parent=43 // pred_check
        %p662 = pneg %p174
      $region46: #{densenet_forward.32} parent=43 // pred_check_branch
        %664 = sbr.rel (%p662) target = $region48
      $region47: #{densenet_forward.32} parent=43 // pred_region
        %s665 = smul.u32 2, %s22
        %p666 = scmp.lt.s32.totalorder %s21, 1
        %s667 = scalar_select %p666, %s21, 1
        %p668 = scmp.lt.s32.totalorder %s665, 1
        %s669 = scalar_select %p668, %s665, 1
        %s670 = smul.addr %s667, 2
        %s671 = sadd.s32 %s669, %s670
        %s672 = scalar_lea.vmem %s4, %s671
      $region48: #{densenet_forward.32} parent=43 // pred_fallthru
        _
    $region44: #{densenet_forward.32} parent=5 // pred_fallthru
      _
  $region6: #{densenet_forward.32} parent=0 // loop_footer
    %s14 = sadd.s32 1, %s10
  $region7: #{densenet_forward.32} parent=0 // loop_footer_branch
    %9 = sbr.rel target = $region3
  $region8: #{densenet_forward.32} parent=0 // loop_exit
    _

// kernel: densenet_forward.35
$region0: #{densenet_forward.35}
  #allocation0 [shape = 'u32[]', space=smem, size = 0x4, offset = 0x4, fixed_abs, tag = 'smem constant byte address 0x4 - core index']
  #allocation1 [shape = 'u32[144,128]{1,0:T(1,128)}', space=vmem, size = 0x12000, scoped, tag = 'internal scratch']
  #allocation2 [shape = 'f32[1,2,32]{2,1,0:T(2,128)}', space=vmem, size = 0x400, scoped, tag = 'scratch operand']
  %s0 = inlined_call_operand.vmem [shape: bf16[2,2,2,32], index: 0, kind: input, shape index: {}]
  %s1 = inlined_call_operand.vmem [shape: f32[1,32], index: 1, kind: input, shape index: {}]
  %s2 = inlined_call_operand.vmem [shape: f32[1,32], index: 2, kind: input, shape index: {}]
  %s3 = inlined_call_operand.vmem [shape: bf16[32,16], index: 3, kind: input, shape index: {}]
  %s4 = inlined_call_operand.vmem [shape: bf16[2,1,1,16], index: 4, kind: output, shape index: {}]
  %s5 = sld [smem:[#allocation0]]
  $region49: #{densenet_forward.35} parent=0
    _
  %s7 = ssub.s32 1, %s5
  %s8 = scalar_select 0, %s7, %s5
  loop: start=0, step=1, limit=4
  $region2: #{densenet_forward.35} parent=0 // loop_pre_header
    _
  $region3: #{densenet_forward.35} parent=0 // loop_header
    %s10 = sphi 0, %s14
    %p11 = scmp.ge.s32.totalorder %s10, 4
    %s17 = sphi 0, %s29
    %s18 = sphi 0, %s25
    %s19 = sphi 0, %s17
    %s20 = sphi 0, %s18
    %s21 = sphi 0, %s19
    %s22 = sphi 0, %s20
    %s34 = sphi 0, %s36
    %s37 = sphi 0, %s34
    %s38 = sphi 0, %s37
    %s54 = sphi 0, %s38
    %s58 = sphi 0, %s58
    %s60 = sphi 0, %s58
    %s61 = sphi 0, %s60
    %s75 = sphi 0, %s61
    %s79 = sphi 0, %s79
    %s81 = sphi 0, %s79
    %s82 = sphi 0, %s81
    %s96 = sphi 0, %s82
    %s100 = sphi 0, %s100
    %s102 = sphi 0, %s100
    %s103 = sphi 0, %s102
    %s117 = sphi 0, %s103
    %s125 = sphi 0, %s127
    %s128 = sphi 0, %s125
    %s129 = sphi 0, %s128
    %s145 = sphi 0, %s129
  $region4: #{densenet_forward.35} parent=0 // loop_header_branch
    %13 = sbr.rel (%p11) target = $region8
  $region5: #{densenet_forward.35} parent=0 // loop_body
    %s15 = ssub.s32 %s10, 1
    %s16 = ssub.s32 %s10, 2
    %s23 = sadd.s32 1, %s18
    %p24 = scmp.ge.s32.totalorder %s23, 1
    %s25 = scalar_select %p24, 0, %s23
    %s26 = sadd.s32 1, %s17
    %s27 = scalar_select %p24, %s26, %s17
    %p28 = scmp.ge.s32.totalorder %s27, 2
    %s29 = scalar_select %p28, 0, %s27
    %s30 = ssub.s32 %s17, %s29
    %s31 = ssub.s32 %s18, %s25
    %s32 = sor.u32 %s30, %s31
    %p33 = scmp.eq.s32.totalorder %s32, 0
    %s35 = sadd.s32 %s34, 1
    %s36 = scalar_select %p33, %s34, %s35
    %p39 = pneg %p33
    %p40 = scmp.eq.s32.totalorder %s10, 1
    %p41 = por %p39, %p40
    %p42 = scmp.ne.s32.totalorder %s34, %s37
    %p43 = scmp.eq.s32.totalorder %s10, 0
    %p44 = por %p42, %p43
    %p45 = scmp.ne.s32.totalorder %s34, %s37
    %p46 = scmp.eq.s32.totalorder %s15, 1
    %p47 = por %p45, %p46
    %p48 = scmp.ne.s32.totalorder %s37, %s38
    %p49 = scmp.eq.s32.totalorder %s15, 0
    %p50 = por %p48, %p49
    %p51 = scmp.ne.s32.totalorder %s37, %s38
    %p52 = scmp.eq.s32.totalorder %s16, 1
    %p53 = por %p51, %p52
    %p55 = scmp.ne.s32.totalorder %s38, %s54
    %p56 = scmp.eq.s32.totalorder %s16, 0
    %p57 = por %p55, %p56
    %s59 = sadd.s32 %s58, 1
    %p62 = scmp.eq.s32.totalorder %s10, 1
    %p63 = scmp.ne.s32.totalorder %s58, %s60
    %p64 = scmp.eq.s32.totalorder %s10, 0
    %p65 = por %p63, %p64
    %p66 = scmp.ne.s32.totalorder %s58, %s60
    %p67 = scmp.eq.s32.totalorder %s15, 1
    %p68 = por %p66, %p67
    %p69 = scmp.ne.s32.totalorder %s60, %s61
    %p70 = scmp.eq.s32.totalorder %s15, 0
    %p71 = por %p69, %p70
    %p72 = scmp.ne.s32.totalorder %s60, %s61
    %p73 = scmp.eq.s32.totalorder %s16, 1
    %p74 = por %p72, %p73
    %p76 = scmp.ne.s32.totalorder %s61, %s75
    %p77 = scmp.eq.s32.totalorder %s16, 0
    %p78 = por %p76, %p77
    %s80 = sadd.s32 %s79, 1
    %p83 = scmp.eq.s32.totalorder %s10, 1
    %p84 = scmp.ne.s32.totalorder %s79, %s81
    %p85 = scmp.eq.s32.totalorder %s10, 0
    %p86 = por %p84, %p85
    %p87 = scmp.ne.s32.totalorder %s79, %s81
    %p88 = scmp.eq.s32.totalorder %s15, 1
    %p89 = por %p87, %p88
    %p90 = scmp.ne.s32.totalorder %s81, %s82
    %p91 = scmp.eq.s32.totalorder %s15, 0
    %p92 = por %p90, %p91
    %p93 = scmp.ne.s32.totalorder %s81, %s82
    %p94 = scmp.eq.s32.totalorder %s16, 1
    %p95 = por %p93, %p94
    %p97 = scmp.ne.s32.totalorder %s82, %s96
    %p98 = scmp.eq.s32.totalorder %s16, 0
    %p99 = por %p97, %p98
    %s101 = sadd.s32 %s100, 1
    %p104 = scmp.eq.s32.totalorder %s10, 1
    %p105 = scmp.ne.s32.totalorder %s100, %s102
    %p106 = scmp.eq.s32.totalorder %s10, 0
    %p107 = por %p105, %p106
    %p108 = scmp.ne.s32.totalorder %s100, %s102
    %p109 = scmp.eq.s32.totalorder %s15, 1
    %p110 = por %p108, %p109
    %p111 = scmp.ne.s32.totalorder %s102, %s103
    %p112 = scmp.eq.s32.totalorder %s15, 0
    %p113 = por %p111, %p112
    %p114 = scmp.ne.s32.totalorder %s102, %s103
    %p115 = scmp.eq.s32.totalorder %s16, 1
    %p116 = por %p114, %p115
    %p118 = scmp.ne.s32.totalorder %s103, %s117
    %p119 = scmp.eq.s32.totalorder %s16, 0
    %p120 = por %p118, %p119
    %s121 = ssub.s32 %s17, %s29
    %s122 = ssub.s32 %s18, %s25
    %s123 = sor.u32 %s121, %s122
    %p124 = scmp.eq.s32.totalorder %s123, 0
    %s126 = sadd.s32 %s125, 1
    %s127 = scalar_select %p124, %s125, %s126
    %p130 = pneg %p124
    %p131 = scmp.eq.s32.totalorder %s10, 1
    %p132 = por %p130, %p131
    %p133 = scmp.ne.s32.totalorder %s125, %s128
    %p134 = scmp.eq.s32.totalorder %s10, 0
    %p135 = por %p133, %p134
    %p136 = scmp.ne.s32.totalorder %s125, %s128
    %p137 = scmp.eq.s32.totalorder %s15, 1
    %p138 = por %p136, %p137
    %p139 = scmp.ne.s32.totalorder %s128, %s129
    %p140 = scmp.eq.s32.totalorder %s15, 0
    %p141 = por %p139, %p140
    %p142 = scmp.ne.s32.totalorder %s128, %s129
    %p143 = scmp.eq.s32.totalorder %s16, 1
    %p144 = por %p142, %p143
    %p146 = scmp.ne.s32.totalorder %s129, %s145
    %p147 = scmp.eq.s32.totalorder %s16, 0
    %p148 = por %p146, %p147
    %p149 = scmp.le.s32.totalorder 1, %s10
    %p150 = scmp.lt.s32.totalorder %s10, 3
    %p151 = pnand %p149, %p150
    %p152 = pneg %p151
    // Predicated region
    $region9: #{densenet_forward.35} parent=5 // pred_check
      _
    $region10: #{densenet_forward.35} parent=5 // pred_check_branch
      %154 = sbr.rel (%p151) target = $region12
    $region11: #{densenet_forward.35} parent=5 // pred_region
      %s155 = ssub.s32 %s10, 1
      // Predicated region
      $region13: #{densenet_forward.35} parent=11 // pred_check
        %p156 = pneg %p71
      $region14: #{densenet_forward.35} parent=11 // pred_check_branch
        %158 = sbr.rel (%p156) target = $region16
      $region15: #{densenet_forward.35} parent=11 // pred_region
        _
      $region16: #{densenet_forward.35} parent=11 // pred_fallthru
        _
      // Predicated region
      $region17: #{densenet_forward.35} parent=11 // pred_check
        %p159 = pneg %p92
      $region18: #{densenet_forward.35} parent=11 // pred_check_branch
        %161 = sbr.rel (%p159) target = $region20
      $region19: #{densenet_forward.35} parent=11 // pred_region
        _
      $region20: #{densenet_forward.35} parent=11 // pred_fallthru
        _
      // Predicated region
      $region21: #{densenet_forward.35} parent=11 // pred_check
        %p162 = pneg %p113
      $region22: #{densenet_forward.35} parent=11 // pred_check_branch
        %164 = sbr.rel (%p162) target = $region24
      $region23: #{densenet_forward.35} parent=11 // pred_region
        _
      $region24: #{densenet_forward.35} parent=11 // pred_fallthru
        _
    $region12: #{densenet_forward.35} parent=5 // pred_fallthru
      _
    %p165 = scmp.lt.s32.totalorder %s10, 2
    // Predicated region
    $region25: #{densenet_forward.35} parent=5 // pred_check
      %p166 = pneg %p165
    $region26: #{densenet_forward.35} parent=5 // pred_check_branch
      %168 = sbr.rel (%p166) target = $region28
    $region27: #{densenet_forward.35} parent=5 // pred_region
      // Predicated region
      $region29: #{densenet_forward.35} parent=27 // pred_check
        %p169 = pneg %p44
      $region30: #{densenet_forward.35} parent=27 // pred_check_branch
        %171 = sbr.rel (%p169) target = $region32
      $region31: #{densenet_forward.35} parent=27 // pred_region
        %s172 = smul.u32 2, %s18
        %p173 = scmp.lt.s32.totalorder %s17, 1
        %s174 = scalar_select %p173, %s17, 1
        %p175 = scmp.lt.s32.totalorder %s172, 1
        %s176 = scalar_select %p175, %s172, 1
        %s177 = smul.addr %s174, 2
        %s178 = sadd.s32 %s176, %s177
        %s179 = scalar_lea.vmem %s0, %s178
        %s180 = smul.u32 2, %s18
      $region32: #{densenet_forward.35} parent=27 // pred_fallthru
        _
    $region28: #{densenet_forward.35} parent=5 // pred_fallthru
      _
    %p181 = scmp.le.s32.totalorder 1, %s10
    %p182 = scmp.lt.s32.totalorder %s10, 3
    %p183 = pnand %p181, %p182
    %p184 = pneg %p183
    // Predicated region
    $region33: #{densenet_forward.35} parent=5 // pred_check
      _
    $region34: #{densenet_forward.35} parent=5 // pred_check_branch
      %186 = sbr.rel (%p183) target = $region36
    $region35: #{densenet_forward.35} parent=5 // pred_region
      %s187 = ssub.s32 %s10, 1
      %s188 = smul.u32 2, %s20
      %p189 = scmp.lt.s32.totalorder %s19, 1
      %s190 = scalar_select %p189, %s19, 1
      %p191 = scmp.lt.s32.totalorder %s188, 1
      %s192 = scalar_select %p191, %s188, 1
      %s193 = smul.addr %s190, 2
      %s194 = sadd.s32 %s192, %s193
      %s195 = scalar_lea.vmem %s0, %s194
      %p196 = pneg %p50
      %p197 = pneg %p47
      %p198 = pneg %p71
      %p199 = pneg %p68
      %p200 = pneg %p92
      %p201 = pneg %p89
      %p202 = pneg %p113
      %p203 = pneg %p110
      %p204 = pneg %p141
      %p205 = pneg %p138
      %p206 = scmp.lt.s32.totalorder %s19, 1
      %s207 = scalar_select %p206, %s19, 1
      %p208 = scmp.lt.s32.totalorder %s20, 0
      %s209 = scalar_select %p208, %s20, 0
      %s210 = sadd.s32 %s209, %s207
      %s211 = scalar_lea.vmem %s4, %s210
      %s212 = smul.u32 2, %s20
      %p213 = scmp.lt.s32.totalorder %s19, 1
      %s214 = scalar_select %p213, %s19, 1
      %p215 = scmp.lt.s32.totalorder %s212, 1
      %s216 = scalar_select %p215, %s212, 1
      %s217 = smul.addr %s214, 2
      %s218 = sadd.s32 %s216, %s217
      %s219 = scalar_lea.vmem %s0, %s218
      %s220 = smul.u32 2, %s20
      %p221 = scmp.lt.s32.totalorder %s19, 1
      %s222 = scalar_select %p221, %s19, 1
      %p223 = scmp.lt.s32.totalorder %s20, 0
      %s224 = scalar_select %p223, %s20, 0
      %s225 = sadd.s32 %s224, %s222
      %s226 = scalar_lea.vmem %s4, %s225
      %v228 = vld [vmem:[%s219] sm:$0x1]
      %v229 = vld [vmem:[%s219 + $0x1] sm:$0x1]
      %v230 = vunpack.c.l.bf16 %v228
      %v231 = vunpack.c.l.bf16 %v229
      %v232 = vld [vmem:[%s1] sm:$0x1]
      %v234 = vlaneseq
      %v235 = vshrl.u32 %v234, 7
      %v236 = vsub.s32 0, %v235
      %v237 = vrot.slane %v232, %v236
      %v239 = vmul.f32 %v230, %v237
      %v240 = vmul.f32 %v231, %v237
      %v241 = vld [vmem:[%s2] sm:$0x1]
      %v243 = vlaneseq
      %v244 = vshrl.u32 %v243, 7
      %v245 = vsub.s32 0, %v244
      %v246 = vrot.slane %v241, %v245
      %v248 = vadd.f32 %v239, %v246
      %v249 = vadd.f32 %v240, %v246
      %v250 = vmax.f32 %v248, 0.0
      %v251 = vmax.f32 %v249, 0.0
      %v252 = vadd.f32 %v250, %v251
      %vm253 = vcmask 254976
      %254 = vst.msk [vmem:[#allocation2] sm:$0x3] %vm253, %v252
      %v255 = vld [vmem:[#allocation2] ss:$2 sm:$0x1]
      %s256 = scalar_lea.vmem [#allocation2], 1
      %v257 = vld [vmem:[%s256] ss:$2 sm:$0x1]
      %v258 = vadd.f32 %v255, %v257
      %v259 = vmul.f32 %v258, 0.25
      %v260 = vpack.c.bf16 %v259, %v259
      %v261 = vld [vmem:[%s3] sm:$0xf]
      %v262 = vld [vmem:[%s3 + $0x4] sm:$0xf]
      %v263 = vld [vmem:[%s3 + $0x8] sm:$0xf]
      %v264 = vld [vmem:[%s3 + $0xc] sm:$0xf]
      %v269 = vunpack.c.l.b16 %v261
      %v270 = vunpack.c.l.b16 %v262
      %v271 = vunpack.c.l.b16 %v263
      %v272 = vunpack.c.l.b16 %v264
      %v273 = vpack.c.b16 %v270, %v269
      %v274 = vpack.c.b16 %v272, %v271
      %vm277 = vcmask 261120
      %v279 = vsel %vm277, %v260, 0
      %281 = vmatprep.subr.bf16.mxu0 0
      %282 = vmatpush1.bf16.msra.mxu0 0
      %283 = vmatprep.subr.bf16.mxu0 0
      %284 = vmatpush1.bf16.msra.mxu0 0
      %285 = vmatprep.subr.bf16.mxu0 0
      %286 = vmatpush1.bf16.msra.mxu0 0
      %287 = vmatprep.subr.bf16.mxu0 0
      %288 = vmatpush1.bf16.msra.mxu0 0
      %289 = vmatprep.subr.bf16.mxu0 0
      %290 = vmatpush1.bf16.msra.mxu0 0
      %291 = vmatprep.subr.bf16.mxu0 0
      %292 = vmatpush1.bf16.msra.mxu0 0
      %293 = vmatprep.subr.bf16.mxu0 0
      %294 = vmatpush1.bf16.msra.mxu0 %v274
      %295 = vmatprep.subr.bf16.mxu0 0
      %296 = vmatpush1.bf16.msra.mxu0 %v273
      %297 = vmatprep.subr.bf16.mxu0 0
      %298 = vmatpush2.bf16.msra.mxu0 0
      %299 = vmatprep.subr.bf16.mxu0 0
      %300 = vmatpush2.bf16.msra.mxu0 0
      %301 = vmatprep.subr.bf16.mxu0 0
      %302 = vmatpush2.bf16.msra.mxu0 0
      %303 = vmatprep.subr.bf16.mxu0 0
      %304 = vmatpush2.bf16.msra.mxu0 0
      %305 = vmatprep.subr.bf16.mxu0 0
      %306 = vmatpush2.bf16.msra.mxu0 0
      %307 = vmatprep.subr.bf16.mxu0 0
      %308 = vmatpush2.bf16.msra.mxu0 0
      %309 = vmatprep.subr.bf16.mxu0 0
      %310 = vmatpush2.bf16.msra.mxu0 0
      %311 = vmatprep.subr.bf16.mxu0 0
      %312 = vmatpush2.bf16.msra.mxu0 0
      %313 = vmatprep.mubr.bf16.mxu0 0
      %314 = vmatmul.mubr.bf16.gmra.mxu0 %v279
      %v315 = vpop.f32.mrf.mxu0
      %v316 = vadd.f32 0.0, %v315
      %v317 = vpop.f32.mrf.mxu0
      %v318 = vpop.f32.mrf.mxu0
      %v319 = vpop.f32.mrf.mxu0
      %320 = vdwg.mxu0
      %v321 = vpack.c.bf16 %v316, %v316
      %vm322 = vcmask 122880
      %vm323 = vsmask.f32 256
      %vm324 = vmand %vm322, %vm323
      %v325 = vld [vmem:[%s226] sm:$0x1]
      %v326 = vsel %vm324, %v321, %v325
      %327 = vst [vmem:[%s226] sm:$0x1] %v326
      %p328 = scmp.lt.s32.totalorder %s19, 1
      %s329 = scalar_select %p328, %s19, 1
      %p330 = scmp.lt.s32.totalorder %s20, 0
      %s331 = scalar_select %p330, %s20, 0
      %s332 = sadd.s32 %s331, %s329
      %s333 = scalar_lea.vmem %s4, %s332
      // Predicated region
      $region37: #{densenet_forward.35} parent=35 // pred_check
        %p334 = pneg %p138
      $region38: #{densenet_forward.35} parent=35 // pred_check_branch
        %336 = sbr.rel (%p334) target = $region40
      $region39: #{densenet_forward.35} parent=35 // pred_region
        _
      $region40: #{densenet_forward.35} parent=35 // pred_fallthru
        _
    $region36: #{densenet_forward.35} parent=5 // pred_fallthru
      _
    %p337 = scmp.le.s32.totalorder 2, %s10
    // Predicated region
    $region41: #{densenet_forward.35} parent=5 // pred_check
      %p338 = pneg %p337
    $region42: #{densenet_forward.35} parent=5 // pred_check_branch
      %340 = sbr.rel (%p338) target = $region44
    $region43: #{densenet_forward.35} parent=5 // pred_region
      %s341 = ssub.s32 %s10, 2
      // Predicated region
      $region45: #{densenet_forward.35} parent=43 // pred_check
        %p342 = pneg %p144
      $region46: #{densenet_forward.35} parent=43 // pred_check_branch
        %344 = sbr.rel (%p342) target = $region48
      $region47: #{densenet_forward.35} parent=43 // pred_region
        %p345 = scmp.lt.s32.totalorder %s21, 1
        %s346 = scalar_select %p345, %s21, 1
        %p347 = scmp.lt.s32.totalorder %s22, 0
        %s348 = scalar_select %p347, %s22, 0
        %s349 = sadd.s32 %s348, %s346
        %s350 = scalar_lea.vmem %s4, %s349
      $region48: #{densenet_forward.35} parent=43 // pred_fallthru
        _
    $region44: #{densenet_forward.35} parent=5 // pred_fallthru
      _
  $region6: #{densenet_forward.35} parent=0 // loop_footer
    %s14 = sadd.s32 1, %s10
  $region7: #{densenet_forward.35} parent=0 // loop_footer_branch
    %9 = sbr.rel target = $region3
  $region8: #{densenet_forward.35} parent=0 // loop_exit
    _

// kernel: densenet_forward.36
$region0: #{densenet_forward.36}
  #allocation0 [shape = 'u32[]', space=smem, size = 0x4, offset = 0x4, fixed_abs, tag = 'smem constant byte address 0x4 - core index']
  #allocation1 [shape = 'u32[144,128]{1,0:T(1,128)}', space=vmem, size = 0x12000, scoped, tag = 'internal scratch']
  %s0 = inlined_call_operand.vmem [shape: bf16[2,32], index: 0, kind: input, shape index: {}]
  %s1 = inlined_call_operand.vmem [shape: f32[1,32], index: 1, kind: input, shape index: {}]
  %s2 = inlined_call_operand.vmem [shape: f32[1,32], index: 2, kind: input, shape index: {}]
  %s3 = inlined_call_operand.vmem [shape: bf16[32,16], index: 3, kind: input, shape index: {}]
  %s4 = inlined_call_operand.vmem [shape: f32[1,16], index: 4, kind: input, shape index: {}]
  %s5 = inlined_call_operand.vmem [shape: bf16[2,16], index: 5, kind: output, shape index: {}]
  %s6 = sld [smem:[#allocation0]]
  $region30: #{densenet_forward.36} parent=0
    _
  %s8 = ssub.s32 1, %s6
  %s9 = scalar_select 0, %s8, %s6
  // Predicated region
  $region2: #{densenet_forward.36} parent=0 // pred_check
    _
  $region3: #{densenet_forward.36} parent=0 // pred_check_branch
    %11 = sbr.rel (0) target = $region5
  $region4: #{densenet_forward.36} parent=0 // pred_region
    _
  $region5: #{densenet_forward.36} parent=0 // pred_fallthru
    _
  // Predicated region
  $region6: #{densenet_forward.36} parent=0 // pred_check
    _
  $region7: #{densenet_forward.36} parent=0 // pred_check_branch
    %13 = sbr.rel (0) target = $region9
  $region8: #{densenet_forward.36} parent=0 // pred_region
    _
  $region9: #{densenet_forward.36} parent=0 // pred_fallthru
    _
  // Predicated region
  $region10: #{densenet_forward.36} parent=0 // pred_check
    _
  $region11: #{densenet_forward.36} parent=0 // pred_check_branch
    %15 = sbr.rel (0) target = $region13
  $region12: #{densenet_forward.36} parent=0 // pred_region
    _
  $region13: #{densenet_forward.36} parent=0 // pred_fallthru
    _
  // Predicated region
  $region14: #{densenet_forward.36} parent=0 // pred_check
    _
  $region15: #{densenet_forward.36} parent=0 // pred_check_branch
    %17 = sbr.rel (0) target = $region17
  $region16: #{densenet_forward.36} parent=0 // pred_region
    _
  $region17: #{densenet_forward.36} parent=0 // pred_fallthru
    _
  // Predicated region
  $region18: #{densenet_forward.36} parent=0 // pred_check
    _
  $region19: #{densenet_forward.36} parent=0 // pred_check_branch
    %19 = sbr.rel (0) target = $region21
  $region20: #{densenet_forward.36} parent=0 // pred_region
    _
  $region21: #{densenet_forward.36} parent=0 // pred_fallthru
    _
  %v21 = vld [vmem:[%s0] sm:$0x1]
  %v22 = vunpack.c.l.bf16 %v21
  %v23 = vld [vmem:[%s1] sm:$0x1]
  %v25 = vlaneseq
  %v26 = vshrl.u32 %v25, 7
  %v27 = vsub.s32 0, %v26
  %v28 = vrot.slane %v23, %v27
  %v30 = vmul.f32 %v22, %v28
  %v31 = vld [vmem:[%s2] sm:$0x1]
  %v33 = vlaneseq
  %v34 = vshrl.u32 %v33, 7
  %v35 = vsub.s32 0, %v34
  %v36 = vrot.slane %v31, %v35
  %v38 = vadd.f32 %v30, %v36
  %v39 = vmax.f32 %v38, 0.0
  %v40 = vpack.c.bf16 %v39, %v39
  %v41 = vld [vmem:[%s3] sm:$0xf]
  %v42 = vld [vmem:[%s3 + $0x4] sm:$0xf]
  %v43 = vld [vmem:[%s3 + $0x8] sm:$0xf]
  %v44 = vld [vmem:[%s3 + $0xc] sm:$0xf]
  %v45 = vld [vmem:[%s4] sm:$0x1]
  %v47 = vlaneseq
  %v48 = vshrl.u32 %v47, 7
  %v49 = vsub.s32 0, %v48
  %v50 = vrot.slane %v45, %v49
  %v56 = vunpack.c.l.b16 %v41
  %v57 = vunpack.c.l.b16 %v42
  %v58 = vunpack.c.l.b16 %v43
  %v59 = vunpack.c.l.b16 %v44
  %v60 = vpack.c.b16 %v57, %v56
  %v61 = vpack.c.b16 %v59, %v58
  %vm64 = vcmask 261120
  %v66 = vsel %vm64, %v40, 0
  %68 = vmatprep.subr.bf16.mxu0 0
  %69 = vmatpush1.bf16.msra.mxu0 0
  %70 = vmatprep.subr.bf16.mxu0 0
  %71 = vmatpush1.bf16.msra.mxu0 0
  %72 = vmatprep.subr.bf16.mxu0 0
  %73 = vmatpush1.bf16.msra.mxu0 0
  %74 = vmatprep.subr.bf16.mxu0 0
  %75 = vmatpush1.bf16.msra.mxu0 0
  %76 = vmatprep.subr.bf16.mxu0 0
  %77 = vmatpush1.bf16.msra.mxu0 0
  %78 = vmatprep.subr.bf16.mxu0 0
  %79 = vmatpush1.bf16.msra.mxu0 0
  %80 = vmatprep.subr.bf16.mxu0 0
  %81 = vmatpush1.bf16.msra.mxu0 %v61
  %82 = vmatprep.subr.bf16.mxu0 0
  %83 = vmatpush1.bf16.msra.mxu0 %v60
  %84 = vmatprep.subr.bf16.mxu0 0
  %85 = vmatpush2.bf16.msra.mxu0 0
  %86 = vmatprep.subr.bf16.mxu0 0
  %87 = vmatpush2.bf16.msra.mxu0 0
  %88 = vmatprep.subr.bf16.mxu0 0
  %89 = vmatpush2.bf16.msra.mxu0 0
  %90 = vmatprep.subr.bf16.mxu0 0
  %91 = vmatpush2.bf16.msra.mxu0 0
  %92 = vmatprep.subr.bf16.mxu0 0
  %93 = vmatpush2.bf16.msra.mxu0 0
  %94 = vmatprep.subr.bf16.mxu0 0
  %95 = vmatpush2.bf16.msra.mxu0 0
  %96 = vmatprep.subr.bf16.mxu0 0
  %97 = vmatpush2.bf16.msra.mxu0 0
  %98 = vmatprep.subr.bf16.mxu0 0
  %99 = vmatpush2.bf16.msra.mxu0 0
  %100 = vmatprep.mubr.bf16.mxu0 0
  %101 = vmatmul.mubr.bf16.gmra.mxu0 %v66
  %v102 = vpop.f32.mrf.mxu0
  %v103 = vadd.f32 %v50, %v102
  %v104 = vpop.f32.mrf.mxu0
  %v105 = vpop.f32.mrf.mxu0
  %v106 = vpop.f32.mrf.mxu0
  %107 = vdwg.mxu0
  %v108 = vmax.f32 %v103, 0.0
  %v109 = vpack.c.bf16 %v108, %v108
  %vm110 = vcmask 122880
  %111 = vst.msk [vmem:[%s5] sm:$0x1] %vm110, %v109
  // Predicated region
  $region22: #{densenet_forward.36} parent=0 // pred_check
    _
  $region23: #{densenet_forward.36} parent=0 // pred_check_branch
    %113 = sbr.rel (0) target = $region25
  $region24: #{densenet_forward.36} parent=0 // pred_region
    _
  $region25: #{densenet_forward.36} parent=0 // pred_fallthru
    _
  // Predicated region
  $region26: #{densenet_forward.36} parent=0 // pred_check
    _
  $region27: #{densenet_forward.36} parent=0 // pred_check_branch
    %115 = sbr.rel (0) target = $region29
  $region28: #{densenet_forward.36} parent=0 // pred_region
    _
  $region29: #{densenet_forward.36} parent=0 // pred_fallthru
    _

// kernel: densenet_forward.37
$region0: #{densenet_forward.37}
  #allocation0 [shape = 'u32[]', space=smem, size = 0x4, offset = 0x4, fixed_abs, tag = 'smem constant byte address 0x4 - core index']
  #allocation1 [shape = 'u32[144,128]{1,0:T(1,128)}', space=vmem, size = 0x12000, scoped, tag = 'internal scratch']
  #allocation2 [shape = 'bf16[3,8,16]{2,1,0:T(8,128)(2,1)}', space=vmem, size = 0x1800, scoped, tag = 'scratch operand']
  %s0 = inlined_call_operand.vmem [shape: bf16[2,1,1,16], index: 0, kind: input, shape index: {}, may-alias: {0,1,2}]
  %s1 = inlined_call_operand.vmem [shape: bf16[2,1,1,16], index: 1, kind: input, shape index: {}, may-alias: {0,1,2}]
  %s2 = inlined_call_operand.vmem [shape: bf16[2,1,1,16], index: 2, kind: input, shape index: {}, may-alias: {0,1,2}]
  %s3 = inlined_call_operand.vmem [shape: bf16[3,16,24], index: 3, kind: input, shape index: {}]
  %s4 = inlined_call_operand.vmem [shape: bf16[2,1,1,8], index: 4, kind: output, shape index: {}]
  %s5 = sld [smem:[#allocation0]]
  $region49: #{densenet_forward.37} parent=0
    _
  %s7 = ssub.s32 1, %s5
  %s8 = scalar_select 0, %s7, %s5
  loop: start=0, step=1, limit=4
  $region2: #{densenet_forward.37} parent=0 // loop_pre_header
    _
  $region3: #{densenet_forward.37} parent=0 // loop_header
    %s10 = sphi 0, %s14
    %p11 = scmp.ge.s32.totalorder %s10, 4
    %s17 = sphi 0, %s29
    %s18 = sphi 0, %s25
    %s19 = sphi 0, %s17
    %s20 = sphi 0, %s18
    %s21 = sphi 0, %s19
    %s22 = sphi 0, %s20
    %s40 = sphi 0, %s42
    %s43 = sphi 0, %s40
    %s44 = sphi 0, %s43
    %s60 = sphi 0, %s44
    %s68 = sphi 0, %s70
    %s71 = sphi 0, %s68
    %s72 = sphi 0, %s71
    %s88 = sphi 0, %s72
    %s102 = sphi 0, %s104
    %s105 = sphi 0, %s102
    %s106 = sphi 0, %s105
    %s122 = sphi 0, %s106
    %s126 = sphi 0, %s126
    %s128 = sphi 0, %s126
    %s129 = sphi 0, %s128
    %s143 = sphi 0, %s129
    %s151 = sphi 0, %s153
    %s154 = sphi 0, %s151
    %s155 = sphi 0, %s154
    %s171 = sphi 0, %s155
  $region4: #{densenet_forward.37} parent=0 // loop_header_branch
    %13 = sbr.rel (%p11) target = $region8
  $region5: #{densenet_forward.37} parent=0 // loop_body
    %s15 = ssub.s32 %s10, 1
    %s16 = ssub.s32 %s10, 2
    %s23 = sadd.s32 1, %s18
    %p24 = scmp.ge.s32.totalorder %s23, 1
    %s25 = scalar_select %p24, 0, %s23
    %s26 = sadd.s32 1, %s17
    %s27 = scalar_select %p24, %s26, %s17
    %p28 = scmp.ge.s32.totalorder %s27, 2
    %s29 = scalar_select %p28, 0, %s27
    %s30 = sadd.s32 %s18, 4294967295
    %p31 = scmp.gt.s32.totalorder %s30, 0
    %s32 = scalar_select %p31, %s30, 0
    %s33 = sadd.s32 %s25, 4294967295
    %p34 = scmp.gt.s32.totalorder %s33, 0
    %s35 = scalar_select %p34, %s33, 0
    %s36 = ssub.s32 %s17, %s29
    %s37 = ssub.s32 %s32, %s35
    %s38 = sor.u32 %s36, %s37
    %p39 = scmp.eq.s32.totalorder %s38, 0
    %s41 = sadd.s32 %s40, 1
    %s42 = scalar_select %p39, %s40, %s41
    %p45 = pneg %p39
    %p46 = scmp.eq.s32.totalorder %s10, 1
    %p47 = por %p45, %p46
    %p48 = scmp.ne.s32.totalorder %s40, %s43
    %p49 = scmp.eq.s32.totalorder %s10, 0
    %p50 = por %p48, %p49
    %p51 = scmp.ne.s32.totalorder %s40, %s43
    %p52 = scmp.eq.s32.totalorder %s15, 1
    %p53 = por %p51, %p52
    %p54 = scmp.ne.s32.totalorder %s43, %s44
    %p55 = scmp.eq.s32.totalorder %s15, 0
    %p56 = por %p54, %p55
    %p57 = scmp.ne.s32.totalorder %s43, %s44
    %p58 = scmp.eq.s32.totalorder %s16, 1
    %p59 = por %p57, %p58
    %p61 = scmp.ne.s32.totalorder %s44, %s60
    %p62 = scmp.eq.s32.totalorder %s16, 0
    %p63 = por %p61, %p62
    %s64 = ssub.s32 %s17, %s29
    %s65 = ssub.s32 %s18, %s25
    %s66 = sor.u32 %s64, %s65
    %p67 = scmp.eq.s32.totalorder %s66, 0
    %s69 = sadd.s32 %s68, 1
    %s70 = scalar_select %p67, %s68, %s69
    %p73 = pneg %p67
    %p74 = scmp.eq.s32.totalorder %s10, 1
    %p75 = por %p73, %p74
    %p76 = scmp.ne.s32.totalorder %s68, %s71
    %p77 = scmp.eq.s32.totalorder %s10, 0
    %p78 = por %p76, %p77
    %p79 = scmp.ne.s32.totalorder %s68, %s71
    %p80 = scmp.eq.s32.totalorder %s15, 1
    %p81 = por %p79, %p80
    %p82 = scmp.ne.s32.totalorder %s71, %s72
    %p83 = scmp.eq.s32.totalorder %s15, 0
    %p84 = por %p82, %p83
    %p85 = scmp.ne.s32.totalorder %s71, %s72
    %p86 = scmp.eq.s32.totalorder %s16, 1
    %p87 = por %p85, %p86
    %p89 = scmp.ne.s32.totalorder %s72, %s88
    %p90 = scmp.eq.s32.totalorder %s16, 0
    %p91 = por %p89, %p90
    %s92 = sadd.s32 %s18, 1
    %p93 = scmp.lt.s32.totalorder %s92, 0
    %s94 = scalar_select %p93, %s92, 0
    %s95 = sadd.s32 %s25, 1
    %p96 = scmp.lt.s32.totalorder %s95, 0
    %s97 = scalar_select %p96, %s95, 0
    %s98 = ssub.s32 %s17, %s29
    %s99 = ssub.s32 %s94, %s97
    %s100 = sor.u32 %s98, %s99
    %p101 = scmp.eq.s32.totalorder %s100, 0
    %s103 = sadd.s32 %s102, 1
    %s104 = scalar_select %p101, %s102, %s103
    %p107 = pneg %p101
    %p108 = scmp.eq.s32.totalorder %s10, 1
    %p109 = por %p107, %p108
    %p110 = scmp.ne.s32.totalorder %s102, %s105
    %p111 = scmp.eq.s32.totalorder %s10, 0
    %p112 = por %p110, %p111
    %p113 = scmp.ne.s32.totalorder %s102, %s105
    %p114 = scmp.eq.s32.totalorder %s15, 1
    %p115 = por %p113, %p114
    %p116 = scmp.ne.s32.totalorder %s105, %s106
    %p117 = scmp.eq.s32.totalorder %s15, 0
    %p118 = por %p116, %p117
    %p119 = scmp.ne.s32.totalorder %s105, %s106
    %p120 = scmp.eq.s32.totalorder %s16, 1
    %p121 = por %p119, %p120
    %p123 = scmp.ne.s32.totalorder %s106, %s122
    %p124 = scmp.eq.s32.totalorder %s16, 0
    %p125 = por %p123, %p124
    %s127 = sadd.s32 %s126, 1
    %p130 = scmp.eq.s32.totalorder %s10, 1
    %p131 = scmp.ne.s32.totalorder %s126, %s128
    %p132 = scmp.eq.s32.totalorder %s10, 0
    %p133 = por %p131, %p132
    %p134 = scmp.ne.s32.totalorder %s126, %s128
    %p135 = scmp.eq.s32.totalorder %s15, 1
    %p136 = por %p134, %p135
    %p137 = scmp.ne.s32.totalorder %s128, %s129
    %p138 = scmp.eq.s32.totalorder %s15, 0
    %p139 = por %p137, %p138
    %p140 = scmp.ne.s32.totalorder %s128, %s129
    %p141 = scmp.eq.s32.totalorder %s16, 1
    %p142 = por %p140, %p141
    %p144 = scmp.ne.s32.totalorder %s129, %s143
    %p145 = scmp.eq.s32.totalorder %s16, 0
    %p146 = por %p144, %p145
    %s147 = ssub.s32 %s17, %s29
    %s148 = ssub.s32 %s18, %s25
    %s149 = sor.u32 %s147, %s148
    %p150 = scmp.eq.s32.totalorder %s149, 0
    %s152 = sadd.s32 %s151, 1
    %s153 = scalar_select %p150, %s151, %s152
    %p156 = pneg %p150
    %p157 = scmp.eq.s32.totalorder %s10, 1
    %p158 = por %p156, %p157
    %p159 = scmp.ne.s32.totalorder %s151, %s154
    %p160 = scmp.eq.s32.totalorder %s10, 0
    %p161 = por %p159, %p160
    %p162 = scmp.ne.s32.totalorder %s151, %s154
    %p163 = scmp.eq.s32.totalorder %s15, 1
    %p164 = por %p162, %p163
    %p165 = scmp.ne.s32.totalorder %s154, %s155
    %p166 = scmp.eq.s32.totalorder %s15, 0
    %p167 = por %p165, %p166
    %p168 = scmp.ne.s32.totalorder %s154, %s155
    %p169 = scmp.eq.s32.totalorder %s16, 1
    %p170 = por %p168, %p169
    %p172 = scmp.ne.s32.totalorder %s155, %s171
    %p173 = scmp.eq.s32.totalorder %s16, 0
    %p174 = por %p172, %p173
    %p175 = scmp.le.s32.totalorder 1, %s10
    %p176 = scmp.lt.s32.totalorder %s10, 3
    %p177 = pnand %p175, %p176
    %p178 = pneg %p177
    // Predicated region
    $region9: #{densenet_forward.37} parent=5 // pred_check
      _
    $region10: #{densenet_forward.37} parent=5 // pred_check_branch
      %180 = sbr.rel (%p177) target = $region12
    $region11: #{densenet_forward.37} parent=5 // pred_region
      %s181 = ssub.s32 %s10, 1
      // Predicated region
      $region13: #{densenet_forward.37} parent=11 // pred_check
        %p182 = pneg %p139
      $region14: #{densenet_forward.37} parent=11 // pred_check_branch
        %184 = sbr.rel (%p182) target = $region16
      $region15: #{densenet_forward.37} parent=11 // pred_region
        _
      $region16: #{densenet_forward.37} parent=11 // pred_fallthru
        _
    $region12: #{densenet_forward.37} parent=5 // pred_fallthru
      _
    %p185 = scmp.lt.s32.totalorder %s10, 2
    // Predicated region
    $region17: #{densenet_forward.37} parent=5 // pred_check
      %p186 = pneg %p185
    $region18: #{densenet_forward.37} parent=5 // pred_check_branch
      %188 = sbr.rel (%p186) target = $region20
    $region19: #{densenet_forward.37} parent=5 // pred_region
      // Predicated region
      $region21: #{densenet_forward.37} parent=19 // pred_check
        %p189 = pneg %p50
      $region22: #{densenet_forward.37} parent=19 // pred_check_branch
        %191 = sbr.rel (%p189) target = $region24
      $region23: #{densenet_forward.37} parent=19 // pred_region
        %s192 = sadd.s32 %s18, 4294967295
        %p193 = scmp.gt.s32.totalorder %s192, 0
        %s194 = scalar_select %p193, %s192, 0
        %p195 = scmp.lt.s32.totalorder %s17, 1
        %s196 = scalar_select %p195, %s17, 1
        %p197 = scmp.lt.s32.totalorder %s194, 0
        %s198 = scalar_select %p197, %s194, 0
        %s199 = sadd.s32 %s198, %s196
        %s200 = scalar_lea.vmem %s0, %s199
        %s201 = sadd.s32 %s18, 4294967295
        %p202 = scmp.gt.s32.totalorder %s201, 0
        %s203 = scalar_select %p202, %s201, 0
      $region24: #{densenet_forward.37} parent=19 // pred_fallthru
        _
      // Predicated region
      $region25: #{densenet_forward.37} parent=19 // pred_check
        %p204 = pneg %p78
      $region26: #{densenet_forward.37} parent=19 // pred_check_branch
        %206 = sbr.rel (%p204) target = $region28
      $region27: #{densenet_forward.37} parent=19 // pred_region
        %p207 = scmp.lt.s32.totalorder %s17, 1
        %s208 = scalar_select %p207, %s17, 1
        %p209 = scmp.lt.s32.totalorder %s18, 0
        %s210 = scalar_select %p209, %s18, 0
        %s211 = sadd.s32 %s210, %s208
        %s212 = scalar_lea.vmem %s1, %s211
      $region28: #{densenet_forward.37} parent=19 // pred_fallthru
        _
      // Predicated region
      $region29: #{densenet_forward.37} parent=19 // pred_check
        %p213 = pneg %p112
      $region30: #{densenet_forward.37} parent=19 // pred_check_branch
        %215 = sbr.rel (%p213) target = $region32
      $region31: #{densenet_forward.37} parent=19 // pred_region
        %s216 = sadd.s32 %s18, 1
        %p217 = scmp.lt.s32.totalorder %s216, 0
        %s218 = scalar_select %p217, %s216, 0
        %p219 = scmp.lt.s32.totalorder %s17, 1
        %s220 = scalar_select %p219, %s17, 1
        %p221 = scmp.lt.s32.totalorder %s218, 0
        %s222 = scalar_select %p221, %s218, 0
        %s223 = sadd.s32 %s222, %s220
        %s224 = scalar_lea.vmem %s2, %s223
        %s225 = sadd.s32 %s18, 1
        %p226 = scmp.lt.s32.totalorder %s225, 0
        %s227 = scalar_select %p226, %s225, 0
      $region32: #{densenet_forward.37} parent=19 // pred_fallthru
        _
    $region20: #{densenet_forward.37} parent=5 // pred_fallthru
      _
    %p228 = scmp.le.s32.totalorder 1, %s10
    %p229 = scmp.lt.s32.totalorder %s10, 3
    %p230 = pnand %p228, %p229
    %p231 = pneg %p230
    // Predicated region
    $region33: #{densenet_forward.37} parent=5 // pred_check
      _
    $region34: #{densenet_forward.37} parent=5 // pred_check_branch
      %233 = sbr.rel (%p230) target = $region36
    $region35: #{densenet_forward.37} parent=5 // pred_region
      %s234 = ssub.s32 %s10, 1
      %s235 = sadd.s32 %s20, 4294967295
      %p236 = scmp.gt.s32.totalorder %s235, 0
      %s237 = scalar_select %p236, %s235, 0
      %p238 = scmp.lt.s32.totalorder %s19, 1
      %s239 = scalar_select %p238, %s19, 1
      %p240 = scmp.lt.s32.totalorder %s237, 0
      %s241 = scalar_select %p240, %s237, 0
      %s242 = sadd.s32 %s241, %s239
      %s243 = scalar_lea.vmem %s0, %s242
      %p244 = pneg %p56
      %p245 = pneg %p53
      %p246 = scmp.lt.s32.totalorder %s19, 1
      %s247 = scalar_select %p246, %s19, 1
      %p248 = scmp.lt.s32.totalorder %s20, 0
      %s249 = scalar_select %p248, %s20, 0
      %s250 = sadd.s32 %s249, %s247
      %s251 = scalar_lea.vmem %s1, %s250
      %p252 = pneg %p84
      %p253 = pneg %p81
      %s254 = sadd.s32 %s20, 1
      %p255 = scmp.lt.s32.totalorder %s254, 0
      %s256 = scalar_select %p255, %s254, 0
      %p257 = scmp.lt.s32.totalorder %s19, 1
      %s258 = scalar_select %p257, %s19, 1
      %p259 = scmp.lt.s32.totalorder %s256, 0
      %s260 = scalar_select %p259, %s256, 0
      %s261 = sadd.s32 %s260, %s258
      %s262 = scalar_lea.vmem %s2, %s261
      %p263 = pneg %p118
      %p264 = pneg %p115
      %p265 = pneg %p139
      %p266 = pneg %p136
      %p267 = pneg %p167
      %p268 = pneg %p164
      %p269 = scmp.lt.s32.totalorder %s19, 1
      %s270 = scalar_select %p269, %s19, 1
      %p271 = scmp.lt.s32.totalorder %s20, 0
      %s272 = scalar_select %p271, %s20, 0
      %s273 = sadd.s32 %s272, %s270
      %s274 = scalar_lea.vmem %s4, %s273
      %s275 = sadd.s32 %s20, 4294967295
      %p276 = scmp.gt.s32.totalorder %s275, 0
      %s277 = scalar_select %p276, %s275, 0
      %p278 = scmp.lt.s32.totalorder %s19, 1
      %s279 = scalar_select %p278, %s19, 1
      %p280 = scmp.lt.s32.totalorder %s277, 0
      %s281 = scalar_select %p280, %s277, 0
      %s282 = sadd.s32 %s281, %s279
      %s283 = scalar_lea.vmem %s0, %s282
      %s284 = sadd.s32 %s20, 4294967295
      %p285 = scmp.gt.s32.totalorder %s284, 0
      %s286 = scalar_select %p285, %s284, 0
      %p287 = scmp.lt.s32.totalorder %s19, 1
      %s288 = scalar_select %p287, %s19, 1
      %p289 = scmp.lt.s32.totalorder %s20, 0
      %s290 = scalar_select %p289, %s20, 0
      %s291 = sadd.s32 %s290, %s288
      %s292 = scalar_lea.vmem %s1, %s291
      %s293 = sadd.s32 %s20, 1
      %p294 = scmp.lt.s32.totalorder %s293, 0
      %s295 = scalar_select %p294, %s293, 0
      %p296 = scmp.lt.s32.totalorder %s19, 1
      %s297 = scalar_select %p296, %s19, 1
      %p298 = scmp.lt.s32.totalorder %s295, 0
      %s299 = scalar_select %p298, %s295, 0
      %s300 = sadd.s32 %s299, %s297
      %s301 = scalar_lea.vmem %s2, %s300
      %s302 = sadd.s32 %s20, 1
      %p303 = scmp.lt.s32.totalorder %s302, 0
      %s304 = scalar_select %p303, %s302, 0
      %p305 = scmp.lt.s32.totalorder %s19, 1
      %s306 = scalar_select %p305, %s19, 1
      %p307 = scmp.lt.s32.totalorder %s20, 0
      %s308 = scalar_select %p307, %s20, 0
      %s309 = sadd.s32 %s308, %s306
      %s310 = scalar_lea.vmem %s4, %s309
      %vm313 = vcmask 125952
      %vm314 = vsmask.f32 7938
      %vm315 = vmand %vm313, %vm314
      %v316 = vld [vmem:[#allocation2] sm:$0xf]
      %v317 = vsel %vm315, 0, %v316
      %318 = vst [vmem:[#allocation2] sm:$0xf] %v317
      %v319 = vld [vmem:[#allocation2 + $0x4] sm:$0xf]
      %v320 = vsel %vm315, 0, %v319
      %321 = vst [vmem:[#allocation2 + $0x4] sm:$0xf] %v320
      %v322 = vld [vmem:[#allocation2 + $0x8] sm:$0xf]
      %v323 = vsel %vm315, 0, %v322
      %324 = vst [vmem:[#allocation2 + $0x8] sm:$0xf] %v323
      %v325 = vld [vmem:[%s292] sm:$0x1]
      %s326 = scalar_lea.vmem [#allocation2], 4
      %vm327 = vcmask 122880
      %vm328 = vsmask.f32 256
      %vm329 = vmand %vm327, %vm328
      %v330 = vld [vmem:[%s326] sm:$0x1]
      %v331 = vsel %vm329, %v325, %v330
      %332 = vst [vmem:[%s326] sm:$0x1] %v331
      %v333 = vld [vmem:[%s283] sm:$0x1]
      %s334 = sadd.s32 %s20, 4294967295
      %p335 = scmp.ge.s32.totalorder %s334, 0
      %s336 = scalar_select %p335, 1, 0
      %v337 = vstv %s336
      %vm338 = vcmp.eq.s32.totalorder %v337, 1
      %v339 = vsel %vm338, 1, 0
      %v340 = vpack.c.b16 %v339, %v339
      %vm341 = vcmp.ne.s16.totalorder %v340, 0
      %v342 = vsel %vm341, %v333, 0
      %v343 = vld [vmem:[#allocation2] sm:$0x1]
      %v344 = vsel %vm329, %v342, %v343
      %345 = vst [vmem:[#allocation2] sm:$0x1] %v344
      %v346 = vld [vmem:[%s301] sm:$0x1]
      %s347 = sadd.s32 %s20, 1
      %p348 = scmp.lt.s32.totalorder %s347, 1
      %s349 = scalar_select %p348, 1, 0
      %v350 = vstv %s349
      %vm351 = vcmp.eq.s32.totalorder %v350, 1
      %v352 = vsel %vm351, 1, 0
      %v353 = vpack.c.b16 %v352, %v352
      %vm354 = vcmp.ne.s16.totalorder %v353, 0
      %v355 = vsel %vm354, %v346, 0
      %s356 = scalar_lea.vmem [#allocation2], 8
      %v357 = vld [vmem:[%s356] sm:$0x1]
      %v358 = vsel %vm329, %v355, %v357
      %359 = vst [vmem:[%s356] sm:$0x1] %v358
      %v360 = vld [vmem:[#allocation2] sm:$0xf]
      %v361 = vld [vmem:[%s3] sm:$0xf]
      %v362 = vld [vmem:[%s3 + $0x4] sm:$0xf]
      %v363 = vld [vmem:[%s326] sm:$0xf]
      %s364 = scalar_lea.vmem %s3, 8
      %v365 = vld [vmem:[%s364] sm:$0xf]
      %v366 = vld [vmem:[%s364 + $0x4] sm:$0xf]
      %v369 = vunpack.c.l.b16 %v365
      %v370 = vunpack.c.l.b16 %v366
      %v371 = vpack.c.b16 %v370, %v369
      %vm373 = vcmask 130048
      %v375 = vsel %vm373, %v363, 0
      %377 = vmatprep.subr.bf16.mxu0 0
      %378 = vmatpush1.bf16.msra.mxu0 0
      %379 = vmatprep.subr.bf16.mxu0 0
      %380 = vmatpush1.bf16.msra.mxu0 0
      %381 = vmatprep.subr.bf16.mxu0 0
      %382 = vmatpush1.bf16.msra.mxu0 0
      %383 = vmatprep.subr.bf16.mxu0 0
      %384 = vmatpush1.bf16.msra.mxu0 0
      %385 = vmatprep.subr.bf16.mxu0 0
      %386 = vmatpush1.bf16.msra.mxu0 0
      %387 = vmatprep.subr.bf16.mxu0 0
      %388 = vmatpush1.bf16.msra.mxu0 0
      %389 = vmatprep.subr.bf16.mxu0 0
      %390 = vmatpush1.bf16.msra.mxu0 0
      %391 = vmatprep.subr.bf16.mxu0 0
      %392 = vmatpush1.bf16.msra.mxu0 %v371
      %393 = vmatprep.subr.bf16.mxu0 0
      %394 = vmatpush2.bf16.msra.mxu0 0
      %395 = vmatprep.subr.bf16.mxu0 0
      %396 = vmatpush2.bf16.msra.mxu0 0
      %397 = vmatprep.subr.bf16.mxu0 0
      %398 = vmatpush2.bf16.msra.mxu0 0
      %399 = vmatprep.subr.bf16.mxu0 0
      %400 = vmatpush2.bf16.msra.mxu0 0
      %401 = vmatprep.subr.bf16.mxu0 0
      %402 = vmatpush2.bf16.msra.mxu0 0
      %403 = vmatprep.subr.bf16.mxu0 0
      %404 = vmatpush2.bf16.msra.mxu0 0
      %405 = vmatprep.subr.bf16.mxu0 0
      %406 = vmatpush2.bf16.msra.mxu0 0
      %407 = vmatprep.subr.bf16.mxu0 0
      %408 = vmatpush2.bf16.msra.mxu0 0
      %409 = vmatprep.mubr.bf16.mxu0 0
      %410 = vmatmul.mubr.bf16.gmra.mxu0 %v375
      %v411 = vpop.f32.mrf.mxu0
      %v412 = vadd.f32 0.0, %v411
      %v413 = vpop.f32.mrf.mxu0
      %v414 = vpop.f32.mrf.mxu0
      %v415 = vpop.f32.mrf.mxu0
      %416 = vdwg.mxu0
      %v419 = vunpack.c.l.b16 %v361
      %v420 = vunpack.c.l.b16 %v362
      %v421 = vpack.c.b16 %v420, %v419
      %v424 = vsel %vm373, %v360, 0
      %426 = vmatprep.subr.bf16.mxu0 0
      %427 = vmatpush1.bf16.msra.mxu0 0
      %428 = vmatprep.subr.bf16.mxu0 0
      %429 = vmatpush1.bf16.msra.mxu0 0
      %430 = vmatprep.subr.bf16.mxu0 0
      %431 = vmatpush1.bf16.msra.mxu0 0
      %432 = vmatprep.subr.bf16.mxu0 0
      %433 = vmatpush1.bf16.msra.mxu0 0
      %434 = vmatprep.subr.bf16.mxu0 0
      %435 = vmatpush1.bf16.msra.mxu0 0
      %436 = vmatprep.subr.bf16.mxu0 0
      %437 = vmatpush1.bf16.msra.mxu0 0
      %438 = vmatprep.subr.bf16.mxu0 0
      %439 = vmatpush1.bf16.msra.mxu0 0
      %440 = vmatprep.subr.bf16.mxu0 0
      %441 = vmatpush1.bf16.msra.mxu0 %v421
      %442 = vmatprep.subr.bf16.mxu0 0
      %443 = vmatpush2.bf16.msra.mxu0 0
      %444 = vmatprep.subr.bf16.mxu0 0
      %445 = vmatpush2.bf16.msra.mxu0 0
      %446 = vmatprep.subr.bf16.mxu0 0
      %447 = vmatpush2.bf16.msra.mxu0 0
      %448 = vmatprep.subr.bf16.mxu0 0
      %449 = vmatpush2.bf16.msra.mxu0 0
      %450 = vmatprep.subr.bf16.mxu0 0
      %451 = vmatpush2.bf16.msra.mxu0 0
      %452 = vmatprep.subr.bf16.mxu0 0
      %453 = vmatpush2.bf16.msra.mxu0 0
      %454 = vmatprep.subr.bf16.mxu0 0
      %455 = vmatpush2.bf16.msra.mxu0 0
      %456 = vmatprep.subr.bf16.mxu0 0
      %457 = vmatpush2.bf16.msra.mxu0 0
      %458 = vmatprep.mubr.bf16.mxu0 0
      %459 = vmatmul.mubr.bf16.gmra.mxu0 %v424
      %v460 = vpop.f32.mrf.mxu0
      %v461 = vadd.f32 %v412, %v460
      %v462 = vpop.f32.mrf.mxu0
      %v463 = vpop.f32.mrf.mxu0
      %v464 = vpop.f32.mrf.mxu0
      %465 = vdwg.mxu0
      %v466 = vld [vmem:[%s356] sm:$0xf]
      %s467 = scalar_lea.vmem %s3, 16
      %v468 = vld [vmem:[%s467] sm:$0xf]
      %v469 = vld [vmem:[%s467 + $0x4] sm:$0xf]
      %v472 = vunpack.c.l.b16 %v468
      %v473 = vunpack.c.l.b16 %v469
      %v474 = vpack.c.b16 %v473, %v472
      %v477 = vsel %vm373, %v466, 0
      %479 = vmatprep.subr.bf16.mxu0 0
      %480 = vmatpush1.bf16.msra.mxu0 0
      %481 = vmatprep.subr.bf16.mxu0 0
      %482 = vmatpush1.bf16.msra.mxu0 0
      %483 = vmatprep.subr.bf16.mxu0 0
      %484 = vmatpush1.bf16.msra.mxu0 0
      %485 = vmatprep.subr.bf16.mxu0 0
      %486 = vmatpush1.bf16.msra.mxu0 0
      %487 = vmatprep.subr.bf16.mxu0 0
      %488 = vmatpush1.bf16.msra.mxu0 0
      %489 = vmatprep.subr.bf16.mxu0 0
      %490 = vmatpush1.bf16.msra.mxu0 0
      %491 = vmatprep.subr.bf16.mxu0 0
      %492 = vmatpush1.bf16.msra.mxu0 0
      %493 = vmatprep.subr.bf16.mxu0 0
      %494 = vmatpush1.bf16.msra.mxu0 %v474
      %495 = vmatprep.subr.bf16.mxu0 0
      %496 = vmatpush2.bf16.msra.mxu0 0
      %497 = vmatprep.subr.bf16.mxu0 0
      %498 = vmatpush2.bf16.msra.mxu0 0
      %499 = vmatprep.subr.bf16.mxu0 0
      %500 = vmatpush2.bf16.msra.mxu0 0
      %501 = vmatprep.subr.bf16.mxu0 0
      %502 = vmatpush2.bf16.msra.mxu0 0
      %503 = vmatprep.subr.bf16.mxu0 0
      %504 = vmatpush2.bf16.msra.mxu0 0
      %505 = vmatprep.subr.bf16.mxu0 0
      %506 = vmatpush2.bf16.msra.mxu0 0
      %507 = vmatprep.subr.bf16.mxu0 0
      %508 = vmatpush2.bf16.msra.mxu0 0
      %509 = vmatprep.subr.bf16.mxu0 0
      %510 = vmatpush2.bf16.msra.mxu0 0
      %511 = vmatprep.mubr.bf16.mxu0 0
      %512 = vmatmul.mubr.bf16.gmra.mxu0 %v477
      %v513 = vpop.f32.mrf.mxu0
      %v514 = vadd.f32 0.0, %v513
      %v515 = vpop.f32.mrf.mxu0
      %v516 = vpop.f32.mrf.mxu0
      %v517 = vpop.f32.mrf.mxu0
      %518 = vdwg.mxu0
      %v519 = vadd.f32 %v461, %v514
      %v520 = vrot.slane %v519, 7
      %522 = vrot.lane.b32.xlu0 %v520, 8
      %v523 = vpop.permute.xlu0 %522
      %v525 = vadd.f32 %v519, %v523
      %527 = vrot.lane.b32.xlu0 %v519, 112
      %v528 = vpop.permute.xlu0 %527
      %v530 = vrot.slane %v528, 1
      %532 = vrot.lane.b32.xlu0 %v530, 8
      %v533 = vpop.permute.xlu0 %532
      %v535 = vadd.f32 %v525, %v533
      %v536 = vpack.c.bf16 %v535, %v535
      %v539 = vunpack.c.l.s4 1966171168
      %v540 = vunpack.c.0.s8 %v539
      %v541 = vlaneseq
      %v542 = vshrl.u32 %v541, 7
      %v543 = vsub.s32 %v540, %v542
      %v544 = vrot.slane %v536, %v543
      %v546 = vunpack.c.l.s4 1966171168
      %v547 = vunpack.c.0.s8 %v546
      %v548 = vlaneseq
      %v549 = vshrl.u32 %v548, 7
      %v550 = vsub.s32 %v547, %v549
      %v551 = vrot.slane %v544, %v550
      %552 = vrot.lane.b32.xlu0 %v551, 120
      %v553 = vpop.permute.xlu0 %552
      %vm555 = vcmask 57344
      %vm556 = vmand %vm555, %vm328
      %v557 = vld [vmem:[%s310] sm:$0x1]
      %v558 = vsel %vm556, %v553, %v557
      %559 = vst [vmem:[%s310] sm:$0x1] %v558
      %p560 = scmp.lt.s32.totalorder %s19, 1
      %s561 = scalar_select %p560, %s19, 1
      %p562 = scmp.lt.s32.totalorder %s20, 0
      %s563 = scalar_select %p562, %s20, 0
      %s564 = sadd.s32 %s563, %s561
      %s565 = scalar_lea.vmem %s4, %s564
      // Predicated region
      $region37: #{densenet_forward.37} parent=35 // pred_check
        %p566 = pneg %p164
      $region38: #{densenet_forward.37} parent=35 // pred_check_branch
        %568 = sbr.rel (%p566) target = $region40
      $region39: #{densenet_forward.37} parent=35 // pred_region
        _
      $region40: #{densenet_forward.37} parent=35 // pred_fallthru
        _
    $region36: #{densenet_forward.37} parent=5 // pred_fallthru
      _
    %p569 = scmp.le.s32.totalorder 2, %s10
    // Predicated region
    $region41: #{densenet_forward.37} parent=5 // pred_check
      %p570 = pneg %p569
    $region42: #{densenet_forward.37} parent=5 // pred_check_branch
      %572 = sbr.rel (%p570) target = $region44
    $region43: #{densenet_forward.37} parent=5 // pred_region
      %s573 = ssub.s32 %s10, 2
      // Predicated region
      $region45: #{densenet_forward.37} parent=43 // pred_check
        %p574 = pneg %p170
      $region46: #{densenet_forward.37} parent=43 // pred_check_branch
        %576 = sbr.rel (%p574) target = $region48
      $region47: #{densenet_forward.37} parent=43 // pred_region
        %p577 = scmp.lt.s32.totalorder %s21, 1
        %s578 = scalar_select %p577, %s21, 1
        %p579 = scmp.lt.s32.totalorder %s22, 0
        %s580 = scalar_select %p579, %s22, 0
        %s581 = sadd.s32 %s580, %s578
        %s582 = scalar_lea.vmem %s4, %s581
      $region48: #{densenet_forward.37} parent=43 // pred_fallthru
        _
    $region44: #{densenet_forward.37} parent=5 // pred_fallthru
      _
  $region6: #{densenet_forward.37} parent=0 // loop_footer
    %s14 = sadd.s32 1, %s10
  $region7: #{densenet_forward.37} parent=0 // loop_footer_branch
    %9 = sbr.rel target = $region3
  $region8: #{densenet_forward.37} parent=0 // loop_exit
    _

</llo_original>
